<compile_context>
chip_gen: v7x
topology: tpu7x:2x2x1
jax: 0.10.0
libtpu: 0.0.40
codegen_flags: <defaults>
</compile_context>

<pallas_src>
import functools
import math

import jax
import jax.numpy as jnp
from jax import lax
from jax.experimental import pallas as pl
from jax.experimental.pallas import tpu as pltpu

CHANNELS = 128          # fixed by linear_h: 44 -> 128
HEADS = 4
HEAD_DIM = CHANNELS // HEADS
NUM_LAYERS = 2
BN_EPS = 1e-5
# eval-mode BatchNorm1d with default stats (mean=0, var=1, gamma=1, beta=0)
BN_SCALE = 1.0 / math.sqrt(1.0 + BN_EPS)


# ----------------------------- Pallas kernels ------------------------------

def _embed_kernel(xin_ref, w_ref, b_ref, h_ref):
    """h = [x | pe] @ W_in + b_in  (linear_h + embedding_lap_pos_enc fused)."""
    h_ref[...] = (jnp.dot(xin_ref[...], w_ref[...],
                          preferred_element_type=jnp.float32) + b_ref[...])


def embed_nodes(xin, w_in, b_in):
    n = xin.shape[0]
    return pl.pallas_call(
        _embed_kernel,
        grid=(1,),
        out_shape=jax.ShapeDtypeStruct((n, CHANNELS), jnp.float32),
        in_specs=[pl.BlockSpec(xin.shape, lambda i: (0, 0)),
                  pl.BlockSpec(w_in.shape, lambda i: (0, 0)),
                  pl.BlockSpec(b_in.shape, lambda i: (0, 0))],
        out_specs=pl.BlockSpec((n, CHANNELS), lambda i: (0, 0)),
    )(xin, w_in, b_in)


def _gps_layer_kernel(src_ref, dst_ref,                 # scalar prefetch (SMEM, int32)
                      x_ref, ea_ref, we_ref, be_ref,
                      gw1_ref, gb1_ref, gw2_ref, gb2_ref,
                      wqkv_ref, bqkv_ref, wo_ref, bo_ref,
                      wm1_ref, bm1_ref, wm2_ref, bm2_ref,
                      o_ref,
                      eattr_ref, aggr_ref, attn_ref,    # VMEM scratch
                      *, heads, num_graphs, seq):
    """One full GPSConv layer, fused.  BN scales / q-scale are pre-folded into
    gw2/gb2, wo/bo, wm1.., wqkv (see init_params)."""
    x = x_ref[...]                                      # (N, C)
    n, c = x.shape
    num_edges = ea_ref.shape[0]
    d = c // heads
    xs = x * BN_SCALE                                   # shared scaled residual

    # ---- edge embedding (linear_e) recomputed in-kernel from (E,10) input ----
    eattr_ref[...] = (jnp.dot(ea_ref[...], we_ref[...],
                              preferred_element_type=jnp.float32) + be_ref[...])

    # ---- GINE aggregation: aggr = x + scatter_dst( relu(x[src] + e) ), eps=0 --
    # True gather/scatter via dynamic row slices + SMEM indices (no one-hot matmul).
    aggr_ref[...] = x

    @pl.loop(0, num_edges)
    def _(i):
        s = src_ref[i]
        t = dst_ref[i]
        msg = jnp.maximum(x_ref[pl.ds(s, 1), :] + eattr_ref[pl.ds(i, 1), :], 0.0)
        aggr_ref[pl.ds(t, 1), :] = aggr_ref[pl.ds(t, 1), :] + msg

    # ---- GIN MLP + residual + BatchNorm (scale folded into gw2/gb2) ----------
    g1 = jnp.maximum(jnp.dot(aggr_ref[...], gw1_ref[...],
                             preferred_element_type=jnp.float32) + gb1_ref[...], 0.0)
    h_local = (jnp.dot(g1, gw2_ref[...], preferred_element_type=jnp.float32)
               + gb2_ref[...] + xs)

    # ---- global branch: QKV projection hoisted over ALL nodes (one MXU call) --
    qkv = (jnp.dot(x, wqkv_ref[...], preferred_element_type=jnp.float32)
           + bqkv_ref[...])                             # (N, 3C); q pre-scaled 1/sqrt(d)
    for g in range(num_graphs):                         # only (S,S) work per graph
        r0 = g * seq
        qg = qkv[r0:r0 + seq, 0 * c:1 * c]
        kg = qkv[r0:r0 + seq, 1 * c:2 * c]
        vg = qkv[r0:r0 + seq, 2 * c:3 * c]
        outs = []
        for hh in range(heads):
            q = qg[:, hh * d:(hh + 1) * d]
            k = kg[:, hh * d:(hh + 1) * d]
            v = vg[:, hh * d:(hh + 1) * d]
            sc = lax.dot_general(q, k, (((1,), (1,)), ((), ())),
                                 preferred_element_type=jnp.float32)
            sc = sc - jnp.max(sc, axis=-1, keepdims=True)
            p = jnp.exp(sc)
            p = p / jnp.sum(p, axis=-1, keepdims=True)
            outs.append(jnp.dot(p, v, preferred_element_type=jnp.float32))
        attn_ref[r0:r0 + seq, :] = jnp.concatenate(outs, axis=-1)

    # attn out-projection over all nodes (BN scale folded into wo/bo) + residual
    h_attn = (jnp.dot(attn_ref[...], wo_ref[...], preferred_element_type=jnp.float32)
              + bo_ref[...] + xs)

    # ---- combine branches, feed-forward MLP, final BatchNorm -----------------
    out = h_local + h_attn
    m = jnp.maximum(jnp.dot(out, wm1_ref[...],
                            preferred_element_type=jnp.float32) + bm1_ref[...], 0.0)
    m = jnp.dot(m, wm2_ref[...], preferred_element_type=jnp.float32) + bm2_ref[...]
    o_ref[...] = out * BN_SCALE + m


def gps_layer(x, src, dst, edge_attr, num_graphs, p):
    n, c = x.shape
    e, fe = edge_attr.shape
    seq = n // num_graphs

    def fs(shape):
        return pl.BlockSpec(shape, lambda i, *_: (0,) * len(shape))

    kernel = functools.partial(_gps_layer_kernel, heads=HEADS,
                               num_graphs=num_graphs, seq=seq)
    return pl.pallas_call(
        kernel,
        grid_spec=pltpu.PrefetchScalarGridSpec(
            num_scalar_prefetch=2,
            grid=(1,),
            in_specs=[fs((n, c)), fs((e, fe)), fs((fe, c)), fs((1, c)),
                      fs((c, c)), fs((1, c)), fs((c, c)), fs((1, c)),
                      fs((c, 3 * c)), fs((1, 3 * c)), fs((c, c)), fs((1, c)),
                      fs((c, 2 * c)), fs((1, 2 * c)), fs((2 * c, c)), fs((1, c))],
            out_specs=fs((n, c)),
            scratch_shapes=[pltpu.VMEM((e, c), jnp.float32),   # edge embedding
                            pltpu.VMEM((n, c), jnp.float32),   # GINE accumulator
                            pltpu.VMEM((n, c), jnp.float32)]), # head outputs
        out_shape=jax.ShapeDtypeStruct((n, c), jnp.float32),
        compiler_params=pltpu.CompilerParams(dimension_semantics=("arbitrary",)),
    )(src, dst, x, edge_attr,
      p["we"], p["be"],
      p["gin_w1"], p["gin_b1"], p["gin_w2s"], p["gin_b2s"],
      p["attn_in_w"], p["attn_in_b"], p["attn_out_ws"], p["attn_out_bs"],
      p["mlp_w1"], p["mlp_b1"], p["mlp_w2s"], p["mlp_b2s"])


# ------------------------------ GPS forward ---------------------------------

def gps_forward(params, x, pe, edge_index, edge_attr, batch, *, num_graphs):
    # `num_graphs` is a static Python int (no device->host sync); `batch` carried
    # only for interface parity.
    # TODO(synk): attention assumes contiguously-batched, equal-sized graphs
    # (to_dense_batch with an all-True mask); ragged key_padding_mask not implemented.
    del batch
    xin = jnp.concatenate([x, pe], axis=1)                  # (N, 44+8)
    h = embed_nodes(xin, params["w_in"], params["b_in"])
    src = edge_index[0].astype(jnp.int32)                   # (E,)  -> SMEM prefetch
    dst = edge_index[1].astype(jnp.int32)                   # (E,)
    for p in params["layers"]:
        h = gps_layer(h, src, dst, edge_attr, num_graphs, p)
    return h


# --------------------------- parameter construction -------------------------

def init_params(key, num_layers=NUM_LAYERS):
    """Weights stored pre-transposed [in_features, out_features]; biases [1, out].
    One-time folds: eval-mode BatchNorm scale (1/sqrt(1+eps)) into gin_w2/b2,
    attn_out_w/b, mlp_w2/b2; attention 1/sqrt(head_dim) into the q columns of the
    in-projection.  Mathematically identical to the PyTorch eval forward."""
    def dense_t(k, in_dim, out_dim, scale=0.05):
        kw, kb = jax.random.split(k)
        w = jax.random.normal(kw, (in_dim, out_dim), jnp.float32) * scale
        b = jax.random.normal(kb, (1, out_dim), jnp.float32) * scale
        return w, b

    keys = jax.random.split(key, 3 + num_layers)
    params = {}
    wh, bh = dense_t(keys[0], 44, CHANNELS)       # linear_h
    wpe, bpe = dense_t(keys[1], 8, CHANNELS)      # embedding_lap_pos_enc
    params["w_in"] = jnp.concatenate([wh, wpe], axis=0)   # (52, 128)
    params["b_in"] = bh + bpe
    we, be = dense_t(keys[2], 10, CHANNELS)       # linear_e (shared across layers)

    q_scale = 1.0 / math.sqrt(HEAD_DIM)
    col_scale = jnp.concatenate([jnp.full((CHANNELS,), q_scale, jnp.float32),
                                 jnp.ones((2 * CHANNELS,), jnp.float32)])[None, :]

    layers = []
    for l in range(num_layers):
        lk = jax.random.split(keys[3 + l], 6)
        p = {"we": we, "be": be}
        p["gin_w1"], p["gin_b1"] = dense_t(lk[0], CHANNELS, CHANNELS)
        w2, b2 = dense_t(lk[1], CHANNELS, CHANNELS)
        p["gin_w2s"], p["gin_b2s"] = w2 * BN_SCALE, b2 * BN_SCALE
        wqkv, bqkv = dense_t(lk[2], CHANNELS, 3 * CHANNELS)
        p["attn_in_w"], p["attn_in_b"] = wqkv * col_scale, bqkv * col_scale
        wo, bo = dense_t(lk[3], CHANNELS, CHANNELS)
        p["attn_out_ws"], p["attn_out_bs"] = wo * BN_SCALE, bo * BN_SCALE
        p["mlp_w1"], p["mlp_b1"] = dense_t(lk[4], CHANNELS, 2 * CHANNELS)
        wm2, bm2 = dense_t(lk[5], 2 * CHANNELS, CHANNELS)
        p["mlp_w2s"], p["mlp_b2s"] = wm2 * BN_SCALE, bm2 * BN_SCALE
        layers.append(p)
    params["layers"] = layers
    return params


if __name__ == "__main__":
    key = jax.random.PRNGKey(0)
    k_param, k_x, k_pe, k_e = jax.random.split(key, 4)

    num_graphs, nodes_per_graph = 2, 8
    n = num_graphs * nodes_per_graph

    params = init_params(k_param)

    # node features: one-hot over 44 atom types (forward calls x.float())
    node_types = jax.random.randint(k_x, (n,), 0, 44)
    x = jax.nn.one_hot(node_types, 44, dtype=jnp.float32)
    pe = jax.random.normal(k_pe, (n, 8), jnp.float32)

    # bidirectional ring inside each 8-node graph -> 32 edges total
    edges = []
    for g in range(num_graphs):
        base = g * nodes_per_graph
        for i in range(nodes_per_graph):
            j = (i + 1) % nodes_per_graph
            edges.append((base + i, base + j))
            edges.append((base + j, base + i))
    edge_index = jnp.array(edges, dtype=jnp.int32).T            # (2, 32)
    num_edges = edge_index.shape[1]
    edge_types = jax.random.randint(k_e, (num_edges,), 0, 10)
    edge_attr = jax.nn.one_hot(edge_types, 10, dtype=jnp.float32)
    batch = jnp.repeat(jnp.arange(num_graphs, dtype=jnp.int32), nodes_per_graph)

    gps_fwd = jax.jit(gps_forward, static_argnames=("num_graphs",))
    out = gps_fwd(params, x, pe, edge_index, edge_attr, batch,
                  num_graphs=num_graphs)
    out = jax.block_until_ready(out)
    assert out.shape == (n, CHANNELS)
    assert bool(jnp.all(jnp.isfinite(out)))
    print("KERNEL_OK")
</pallas_src>

<mosaic_0001>
module attributes {stable_mosaic.version = 11 : i64} {
  func.func @_embed_kernel(%arg0: i32, %arg1: memref<16x52xf32, #tpu.memory_space<vmem>>, %arg2: memref<52x128xf32, #tpu.memory_space<vmem>>, %arg3: memref<1x128xf32, #tpu.memory_space<vmem>>, %arg4: memref<16x128xf32, #tpu.memory_space<vmem>>) attributes {dimension_semantics = [#tpu.dimension_semantics<arbitrary>], iteration_bounds = array<i64: 1>, scalar_prefetch = 0 : i64, scratch_operands = 0 : i64, tpu.core_type = #tpu.core_type<tc>, window_params = [{pipeline_mode = #tpu.pipeline_mode<synchronous>, transform_indices = @transform_0, window_bounds = array<i64: 16, 52>}, {pipeline_mode = #tpu.pipeline_mode<synchronous>, transform_indices = @transform_1, window_bounds = array<i64: 52, 128>}, {pipeline_mode = #tpu.pipeline_mode<synchronous>, transform_indices = @transform_2, window_bounds = array<i64: 1, 128>}, {pipeline_mode = #tpu.pipeline_mode<synchronous>, transform_indices = @transform_3, window_bounds = array<i64: 16, 128>}]} {
    %c0 = arith.constant 0 : index
    %c0_0 = arith.constant 0 : index
    %0 = vector.load %arg1[%c0, %c0_0] : memref<16x52xf32, #tpu.memory_space<vmem>>, vector<16x52xf32>
    %c0_1 = arith.constant 0 : index
    %c0_2 = arith.constant 0 : index
    %1 = vector.load %arg2[%c0_1, %c0_2] : memref<52x128xf32, #tpu.memory_space<vmem>>, vector<52x128xf32>
    %cst = arith.constant dense<0.000000e+00> : vector<16x128xf32>
    %2 = tpu.matmul %0, %1, %cst {dimension_numbers = #tpu.dot_dimension_numbers<[1], [0], [0], [1], [0, 0, 1, 1], [], []>} : vector<16x52xf32>, vector<52x128xf32>, vector<16x128xf32> -> vector<16x128xf32>
    %c0_3 = arith.constant 0 : index
    %c0_4 = arith.constant 0 : index
    %3 = vector.load %arg3[%c0_3, %c0_4] : memref<1x128xf32, #tpu.memory_space<vmem>>, vector<1x128xf32>
    %4 = vector.broadcast %3 : vector<1x128xf32> to vector<16x128xf32>
    %5 = arith.addf %2, %4 : vector<16x128xf32>
    %c0_5 = arith.constant 0 : index
    %c0_6 = arith.constant 0 : index
    %6 = vector.load %arg4[%c0_5, %c0_6] : memref<16x128xf32, #tpu.memory_space<vmem>>, vector<16x128xf32>
    tpu.vector_store %arg4[%c0_5, %c0_6], %5 {strides = array<i32>} : memref<16x128xf32, #tpu.memory_space<vmem>>, vector<16x128xf32>,
    return
  }
  func.func @transform_0(%arg0: i32) -> (i32, i32) {
    %c0_i32 = arith.constant 0 : i32
    %c0_i32_0 = arith.constant 0 : i32
    %c0_i32_1 = arith.constant 0 : i32
    return %c0_i32, %c0_i32_0 : i32, i32
  }
  func.func @transform_1(%arg0: i32) -> (i32, i32) {
    %c0_i32 = arith.constant 0 : i32
    %c0_i32_0 = arith.constant 0 : i32
    %c0_i32_1 = arith.constant 0 : i32
    return %c0_i32, %c0_i32_0 : i32, i32
  }
  func.func @transform_2(%arg0: i32) -> (i32, i32) {
    %c0_i32 = arith.constant 0 : i32
    %c0_i32_0 = arith.constant 0 : i32
    %c0_i32_1 = arith.constant 0 : i32
    return %c0_i32, %c0_i32_0 : i32, i32
  }
  func.func @transform_3(%arg0: i32) -> (i32, i32) {
    %c0_i32 = arith.constant 0 : i32
    %c0_i32_0 = arith.constant 0 : i32
    %c0_i32_1 = arith.constant 0 : i32
    return %c0_i32, %c0_i32_0 : i32, i32
  }
}

module attributes {stable_mosaic.version = 11 : i64} {
  func.func @_gps_layer_kernel(%arg0: i32, %arg1: memref<32xi32, #tpu.memory_space<smem>>, %arg2: memref<32xi32, #tpu.memory_space<smem>>, %arg3: memref<16x128xf32, #tpu.memory_space<vmem>>, %arg4: memref<32x10xf32, #tpu.memory_space<vmem>>, %arg5: memref<10x128xf32, #tpu.memory_space<vmem>>, %arg6: memref<1x128xf32, #tpu.memory_space<vmem>>, %arg7: memref<128x128xf32, #tpu.memory_space<vmem>>, %arg8: memref<1x128xf32, #tpu.memory_space<vmem>>, %arg9: memref<128x128xf32, #tpu.memory_space<vmem>>, %arg10: memref<1x128xf32, #tpu.memory_space<vmem>>, %arg11: memref<128x384xf32, #tpu.memory_space<vmem>>, %arg12: memref<1x384xf32, #tpu.memory_space<vmem>>, %arg13: memref<128x128xf32, #tpu.memory_space<vmem>>, %arg14: memref<1x128xf32, #tpu.memory_space<vmem>>, %arg15: memref<128x256xf32, #tpu.memory_space<vmem>>, %arg16: memref<1x256xf32, #tpu.memory_space<vmem>>, %arg17: memref<256x128xf32, #tpu.memory_space<vmem>>, %arg18: memref<1x128xf32, #tpu.memory_space<vmem>>, %arg19: memref<16x128xf32, #tpu.memory_space<vmem>>, %arg20: memref<32x128xf32, #tpu.memory_space<vmem>>, %arg21: memref<16x128xf32, #tpu.memory_space<vmem>>, %arg22: memref<16x128xf32, #tpu.memory_space<vmem>>) attributes {dimension_semantics = [#tpu.dimension_semantics<arbitrary>], iteration_bounds = array<i64: 1>, scalar_prefetch = 2 : i64, scratch_operands = 3 : i64, tpu.core_type = #tpu.core_type<tc>, window_params = [{pipeline_mode = #tpu.pipeline_mode<synchronous>, transform_indices = @transform_0, window_bounds = array<i64: 16, 128>}, {pipeline_mode = #tpu.pipeline_mode<synchronous>, transform_indices = @transform_1, window_bounds = array<i64: 32, 10>}, {pipeline_mode = #tpu.pipeline_mode<synchronous>, transform_indices = @transform_2, window_bounds = array<i64: 10, 128>}, {pipeline_mode = #tpu.pipeline_mode<synchronous>, transform_indices = @transform_3, window_bounds = array<i64: 1, 128>}, {pipeline_mode = #tpu.pipeline_mode<synchronous>, transform_indices = @transform_4, window_bounds = array<i64: 128, 128>}, {pipeline_mode = #tpu.pipeline_mode<synchronous>, transform_indices = @transform_5, window_bounds = array<i64: 1, 128>}, {pipeline_mode = #tpu.pipeline_mode<synchronous>, transform_indices = @transform_6, window_bounds = array<i64: 128, 128>}, {pipeline_mode = #tpu.pipeline_mode<synchronous>, transform_indices = @transform_7, window_bounds = array<i64: 1, 128>}, {pipeline_mode = #tpu.pipeline_mode<synchronous>, transform_indices = @transform_8, window_bounds = array<i64: 128, 384>}, {pipeline_mode = #tpu.pipeline_mode<synchronous>, transform_indices = @transform_9, window_bounds = array<i64: 1, 384>}, {pipeline_mode = #tpu.pipeline_mode<synchronous>, transform_indices = @transform_10, window_bounds = array<i64: 128, 128>}, {pipeline_mode = #tpu.pipeline_mode<synchronous>, transform_indices = @transform_11, window_bounds = array<i64: 1, 128>}, {pipeline_mode = #tpu.pipeline_mode<synchronous>, transform_indices = @transform_12, window_bounds = array<i64: 128, 256>}, {pipeline_mode = #tpu.pipeline_mode<synchronous>, transform_indices = @transform_13, window_bounds = array<i64: 1, 256>}, {pipeline_mode = #tpu.pipeline_mode<synchronous>, transform_indices = @transform_14, window_bounds = array<i64: 256, 128>}, {pipeline_mode = #tpu.pipeline_mode<synchronous>, transform_indices = @transform_15, window_bounds = array<i64: 1, 128>}, {pipeline_mode = #tpu.pipeline_mode<synchronous>, transform_indices = @transform_16, window_bounds = array<i64: 16, 128>}]} {
    %c0 = arith.constant 0 : index
    %c0_0 = arith.constant 0 : index
    %0 = vector.load %arg3[%c0, %c0_0] : memref<16x128xf32, #tpu.memory_space<vmem>>, vector<16x128xf32>
    %cst = arith.constant 0.999994993 : f32
    %1 = vector.broadcast %cst : f32 to vector<16x128xf32>
    %2 = arith.mulf %0, %1 : vector<16x128xf32>
    %c0_1 = arith.constant 0 : index
    %c0_2 = arith.constant 0 : index
    %3 = vector.load %arg4[%c0_1, %c0_2] : memref<32x10xf32, #tpu.memory_space<vmem>>, vector<32x10xf32>
    %c0_3 = arith.constant 0 : index
    %c0_4 = arith.constant 0 : index
    %4 = vector.load %arg5[%c0_3, %c0_4] : memref<10x128xf32, #tpu.memory_space<vmem>>, vector<10x128xf32>
    %cst_5 = arith.constant dense<0.000000e+00> : vector<32x128xf32>
    %5 = tpu.matmul %3, %4, %cst_5 {dimension_numbers = #tpu.dot_dimension_numbers<[1], [0], [0], [1], [0, 0, 1, 1], [], []>} : vector<32x10xf32>, vector<10x128xf32>, vector<32x128xf32> -> vector<32x128xf32>
    %c0_6 = arith.constant 0 : index
    %c0_7 = arith.constant 0 : index
    %6 = vector.load %arg6[%c0_6, %c0_7] : memref<1x128xf32, #tpu.memory_space<vmem>>, vector<1x128xf32>
    %7 = vector.broadcast %6 : vector<1x128xf32> to vector<32x128xf32>
    %8 = arith.addf %5, %7 : vector<32x128xf32>
    %c0_8 = arith.constant 0 : index
    %c0_9 = arith.constant 0 : index
    %9 = vector.load %arg20[%c0_8, %c0_9] : memref<32x128xf32, #tpu.memory_space<vmem>>, vector<32x128xf32>
    tpu.vector_store %arg20[%c0_8, %c0_9], %8 {strides = array<i32>} : memref<32x128xf32, #tpu.memory_space<vmem>>, vector<32x128xf32>,
    %c0_10 = arith.constant 0 : index
    %c0_11 = arith.constant 0 : index
    %10 = vector.load %arg21[%c0_10, %c0_11] : memref<16x128xf32, #tpu.memory_space<vmem>>, vector<16x128xf32>
    tpu.vector_store %arg21[%c0_10, %c0_11], %0 {strides = array<i32>} : memref<16x128xf32, #tpu.memory_space<vmem>>, vector<16x128xf32>,
    %c0_i32 = arith.constant 0 : i32
    %c32_i32 = arith.constant 32 : i32
    %11 = arith.addi %c0_i32, %c32_i32 : i32
    %c1_i32 = arith.constant 1 : i32
    scf.for %arg23 = %c0_i32 to %11 step %c1_i32  : i32 {
      %c1_i32_87 = arith.constant 1 : i32
      %177 = arith.muli %arg23, %c1_i32_87 : i32
      %c0_i32_88 = arith.constant 0 : i32
      %178 = arith.addi %c0_i32_88, %177 : i32
      %179 = arith.index_cast %178 : i32 to index
      %180 = memref.load %arg1[%179] : memref<32xi32, #tpu.memory_space<smem>>
      %181 = arith.index_cast %178 : i32 to index
      %182 = memref.load %arg2[%181] : memref<32xi32, #tpu.memory_space<smem>>
      %183 = arith.index_cast %180 : i32 to index
      %c0_89 = arith.constant 0 : index
      %184 = vector.load %arg3[%183, %c0_89] : memref<16x128xf32, #tpu.memory_space<vmem>>, vector<1x128xf32>
      %185 = arith.index_cast %178 : i32 to index
      %c0_90 = arith.constant 0 : index
      %186 = vector.load %arg20[%185, %c0_90] : memref<32x128xf32, #tpu.memory_space<vmem>>, vector<1x128xf32>
      %187 = arith.addf %184, %186 : vector<1x128xf32>
      %cst_91 = arith.constant 0.000000e+00 : f32
      %188 = vector.broadcast %cst_91 : f32 to vector<1x128xf32>
      %189 = arith.maximumf %187, %188 : vector<1x128xf32>
      %190 = arith.index_cast %182 : i32 to index
      %c0_92 = arith.constant 0 : index
      %191 = vector.load %arg21[%190, %c0_92] : memref<16x128xf32, #tpu.memory_space<vmem>>, vector<1x128xf32>
      %192 = arith.addf %191, %189 : vector<1x128xf32>
      %193 = arith.index_cast %182 : i32 to index
      %c0_93 = arith.constant 0 : index
      %194 = vector.load %arg21[%193, %c0_93] : memref<16x128xf32, #tpu.memory_space<vmem>>, vector<1x128xf32>
      tpu.vector_store %arg21[%193, %c0_93], %192 {strides = array<i32>} : memref<16x128xf32, #tpu.memory_space<vmem>>, vector<1x128xf32>,
    }
    %c32_i32_12 = arith.constant 32 : i32
    %c0_13 = arith.constant 0 : index
    %c0_14 = arith.constant 0 : index
    %12 = vector.load %arg21[%c0_13, %c0_14] : memref<16x128xf32, #tpu.memory_space<vmem>>, vector<16x128xf32>
    %c0_15 = arith.constant 0 : index
    %c0_16 = arith.constant 0 : index
    %13 = vector.load %arg7[%c0_15, %c0_16] : memref<128x128xf32, #tpu.memory_space<vmem>>, vector<128x128xf32>
    %cst_17 = arith.constant dense<0.000000e+00> : vector<16x128xf32>
    %14 = tpu.matmul %12, %13, %cst_17 {dimension_numbers = #tpu.dot_dimension_numbers<[1], [0], [0], [1], [0, 0, 1, 1], [], []>} : vector<16x128xf32>, vector<128x128xf32>, vector<16x128xf32> -> vector<16x128xf32>
    %c0_18 = arith.constant 0 : index
    %c0_19 = arith.constant 0 : index
    %15 = vector.load %arg8[%c0_18, %c0_19] : memref<1x128xf32, #tpu.memory_space<vmem>>, vector<1x128xf32>
    %16 = vector.broadcast %15 : vector<1x128xf32> to vector<16x128xf32>
    %17 = arith.addf %14, %16 : vector<16x128xf32>
    %cst_20 = arith.constant 0.000000e+00 : f32
    %18 = vector.broadcast %cst_20 : f32 to vector<16x128xf32>
    %19 = arith.maximumf %17, %18 : vector<16x128xf32>
    %c0_21 = arith.constant 0 : index
    %c0_22 = arith.constant 0 : index
    %20 = vector.load %arg9[%c0_21, %c0_22] : memref<128x128xf32, #tpu.memory_space<vmem>>, vector<128x128xf32>
    %cst_23 = arith.constant dense<0.000000e+00> : vector<16x128xf32>
    %21 = tpu.matmul %19, %20, %cst_23 {dimension_numbers = #tpu.dot_dimension_numbers<[1], [0], [0], [1], [0, 0, 1, 1], [], []>} : vector<16x128xf32>, vector<128x128xf32>, vector<16x128xf32> -> vector<16x128xf32>
    %c0_24 = arith.constant 0 : index
    %c0_25 = arith.constant 0 : index
    %22 = vector.load %arg10[%c0_24, %c0_25] : memref<1x128xf32, #tpu.memory_space<vmem>>, vector<1x128xf32>
    %23 = vector.broadcast %22 : vector<1x128xf32> to vector<16x128xf32>
    %24 = arith.addf %21, %23 : vector<16x128xf32>
    %25 = arith.addf %24, %2 : vector<16x128xf32>
    %c0_26 = arith.constant 0 : index
    %c0_27 = arith.constant 0 : index
    %26 = vector.load %arg11[%c0_26, %c0_27] : memref<128x384xf32, #tpu.memory_space<vmem>>, vector<128x384xf32>
    %cst_28 = arith.constant dense<0.000000e+00> : vector<16x384xf32>
    %27 = tpu.matmul %0, %26, %cst_28 {dimension_numbers = #tpu.dot_dimension_numbers<[1], [0], [0], [1], [0, 0, 1, 1], [], []>} : vector<16x128xf32>, vector<128x384xf32>, vector<16x384xf32> -> vector<16x384xf32>
    %c0_29 = arith.constant 0 : index
    %c0_30 = arith.constant 0 : index
    %28 = vector.load %arg12[%c0_29, %c0_30] : memref<1x384xf32, #tpu.memory_space<vmem>>, vector<1x384xf32>
    %29 = vector.broadcast %28 : vector<1x384xf32> to vector<16x384xf32>
    %30 = arith.addf %27, %29 : vector<16x384xf32>
    %31 = vector.extract_strided_slice %30 {offsets = [0, 0], sizes = [8, 128], strides = [1, 1]} : vector<16x384xf32> to vector<8x128xf32>
    %32 = vector.extract_strided_slice %30 {offsets = [0, 128], sizes = [8, 128], strides = [1, 1]} : vector<16x384xf32> to vector<8x128xf32>
    %33 = vector.extract_strided_slice %30 {offsets = [0, 256], sizes = [8, 128], strides = [1, 1]} : vector<16x384xf32> to vector<8x128xf32>
    %34 = vector.extract_strided_slice %31 {offsets = [0, 0], sizes = [8, 32], strides = [1, 1]} : vector<8x128xf32> to vector<8x32xf32>
    %35 = vector.extract_strided_slice %32 {offsets = [0, 0], sizes = [8, 32], strides = [1, 1]} : vector<8x128xf32> to vector<8x32xf32>
    %36 = vector.extract_strided_slice %33 {offsets = [0, 0], sizes = [8, 32], strides = [1, 1]} : vector<8x128xf32> to vector<8x32xf32>
    %cst_31 = arith.constant dense<0.000000e+00> : vector<8x8xf32>
    %37 = tpu.matmul %34, %35, %cst_31 {dimension_numbers = #tpu.dot_dimension_numbers<[1], [1], [0], [0], [0, 0, 1, 0], [], []>} : vector<8x32xf32>, vector<8x32xf32>, vector<8x8xf32> -> vector<8x8xf32>
    %cst_32 = arith.constant dense<0xFF800000> : vector<8xf32>
    %38 = vector.multi_reduction <maximumf>, %37, %cst_32 [1] : vector<8x8xf32> to vector<8xf32>
    %39 = vector.shape_cast %38 : vector<8xf32> to vector<8x1xf32>
    %40 = vector.broadcast %39 : vector<8x1xf32> to vector<8x8xf32>
    %41 = arith.subf %37, %40 : vector<8x8xf32>
    %42 = math.exp %41 : vector<8x8xf32>
    %cst_33 = arith.constant dense<0.000000e+00> : vector<8xf32>
    %43 = vector.multi_reduction <add>, %42, %cst_33 [1] : vector<8x8xf32> to vector<8xf32>
    %44 = vector.shape_cast %43 : vector<8xf32> to vector<8x1xf32>
    %45 = vector.broadcast %44 : vector<8x1xf32> to vector<8x8xf32>
    %46 = arith.divf %42, %45 : vector<8x8xf32>
    %cst_34 = arith.constant dense<0.000000e+00> : vector<8x32xf32>
    %47 = tpu.matmul %46, %36, %cst_34 {dimension_numbers = #tpu.dot_dimension_numbers<[1], [0], [0], [1], [0, 0, 1, 1], [], []>} : vector<8x8xf32>, vector<8x32xf32>, vector<8x32xf32> -> vector<8x32xf32>
    %48 = vector.extract_strided_slice %31 {offsets = [0, 32], sizes = [8, 32], strides = [1, 1]} : vector<8x128xf32> to vector<8x32xf32>
    %49 = vector.extract_strided_slice %32 {offsets = [0, 32], sizes = [8, 32], strides = [1, 1]} : vector<8x128xf32> to vector<8x32xf32>
    %50 = vector.extract_strided_slice %33 {offsets = [0, 32], sizes = [8, 32], strides = [1, 1]} : vector<8x128xf32> to vector<8x32xf32>
    %cst_35 = arith.constant dense<0.000000e+00> : vector<8x8xf32>
    %51 = tpu.matmul %48, %49, %cst_35 {dimension_numbers = #tpu.dot_dimension_numbers<[1], [1], [0], [0], [0, 0, 1, 0], [], []>} : vector<8x32xf32>, vector<8x32xf32>, vector<8x8xf32> -> vector<8x8xf32>
    %cst_36 = arith.constant dense<0xFF800000> : vector<8xf32>
    %52 = vector.multi_reduction <maximumf>, %51, %cst_36 [1] : vector<8x8xf32> to vector<8xf32>
    %53 = vector.shape_cast %52 : vector<8xf32> to vector<8x1xf32>
    %54 = vector.broadcast %53 : vector<8x1xf32> to vector<8x8xf32>
    %55 = arith.subf %51, %54 : vector<8x8xf32>
    %56 = math.exp %55 : vector<8x8xf32>
    %cst_37 = arith.constant dense<0.000000e+00> : vector<8xf32>
    %57 = vector.multi_reduction <add>, %56, %cst_37 [1] : vector<8x8xf32> to vector<8xf32>
    %58 = vector.shape_cast %57 : vector<8xf32> to vector<8x1xf32>
    %59 = vector.broadcast %58 : vector<8x1xf32> to vector<8x8xf32>
    %60 = arith.divf %56, %59 : vector<8x8xf32>
    %cst_38 = arith.constant dense<0.000000e+00> : vector<8x32xf32>
    %61 = tpu.matmul %60, %50, %cst_38 {dimension_numbers = #tpu.dot_dimension_numbers<[1], [0], [0], [1], [0, 0, 1, 1], [], []>} : vector<8x8xf32>, vector<8x32xf32>, vector<8x32xf32> -> vector<8x32xf32>
    %62 = vector.extract_strided_slice %31 {offsets = [0, 64], sizes = [8, 32], strides = [1, 1]} : vector<8x128xf32> to vector<8x32xf32>
    %63 = vector.extract_strided_slice %32 {offsets = [0, 64], sizes = [8, 32], strides = [1, 1]} : vector<8x128xf32> to vector<8x32xf32>
    %64 = vector.extract_strided_slice %33 {offsets = [0, 64], sizes = [8, 32], strides = [1, 1]} : vector<8x128xf32> to vector<8x32xf32>
    %cst_39 = arith.constant dense<0.000000e+00> : vector<8x8xf32>
    %65 = tpu.matmul %62, %63, %cst_39 {dimension_numbers = #tpu.dot_dimension_numbers<[1], [1], [0], [0], [0, 0, 1, 0], [], []>} : vector<8x32xf32>, vector<8x32xf32>, vector<8x8xf32> -> vector<8x8xf32>
    %cst_40 = arith.constant dense<0xFF800000> : vector<8xf32>
    %66 = vector.multi_reduction <maximumf>, %65, %cst_40 [1] : vector<8x8xf32> to vector<8xf32>
    %67 = vector.shape_cast %66 : vector<8xf32> to vector<8x1xf32>
    %68 = vector.broadcast %67 : vector<8x1xf32> to vector<8x8xf32>
    %69 = arith.subf %65, %68 : vector<8x8xf32>
    %70 = math.exp %69 : vector<8x8xf32>
    %cst_41 = arith.constant dense<0.000000e+00> : vector<8xf32>
    %71 = vector.multi_reduction <add>, %70, %cst_41 [1] : vector<8x8xf32> to vector<8xf32>
    %72 = vector.shape_cast %71 : vector<8xf32> to vector<8x1xf32>
    %73 = vector.broadcast %72 : vector<8x1xf32> to vector<8x8xf32>
    %74 = arith.divf %70, %73 : vector<8x8xf32>
    %cst_42 = arith.constant dense<0.000000e+00> : vector<8x32xf32>
    %75 = tpu.matmul %74, %64, %cst_42 {dimension_numbers = #tpu.dot_dimension_numbers<[1], [0], [0], [1], [0, 0, 1, 1], [], []>} : vector<8x8xf32>, vector<8x32xf32>, vector<8x32xf32> -> vector<8x32xf32>
    %76 = vector.extract_strided_slice %31 {offsets = [0, 96], sizes = [8, 32], strides = [1, 1]} : vector<8x128xf32> to vector<8x32xf32>
    %77 = vector.extract_strided_slice %32 {offsets = [0, 96], sizes = [8, 32], strides = [1, 1]} : vector<8x128xf32> to vector<8x32xf32>
    %78 = vector.extract_strided_slice %33 {offsets = [0, 96], sizes = [8, 32], strides = [1, 1]} : vector<8x128xf32> to vector<8x32xf32>
    %cst_43 = arith.constant dense<0.000000e+00> : vector<8x8xf32>
    %79 = tpu.matmul %76, %77, %cst_43 {dimension_numbers = #tpu.dot_dimension_numbers<[1], [1], [0], [0], [0, 0, 1, 0], [], []>} : vector<8x32xf32>, vector<8x32xf32>, vector<8x8xf32> -> vector<8x8xf32>
    %cst_44 = arith.constant dense<0xFF800000> : vector<8xf32>
    %80 = vector.multi_reduction <maximumf>, %79, %cst_44 [1] : vector<8x8xf32> to vector<8xf32>
    %81 = vector.shape_cast %80 : vector<8xf32> to vector<8x1xf32>
    %82 = vector.broadcast %81 : vector<8x1xf32> to vector<8x8xf32>
    %83 = arith.subf %79, %82 : vector<8x8xf32>
    %84 = math.exp %83 : vector<8x8xf32>
    %cst_45 = arith.constant dense<0.000000e+00> : vector<8xf32>
    %85 = vector.multi_reduction <add>, %84, %cst_45 [1] : vector<8x8xf32> to vector<8xf32>
    %86 = vector.shape_cast %85 : vector<8xf32> to vector<8x1xf32>
    %87 = vector.broadcast %86 : vector<8x1xf32> to vector<8x8xf32>
    %88 = arith.divf %84, %87 : vector<8x8xf32>
    %cst_46 = arith.constant dense<0.000000e+00> : vector<8x32xf32>
    %89 = tpu.matmul %88, %78, %cst_46 {dimension_numbers = #tpu.dot_dimension_numbers<[1], [0], [0], [1], [0, 0, 1, 1], [], []>} : vector<8x8xf32>, vector<8x32xf32>, vector<8x32xf32> -> vector<8x32xf32>
    %90 = tpu.concatenate %47, %61, %75, %89 in 1 : vector<8x32xf32>, vector<8x32xf32>, vector<8x32xf32>, vector<8x32xf32> -> vector<8x128xf32>
    %c0_47 = arith.constant 0 : index
    %c0_48 = arith.constant 0 : index
    %91 = vector.load %arg22[%c0_47, %c0_48] : memref<16x128xf32, #tpu.memory_space<vmem>>, vector<8x128xf32>
    tpu.vector_store %arg22[%c0_47, %c0_48], %90 {strides = array<i32>} : memref<16x128xf32, #tpu.memory_space<vmem>>, vector<8x128xf32>,
    %92 = vector.extract_strided_slice %30 {offsets = [8, 0], sizes = [8, 128], strides = [1, 1]} : vector<16x384xf32> to vector<8x128xf32>
    %93 = vector.extract_strided_slice %30 {offsets = [8, 128], sizes = [8, 128], strides = [1, 1]} : vector<16x384xf32> to vector<8x128xf32>
    %94 = vector.extract_strided_slice %30 {offsets = [8, 256], sizes = [8, 128], strides = [1, 1]} : vector<16x384xf32> to vector<8x128xf32>
    %95 = vector.extract_strided_slice %92 {offsets = [0, 0], sizes = [8, 32], strides = [1, 1]} : vector<8x128xf32> to vector<8x32xf32>
    %96 = vector.extract_strided_slice %93 {offsets = [0, 0], sizes = [8, 32], strides = [1, 1]} : vector<8x128xf32> to vector<8x32xf32>
    %97 = vector.extract_strided_slice %94 {offsets = [0, 0], sizes = [8, 32], strides = [1, 1]} : vector<8x128xf32> to vector<8x32xf32>
    %cst_49 = arith.constant dense<0.000000e+00> : vector<8x8xf32>
    %98 = tpu.matmul %95, %96, %cst_49 {dimension_numbers = #tpu.dot_dimension_numbers<[1], [1], [0], [0], [0, 0, 1, 0], [], []>} : vector<8x32xf32>, vector<8x32xf32>, vector<8x8xf32> -> vector<8x8xf32>
    %cst_50 = arith.constant dense<0xFF800000> : vector<8xf32>
    %99 = vector.multi_reduction <maximumf>, %98, %cst_50 [1] : vector<8x8xf32> to vector<8xf32>
    %100 = vector.shape_cast %99 : vector<8xf32> to vector<8x1xf32>
    %101 = vector.broadcast %100 : vector<8x1xf32> to vector<8x8xf32>
    %102 = arith.subf %98, %101 : vector<8x8xf32>
    %103 = math.exp %102 : vector<8x8xf32>
    %cst_51 = arith.constant dense<0.000000e+00> : vector<8xf32>
    %104 = vector.multi_reduction <add>, %103, %cst_51 [1] : vector<8x8xf32> to vector<8xf32>
    %105 = vector.shape_cast %104 : vector<8xf32> to vector<8x1xf32>
    %106 = vector.broadcast %105 : vector<8x1xf32> to vector<8x8xf32>
    %107 = arith.divf %103, %106 : vector<8x8xf32>
    %cst_52 = arith.constant dense<0.000000e+00> : vector<8x32xf32>
    %108 = tpu.matmul %107, %97, %cst_52 {dimension_numbers = #tpu.dot_dimension_numbers<[1], [0], [0], [1], [0, 0, 1, 1], [], []>} : vector<8x8xf32>, vector<8x32xf32>, vector<8x32xf32> -> vector<8x32xf32>
    %109 = vector.extract_strided_slice %92 {offsets = [0, 32], sizes = [8, 32], strides = [1, 1]} : vector<8x128xf32> to vector<8x32xf32>
    %110 = vector.extract_strided_slice %93 {offsets = [0, 32], sizes = [8, 32], strides = [1, 1]} : vector<8x128xf32> to vector<8x32xf32>
    %111 = vector.extract_strided_slice %94 {offsets = [0, 32], sizes = [8, 32], strides = [1, 1]} : vector<8x128xf32> to vector<8x32xf32>
    %cst_53 = arith.constant dense<0.000000e+00> : vector<8x8xf32>
    %112 = tpu.matmul %109, %110, %cst_53 {dimension_numbers = #tpu.dot_dimension_numbers<[1], [1], [0], [0], [0, 0, 1, 0], [], []>} : vector<8x32xf32>, vector<8x32xf32>, vector<8x8xf32> -> vector<8x8xf32>
    %cst_54 = arith.constant dense<0xFF800000> : vector<8xf32>
    %113 = vector.multi_reduction <maximumf>, %112, %cst_54 [1] : vector<8x8xf32> to vector<8xf32>
    %114 = vector.shape_cast %113 : vector<8xf32> to vector<8x1xf32>
    %115 = vector.broadcast %114 : vector<8x1xf32> to vector<8x8xf32>
    %116 = arith.subf %112, %115 : vector<8x8xf32>
    %117 = math.exp %116 : vector<8x8xf32>
    %cst_55 = arith.constant dense<0.000000e+00> : vector<8xf32>
    %118 = vector.multi_reduction <add>, %117, %cst_55 [1] : vector<8x8xf32> to vector<8xf32>
    %119 = vector.shape_cast %118 : vector<8xf32> to vector<8x1xf32>
    %120 = vector.broadcast %119 : vector<8x1xf32> to vector<8x8xf32>
    %121 = arith.divf %117, %120 : vector<8x8xf32>
    %cst_56 = arith.constant dense<0.000000e+00> : vector<8x32xf32>
    %122 = tpu.matmul %121, %111, %cst_56 {dimension_numbers = #tpu.dot_dimension_numbers<[1], [0], [0], [1], [0, 0, 1, 1], [], []>} : vector<8x8xf32>, vector<8x32xf32>, vector<8x32xf32> -> vector<8x32xf32>
    %123 = vector.extract_strided_slice %92 {offsets = [0, 64], sizes = [8, 32], strides = [1, 1]} : vector<8x128xf32> to vector<8x32xf32>
    %124 = vector.extract_strided_slice %93 {offsets = [0, 64], sizes = [8, 32], strides = [1, 1]} : vector<8x128xf32> to vector<8x32xf32>
    %125 = vector.extract_strided_slice %94 {offsets = [0, 64], sizes = [8, 32], strides = [1, 1]} : vector<8x128xf32> to vector<8x32xf32>
    %cst_57 = arith.constant dense<0.000000e+00> : vector<8x8xf32>
    %126 = tpu.matmul %123, %124, %cst_57 {dimension_numbers = #tpu.dot_dimension_numbers<[1], [1], [0], [0], [0, 0, 1, 0], [], []>} : vector<8x32xf32>, vector<8x32xf32>, vector<8x8xf32> -> vector<8x8xf32>
    %cst_58 = arith.constant dense<0xFF800000> : vector<8xf32>
    %127 = vector.multi_reduction <maximumf>, %126, %cst_58 [1] : vector<8x8xf32> to vector<8xf32>
    %128 = vector.shape_cast %127 : vector<8xf32> to vector<8x1xf32>
    %129 = vector.broadcast %128 : vector<8x1xf32> to vector<8x8xf32>
    %130 = arith.subf %126, %129 : vector<8x8xf32>
    %131 = math.exp %130 : vector<8x8xf32>
    %cst_59 = arith.constant dense<0.000000e+00> : vector<8xf32>
    %132 = vector.multi_reduction <add>, %131, %cst_59 [1] : vector<8x8xf32> to vector<8xf32>
    %133 = vector.shape_cast %132 : vector<8xf32> to vector<8x1xf32>
    %134 = vector.broadcast %133 : vector<8x1xf32> to vector<8x8xf32>
    %135 = arith.divf %131, %134 : vector<8x8xf32>
    %cst_60 = arith.constant dense<0.000000e+00> : vector<8x32xf32>
    %136 = tpu.matmul %135, %125, %cst_60 {dimension_numbers = #tpu.dot_dimension_numbers<[1], [0], [0], [1], [0, 0, 1, 1], [], []>} : vector<8x8xf32>, vector<8x32xf32>, vector<8x32xf32> -> vector<8x32xf32>
    %137 = vector.extract_strided_slice %92 {offsets = [0, 96], sizes = [8, 32], strides = [1, 1]} : vector<8x128xf32> to vector<8x32xf32>
    %138 = vector.extract_strided_slice %93 {offsets = [0, 96], sizes = [8, 32], strides = [1, 1]} : vector<8x128xf32> to vector<8x32xf32>
    %139 = vector.extract_strided_slice %94 {offsets = [0, 96], sizes = [8, 32], strides = [1, 1]} : vector<8x128xf32> to vector<8x32xf32>
    %cst_61 = arith.constant dense<0.000000e+00> : vector<8x8xf32>
    %140 = tpu.matmul %137, %138, %cst_61 {dimension_numbers = #tpu.dot_dimension_numbers<[1], [1], [0], [0], [0, 0, 1, 0], [], []>} : vector<8x32xf32>, vector<8x32xf32>, vector<8x8xf32> -> vector<8x8xf32>
    %cst_62 = arith.constant dense<0xFF800000> : vector<8xf32>
    %141 = vector.multi_reduction <maximumf>, %140, %cst_62 [1] : vector<8x8xf32> to vector<8xf32>
    %142 = vector.shape_cast %141 : vector<8xf32> to vector<8x1xf32>
    %143 = vector.broadcast %142 : vector<8x1xf32> to vector<8x8xf32>
    %144 = arith.subf %140, %143 : vector<8x8xf32>
    %145 = math.exp %144 : vector<8x8xf32>
    %cst_63 = arith.constant dense<0.000000e+00> : vector<8xf32>
    %146 = vector.multi_reduction <add>, %145, %cst_63 [1] : vector<8x8xf32> to vector<8xf32>
    %147 = vector.shape_cast %146 : vector<8xf32> to vector<8x1xf32>
    %148 = vector.broadcast %147 : vector<8x1xf32> to vector<8x8xf32>
    %149 = arith.divf %145, %148 : vector<8x8xf32>
    %cst_64 = arith.constant dense<0.000000e+00> : vector<8x32xf32>
    %150 = tpu.matmul %149, %139, %cst_64 {dimension_numbers = #tpu.dot_dimension_numbers<[1], [0], [0], [1], [0, 0, 1, 1], [], []>} : vector<8x8xf32>, vector<8x32xf32>, vector<8x32xf32> -> vector<8x32xf32>
    %151 = tpu.concatenate %108, %122, %136, %150 in 1 : vector<8x32xf32>, vector<8x32xf32>, vector<8x32xf32>, vector<8x32xf32> -> vector<8x128xf32>
    %c8 = arith.constant 8 : index
    %c0_65 = arith.constant 0 : index
    %152 = vector.load %arg22[%c8, %c0_65] : memref<16x128xf32, #tpu.memory_space<vmem>>, vector<8x128xf32>
    tpu.vector_store %arg22[%c8, %c0_65], %151 {strides = array<i32>} : memref<16x128xf32, #tpu.memory_space<vmem>>, vector<8x128xf32>,
    %c0_66 = arith.constant 0 : index
    %c0_67 = arith.constant 0 : index
    %153 = vector.load %arg22[%c0_66, %c0_67] : memref<16x128xf32, #tpu.memory_space<vmem>>, vector<16x128xf32>
    %c0_68 = arith.constant 0 : index
    %c0_69 = arith.constant 0 : index
    %154 = vector.load %arg13[%c0_68, %c0_69] : memref<128x128xf32, #tpu.memory_space<vmem>>, vector<128x128xf32>
    %cst_70 = arith.constant dense<0.000000e+00> : vector<16x128xf32>
    %155 = tpu.matmul %153, %154, %cst_70 {dimension_numbers = #tpu.dot_dimension_numbers<[1], [0], [0], [1], [0, 0, 1, 1], [], []>} : vector<16x128xf32>, vector<128x128xf32>, vector<16x128xf32> -> vector<16x128xf32>
    %c0_71 = arith.constant 0 : index
    %c0_72 = arith.constant 0 : index
    %156 = vector.load %arg14[%c0_71, %c0_72] : memref<1x128xf32, #tpu.memory_space<vmem>>, vector<1x128xf32>
    %157 = vector.broadcast %156 : vector<1x128xf32> to vector<16x128xf32>
    %158 = arith.addf %155, %157 : vector<16x128xf32>
    %159 = arith.addf %158, %2 : vector<16x128xf32>
    %160 = arith.addf %25, %159 : vector<16x128xf32>
    %c0_73 = arith.constant 0 : index
    %c0_74 = arith.constant 0 : index
    %161 = vector.load %arg15[%c0_73, %c0_74] : memref<128x256xf32, #tpu.memory_space<vmem>>, vector<128x256xf32>
    %cst_75 = arith.constant dense<0.000000e+00> : vector<16x256xf32>
    %162 = tpu.matmul %160, %161, %cst_75 {dimension_numbers = #tpu.dot_dimension_numbers<[1], [0], [0], [1], [0, 0, 1, 1], [], []>} : vector<16x128xf32>, vector<128x256xf32>, vector<16x256xf32> -> vector<16x256xf32>
    %c0_76 = arith.constant 0 : index
    %c0_77 = arith.constant 0 : index
    %163 = vector.load %arg16[%c0_76, %c0_77] : memref<1x256xf32, #tpu.memory_space<vmem>>, vector<1x256xf32>
    %164 = vector.broadcast %163 : vector<1x256xf32> to vector<16x256xf32>
    %165 = arith.addf %162, %164 : vector<16x256xf32>
    %cst_78 = arith.constant 0.000000e+00 : f32
    %166 = vector.broadcast %cst_78 : f32 to vector<16x256xf32>
    %167 = arith.maximumf %165, %166 : vector<16x256xf32>
    %c0_79 = arith.constant 0 : index
    %c0_80 = arith.constant 0 : index
    %168 = vector.load %arg17[%c0_79, %c0_80] : memref<256x128xf32, #tpu.memory_space<vmem>>, vector<256x128xf32>
    %cst_81 = arith.constant dense<0.000000e+00> : vector<16x128xf32>
    %169 = tpu.matmul %167, %168, %cst_81 {dimension_numbers = #tpu.dot_dimension_numbers<[1], [0], [0], [1], [0, 0, 1, 1], [], []>} : vector<16x256xf32>, vector<256x128xf32>, vector<16x128xf32> -> vector<16x128xf32>
    %c0_82 = arith.constant 0 : index
    %c0_83 = arith.constant 0 : index
    %170 = vector.load %arg18[%c0_82, %c0_83] : memref<1x128xf32, #tpu.memory_space<vmem>>, vector<1x128xf32>
    %171 = vector.broadcast %170 : vector<1x128xf32> to vector<16x128xf32>
    %172 = arith.addf %169, %171 : vector<16x128xf32>
    %cst_84 = arith.constant 0.999994993 : f32
    %173 = vector.broadcast %cst_84 : f32 to vector<16x128xf32>
    %174 = arith.mulf %160, %173 : vector<16x128xf32>
    %175 = arith.addf %174, %172 : vector<16x128xf32>
    %c0_85 = arith.constant 0 : index
    %c0_86 = arith.constant 0 : index
    %176 = vector.load %arg19[%c0_85, %c0_86] : memref<16x128xf32, #tpu.memory_space<vmem>>, vector<16x128xf32>
    tpu.vector_store %arg19[%c0_85, %c0_86], %175 {strides = array<i32>} : memref<16x128xf32, #tpu.memory_space<vmem>>, vector<16x128xf32>,
    return
  }
  func.func @transform_0(%arg0: i32, %arg1: memref<32xi32, #tpu.memory_space<smem>>, %arg2: memref<32xi32, #tpu.memory_space<smem>>) -> (i32, i32) {
    %c0_i32 = arith.constant 0 : i32
    %c0_i32_0 = arith.constant 0 : i32
    %c0_i32_1 = arith.constant 0 : i32
    return %c0_i32, %c0_i32_0 : i32, i32
  }
  func.func @transform_1(%arg0: i32, %arg1: memref<32xi32, #tpu.memory_space<smem>>, %arg2: memref<32xi32, #tpu.memory_space<smem>>) -> (i32, i32) {
    %c0_i32 = arith.constant 0 : i32
    %c0_i32_0 = arith.constant 0 : i32
    %c0_i32_1 = arith.constant 0 : i32
    return %c0_i32, %c0_i32_0 : i32, i32
  }
  func.func @transform_2(%arg0: i32, %arg1: memref<32xi32, #tpu.memory_space<smem>>, %arg2: memref<32xi32, #tpu.memory_space<smem>>) -> (i32, i32) {
    %c0_i32 = arith.constant 0 : i32
    %c0_i32_0 = arith.constant 0 : i32
    %c0_i32_1 = arith.constant 0 : i32
    return %c0_i32, %c0_i32_0 : i32, i32
  }
  func.func @transform_3(%arg0: i32, %arg1: memref<32xi32, #tpu.memory_space<smem>>, %arg2: memref<32xi32, #tpu.memory_space<smem>>) -> (i32, i32) {
    %c0_i32 = arith.constant 0 : i32
    %c0_i32_0 = arith.constant 0 : i32
    %c0_i32_1 = arith.constant 0 : i32
    return %c0_i32, %c0_i32_0 : i32, i32
  }
  func.func @transform_4(%arg0: i32, %arg1: memref<32xi32, #tpu.memory_space<smem>>, %arg2: memref<32xi32, #tpu.memory_space<smem>>) -> (i32, i32) {
    %c0_i32 = arith.constant 0 : i32
    %c0_i32_0 = arith.constant 0 : i32
    %c0_i32_1 = arith.constant 0 : i32
    return %c0_i32, %c0_i32_0 : i32, i32
  }
  func.func @transform_5(%arg0: i32, %arg1: memref<32xi32, #tpu.memory_space<smem>>, %arg2: memref<32xi32, #tpu.memory_space<smem>>) -> (i32, i32) {
    %c0_i32 = arith.constant 0 : i32
    %c0_i32_0 = arith.constant 0 : i32
    %c0_i32_1 = arith.constant 0 : i32
    return %c0_i32, %c0_i32_0 : i32, i32
  }
  func.func @transform_6(%arg0: i32, %arg1: memref<32xi32, #tpu.memory_space<smem>>, %arg2: memref<32xi32, #tpu.memory_space<smem>>) -> (i32, i32) {
    %c0_i32 = arith.constant 0 : i32
    %c0_i32_0 = arith.constant 0 : i32
    %c0_i32_1 = arith.constant 0 : i32
    return %c0_i32, %c0_i32_0 : i32, i32
  }
  func.func @transform_7(%arg0: i32, %arg1: memref<32xi32, #tpu.memory_space<smem>>, %arg2: memref<32xi32, #tpu.memory_space<smem>>) -> (i32, i32) {
    %c0_i32 = arith.constant 0 : i32
    %c0_i32_0 = arith.constant 0 : i32
    %c0_i32_1 = arith.constant 0 : i32
    return %c0_i32, %c0_i32_0 : i32, i32
  }
  func.func @transform_8(%arg0: i32, %arg1: memref<32xi32, #tpu.memory_space<smem>>, %arg2: memref<32xi32, #tpu.memory_space<smem>>) -> (i32, i32) {
    %c0_i32 = arith.constant 0 : i32
    %c0_i32_0 = arith.constant 0 : i32
    %c0_i32_1 = arith.constant 0 : i32
    return %c0_i32, %c0_i32_0 : i32, i32
  }
  func.func @transform_9(%arg0: i32, %arg1: memref<32xi32, #tpu.memory_space<smem>>, %arg2: memref<32xi32, #tpu.memory_space<smem>>) -> (i32, i32) {
    %c0_i32 = arith.constant 0 : i32
    %c0_i32_0 = arith.constant 0 : i32
    %c0_i32_1 = arith.constant 0 : i32
    return %c0_i32, %c0_i32_0 : i32, i32
  }
  func.func @transform_10(%arg0: i32, %arg1: memref<32xi32, #tpu.memory_space<smem>>, %arg2: memref<32xi32, #tpu.memory_space<smem>>) -> (i32, i32) {
    %c0_i32 = arith.constant 0 : i32
    %c0_i32_0 = arith.constant 0 : i32
    %c0_i32_1 = arith.constant 0 : i32
    return %c0_i32, %c0_i32_0 : i32, i32
  }
  func.func @transform_11(%arg0: i32, %arg1: memref<32xi32, #tpu.memory_space<smem>>, %arg2: memref<32xi32, #tpu.memory_space<smem>>) -> (i32, i32) {
    %c0_i32 = arith.constant 0 : i32
    %c0_i32_0 = arith.constant 0 : i32
    %c0_i32_1 = arith.constant 0 : i32
    return %c0_i32, %c0_i32_0 : i32, i32
  }
  func.func @transform_12(%arg0: i32, %arg1: memref<32xi32, #tpu.memory_space<smem>>, %arg2: memref<32xi32, #tpu.memory_space<smem>>) -> (i32, i32) {
    %c0_i32 = arith.constant 0 : i32
    %c0_i32_0 = arith.constant 0 : i32
    %c0_i32_1 = arith.constant 0 : i32
    return %c0_i32, %c0_i32_0 : i32, i32
  }
  func.func @transform_13(%arg0: i32, %arg1: memref<32xi32, #tpu.memory_space<smem>>, %arg2: memref<32xi32, #tpu.memory_space<smem>>) -> (i32, i32) {
    %c0_i32 = arith.constant 0 : i32
    %c0_i32_0 = arith.constant 0 : i32
    %c0_i32_1 = arith.constant 0 : i32
    return %c0_i32, %c0_i32_0 : i32, i32
  }
  func.func @transform_14(%arg0: i32, %arg1: memref<32xi32, #tpu.memory_space<smem>>, %arg2: memref<32xi32, #tpu.memory_space<smem>>) -> (i32, i32) {
    %c0_i32 = arith.constant 0 : i32
    %c0_i32_0 = arith.constant 0 : i32
    %c0_i32_1 = arith.constant 0 : i32
    return %c0_i32, %c0_i32_0 : i32, i32
  }
  func.func @transform_15(%arg0: i32, %arg1: memref<32xi32, #tpu.memory_space<smem>>, %arg2: memref<32xi32, #tpu.memory_space<smem>>) -> (i32, i32) {
    %c0_i32 = arith.constant 0 : i32
    %c0_i32_0 = arith.constant 0 : i32
    %c0_i32_1 = arith.constant 0 : i32
    return %c0_i32, %c0_i32_0 : i32, i32
  }
  func.func @transform_16(%arg0: i32, %arg1: memref<32xi32, #tpu.memory_space<smem>>, %arg2: memref<32xi32, #tpu.memory_space<smem>>) -> (i32, i32) {
    %c0_i32 = arith.constant 0 : i32
    %c0_i32_0 = arith.constant 0 : i32
    %c0_i32_1 = arith.constant 0 : i32
    return %c0_i32, %c0_i32_0 : i32, i32
  }
}

module attributes {stable_mosaic.version = 11 : i64} {
  func.func @_gps_layer_kernel(%arg0: i32, %arg1: memref<32xi32, #tpu.memory_space<smem>>, %arg2: memref<32xi32, #tpu.memory_space<smem>>, %arg3: memref<16x128xf32, #tpu.memory_space<vmem>>, %arg4: memref<32x10xf32, #tpu.memory_space<vmem>>, %arg5: memref<10x128xf32, #tpu.memory_space<vmem>>, %arg6: memref<1x128xf32, #tpu.memory_space<vmem>>, %arg7: memref<128x128xf32, #tpu.memory_space<vmem>>, %arg8: memref<1x128xf32, #tpu.memory_space<vmem>>, %arg9: memref<128x128xf32, #tpu.memory_space<vmem>>, %arg10: memref<1x128xf32, #tpu.memory_space<vmem>>, %arg11: memref<128x384xf32, #tpu.memory_space<vmem>>, %arg12: memref<1x384xf32, #tpu.memory_space<vmem>>, %arg13: memref<128x128xf32, #tpu.memory_space<vmem>>, %arg14: memref<1x128xf32, #tpu.memory_space<vmem>>, %arg15: memref<128x256xf32, #tpu.memory_space<vmem>>, %arg16: memref<1x256xf32, #tpu.memory_space<vmem>>, %arg17: memref<256x128xf32, #tpu.memory_space<vmem>>, %arg18: memref<1x128xf32, #tpu.memory_space<vmem>>, %arg19: memref<16x128xf32, #tpu.memory_space<vmem>>, %arg20: memref<32x128xf32, #tpu.memory_space<vmem>>, %arg21: memref<16x128xf32, #tpu.memory_space<vmem>>, %arg22: memref<16x128xf32, #tpu.memory_space<vmem>>) attributes {dimension_semantics = [#tpu.dimension_semantics<arbitrary>], iteration_bounds = array<i64: 1>, scalar_prefetch = 2 : i64, scratch_operands = 3 : i64, tpu.core_type = #tpu.core_type<tc>, window_params = [{pipeline_mode = #tpu.pipeline_mode<synchronous>, transform_indices = @transform_0, window_bounds = array<i64: 16, 128>}, {pipeline_mode = #tpu.pipeline_mode<synchronous>, transform_indices = @transform_1, window_bounds = array<i64: 32, 10>}, {pipeline_mode = #tpu.pipeline_mode<synchronous>, transform_indices = @transform_2, window_bounds = array<i64: 10, 128>}, {pipeline_mode = #tpu.pipeline_mode<synchronous>, transform_indices = @transform_3, window_bounds = array<i64: 1, 128>}, {pipeline_mode = #tpu.pipeline_mode<synchronous>, transform_indices = @transform_4, window_bounds = array<i64: 128, 128>}, {pipeline_mode = #tpu.pipeline_mode<synchronous>, transform_indices = @transform_5, window_bounds = array<i64: 1, 128>}, {pipeline_mode = #tpu.pipeline_mode<synchronous>, transform_indices = @transform_6, window_bounds = array<i64: 128, 128>}, {pipeline_mode = #tpu.pipeline_mode<synchronous>, transform_indices = @transform_7, window_bounds = array<i64: 1, 128>}, {pipeline_mode = #tpu.pipeline_mode<synchronous>, transform_indices = @transform_8, window_bounds = array<i64: 128, 384>}, {pipeline_mode = #tpu.pipeline_mode<synchronous>, transform_indices = @transform_9, window_bounds = array<i64: 1, 384>}, {pipeline_mode = #tpu.pipeline_mode<synchronous>, transform_indices = @transform_10, window_bounds = array<i64: 128, 128>}, {pipeline_mode = #tpu.pipeline_mode<synchronous>, transform_indices = @transform_11, window_bounds = array<i64: 1, 128>}, {pipeline_mode = #tpu.pipeline_mode<synchronous>, transform_indices = @transform_12, window_bounds = array<i64: 128, 256>}, {pipeline_mode = #tpu.pipeline_mode<synchronous>, transform_indices = @transform_13, window_bounds = array<i64: 1, 256>}, {pipeline_mode = #tpu.pipeline_mode<synchronous>, transform_indices = @transform_14, window_bounds = array<i64: 256, 128>}, {pipeline_mode = #tpu.pipeline_mode<synchronous>, transform_indices = @transform_15, window_bounds = array<i64: 1, 128>}, {pipeline_mode = #tpu.pipeline_mode<synchronous>, transform_indices = @transform_16, window_bounds = array<i64: 16, 128>}]} {
    %c0 = arith.constant 0 : index
    %c0_0 = arith.constant 0 : index
    %0 = vector.load %arg3[%c0, %c0_0] : memref<16x128xf32, #tpu.memory_space<vmem>>, vector<16x128xf32>
    %cst = arith.constant 0.999994993 : f32
    %1 = vector.broadcast %cst : f32 to vector<16x128xf32>
    %2 = arith.mulf %0, %1 : vector<16x128xf32>
    %c0_1 = arith.constant 0 : index
    %c0_2 = arith.constant 0 : index
    %3 = vector.load %arg4[%c0_1, %c0_2] : memref<32x10xf32, #tpu.memory_space<vmem>>, vector<32x10xf32>
    %c0_3 = arith.constant 0 : index
    %c0_4 = arith.constant 0 : index
    %4 = vector.load %arg5[%c0_3, %c0_4] : memref<10x128xf32, #tpu.memory_space<vmem>>, vector<10x128xf32>
    %cst_5 = arith.constant dense<0.000000e+00> : vector<32x128xf32>
    %5 = tpu.matmul %3, %4, %cst_5 {dimension_numbers = #tpu.dot_dimension_numbers<[1], [0], [0], [1], [0, 0, 1, 1], [], []>} : vector<32x10xf32>, vector<10x128xf32>, vector<32x128xf32> -> vector<32x128xf32>
    %c0_6 = arith.constant 0 : index
    %c0_7 = arith.constant 0 : index
    %6 = vector.load %arg6[%c0_6, %c0_7] : memref<1x128xf32, #tpu.memory_space<vmem>>, vector<1x128xf32>
    %7 = vector.broadcast %6 : vector<1x128xf32> to vector<32x128xf32>
    %8 = arith.addf %5, %7 : vector<32x128xf32>
    %c0_8 = arith.constant 0 : index
    %c0_9 = arith.constant 0 : index
    %9 = vector.load %arg20[%c0_8, %c0_9] : memref<32x128xf32, #tpu.memory_space<vmem>>, vector<32x128xf32>
    tpu.vector_store %arg20[%c0_8, %c0_9], %8 {strides = array<i32>} : memref<32x128xf32, #tpu.memory_space<vmem>>, vector<32x128xf32>,
    %c0_10 = arith.constant 0 : index
    %c0_11 = arith.constant 0 : index
    %10 = vector.load %arg21[%c0_10, %c0_11] : memref<16x128xf32, #tpu.memory_space<vmem>>, vector<16x128xf32>
    tpu.vector_store %arg21[%c0_10, %c0_11], %0 {strides = array<i32>} : memref<16x128xf32, #tpu.memory_space<vmem>>, vector<16x128xf32>,
    %c0_i32 = arith.constant 0 : i32
    %c32_i32 = arith.constant 32 : i32
    %11 = arith.addi %c0_i32, %c32_i32 : i32
    %c1_i32 = arith.constant 1 : i32
    scf.for %arg23 = %c0_i32 to %11 step %c1_i32  : i32 {
      %c1_i32_87 = arith.constant 1 : i32
      %177 = arith.muli %arg23, %c1_i32_87 : i32
      %c0_i32_88 = arith.constant 0 : i32
      %178 = arith.addi %c0_i32_88, %177 : i32
      %179 = arith.index_cast %178 : i32 to index
      %180 = memref.load %arg1[%179] : memref<32xi32, #tpu.memory_space<smem>>
      %181 = arith.index_cast %178 : i32 to index
      %182 = memref.load %arg2[%181] : memref<32xi32, #tpu.memory_space<smem>>
      %183 = arith.index_cast %180 : i32 to index
      %c0_89 = arith.constant 0 : index
      %184 = vector.load %arg3[%183, %c0_89] : memref<16x128xf32, #tpu.memory_space<vmem>>, vector<1x128xf32>
      %185 = arith.index_cast %178 : i32 to index
      %c0_90 = arith.constant 0 : index
      %186 = vector.load %arg20[%185, %c0_90] : memref<32x128xf32, #tpu.memory_space<vmem>>, vector<1x128xf32>
      %187 = arith.addf %184, %186 : vector<1x128xf32>
      %cst_91 = arith.constant 0.000000e+00 : f32
      %188 = vector.broadcast %cst_91 : f32 to vector<1x128xf32>
      %189 = arith.maximumf %187, %188 : vector<1x128xf32>
      %190 = arith.index_cast %182 : i32 to index
      %c0_92 = arith.constant 0 : index
      %191 = vector.load %arg21[%190, %c0_92] : memref<16x128xf32, #tpu.memory_space<vmem>>, vector<1x128xf32>
      %192 = arith.addf %191, %189 : vector<1x128xf32>
      %193 = arith.index_cast %182 : i32 to index
      %c0_93 = arith.constant 0 : index
      %194 = vector.load %arg21[%193, %c0_93] : memref<16x128xf32, #tpu.memory_space<vmem>>, vector<1x128xf32>
      tpu.vector_store %arg21[%193, %c0_93], %192 {strides = array<i32>} : memref<16x128xf32, #tpu.memory_space<vmem>>, vector<1x128xf32>,
    }
    %c32_i32_12 = arith.constant 32 : i32
    %c0_13 = arith.constant 0 : index
    %c0_14 = arith.constant 0 : index
    %12 = vector.load %arg21[%c0_13, %c0_14] : memref<16x128xf32, #tpu.memory_space<vmem>>, vector<16x128xf32>
    %c0_15 = arith.constant 0 : index
    %c0_16 = arith.constant 0 : index
    %13 = vector.load %arg7[%c0_15, %c0_16] : memref<128x128xf32, #tpu.memory_space<vmem>>, vector<128x128xf32>
    %cst_17 = arith.constant dense<0.000000e+00> : vector<16x128xf32>
    %14 = tpu.matmul %12, %13, %cst_17 {dimension_numbers = #tpu.dot_dimension_numbers<[1], [0], [0], [1], [0, 0, 1, 1], [], []>} : vector<16x128xf32>, vector<128x128xf32>, vector<16x128xf32> -> vector<16x128xf32>
    %c0_18 = arith.constant 0 : index
    %c0_19 = arith.constant 0 : index
    %15 = vector.load %arg8[%c0_18, %c0_19] : memref<1x128xf32, #tpu.memory_space<vmem>>, vector<1x128xf32>
    %16 = vector.broadcast %15 : vector<1x128xf32> to vector<16x128xf32>
    %17 = arith.addf %14, %16 : vector<16x128xf32>
    %cst_20 = arith.constant 0.000000e+00 : f32
    %18 = vector.broadcast %cst_20 : f32 to vector<16x128xf32>
    %19 = arith.maximumf %17, %18 : vector<16x128xf32>
    %c0_21 = arith.constant 0 : index
    %c0_22 = arith.constant 0 : index
    %20 = vector.load %arg9[%c0_21, %c0_22] : memref<128x128xf32, #tpu.memory_space<vmem>>, vector<128x128xf32>
    %cst_23 = arith.constant dense<0.000000e+00> : vector<16x128xf32>
    %21 = tpu.matmul %19, %20, %cst_23 {dimension_numbers = #tpu.dot_dimension_numbers<[1], [0], [0], [1], [0, 0, 1, 1], [], []>} : vector<16x128xf32>, vector<128x128xf32>, vector<16x128xf32> -> vector<16x128xf32>
    %c0_24 = arith.constant 0 : index
    %c0_25 = arith.constant 0 : index
    %22 = vector.load %arg10[%c0_24, %c0_25] : memref<1x128xf32, #tpu.memory_space<vmem>>, vector<1x128xf32>
    %23 = vector.broadcast %22 : vector<1x128xf32> to vector<16x128xf32>
    %24 = arith.addf %21, %23 : vector<16x128xf32>
    %25 = arith.addf %24, %2 : vector<16x128xf32>
    %c0_26 = arith.constant 0 : index
    %c0_27 = arith.constant 0 : index
    %26 = vector.load %arg11[%c0_26, %c0_27] : memref<128x384xf32, #tpu.memory_space<vmem>>, vector<128x384xf32>
    %cst_28 = arith.constant dense<0.000000e+00> : vector<16x384xf32>
    %27 = tpu.matmul %0, %26, %cst_28 {dimension_numbers = #tpu.dot_dimension_numbers<[1], [0], [0], [1], [0, 0, 1, 1], [], []>} : vector<16x128xf32>, vector<128x384xf32>, vector<16x384xf32> -> vector<16x384xf32>
    %c0_29 = arith.constant 0 : index
    %c0_30 = arith.constant 0 : index
    %28 = vector.load %arg12[%c0_29, %c0_30] : memref<1x384xf32, #tpu.memory_space<vmem>>, vector<1x384xf32>
    %29 = vector.broadcast %28 : vector<1x384xf32> to vector<16x384xf32>
    %30 = arith.addf %27, %29 : vector<16x384xf32>
    %31 = vector.extract_strided_slice %30 {offsets = [0, 0], sizes = [8, 128], strides = [1, 1]} : vector<16x384xf32> to vector<8x128xf32>
    %32 = vector.extract_strided_slice %30 {offsets = [0, 128], sizes = [8, 128], strides = [1, 1]} : vector<16x384xf32> to vector<8x128xf32>
    %33 = vector.extract_strided_slice %30 {offsets = [0, 256], sizes = [8, 128], strides = [1, 1]} : vector<16x384xf32> to vector<8x128xf32>
    %34 = vector.extract_strided_slice %31 {offsets = [0, 0], sizes = [8, 32], strides = [1, 1]} : vector<8x128xf32> to vector<8x32xf32>
    %35 = vector.extract_strided_slice %32 {offsets = [0, 0], sizes = [8, 32], strides = [1, 1]} : vector<8x128xf32> to vector<8x32xf32>
    %36 = vector.extract_strided_slice %33 {offsets = [0, 0], sizes = [8, 32], strides = [1, 1]} : vector<8x128xf32> to vector<8x32xf32>
    %cst_31 = arith.constant dense<0.000000e+00> : vector<8x8xf32>
    %37 = tpu.matmul %34, %35, %cst_31 {dimension_numbers = #tpu.dot_dimension_numbers<[1], [1], [0], [0], [0, 0, 1, 0], [], []>} : vector<8x32xf32>, vector<8x32xf32>, vector<8x8xf32> -> vector<8x8xf32>
    %cst_32 = arith.constant dense<0xFF800000> : vector<8xf32>
    %38 = vector.multi_reduction <maximumf>, %37, %cst_32 [1] : vector<8x8xf32> to vector<8xf32>
    %39 = vector.shape_cast %38 : vector<8xf32> to vector<8x1xf32>
    %40 = vector.broadcast %39 : vector<8x1xf32> to vector<8x8xf32>
    %41 = arith.subf %37, %40 : vector<8x8xf32>
    %42 = math.exp %41 : vector<8x8xf32>
    %cst_33 = arith.constant dense<0.000000e+00> : vector<8xf32>
    %43 = vector.multi_reduction <add>, %42, %cst_33 [1] : vector<8x8xf32> to vector<8xf32>
    %44 = vector.shape_cast %43 : vector<8xf32> to vector<8x1xf32>
    %45 = vector.broadcast %44 : vector<8x1xf32> to vector<8x8xf32>
    %46 = arith.divf %42, %45 : vector<8x8xf32>
    %cst_34 = arith.constant dense<0.000000e+00> : vector<8x32xf32>
    %47 = tpu.matmul %46, %36, %cst_34 {dimension_numbers = #tpu.dot_dimension_numbers<[1], [0], [0], [1], [0, 0, 1, 1], [], []>} : vector<8x8xf32>, vector<8x32xf32>, vector<8x32xf32> -> vector<8x32xf32>
    %48 = vector.extract_strided_slice %31 {offsets = [0, 32], sizes = [8, 32], strides = [1, 1]} : vector<8x128xf32> to vector<8x32xf32>
    %49 = vector.extract_strided_slice %32 {offsets = [0, 32], sizes = [8, 32], strides = [1, 1]} : vector<8x128xf32> to vector<8x32xf32>
    %50 = vector.extract_strided_slice %33 {offsets = [0, 32], sizes = [8, 32], strides = [1, 1]} : vector<8x128xf32> to vector<8x32xf32>
    %cst_35 = arith.constant dense<0.000000e+00> : vector<8x8xf32>
    %51 = tpu.matmul %48, %49, %cst_35 {dimension_numbers = #tpu.dot_dimension_numbers<[1], [1], [0], [0], [0, 0, 1, 0], [], []>} : vector<8x32xf32>, vector<8x32xf32>, vector<8x8xf32> -> vector<8x8xf32>
    %cst_36 = arith.constant dense<0xFF800000> : vector<8xf32>
    %52 = vector.multi_reduction <maximumf>, %51, %cst_36 [1] : vector<8x8xf32> to vector<8xf32>
    %53 = vector.shape_cast %52 : vector<8xf32> to vector<8x1xf32>
    %54 = vector.broadcast %53 : vector<8x1xf32> to vector<8x8xf32>
    %55 = arith.subf %51, %54 : vector<8x8xf32>
    %56 = math.exp %55 : vector<8x8xf32>
    %cst_37 = arith.constant dense<0.000000e+00> : vector<8xf32>
    %57 = vector.multi_reduction <add>, %56, %cst_37 [1] : vector<8x8xf32> to vector<8xf32>
    %58 = vector.shape_cast %57 : vector<8xf32> to vector<8x1xf32>
    %59 = vector.broadcast %58 : vector<8x1xf32> to vector<8x8xf32>
    %60 = arith.divf %56, %59 : vector<8x8xf32>
    %cst_38 = arith.constant dense<0.000000e+00> : vector<8x32xf32>
    %61 = tpu.matmul %60, %50, %cst_38 {dimension_numbers = #tpu.dot_dimension_numbers<[1], [0], [0], [1], [0, 0, 1, 1], [], []>} : vector<8x8xf32>, vector<8x32xf32>, vector<8x32xf32> -> vector<8x32xf32>
    %62 = vector.extract_strided_slice %31 {offsets = [0, 64], sizes = [8, 32], strides = [1, 1]} : vector<8x128xf32> to vector<8x32xf32>
    %63 = vector.extract_strided_slice %32 {offsets = [0, 64], sizes = [8, 32], strides = [1, 1]} : vector<8x128xf32> to vector<8x32xf32>
    %64 = vector.extract_strided_slice %33 {offsets = [0, 64], sizes = [8, 32], strides = [1, 1]} : vector<8x128xf32> to vector<8x32xf32>
    %cst_39 = arith.constant dense<0.000000e+00> : vector<8x8xf32>
    %65 = tpu.matmul %62, %63, %cst_39 {dimension_numbers = #tpu.dot_dimension_numbers<[1], [1], [0], [0], [0, 0, 1, 0], [], []>} : vector<8x32xf32>, vector<8x32xf32>, vector<8x8xf32> -> vector<8x8xf32>
    %cst_40 = arith.constant dense<0xFF800000> : vector<8xf32>
    %66 = vector.multi_reduction <maximumf>, %65, %cst_40 [1] : vector<8x8xf32> to vector<8xf32>
    %67 = vector.shape_cast %66 : vector<8xf32> to vector<8x1xf32>
    %68 = vector.broadcast %67 : vector<8x1xf32> to vector<8x8xf32>
    %69 = arith.subf %65, %68 : vector<8x8xf32>
    %70 = math.exp %69 : vector<8x8xf32>
    %cst_41 = arith.constant dense<0.000000e+00> : vector<8xf32>
    %71 = vector.multi_reduction <add>, %70, %cst_41 [1] : vector<8x8xf32> to vector<8xf32>
    %72 = vector.shape_cast %71 : vector<8xf32> to vector<8x1xf32>
    %73 = vector.broadcast %72 : vector<8x1xf32> to vector<8x8xf32>
    %74 = arith.divf %70, %73 : vector<8x8xf32>
    %cst_42 = arith.constant dense<0.000000e+00> : vector<8x32xf32>
    %75 = tpu.matmul %74, %64, %cst_42 {dimension_numbers = #tpu.dot_dimension_numbers<[1], [0], [0], [1], [0, 0, 1, 1], [], []>} : vector<8x8xf32>, vector<8x32xf32>, vector<8x32xf32> -> vector<8x32xf32>
    %76 = vector.extract_strided_slice %31 {offsets = [0, 96], sizes = [8, 32], strides = [1, 1]} : vector<8x128xf32> to vector<8x32xf32>
    %77 = vector.extract_strided_slice %32 {offsets = [0, 96], sizes = [8, 32], strides = [1, 1]} : vector<8x128xf32> to vector<8x32xf32>
    %78 = vector.extract_strided_slice %33 {offsets = [0, 96], sizes = [8, 32], strides = [1, 1]} : vector<8x128xf32> to vector<8x32xf32>
    %cst_43 = arith.constant dense<0.000000e+00> : vector<8x8xf32>
    %79 = tpu.matmul %76, %77, %cst_43 {dimension_numbers = #tpu.dot_dimension_numbers<[1], [1], [0], [0], [0, 0, 1, 0], [], []>} : vector<8x32xf32>, vector<8x32xf32>, vector<8x8xf32> -> vector<8x8xf32>
    %cst_44 = arith.constant dense<0xFF800000> : vector<8xf32>
    %80 = vector.multi_reduction <maximumf>, %79, %cst_44 [1] : vector<8x8xf32> to vector<8xf32>
    %81 = vector.shape_cast %80 : vector<8xf32> to vector<8x1xf32>
    %82 = vector.broadcast %81 : vector<8x1xf32> to vector<8x8xf32>
    %83 = arith.subf %79, %82 : vector<8x8xf32>
    %84 = math.exp %83 : vector<8x8xf32>
    %cst_45 = arith.constant dense<0.000000e+00> : vector<8xf32>
    %85 = vector.multi_reduction <add>, %84, %cst_45 [1] : vector<8x8xf32> to vector<8xf32>
    %86 = vector.shape_cast %85 : vector<8xf32> to vector<8x1xf32>
    %87 = vector.broadcast %86 : vector<8x1xf32> to vector<8x8xf32>
    %88 = arith.divf %84, %87 : vector<8x8xf32>
    %cst_46 = arith.constant dense<0.000000e+00> : vector<8x32xf32>
    %89 = tpu.matmul %88, %78, %cst_46 {dimension_numbers = #tpu.dot_dimension_numbers<[1], [0], [0], [1], [0, 0, 1, 1], [], []>} : vector<8x8xf32>, vector<8x32xf32>, vector<8x32xf32> -> vector<8x32xf32>
    %90 = tpu.concatenate %47, %61, %75, %89 in 1 : vector<8x32xf32>, vector<8x32xf32>, vector<8x32xf32>, vector<8x32xf32> -> vector<8x128xf32>
    %c0_47 = arith.constant 0 : index
    %c0_48 = arith.constant 0 : index
    %91 = vector.load %arg22[%c0_47, %c0_48] : memref<16x128xf32, #tpu.memory_space<vmem>>, vector<8x128xf32>
    tpu.vector_store %arg22[%c0_47, %c0_48], %90 {strides = array<i32>} : memref<16x128xf32, #tpu.memory_space<vmem>>, vector<8x128xf32>,
    %92 = vector.extract_strided_slice %30 {offsets = [8, 0], sizes = [8, 128], strides = [1, 1]} : vector<16x384xf32> to vector<8x128xf32>
    %93 = vector.extract_strided_slice %30 {offsets = [8, 128], sizes = [8, 128], strides = [1, 1]} : vector<16x384xf32> to vector<8x128xf32>
    %94 = vector.extract_strided_slice %30 {offsets = [8, 256], sizes = [8, 128], strides = [1, 1]} : vector<16x384xf32> to vector<8x128xf32>
    %95 = vector.extract_strided_slice %92 {offsets = [0, 0], sizes = [8, 32], strides = [1, 1]} : vector<8x128xf32> to vector<8x32xf32>
    %96 = vector.extract_strided_slice %93 {offsets = [0, 0], sizes = [8, 32], strides = [1, 1]} : vector<8x128xf32> to vector<8x32xf32>
    %97 = vector.extract_strided_slice %94 {offsets = [0, 0], sizes = [8, 32], strides = [1, 1]} : vector<8x128xf32> to vector<8x32xf32>
    %cst_49 = arith.constant dense<0.000000e+00> : vector<8x8xf32>
    %98 = tpu.matmul %95, %96, %cst_49 {dimension_numbers = #tpu.dot_dimension_numbers<[1], [1], [0], [0], [0, 0, 1, 0], [], []>} : vector<8x32xf32>, vector<8x32xf32>, vector<8x8xf32> -> vector<8x8xf32>
    %cst_50 = arith.constant dense<0xFF800000> : vector<8xf32>
    %99 = vector.multi_reduction <maximumf>, %98, %cst_50 [1] : vector<8x8xf32> to vector<8xf32>
    %100 = vector.shape_cast %99 : vector<8xf32> to vector<8x1xf32>
    %101 = vector.broadcast %100 : vector<8x1xf32> to vector<8x8xf32>
    %102 = arith.subf %98, %101 : vector<8x8xf32>
    %103 = math.exp %102 : vector<8x8xf32>
    %cst_51 = arith.constant dense<0.000000e+00> : vector<8xf32>
    %104 = vector.multi_reduction <add>, %103, %cst_51 [1] : vector<8x8xf32> to vector<8xf32>
    %105 = vector.shape_cast %104 : vector<8xf32> to vector<8x1xf32>
    %106 = vector.broadcast %105 : vector<8x1xf32> to vector<8x8xf32>
    %107 = arith.divf %103, %106 : vector<8x8xf32>
    %cst_52 = arith.constant dense<0.000000e+00> : vector<8x32xf32>
    %108 = tpu.matmul %107, %97, %cst_52 {dimension_numbers = #tpu.dot_dimension_numbers<[1], [0], [0], [1], [0, 0, 1, 1], [], []>} : vector<8x8xf32>, vector<8x32xf32>, vector<8x32xf32> -> vector<8x32xf32>
    %109 = vector.extract_strided_slice %92 {offsets = [0, 32], sizes = [8, 32], strides = [1, 1]} : vector<8x128xf32> to vector<8x32xf32>
    %110 = vector.extract_strided_slice %93 {offsets = [0, 32], sizes = [8, 32], strides = [1, 1]} : vector<8x128xf32> to vector<8x32xf32>
    %111 = vector.extract_strided_slice %94 {offsets = [0, 32], sizes = [8, 32], strides = [1, 1]} : vector<8x128xf32> to vector<8x32xf32>
    %cst_53 = arith.constant dense<0.000000e+00> : vector<8x8xf32>
    %112 = tpu.matmul %109, %110, %cst_53 {dimension_numbers = #tpu.dot_dimension_numbers<[1], [1], [0], [0], [0, 0, 1, 0], [], []>} : vector<8x32xf32>, vector<8x32xf32>, vector<8x8xf32> -> vector<8x8xf32>
    %cst_54 = arith.constant dense<0xFF800000> : vector<8xf32>
    %113 = vector.multi_reduction <maximumf>, %112, %cst_54 [1] : vector<8x8xf32> to vector<8xf32>
    %114 = vector.shape_cast %113 : vector<8xf32> to vector<8x1xf32>
    %115 = vector.broadcast %114 : vector<8x1xf32> to vector<8x8xf32>
    %116 = arith.subf %112, %115 : vector<8x8xf32>
    %117 = math.exp %116 : vector<8x8xf32>
    %cst_55 = arith.constant dense<0.000000e+00> : vector<8xf32>
    %118 = vector.multi_reduction <add>, %117, %cst_55 [1] : vector<8x8xf32> to vector<8xf32>
    %119 = vector.shape_cast %118 : vector<8xf32> to vector<8x1xf32>
    %120 = vector.broadcast %119 : vector<8x1xf32> to vector<8x8xf32>
    %121 = arith.divf %117, %120 : vector<8x8xf32>
    %cst_56 = arith.constant dense<0.000000e+00> : vector<8x32xf32>
    %122 = tpu.matmul %121, %111, %cst_56 {dimension_numbers = #tpu.dot_dimension_numbers<[1], [0], [0], [1], [0, 0, 1, 1], [], []>} : vector<8x8xf32>, vector<8x32xf32>, vector<8x32xf32> -> vector<8x32xf32>
    %123 = vector.extract_strided_slice %92 {offsets = [0, 64], sizes = [8, 32], strides = [1, 1]} : vector<8x128xf32> to vector<8x32xf32>
    %124 = vector.extract_strided_slice %93 {offsets = [0, 64], sizes = [8, 32], strides = [1, 1]} : vector<8x128xf32> to vector<8x32xf32>
    %125 = vector.extract_strided_slice %94 {offsets = [0, 64], sizes = [8, 32], strides = [1, 1]} : vector<8x128xf32> to vector<8x32xf32>
    %cst_57 = arith.constant dense<0.000000e+00> : vector<8x8xf32>
    %126 = tpu.matmul %123, %124, %cst_57 {dimension_numbers = #tpu.dot_dimension_numbers<[1], [1], [0], [0], [0, 0, 1, 0], [], []>} : vector<8x32xf32>, vector<8x32xf32>, vector<8x8xf32> -> vector<8x8xf32>
    %cst_58 = arith.constant dense<0xFF800000> : vector<8xf32>
    %127 = vector.multi_reduction <maximumf>, %126, %cst_58 [1] : vector<8x8xf32> to vector<8xf32>
    %128 = vector.shape_cast %127 : vector<8xf32> to vector<8x1xf32>
    %129 = vector.broadcast %128 : vector<8x1xf32> to vector<8x8xf32>
    %130 = arith.subf %126, %129 : vector<8x8xf32>
    %131 = math.exp %130 : vector<8x8xf32>
    %cst_59 = arith.constant dense<0.000000e+00> : vector<8xf32>
    %132 = vector.multi_reduction <add>, %131, %cst_59 [1] : vector<8x8xf32> to vector<8xf32>
    %133 = vector.shape_cast %132 : vector<8xf32> to vector<8x1xf32>
    %134 = vector.broadcast %133 : vector<8x1xf32> to vector<8x8xf32>
    %135 = arith.divf %131, %134 : vector<8x8xf32>
    %cst_60 = arith.constant dense<0.000000e+00> : vector<8x32xf32>
    %136 = tpu.matmul %135, %125, %cst_60 {dimension_numbers = #tpu.dot_dimension_numbers<[1], [0], [0], [1], [0, 0, 1, 1], [], []>} : vector<8x8xf32>, vector<8x32xf32>, vector<8x32xf32> -> vector<8x32xf32>
    %137 = vector.extract_strided_slice %92 {offsets = [0, 96], sizes = [8, 32], strides = [1, 1]} : vector<8x128xf32> to vector<8x32xf32>
    %138 = vector.extract_strided_slice %93 {offsets = [0, 96], sizes = [8, 32], strides = [1, 1]} : vector<8x128xf32> to vector<8x32xf32>
    %139 = vector.extract_strided_slice %94 {offsets = [0, 96], sizes = [8, 32], strides = [1, 1]} : vector<8x128xf32> to vector<8x32xf32>
    %cst_61 = arith.constant dense<0.000000e+00> : vector<8x8xf32>
    %140 = tpu.matmul %137, %138, %cst_61 {dimension_numbers = #tpu.dot_dimension_numbers<[1], [1], [0], [0], [0, 0, 1, 0], [], []>} : vector<8x32xf32>, vector<8x32xf32>, vector<8x8xf32> -> vector<8x8xf32>
    %cst_62 = arith.constant dense<0xFF800000> : vector<8xf32>
    %141 = vector.multi_reduction <maximumf>, %140, %cst_62 [1] : vector<8x8xf32> to vector<8xf32>
    %142 = vector.shape_cast %141 : vector<8xf32> to vector<8x1xf32>
    %143 = vector.broadcast %142 : vector<8x1xf32> to vector<8x8xf32>
    %144 = arith.subf %140, %143 : vector<8x8xf32>
    %145 = math.exp %144 : vector<8x8xf32>
    %cst_63 = arith.constant dense<0.000000e+00> : vector<8xf32>
    %146 = vector.multi_reduction <add>, %145, %cst_63 [1] : vector<8x8xf32> to vector<8xf32>
    %147 = vector.shape_cast %146 : vector<8xf32> to vector<8x1xf32>
    %148 = vector.broadcast %147 : vector<8x1xf32> to vector<8x8xf32>
    %149 = arith.divf %145, %148 : vector<8x8xf32>
    %cst_64 = arith.constant dense<0.000000e+00> : vector<8x32xf32>
    %150 = tpu.matmul %149, %139, %cst_64 {dimension_numbers = #tpu.dot_dimension_numbers<[1], [0], [0], [1], [0, 0, 1, 1], [], []>} : vector<8x8xf32>, vector<8x32xf32>, vector<8x32xf32> -> vector<8x32xf32>
    %151 = tpu.concatenate %108, %122, %136, %150 in 1 : vector<8x32xf32>, vector<8x32xf32>, vector<8x32xf32>, vector<8x32xf32> -> vector<8x128xf32>
    %c8 = arith.constant 8 : index
    %c0_65 = arith.constant 0 : index
    %152 = vector.load %arg22[%c8, %c0_65] : memref<16x128xf32, #tpu.memory_space<vmem>>, vector<8x128xf32>
    tpu.vector_store %arg22[%c8, %c0_65], %151 {strides = array<i32>} : memref<16x128xf32, #tpu.memory_space<vmem>>, vector<8x128xf32>,
    %c0_66 = arith.constant 0 : index
    %c0_67 = arith.constant 0 : index
    %153 = vector.load %arg22[%c0_66, %c0_67] : memref<16x128xf32, #tpu.memory_space<vmem>>, vector<16x128xf32>
    %c0_68 = arith.constant 0 : index
    %c0_69 = arith.constant 0 : index
    %154 = vector.load %arg13[%c0_68, %c0_69] : memref<128x128xf32, #tpu.memory_space<vmem>>, vector<128x128xf32>
    %cst_70 = arith.constant dense<0.000000e+00> : vector<16x128xf32>
    %155 = tpu.matmul %153, %154, %cst_70 {dimension_numbers = #tpu.dot_dimension_numbers<[1], [0], [0], [1], [0, 0, 1, 1], [], []>} : vector<16x128xf32>, vector<128x128xf32>, vector<16x128xf32> -> vector<16x128xf32>
    %c0_71 = arith.constant 0 : index
    %c0_72 = arith.constant 0 : index
    %156 = vector.load %arg14[%c0_71, %c0_72] : memref<1x128xf32, #tpu.memory_space<vmem>>, vector<1x128xf32>
    %157 = vector.broadcast %156 : vector<1x128xf32> to vector<16x128xf32>
    %158 = arith.addf %155, %157 : vector<16x128xf32>
    %159 = arith.addf %158, %2 : vector<16x128xf32>
    %160 = arith.addf %25, %159 : vector<16x128xf32>
    %c0_73 = arith.constant 0 : index
    %c0_74 = arith.constant 0 : index
    %161 = vector.load %arg15[%c0_73, %c0_74] : memref<128x256xf32, #tpu.memory_space<vmem>>, vector<128x256xf32>
    %cst_75 = arith.constant dense<0.000000e+00> : vector<16x256xf32>
    %162 = tpu.matmul %160, %161, %cst_75 {dimension_numbers = #tpu.dot_dimension_numbers<[1], [0], [0], [1], [0, 0, 1, 1], [], []>} : vector<16x128xf32>, vector<128x256xf32>, vector<16x256xf32> -> vector<16x256xf32>
    %c0_76 = arith.constant 0 : index
    %c0_77 = arith.constant 0 : index
    %163 = vector.load %arg16[%c0_76, %c0_77] : memref<1x256xf32, #tpu.memory_space<vmem>>, vector<1x256xf32>
    %164 = vector.broadcast %163 : vector<1x256xf32> to vector<16x256xf32>
    %165 = arith.addf %162, %164 : vector<16x256xf32>
    %cst_78 = arith.constant 0.000000e+00 : f32
    %166 = vector.broadcast %cst_78 : f32 to vector<16x256xf32>
    %167 = arith.maximumf %165, %166 : vector<16x256xf32>
    %c0_79 = arith.constant 0 : index
    %c0_80 = arith.constant 0 : index
    %168 = vector.load %arg17[%c0_79, %c0_80] : memref<256x128xf32, #tpu.memory_space<vmem>>, vector<256x128xf32>
    %cst_81 = arith.constant dense<0.000000e+00> : vector<16x128xf32>
    %169 = tpu.matmul %167, %168, %cst_81 {dimension_numbers = #tpu.dot_dimension_numbers<[1], [0], [0], [1], [0, 0, 1, 1], [], []>} : vector<16x256xf32>, vector<256x128xf32>, vector<16x128xf32> -> vector<16x128xf32>
    %c0_82 = arith.constant 0 : index
    %c0_83 = arith.constant 0 : index
    %170 = vector.load %arg18[%c0_82, %c0_83] : memref<1x128xf32, #tpu.memory_space<vmem>>, vector<1x128xf32>
    %171 = vector.broadcast %170 : vector<1x128xf32> to vector<16x128xf32>
    %172 = arith.addf %169, %171 : vector<16x128xf32>
    %cst_84 = arith.constant 0.999994993 : f32
    %173 = vector.broadcast %cst_84 : f32 to vector<16x128xf32>
    %174 = arith.mulf %160, %173 : vector<16x128xf32>
    %175 = arith.addf %174, %172 : vector<16x128xf32>
    %c0_85 = arith.constant 0 : index
    %c0_86 = arith.constant 0 : index
    %176 = vector.load %arg19[%c0_85, %c0_86] : memref<16x128xf32, #tpu.memory_space<vmem>>, vector<16x128xf32>
    tpu.vector_store %arg19[%c0_85, %c0_86], %175 {strides = array<i32>} : memref<16x128xf32, #tpu.memory_space<vmem>>, vector<16x128xf32>,
    return
  }
  func.func @transform_0(%arg0: i32, %arg1: memref<32xi32, #tpu.memory_space<smem>>, %arg2: memref<32xi32, #tpu.memory_space<smem>>) -> (i32, i32) {
    %c0_i32 = arith.constant 0 : i32
    %c0_i32_0 = arith.constant 0 : i32
    %c0_i32_1 = arith.constant 0 : i32
    return %c0_i32, %c0_i32_0 : i32, i32
  }
  func.func @transform_1(%arg0: i32, %arg1: memref<32xi32, #tpu.memory_space<smem>>, %arg2: memref<32xi32, #tpu.memory_space<smem>>) -> (i32, i32) {
    %c0_i32 = arith.constant 0 : i32
    %c0_i32_0 = arith.constant 0 : i32
    %c0_i32_1 = arith.constant 0 : i32
    return %c0_i32, %c0_i32_0 : i32, i32
  }
  func.func @transform_2(%arg0: i32, %arg1: memref<32xi32, #tpu.memory_space<smem>>, %arg2: memref<32xi32, #tpu.memory_space<smem>>) -> (i32, i32) {
    %c0_i32 = arith.constant 0 : i32
    %c0_i32_0 = arith.constant 0 : i32
    %c0_i32_1 = arith.constant 0 : i32
    return %c0_i32, %c0_i32_0 : i32, i32
  }
  func.func @transform_3(%arg0: i32, %arg1: memref<32xi32, #tpu.memory_space<smem>>, %arg2: memref<32xi32, #tpu.memory_space<smem>>) -> (i32, i32) {
    %c0_i32 = arith.constant 0 : i32
    %c0_i32_0 = arith.constant 0 : i32
    %c0_i32_1 = arith.constant 0 : i32
    return %c0_i32, %c0_i32_0 : i32, i32
  }
  func.func @transform_4(%arg0: i32, %arg1: memref<32xi32, #tpu.memory_space<smem>>, %arg2: memref<32xi32, #tpu.memory_space<smem>>) -> (i32, i32) {
    %c0_i32 = arith.constant 0 : i32
    %c0_i32_0 = arith.constant 0 : i32
    %c0_i32_1 = arith.constant 0 : i32
    return %c0_i32, %c0_i32_0 : i32, i32
  }
  func.func @transform_5(%arg0: i32, %arg1: memref<32xi32, #tpu.memory_space<smem>>, %arg2: memref<32xi32, #tpu.memory_space<smem>>) -> (i32, i32) {
    %c0_i32 = arith.constant 0 : i32
    %c0_i32_0 = arith.constant 0 : i32
    %c0_i32_1 = arith.constant 0 : i32
    return %c0_i32, %c0_i32_0 : i32, i32
  }
  func.func @transform_6(%arg0: i32, %arg1: memref<32xi32, #tpu.memory_space<smem>>, %arg2: memref<32xi32, #tpu.memory_space<smem>>) -> (i32, i32) {
    %c0_i32 = arith.constant 0 : i32
    %c0_i32_0 = arith.constant 0 : i32
    %c0_i32_1 = arith.constant 0 : i32
    return %c0_i32, %c0_i32_0 : i32, i32
  }
  func.func @transform_7(%arg0: i32, %arg1: memref<32xi32, #tpu.memory_space<smem>>, %arg2: memref<32xi32, #tpu.memory_space<smem>>) -> (i32, i32) {
    %c0_i32 = arith.constant 0 : i32
    %c0_i32_0 = arith.constant 0 : i32
    %c0_i32_1 = arith.constant 0 : i32
    return %c0_i32, %c0_i32_0 : i32, i32
  }
  func.func @transform_8(%arg0: i32, %arg1: memref<32xi32, #tpu.memory_space<smem>>, %arg2: memref<32xi32, #tpu.memory_space<smem>>) -> (i32, i32) {
    %c0_i32 = arith.constant 0 : i32
    %c0_i32_0 = arith.constant 0 : i32
    %c0_i32_1 = arith.constant 0 : i32
    return %c0_i32, %c0_i32_0 : i32, i32
  }
  func.func @transform_9(%arg0: i32, %arg1: memref<32xi32, #tpu.memory_space<smem>>, %arg2: memref<32xi32, #tpu.memory_space<smem>>) -> (i32, i32) {
    %c0_i32 = arith.constant 0 : i32
    %c0_i32_0 = arith.constant 0 : i32
    %c0_i32_1 = arith.constant 0 : i32
    return %c0_i32, %c0_i32_0 : i32, i32
  }
  func.func @transform_10(%arg0: i32, %arg1: memref<32xi32, #tpu.memory_space<smem>>, %arg2: memref<32xi32, #tpu.memory_space<smem>>) -> (i32, i32) {
    %c0_i32 = arith.constant 0 : i32
    %c0_i32_0 = arith.constant 0 : i32
    %c0_i32_1 = arith.constant 0 : i32
    return %c0_i32, %c0_i32_0 : i32, i32
  }
  func.func @transform_11(%arg0: i32, %arg1: memref<32xi32, #tpu.memory_space<smem>>, %arg2: memref<32xi32, #tpu.memory_space<smem>>) -> (i32, i32) {
    %c0_i32 = arith.constant 0 : i32
    %c0_i32_0 = arith.constant 0 : i32
    %c0_i32_1 = arith.constant 0 : i32
    return %c0_i32, %c0_i32_0 : i32, i32
  }
  func.func @transform_12(%arg0: i32, %arg1: memref<32xi32, #tpu.memory_space<smem>>, %arg2: memref<32xi32, #tpu.memory_space<smem>>) -> (i32, i32) {
    %c0_i32 = arith.constant 0 : i32
    %c0_i32_0 = arith.constant 0 : i32
    %c0_i32_1 = arith.constant 0 : i32
    return %c0_i32, %c0_i32_0 : i32, i32
  }
  func.func @transform_13(%arg0: i32, %arg1: memref<32xi32, #tpu.memory_space<smem>>, %arg2: memref<32xi32, #tpu.memory_space<smem>>) -> (i32, i32) {
    %c0_i32 = arith.constant 0 : i32
    %c0_i32_0 = arith.constant 0 : i32
    %c0_i32_1 = arith.constant 0 : i32
    return %c0_i32, %c0_i32_0 : i32, i32
  }
  func.func @transform_14(%arg0: i32, %arg1: memref<32xi32, #tpu.memory_space<smem>>, %arg2: memref<32xi32, #tpu.memory_space<smem>>) -> (i32, i32) {
    %c0_i32 = arith.constant 0 : i32
    %c0_i32_0 = arith.constant 0 : i32
    %c0_i32_1 = arith.constant 0 : i32
    return %c0_i32, %c0_i32_0 : i32, i32
  }
  func.func @transform_15(%arg0: i32, %arg1: memref<32xi32, #tpu.memory_space<smem>>, %arg2: memref<32xi32, #tpu.memory_space<smem>>) -> (i32, i32) {
    %c0_i32 = arith.constant 0 : i32
    %c0_i32_0 = arith.constant 0 : i32
    %c0_i32_1 = arith.constant 0 : i32
    return %c0_i32, %c0_i32_0 : i32, i32
  }
  func.func @transform_16(%arg0: i32, %arg1: memref<32xi32, #tpu.memory_space<smem>>, %arg2: memref<32xi32, #tpu.memory_space<smem>>) -> (i32, i32) {
    %c0_i32 = arith.constant 0 : i32
    %c0_i32_0 = arith.constant 0 : i32
    %c0_i32_1 = arith.constant 0 : i32
    return %c0_i32, %c0_i32_0 : i32, i32
  }
}

</mosaic_0001>

<llo_original>
// kernel: gps_forward.3
$region0: #{gps_forward.3}
  #allocation0 [shape = 'u32[]', space=smem, size = 0x4, offset = 0x4, fixed_abs, tag = 'smem constant byte address 0x4 - core index']
  #allocation1 [shape = 'u32[144,128]{1,0:T(1,128)}', space=vmem, size = 0x12000, scoped, tag = 'internal scratch']
  %s0 = inlined_call_operand.vmem [shape: f32[16,52], index: 0, kind: input, shape index: {}]
  %s1 = inlined_call_operand.vmem [shape: f32[52,128], index: 1, kind: input, shape index: {}]
  %s2 = inlined_call_operand.hbm [shape: f32[1,128], index: 2, kind: input, shape index: {}]
  %s3 = inlined_call_operand.vmem [shape: f32[16,128], index: 3, kind: output, shape index: {}]
  %s4 = sld [smem:[#allocation0]]
  $region26: #{gps_forward.3} parent=0
    _
  %s6 = ssub.s32 1, %s4
  %s7 = scalar_select 0, %s6, %s4
  $region1: #{gps_forward.3} parent=0
    #allocation2 [shape = 'u8[512]{0}', space=vmem, size = 0x400, scoped, tag = 'input window, operand 2, single buffered']
    #allocation3 [shape = 's32[1]{0}', space=sflag, size = 0x4, scoped, tag = 'scoped memory for gps_forward.3']
    %8 = vsyncpa [#allocation3], 0
    // Predicated region
    $region2: #{gps_forward.3} parent=1 // pred_check
      _
    $region3: #{gps_forward.3} parent=1 // pred_check_branch
      %10 = sbr.rel (0) target = $region5
    $region4: #{gps_forward.3} parent=1 // pred_region
      _
    $region5: #{gps_forward.3} parent=1 // pred_fallthru
      _
    // Predicated region
    $region6: #{gps_forward.3} parent=1 // pred_check
      _
    $region7: #{gps_forward.3} parent=1 // pred_check_branch
      %12 = sbr.rel (0) target = $region9
    $region8: #{gps_forward.3} parent=1 // pred_region
      _
    $region9: #{gps_forward.3} parent=1 // pred_fallthru
      _
    // Predicated region
    $region10: #{gps_forward.3} parent=1 // pred_check
      _
    $region11: #{gps_forward.3} parent=1 // pred_check_branch
      %14 = sbr.rel (0) target = $region13
    $region12: #{gps_forward.3} parent=1 // pred_region
      %s16 = ssub.s32 16, 16
      %17 = vsyncadd [#allocation3], %s16
      %s19 = sshll.u32 [#allocation2], 4
      %s20 = int_to_ptr.vmem [resolvable:$true] %s19
      %22 = dma.hbm_to_vmem [thread:$0]  %s2, 16, %s20, [#allocation3]
    $region13: #{gps_forward.3} parent=1 // pred_fallthru
      _
    // Predicated region
    $region14: #{gps_forward.3} parent=1 // pred_check
      _
    $region15: #{gps_forward.3} parent=1 // pred_check_branch
      %24 = sbr.rel (0) target = $region17
    $region16: #{gps_forward.3} parent=1 // pred_region
      %25 = dma.done [#allocation3], 16
    $region17: #{gps_forward.3} parent=1 // pred_fallthru
      _
    %v26 = vld [vmem:[%s0] sm:$0xff]
    %v27 = vld [vmem:[%s0 + $0x8] sm:$0xff]
    %v28 = vld [vmem:[%s1] sm:$0xff]
    %v29 = vld [vmem:[%s1 + $0x8] sm:$0xff]
    %v30 = vld [vmem:[%s1 + $0x10] sm:$0xff]
    %v31 = vld [vmem:[%s1 + $0x18] sm:$0xff]
    %v32 = vld [vmem:[%s1 + $0x20] sm:$0xff]
    %v33 = vld [vmem:[%s1 + $0x28] sm:$0xff]
    %v34 = vld [vmem:[%s1 + $0x30] sm:$0xf]
    %v35 = vld [vmem:[#allocation2] sm:$0x1]
    %v37 = vlaneseq
    %v38 = vshrl.u32 %v37, 7
    %v39 = vsub.s32 0, %v38
    %v40 = vrot.slane %v35, %v39
    %vm42 = vcmask 424960
    %v44 = vsel %vm42, %v26, 0
    %v47 = vsel %vm42, %v27, 0
    %vm49 = vcmask 1043456
    %v51 = vsel %vm49, %v34, 0
    %53 = vmatprep.subr.mxu0 0.0
    %54 = vmatpush1.msra.mxu0 %v28
    %55 = vmatprep.subr.mxu0 0.0
    %56 = vmatpush1.msra.mxu0 %v29
    %57 = vmatprep.subr.mxu0 0.0
    %58 = vmatpush1.msra.mxu0 %v30
    %59 = vmatprep.subr.mxu0 0.0
    %60 = vmatpush1.msra.mxu0 %v31
    %61 = vmatprep.subr.mxu0 0.0
    %62 = vmatpush1.msra.mxu0 %v32
    %63 = vmatprep.subr.mxu0 0.0
    %64 = vmatpush1.msra.mxu0 %v33
    %65 = vmatprep.subr.mxu0 0.0
    %66 = vmatpush1.msra.mxu0 %v51
    %67 = vmatprep.subr.mxu0 0.0
    %68 = vmatpush1.msra.mxu0 0.0
    %69 = vmatprep.subr.mxu0 0.0
    %70 = vmatpush1.msra.mxu0 0.0
    %71 = vmatprep.subr.mxu0 0.0
    %72 = vmatpush1.msra.mxu0 0.0
    %73 = vmatprep.subr.mxu0 0.0
    %74 = vmatpush1.msra.mxu0 0.0
    %75 = vmatprep.subr.mxu0 0.0
    %76 = vmatpush1.msra.mxu0 0.0
    %77 = vmatprep.subr.mxu0 0.0
    %78 = vmatpush1.msra.mxu0 0.0
    %79 = vmatprep.subr.mxu0 0.0
    %80 = vmatpush1.msra.mxu0 0.0
    %81 = vmatprep.subr.mxu0 0.0
    %82 = vmatpush1.msra.mxu0 0.0
    %83 = vmatprep.subr.mxu0 0.0
    %84 = vmatpush1.msra.mxu0 0.0
    %85 = vmatprep.subr.mxu0 0.0
    %86 = vmatpush1.msra.mxu0 0.0
    %87 = vmatprep.subr.mxu0 0.0
    %88 = vmatpush1.msra.mxu0 0.0
    %89 = vmatprep.subr.mxu0 0.0
    %90 = vmatpush1.msra.mxu0 0.0
    %91 = vmatprep.subr.mxu0 0.0
    %92 = vmatpush1.msra.mxu0 0.0
    %93 = vmatprep.subr.mxu0 0.0
    %94 = vmatpush1.msra.mxu0 0.0
    %95 = vmatprep.subr.mxu0 0.0
    %96 = vmatpush1.msra.mxu0 0.0
    %97 = vmatprep.subr.mxu0 0.0
    %98 = vmatpush1.msra.mxu0 0.0
    %99 = vmatprep.subr.mxu0 0.0
    %100 = vmatpush1.msra.mxu0 0.0
    %101 = vmatprep.subr.mxu0 0.0
    %102 = vmatpush1.msra.mxu0 0.0
    %103 = vmatprep.subr.mxu0 0.0
    %104 = vmatpush1.msra.mxu0 0.0
    %105 = vmatprep.subr.mxu0 0.0
    %106 = vmatpush1.msra.mxu0 0.0
    %107 = vmatprep.subr.mxu0 0.0
    %108 = vmatpush1.msra.mxu0 0.0
    %109 = vmatprep.subr.mxu0 0.0
    %110 = vmatpush1.msra.mxu0 0.0
    %111 = vmatprep.subr.mxu0 0.0
    %112 = vmatpush1.msra.mxu0 0.0
    %113 = vmatprep.subr.mxu0 0.0
    %114 = vmatpush1.msra.mxu0 0.0
    %115 = vmatprep.subr.mxu0 0.0
    %116 = vmatpush1.msra.mxu0 0.0
    %117 = vmatprep.mubr.f32.mxu0 0.0
    %118 = vmatmul.mubr.f32.gmra.mrb[0].mxu0 %v44
    %v119 = vpop.f32.mrb[0].mxu0
    %v120 = vadd.f32 %v40, %v119
    %v121 = vpop.f32.mrb[0].mxu0
    %122 = vmatprep.mubr.f32.mxu0 0.0
    %123 = vmatmul.mubr.f32.gmra.mrb[0].mxu0 %v47
    %v124 = vpop.f32.mrb[0].mxu0
    %v125 = vadd.f32 %v40, %v124
    %v126 = vpop.f32.mrb[0].mxu0
    %127 = vdwg.mxu0
    %128 = vst [vmem:[%s3] sm:$0xff] %v120
    %129 = vst [vmem:[%s3 + $0x8] sm:$0xff] %v125
    // Predicated region
    $region18: #{gps_forward.3} parent=1 // pred_check
      _
    $region19: #{gps_forward.3} parent=1 // pred_check_branch
      %131 = sbr.rel (0) target = $region21
    $region20: #{gps_forward.3} parent=1 // pred_region
      _
    $region21: #{gps_forward.3} parent=1 // pred_fallthru
      _
    // Predicated region
    $region22: #{gps_forward.3} parent=1 // pred_check
      _
    $region23: #{gps_forward.3} parent=1 // pred_check_branch
      %133 = sbr.rel (0) target = $region25
    $region24: #{gps_forward.3} parent=1 // pred_region
      _
    $region25: #{gps_forward.3} parent=1 // pred_fallthru
      _
    %134 = vsyncpa [#allocation3], 1

// kernel: gps_forward.4
$region0: #{gps_forward.4}
  #allocation0 [shape = 'u32[]', space=smem, size = 0x4, offset = 0x4, fixed_abs, tag = 'smem constant byte address 0x4 - core index']
  #allocation1 [shape = 'u32[144,128]{1,0:T(1,128)}', space=vmem, size = 0x12000, scoped, tag = 'internal scratch']
  #allocation2 [shape = 'f32[32,128]{1,0:T(8,128)}', space=vmem, size = 0x4000, scoped, tag = 'scratch operand']
  #allocation3 [shape = 'f32[16,128]{1,0:T(8,128)}', space=vmem, size = 0x2000, scoped, tag = 'scratch operand']
  #allocation4 [shape = 'f32[16,128]{1,0:T(8,128)}', space=vmem, size = 0x2000, scoped, tag = 'scratch operand']
  #allocation5 [shape = 's32[1]{0}', space=sflag, size = 0x4, scoped, tag = 'scoped memory for gps_forward.4']
  #allocation6 [shape = 'u8[512]{0}', space=smem, size = 0x200, scoped, tag = 'prefetched SMEM operand 0']
  #allocation7 [shape = 'u8[512]{0}', space=smem, size = 0x200, scoped, tag = 'prefetched SMEM operand 1']
  %s0 = inlined_call_operand.vmem [shape: s32[32], index: 0, kind: input, shape index: {}]
  %s1 = inlined_call_operand.vmem [shape: s32[32], index: 1, kind: input, shape index: {}]
  %s2 = inlined_call_operand.vmem [shape: f32[16,128], index: 2, kind: input, shape index: {}]
  %s3 = inlined_call_operand.vmem [shape: f32[32,10], index: 3, kind: input, shape index: {}]
  %s4 = inlined_call_operand.hbm [shape: f32[10,128], index: 4, kind: input, shape index: {}]
  %s5 = inlined_call_operand.vmem [shape: f32[1,128], index: 5, kind: input, shape index: {}]
  %s6 = inlined_call_operand.hbm [shape: f32[128,128], index: 6, kind: input, shape index: {}]
  %s7 = inlined_call_operand.hbm [shape: f32[1,128], index: 7, kind: input, shape index: {}]
  %s8 = inlined_call_operand.hbm [shape: f32[128,128], index: 8, kind: input, shape index: {}]
  %s9 = inlined_call_operand.hbm [shape: f32[1,128], index: 9, kind: input, shape index: {}]
  %s10 = inlined_call_operand.hbm [shape: f32[128,384], index: 10, kind: input, shape index: {}]
  %s11 = inlined_call_operand.hbm [shape: f32[1,384], index: 11, kind: input, shape index: {}]
  %s12 = inlined_call_operand.hbm [shape: f32[128,128], index: 12, kind: input, shape index: {}]
  %s13 = inlined_call_operand.hbm [shape: f32[1,128], index: 13, kind: input, shape index: {}]
  %s14 = inlined_call_operand.vmem [shape: f32[128,256], index: 14, kind: input, shape index: {}]
  %s15 = inlined_call_operand.hbm [shape: f32[1,256], index: 15, kind: input, shape index: {}]
  %s16 = inlined_call_operand.hbm [shape: f32[256,128], index: 16, kind: input, shape index: {}]
  %s17 = inlined_call_operand.hbm [shape: f32[1,128], index: 17, kind: input, shape index: {}]
  %s18 = inlined_call_operand.vmem [shape: f32[16,128], index: 18, kind: output, shape index: {}]
  %s19 = sld [smem:[#allocation0]]
  $region129: #{gps_forward.4} parent=0
    _
  %s21 = ssub.s32 1, %s19
  %s22 = scalar_select 0, %s21, %s19
  %s23 = sshll.u32 %s0, 4
  %s24 = int_to_ptr.vmem [resolvable:$true] %s23
  %26 = dma.vmem_to_smem %s24, 16, [#allocation6], [#allocation5]
  %s27 = sshll.u32 %s1, 4
  %s28 = int_to_ptr.vmem [resolvable:$true] %s27
  %30 = dma.vmem_to_smem %s28, 16, [#allocation7], [#allocation5]
  %31 = dma.done [#allocation5], 32
  %32 = sfence
  $region1: #{gps_forward.4} parent=0
    #allocation8 [shape = 'u8[8192]{0}', space=vmem, size = 0x2000, scoped, tag = 'input window, operand 4, single buffered']
    #allocation9 [shape = 's32[1]{0}', space=sflag, size = 0x4, scoped, tag = 'scoped memory for gps_forward.4']
    #allocation10 [shape = 'u8[65536]{0}', space=vmem, size = 0x10000, scoped, tag = 'input window, operand 6, single buffered']
    #allocation11 [shape = 's32[1]{0}', space=sflag, size = 0x4, scoped, tag = 'scoped memory for gps_forward.4']
    #allocation12 [shape = 'u8[512]{0}', space=vmem, size = 0x400, scoped, tag = 'input window, operand 7, single buffered']
    #allocation13 [shape = 'u8[65536]{0}', space=vmem, size = 0x10000, scoped, tag = 'input window, operand 8, single buffered']
    #allocation14 [shape = 's32[1]{0}', space=sflag, size = 0x4, scoped, tag = 'scoped memory for gps_forward.4']
    #allocation15 [shape = 'u8[512]{0}', space=vmem, size = 0x400, scoped, tag = 'input window, operand 9, single buffered']
    #allocation16 [shape = 'u8[196608]{0}', space=vmem, size = 0x30000, scoped, tag = 'input window, operand 10, single buffered']
    #allocation17 [shape = 's32[1]{0}', space=sflag, size = 0x4, scoped, tag = 'scoped memory for gps_forward.4']
    #allocation18 [shape = 'u8[1536]{0}', space=vmem, size = 0x800, scoped, tag = 'input window, operand 11, single buffered']
    #allocation19 [shape = 'u8[65536]{0}', space=vmem, size = 0x10000, scoped, tag = 'input window, operand 12, single buffered']
    #allocation20 [shape = 's32[1]{0}', space=sflag, size = 0x4, scoped, tag = 'scoped memory for gps_forward.4']
    #allocation21 [shape = 'u8[512]{0}', space=vmem, size = 0x400, scoped, tag = 'input window, operand 13, single buffered']
    #allocation22 [shape = 'u8[1024]{0}', space=vmem, size = 0x400, scoped, tag = 'input window, operand 15, single buffered']
    #allocation23 [shape = 's32[1]{0}', space=sflag, size = 0x4, scoped, tag = 'scoped memory for gps_forward.4']
    #allocation24 [shape = 'u8[131072]{0}', space=vmem, size = 0x20000, scoped, tag = 'input window, operand 16, single buffered']
    #allocation25 [shape = 'u8[512]{0}', space=vmem, size = 0x400, scoped, tag = 'input window, operand 17, single buffered']
    #allocation26 [shape = 's32[1]{0}', space=sflag, size = 0x4, scoped, tag = 'scoped memory for gps_forward.4']
    %33 = vsyncpa [#allocation9], 0
    %34 = vsyncpa [#allocation11], 0
    %35 = vsyncpa [#allocation14], 0
    %36 = vsyncpa [#allocation17], 0
    %37 = vsyncpa [#allocation20], 0
    %38 = vsyncpa [#allocation23], 0
    %39 = vsyncpa [#allocation26], 0
    // Predicated region
    $region2: #{gps_forward.4} parent=1 // pred_check
      _
    $region3: #{gps_forward.4} parent=1 // pred_check_branch
      %41 = sbr.rel (0) target = $region5
    $region4: #{gps_forward.4} parent=1 // pred_region
      _
    $region5: #{gps_forward.4} parent=1 // pred_fallthru
      _
    // Predicated region
    $region6: #{gps_forward.4} parent=1 // pred_check
      _
    $region7: #{gps_forward.4} parent=1 // pred_check_branch
      %43 = sbr.rel (0) target = $region9
    $region8: #{gps_forward.4} parent=1 // pred_region
      _
    $region9: #{gps_forward.4} parent=1 // pred_fallthru
      _
    // Predicated region
    $region10: #{gps_forward.4} parent=1 // pred_check
      _
    $region11: #{gps_forward.4} parent=1 // pred_check_branch
      %45 = sbr.rel (0) target = $region13
    $region12: #{gps_forward.4} parent=1 // pred_region
      %s47 = ssub.s32 256, 256
      %48 = vsyncadd [#allocation9], %s47
      %s49 = sshll.u32 [#allocation8], 4
      %s50 = int_to_ptr.vmem [resolvable:$true] %s49
      %55 = dma.hbm_to_vmem [thread:$0]  %s4, 256, %s50, [#allocation9], 128, 128, 8
    $region13: #{gps_forward.4} parent=1 // pred_fallthru
      _
    // Predicated region
    $region14: #{gps_forward.4} parent=1 // pred_check
      _
    $region15: #{gps_forward.4} parent=1 // pred_check_branch
      %57 = sbr.rel (0) target = $region17
    $region16: #{gps_forward.4} parent=1 // pred_region
      _
    $region17: #{gps_forward.4} parent=1 // pred_fallthru
      _
    // Predicated region
    $region18: #{gps_forward.4} parent=1 // pred_check
      _
    $region19: #{gps_forward.4} parent=1 // pred_check_branch
      %59 = sbr.rel (0) target = $region21
    $region20: #{gps_forward.4} parent=1 // pred_region
      %s61 = ssub.s32 2048, 2048
      %62 = vsyncadd [#allocation11], %s61
      %s63 = sshll.u32 [#allocation10], 4
      %s64 = int_to_ptr.vmem [resolvable:$true] %s63
      %69 = dma.hbm_to_vmem [thread:$0]  %s6, 2048, %s64, [#allocation11], 128, 128, 8
    $region21: #{gps_forward.4} parent=1 // pred_fallthru
      _
    // Predicated region
    $region22: #{gps_forward.4} parent=1 // pred_check
      _
    $region23: #{gps_forward.4} parent=1 // pred_check_branch
      %71 = sbr.rel (0) target = $region25
    $region24: #{gps_forward.4} parent=1 // pred_region
      %s73 = ssub.s32 16, 16
      %74 = vsyncadd [#allocation11], %s73
      %s76 = sshll.u32 [#allocation12], 4
      %s77 = int_to_ptr.vmem [resolvable:$true] %s76
      %79 = dma.hbm_to_vmem [thread:$0]  %s7, 16, %s77, [#allocation11]
    $region25: #{gps_forward.4} parent=1 // pred_fallthru
      _
    // Predicated region
    $region26: #{gps_forward.4} parent=1 // pred_check
      _
    $region27: #{gps_forward.4} parent=1 // pred_check_branch
      %81 = sbr.rel (0) target = $region29
    $region28: #{gps_forward.4} parent=1 // pred_region
      %s83 = ssub.s32 2048, 2048
      %84 = vsyncadd [#allocation14], %s83
      %s85 = sshll.u32 [#allocation13], 4
      %s86 = int_to_ptr.vmem [resolvable:$true] %s85
      %91 = dma.hbm_to_vmem [thread:$0]  %s8, 2048, %s86, [#allocation14], 128, 128, 8
    $region29: #{gps_forward.4} parent=1 // pred_fallthru
      _
    // Predicated region
    $region30: #{gps_forward.4} parent=1 // pred_check
      _
    $region31: #{gps_forward.4} parent=1 // pred_check_branch
      %93 = sbr.rel (0) target = $region33
    $region32: #{gps_forward.4} parent=1 // pred_region
      %s95 = ssub.s32 16, 16
      %96 = vsyncadd [#allocation14], %s95
      %s98 = sshll.u32 [#allocation15], 4
      %s99 = int_to_ptr.vmem [resolvable:$true] %s98
      %101 = dma.hbm_to_vmem [thread:$0]  %s9, 16, %s99, [#allocation14]
    $region33: #{gps_forward.4} parent=1 // pred_fallthru
      _
    // Predicated region
    $region34: #{gps_forward.4} parent=1 // pred_check
      _
    $region35: #{gps_forward.4} parent=1 // pred_check_branch
      %103 = sbr.rel (0) target = $region37
    $region36: #{gps_forward.4} parent=1 // pred_region
      %s105 = ssub.s32 6144, 6144
      %106 = vsyncadd [#allocation17], %s105
      %s107 = sshll.u32 [#allocation16], 4
      %s108 = int_to_ptr.vmem [resolvable:$true] %s107
      %113 = dma.hbm_to_vmem [thread:$0]  %s10, 6144, %s108, [#allocation17], 384, 384, 24
    $region37: #{gps_forward.4} parent=1 // pred_fallthru
      _
    // Predicated region
    $region38: #{gps_forward.4} parent=1 // pred_check
      _
    $region39: #{gps_forward.4} parent=1 // pred_check_branch
      %115 = sbr.rel (0) target = $region41
    $region40: #{gps_forward.4} parent=1 // pred_region
      %s117 = ssub.s32 48, 48
      %118 = vsyncadd [#allocation17], %s117
      %s120 = sshll.u32 [#allocation18], 4
      %s121 = int_to_ptr.vmem [resolvable:$true] %s120
      %123 = dma.hbm_to_vmem [thread:$0]  %s11, 48, %s121, [#allocation17]
    $region41: #{gps_forward.4} parent=1 // pred_fallthru
      _
    // Predicated region
    $region42: #{gps_forward.4} parent=1 // pred_check
      _
    $region43: #{gps_forward.4} parent=1 // pred_check_branch
      %125 = sbr.rel (0) target = $region45
    $region44: #{gps_forward.4} parent=1 // pred_region
      %s127 = ssub.s32 2048, 2048
      %128 = vsyncadd [#allocation20], %s127
      %s129 = sshll.u32 [#allocation19], 4
      %s130 = int_to_ptr.vmem [resolvable:$true] %s129
      %135 = dma.hbm_to_vmem [thread:$0]  %s12, 2048, %s130, [#allocation20], 128, 128, 8
    $region45: #{gps_forward.4} parent=1 // pred_fallthru
      _
    // Predicated region
    $region46: #{gps_forward.4} parent=1 // pred_check
      _
    $region47: #{gps_forward.4} parent=1 // pred_check_branch
      %137 = sbr.rel (0) target = $region49
    $region48: #{gps_forward.4} parent=1 // pred_region
      %s139 = ssub.s32 16, 16
      %140 = vsyncadd [#allocation20], %s139
      %s142 = sshll.u32 [#allocation21], 4
      %s143 = int_to_ptr.vmem [resolvable:$true] %s142
      %145 = dma.hbm_to_vmem [thread:$0]  %s13, 16, %s143, [#allocation20]
    $region49: #{gps_forward.4} parent=1 // pred_fallthru
      _
    // Predicated region
    $region50: #{gps_forward.4} parent=1 // pred_check
      _
    $region51: #{gps_forward.4} parent=1 // pred_check_branch
      %147 = sbr.rel (0) target = $region53
    $region52: #{gps_forward.4} parent=1 // pred_region
      _
    $region53: #{gps_forward.4} parent=1 // pred_fallthru
      _
    // Predicated region
    $region54: #{gps_forward.4} parent=1 // pred_check
      _
    $region55: #{gps_forward.4} parent=1 // pred_check_branch
      %149 = sbr.rel (0) target = $region57
    $region56: #{gps_forward.4} parent=1 // pred_region
      %s151 = ssub.s32 32, 32
      %152 = vsyncadd [#allocation23], %s151
      %s154 = sshll.u32 [#allocation22], 4
      %s155 = int_to_ptr.vmem [resolvable:$true] %s154
      %157 = dma.hbm_to_vmem [thread:$0]  %s15, 32, %s155, [#allocation23]
    $region57: #{gps_forward.4} parent=1 // pred_fallthru
      _
    // Predicated region
    $region58: #{gps_forward.4} parent=1 // pred_check
      _
    $region59: #{gps_forward.4} parent=1 // pred_check_branch
      %159 = sbr.rel (0) target = $region61
    $region60: #{gps_forward.4} parent=1 // pred_region
      %s161 = ssub.s32 4096, 4096
      %162 = vsyncadd [#allocation23], %s161
      %s163 = sshll.u32 [#allocation24], 4
      %s164 = int_to_ptr.vmem [resolvable:$true] %s163
      %169 = dma.hbm_to_vmem [thread:$0]  %s16, 4096, %s164, [#allocation23], 128, 128, 8
    $region61: #{gps_forward.4} parent=1 // pred_fallthru
      _
    // Predicated region
    $region62: #{gps_forward.4} parent=1 // pred_check
      _
    $region63: #{gps_forward.4} parent=1 // pred_check_branch
      %171 = sbr.rel (0) target = $region65
    $region64: #{gps_forward.4} parent=1 // pred_region
      %s173 = ssub.s32 16, 16
      %174 = vsyncadd [#allocation26], %s173
      %s176 = sshll.u32 [#allocation25], 4
      %s177 = int_to_ptr.vmem [resolvable:$true] %s176
      %179 = dma.hbm_to_vmem [thread:$0]  %s17, 16, %s177, [#allocation26]
    $region65: #{gps_forward.4} parent=1 // pred_fallthru
      _
    // Predicated region
    $region66: #{gps_forward.4} parent=1 // pred_check
      _
    $region67: #{gps_forward.4} parent=1 // pred_check_branch
      %181 = sbr.rel (0) target = $region69
    $region68: #{gps_forward.4} parent=1 // pred_region
      %182 = dma.done [#allocation9], 256
    $region69: #{gps_forward.4} parent=1 // pred_fallthru
      _
    // Predicated region
    $region70: #{gps_forward.4} parent=1 // pred_check
      _
    $region71: #{gps_forward.4} parent=1 // pred_check_branch
      %184 = sbr.rel (0) target = $region73
    $region72: #{gps_forward.4} parent=1 // pred_region
      %185 = dma.done [#allocation11], 2048
    $region73: #{gps_forward.4} parent=1 // pred_fallthru
      _
    // Predicated region
    $region74: #{gps_forward.4} parent=1 // pred_check
      _
    $region75: #{gps_forward.4} parent=1 // pred_check_branch
      %187 = sbr.rel (0) target = $region77
    $region76: #{gps_forward.4} parent=1 // pred_region
      %188 = dma.done [#allocation11], 16
    $region77: #{gps_forward.4} parent=1 // pred_fallthru
      _
    // Predicated region
    $region78: #{gps_forward.4} parent=1 // pred_check
      _
    $region79: #{gps_forward.4} parent=1 // pred_check_branch
      %190 = sbr.rel (0) target = $region81
    $region80: #{gps_forward.4} parent=1 // pred_region
      %191 = dma.done [#allocation14], 2048
    $region81: #{gps_forward.4} parent=1 // pred_fallthru
      _
    // Predicated region
    $region82: #{gps_forward.4} parent=1 // pred_check
      _
    $region83: #{gps_forward.4} parent=1 // pred_check_branch
      %193 = sbr.rel (0) target = $region85
    $region84: #{gps_forward.4} parent=1 // pred_region
      %194 = dma.done [#allocation14], 16
    $region85: #{gps_forward.4} parent=1 // pred_fallthru
      _
    // Predicated region
    $region86: #{gps_forward.4} parent=1 // pred_check
      _
    $region87: #{gps_forward.4} parent=1 // pred_check_branch
      %196 = sbr.rel (0) target = $region89
    $region88: #{gps_forward.4} parent=1 // pred_region
      %197 = dma.done [#allocation17], 6144
    $region89: #{gps_forward.4} parent=1 // pred_fallthru
      _
    // Predicated region
    $region90: #{gps_forward.4} parent=1 // pred_check
      _
    $region91: #{gps_forward.4} parent=1 // pred_check_branch
      %199 = sbr.rel (0) target = $region93
    $region92: #{gps_forward.4} parent=1 // pred_region
      %200 = dma.done [#allocation17], 48
    $region93: #{gps_forward.4} parent=1 // pred_fallthru
      _
    // Predicated region
    $region94: #{gps_forward.4} parent=1 // pred_check
      _
    $region95: #{gps_forward.4} parent=1 // pred_check_branch
      %202 = sbr.rel (0) target = $region97
    $region96: #{gps_forward.4} parent=1 // pred_region
      %203 = dma.done [#allocation20], 2048
    $region97: #{gps_forward.4} parent=1 // pred_fallthru
      _
    // Predicated region
    $region98: #{gps_forward.4} parent=1 // pred_check
      _
    $region99: #{gps_forward.4} parent=1 // pred_check_branch
      %205 = sbr.rel (0) target = $region101
    $region100: #{gps_forward.4} parent=1 // pred_region
      %206 = dma.done [#allocation20], 16
    $region101: #{gps_forward.4} parent=1 // pred_fallthru
      _
    // Predicated region
    $region102: #{gps_forward.4} parent=1 // pred_check
      _
    $region103: #{gps_forward.4} parent=1 // pred_check_branch
      %208 = sbr.rel (0) target = $region105
    $region104: #{gps_forward.4} parent=1 // pred_region
      %209 = dma.done [#allocation23], 32
    $region105: #{gps_forward.4} parent=1 // pred_fallthru
      _
    // Predicated region
    $region106: #{gps_forward.4} parent=1 // pred_check
      _
    $region107: #{gps_forward.4} parent=1 // pred_check_branch
      %211 = sbr.rel (0) target = $region109
    $region108: #{gps_forward.4} parent=1 // pred_region
      %212 = dma.done [#allocation23], 4096
    $region109: #{gps_forward.4} parent=1 // pred_fallthru
      _
    // Predicated region
    $region110: #{gps_forward.4} parent=1 // pred_check
      _
    $region111: #{gps_forward.4} parent=1 // pred_check_branch
      %214 = sbr.rel (0) target = $region113
    $region112: #{gps_forward.4} parent=1 // pred_region
      %215 = dma.done [#allocation26], 16
    $region113: #{gps_forward.4} parent=1 // pred_fallthru
      _
    %v216 = vld [vmem:[%s2] sm:$0xff]
    %v217 = vld [vmem:[%s2 + $0x8] sm:$0xff]
    %v218 = vmul.f32 %v216, 0.999995
    %v219 = vmul.f32 %v217, 0.999995
    %v220 = vld [vmem:[%s3] sm:$0xff]
    %v221 = vld [vmem:[%s3 + $0x8] sm:$0xff]
    %v222 = vld [vmem:[%s3 + $0x10] sm:$0xff]
    %v223 = vld [vmem:[%s3 + $0x18] sm:$0xff]
    %v224 = vld [vmem:[#allocation8] sm:$0xff]
    %v225 = vld [vmem:[#allocation8 + $0x8] sm:$0x3]
    %v226 = vld [vmem:[%s5] sm:$0x1]
    %v228 = vlaneseq
    %v229 = vshrl.u32 %v228, 7
    %v230 = vsub.s32 0, %v229
    %v231 = vrot.slane %v226, %v230
    %vm233 = vcmask 80896
    %v235 = vsel %vm233, %v220, 0
    %v238 = vsel %vm233, %v221, 0
    %v241 = vsel %vm233, %v222, 0
    %v244 = vsel %vm233, %v223, 0
    %vm246 = vcmask 1041408
    %v248 = vsel %vm246, %v225, 0
    %250 = vmatprep.subr.mxu0 0.0
    %251 = vmatpush1.msra.mxu0 %v224
    %252 = vmatprep.subr.mxu0 0.0
    %253 = vmatpush1.msra.mxu0 %v248
    %254 = vmatprep.subr.mxu0 0.0
    %255 = vmatpush1.msra.mxu0 0.0
    %256 = vmatprep.subr.mxu0 0.0
    %257 = vmatpush1.msra.mxu0 0.0
    %258 = vmatprep.subr.mxu0 0.0
    %259 = vmatpush1.msra.mxu0 0.0
    %260 = vmatprep.subr.mxu0 0.0
    %261 = vmatpush1.msra.mxu0 0.0
    %262 = vmatprep.subr.mxu0 0.0
    %263 = vmatpush1.msra.mxu0 0.0
    %264 = vmatprep.subr.mxu0 0.0
    %265 = vmatpush1.msra.mxu0 0.0
    %266 = vmatprep.subr.mxu0 0.0
    %267 = vmatpush1.msra.mxu0 0.0
    %268 = vmatprep.subr.mxu0 0.0
    %269 = vmatpush1.msra.mxu0 0.0
    %270 = vmatprep.subr.mxu0 0.0
    %271 = vmatpush1.msra.mxu0 0.0
    %272 = vmatprep.subr.mxu0 0.0
    %273 = vmatpush1.msra.mxu0 0.0
    %274 = vmatprep.subr.mxu0 0.0
    %275 = vmatpush1.msra.mxu0 0.0
    %276 = vmatprep.subr.mxu0 0.0
    %277 = vmatpush1.msra.mxu0 0.0
    %278 = vmatprep.subr.mxu0 0.0
    %279 = vmatpush1.msra.mxu0 0.0
    %280 = vmatprep.subr.mxu0 0.0
    %281 = vmatpush1.msra.mxu0 0.0
    %282 = vmatprep.subr.mxu0 0.0
    %283 = vmatpush1.msra.mxu0 0.0
    %284 = vmatprep.subr.mxu0 0.0
    %285 = vmatpush1.msra.mxu0 0.0
    %286 = vmatprep.subr.mxu0 0.0
    %287 = vmatpush1.msra.mxu0 0.0
    %288 = vmatprep.subr.mxu0 0.0
    %289 = vmatpush1.msra.mxu0 0.0
    %290 = vmatprep.subr.mxu0 0.0
    %291 = vmatpush1.msra.mxu0 0.0
    %292 = vmatprep.subr.mxu0 0.0
    %293 = vmatpush1.msra.mxu0 0.0
    %294 = vmatprep.subr.mxu0 0.0
    %295 = vmatpush1.msra.mxu0 0.0
    %296 = vmatprep.subr.mxu0 0.0
    %297 = vmatpush1.msra.mxu0 0.0
    %298 = vmatprep.subr.mxu0 0.0
    %299 = vmatpush1.msra.mxu0 0.0
    %300 = vmatprep.subr.mxu0 0.0
    %301 = vmatpush1.msra.mxu0 0.0
    %302 = vmatprep.subr.mxu0 0.0
    %303 = vmatpush1.msra.mxu0 0.0
    %304 = vmatprep.subr.mxu0 0.0
    %305 = vmatpush1.msra.mxu0 0.0
    %306 = vmatprep.subr.mxu0 0.0
    %307 = vmatpush1.msra.mxu0 0.0
    %308 = vmatprep.subr.mxu0 0.0
    %309 = vmatpush1.msra.mxu0 0.0
    %310 = vmatprep.subr.mxu0 0.0
    %311 = vmatpush1.msra.mxu0 0.0
    %312 = vmatprep.subr.mxu0 0.0
    %313 = vmatpush1.msra.mxu0 0.0
    %314 = vmatprep.mubr.f32.mxu0 0.0
    %315 = vmatmul.mubr.f32.gmra.mrb[0].mxu0 %v235
    %v316 = vpop.f32.mrb[0].mxu0
    %v317 = vadd.f32 %v231, %v316
    %v318 = vpop.f32.mrb[0].mxu0
    %319 = vmatprep.mubr.f32.mxu0 0.0
    %320 = vmatmul.mubr.f32.gmra.mrb[0].mxu0 %v238
    %v321 = vpop.f32.mrb[0].mxu0
    %v322 = vadd.f32 %v231, %v321
    %v323 = vpop.f32.mrb[0].mxu0
    %324 = vmatprep.mubr.f32.mxu0 0.0
    %325 = vmatmul.mubr.f32.gmra.mrb[0].mxu0 %v241
    %v326 = vpop.f32.mrb[0].mxu0
    %v327 = vadd.f32 %v231, %v326
    %v328 = vpop.f32.mrb[0].mxu0
    %329 = vmatprep.mubr.f32.mxu0 0.0
    %330 = vmatmul.mubr.f32.gmra.mrb[0].mxu0 %v244
    %v331 = vpop.f32.mrb[0].mxu0
    %v332 = vadd.f32 %v231, %v331
    %v333 = vpop.f32.mrb[0].mxu0
    %334 = vdwg.mxu0
    %335 = vst [vmem:[#allocation2] sm:$0xff] %v317
    %336 = vst [vmem:[#allocation2 + $0x8] sm:$0xff] %v322
    %337 = vst [vmem:[#allocation2 + $0x10] sm:$0xff] %v327
    %338 = vst [vmem:[#allocation2 + $0x18] sm:$0xff] %v332
    %339 = vst [vmem:[#allocation3] sm:$0xff] %v216
    %340 = vst [vmem:[#allocation3 + $0x8] sm:$0xff] %v217
    loop: start=0, step=1, limit=32
    $region114: #{gps_forward.4} parent=1 // loop_pre_header
      _
    $region115: #{gps_forward.4} parent=1 // loop_header
      %s342 = sphi 0, %s346
      %p343 = scmp.ge.s32.totalorder %s342, 32
    $region116: #{gps_forward.4} parent=1 // loop_header_branch
      %345 = sbr.rel (%p343) target = $region120
    $region117: #{gps_forward.4} parent=1 // loop_body
      %s347 = sld [smem:[#allocation6 + %s342]]
      %s348 = sld [smem:[#allocation7 + %s342]]
      %s349 = scalar_lea.vmem %s2, %s347
      %v350 = vld [vmem:[%s349] sm:$0x1]
      %s351 = scalar_lea.vmem [#allocation2], %s342
      %v352 = vld [vmem:[%s351] sm:$0x1]
      %v353 = vadd.f32 %v350, %v352
      %v354 = vmax.f32 %v353, 0.0
      %s355 = scalar_lea.vmem [#allocation3], %s348
      %v356 = vld [vmem:[%s355] sm:$0x1]
      %v357 = vadd.f32 %v356, %v354
      %358 = vst [vmem:[%s355] sm:$0x1] %v357
    $region118: #{gps_forward.4} parent=1 // loop_footer
      %s346 = sadd.s32 1, %s342
    $region119: #{gps_forward.4} parent=1 // loop_footer_branch
      %341 = sbr.rel target = $region115
    $region120: #{gps_forward.4} parent=1 // loop_exit
      _
    %v359 = vld [vmem:[#allocation3] sm:$0xff]
    %v360 = vld [vmem:[#allocation3 + $0x8] sm:$0xff]
    %v361 = vld [vmem:[#allocation10] sm:$0xff]
    %v362 = vld [vmem:[#allocation10 + $0x8] sm:$0xff]
    %v363 = vld [vmem:[#allocation10 + $0x10] sm:$0xff]
    %v364 = vld [vmem:[#allocation10 + $0x18] sm:$0xff]
    %v365 = vld [vmem:[#allocation10 + $0x20] sm:$0xff]
    %v366 = vld [vmem:[#allocation10 + $0x28] sm:$0xff]
    %v367 = vld [vmem:[#allocation10 + $0x30] sm:$0xff]
    %v368 = vld [vmem:[#allocation10 + $0x38] sm:$0xff]
    %v369 = vld [vmem:[#allocation10 + $0x40] sm:$0xff]
    %v370 = vld [vmem:[#allocation10 + $0x48] sm:$0xff]
    %v371 = vld [vmem:[#allocation10 + $0x50] sm:$0xff]
    %v372 = vld [vmem:[#allocation10 + $0x58] sm:$0xff]
    %v373 = vld [vmem:[#allocation10 + $0x60] sm:$0xff]
    %v374 = vld [vmem:[#allocation10 + $0x68] sm:$0xff]
    %v375 = vld [vmem:[#allocation10 + $0x70] sm:$0xff]
    %v376 = vld [vmem:[#allocation10 + $0x78] sm:$0xff]
    %v377 = vld [vmem:[#allocation12] sm:$0x1]
    %v379 = vlaneseq
    %v380 = vshrl.u32 %v379, 7
    %v381 = vsub.s32 0, %v380
    %v382 = vrot.slane %v377, %v381
    %384 = vmatprep.subr.mxu0 0.0
    %385 = vmatpush1.msra.mxu0 %v361
    %386 = vmatprep.subr.mxu0 0.0
    %387 = vmatpush1.msra.mxu0 %v362
    %388 = vmatprep.subr.mxu0 0.0
    %389 = vmatpush1.msra.mxu0 %v363
    %390 = vmatprep.subr.mxu0 0.0
    %391 = vmatpush1.msra.mxu0 %v364
    %392 = vmatprep.subr.mxu0 0.0
    %393 = vmatpush1.msra.mxu0 %v365
    %394 = vmatprep.subr.mxu0 0.0
    %395 = vmatpush1.msra.mxu0 %v366
    %396 = vmatprep.subr.mxu0 0.0
    %397 = vmatpush1.msra.mxu0 %v367
    %398 = vmatprep.subr.mxu0 0.0
    %399 = vmatpush1.msra.mxu0 %v368
    %400 = vmatprep.subr.mxu0 0.0
    %401 = vmatpush1.msra.mxu0 %v369
    %402 = vmatprep.subr.mxu0 0.0
    %403 = vmatpush1.msra.mxu0 %v370
    %404 = vmatprep.subr.mxu0 0.0
    %405 = vmatpush1.msra.mxu0 %v371
    %406 = vmatprep.subr.mxu0 0.0
    %407 = vmatpush1.msra.mxu0 %v372
    %408 = vmatprep.subr.mxu0 0.0
    %409 = vmatpush1.msra.mxu0 %v373
    %410 = vmatprep.subr.mxu0 0.0
    %411 = vmatpush1.msra.mxu0 %v374
    %412 = vmatprep.subr.mxu0 0.0
    %413 = vmatpush1.msra.mxu0 %v375
    %414 = vmatprep.subr.mxu0 0.0
    %415 = vmatpush1.msra.mxu0 %v376
    %416 = vmatprep.subr.mxu0 0.0
    %417 = vmatpush1.msra.mxu0 0.0
    %418 = vmatprep.subr.mxu0 0.0
    %419 = vmatpush1.msra.mxu0 0.0
    %420 = vmatprep.subr.mxu0 0.0
    %421 = vmatpush1.msra.mxu0 0.0
    %422 = vmatprep.subr.mxu0 0.0
    %423 = vmatpush1.msra.mxu0 0.0
    %424 = vmatprep.subr.mxu0 0.0
    %425 = vmatpush1.msra.mxu0 0.0
    %426 = vmatprep.subr.mxu0 0.0
    %427 = vmatpush1.msra.mxu0 0.0
    %428 = vmatprep.subr.mxu0 0.0
    %429 = vmatpush1.msra.mxu0 0.0
    %430 = vmatprep.subr.mxu0 0.0
    %431 = vmatpush1.msra.mxu0 0.0
    %432 = vmatprep.subr.mxu0 0.0
    %433 = vmatpush1.msra.mxu0 0.0
    %434 = vmatprep.subr.mxu0 0.0
    %435 = vmatpush1.msra.mxu0 0.0
    %436 = vmatprep.subr.mxu0 0.0
    %437 = vmatpush1.msra.mxu0 0.0
    %438 = vmatprep.subr.mxu0 0.0
    %439 = vmatpush1.msra.mxu0 0.0
    %440 = vmatprep.subr.mxu0 0.0
    %441 = vmatpush1.msra.mxu0 0.0
    %442 = vmatprep.subr.mxu0 0.0
    %443 = vmatpush1.msra.mxu0 0.0
    %444 = vmatprep.subr.mxu0 0.0
    %445 = vmatpush1.msra.mxu0 0.0
    %446 = vmatprep.subr.mxu0 0.0
    %447 = vmatpush1.msra.mxu0 0.0
    %448 = vmatprep.mubr.f32.mxu0 0.0
    %449 = vmatmul.mubr.f32.gmra.mrb[0].mxu0 %v359
    %v450 = vpop.f32.mrb[0].mxu0
    %v451 = vadd.f32 %v382, %v450
    %v452 = vpop.f32.mrb[0].mxu0
    %453 = vmatprep.mubr.f32.mxu0 0.0
    %454 = vmatmul.mubr.f32.gmra.mrb[0].mxu0 %v360
    %v455 = vpop.f32.mrb[0].mxu0
    %v456 = vadd.f32 %v382, %v455
    %v457 = vpop.f32.mrb[0].mxu0
    %458 = vdwg.mxu0
    %v459 = vmax.f32 %v451, 0.0
    %v460 = vmax.f32 %v456, 0.0
    %v461 = vld [vmem:[#allocation13] sm:$0xff]
    %v462 = vld [vmem:[#allocation13 + $0x8] sm:$0xff]
    %v463 = vld [vmem:[#allocation13 + $0x10] sm:$0xff]
    %v464 = vld [vmem:[#allocation13 + $0x18] sm:$0xff]
    %v465 = vld [vmem:[#allocation13 + $0x20] sm:$0xff]
    %v466 = vld [vmem:[#allocation13 + $0x28] sm:$0xff]
    %v467 = vld [vmem:[#allocation13 + $0x30] sm:$0xff]
    %v468 = vld [vmem:[#allocation13 + $0x38] sm:$0xff]
    %v469 = vld [vmem:[#allocation13 + $0x40] sm:$0xff]
    %v470 = vld [vmem:[#allocation13 + $0x48] sm:$0xff]
    %v471 = vld [vmem:[#allocation13 + $0x50] sm:$0xff]
    %v472 = vld [vmem:[#allocation13 + $0x58] sm:$0xff]
    %v473 = vld [vmem:[#allocation13 + $0x60] sm:$0xff]
    %v474 = vld [vmem:[#allocation13 + $0x68] sm:$0xff]
    %v475 = vld [vmem:[#allocation13 + $0x70] sm:$0xff]
    %v476 = vld [vmem:[#allocation13 + $0x78] sm:$0xff]
    %v477 = vld [vmem:[#allocation15] sm:$0x1]
    %v479 = vlaneseq
    %v480 = vshrl.u32 %v479, 7
    %v481 = vsub.s32 0, %v480
    %v482 = vrot.slane %v477, %v481
    %484 = vmatprep.subr.mxu0 0.0
    %485 = vmatpush1.msra.mxu0 %v461
    %486 = vmatprep.subr.mxu0 0.0
    %487 = vmatpush1.msra.mxu0 %v462
    %488 = vmatprep.subr.mxu0 0.0
    %489 = vmatpush1.msra.mxu0 %v463
    %490 = vmatprep.subr.mxu0 0.0
    %491 = vmatpush1.msra.mxu0 %v464
    %492 = vmatprep.subr.mxu0 0.0
    %493 = vmatpush1.msra.mxu0 %v465
    %494 = vmatprep.subr.mxu0 0.0
    %495 = vmatpush1.msra.mxu0 %v466
    %496 = vmatprep.subr.mxu0 0.0
    %497 = vmatpush1.msra.mxu0 %v467
    %498 = vmatprep.subr.mxu0 0.0
    %499 = vmatpush1.msra.mxu0 %v468
    %500 = vmatprep.subr.mxu0 0.0
    %501 = vmatpush1.msra.mxu0 %v469
    %502 = vmatprep.subr.mxu0 0.0
    %503 = vmatpush1.msra.mxu0 %v470
    %504 = vmatprep.subr.mxu0 0.0
    %505 = vmatpush1.msra.mxu0 %v471
    %506 = vmatprep.subr.mxu0 0.0
    %507 = vmatpush1.msra.mxu0 %v472
    %508 = vmatprep.subr.mxu0 0.0
    %509 = vmatpush1.msra.mxu0 %v473
    %510 = vmatprep.subr.mxu0 0.0
    %511 = vmatpush1.msra.mxu0 %v474
    %512 = vmatprep.subr.mxu0 0.0
    %513 = vmatpush1.msra.mxu0 %v475
    %514 = vmatprep.subr.mxu0 0.0
    %515 = vmatpush1.msra.mxu0 %v476
    %516 = vmatprep.subr.mxu0 0.0
    %517 = vmatpush1.msra.mxu0 0.0
    %518 = vmatprep.subr.mxu0 0.0
    %519 = vmatpush1.msra.mxu0 0.0
    %520 = vmatprep.subr.mxu0 0.0
    %521 = vmatpush1.msra.mxu0 0.0
    %522 = vmatprep.subr.mxu0 0.0
    %523 = vmatpush1.msra.mxu0 0.0
    %524 = vmatprep.subr.mxu0 0.0
    %525 = vmatpush1.msra.mxu0 0.0
    %526 = vmatprep.subr.mxu0 0.0
    %527 = vmatpush1.msra.mxu0 0.0
    %528 = vmatprep.subr.mxu0 0.0
    %529 = vmatpush1.msra.mxu0 0.0
    %530 = vmatprep.subr.mxu0 0.0
    %531 = vmatpush1.msra.mxu0 0.0
    %532 = vmatprep.subr.mxu0 0.0
    %533 = vmatpush1.msra.mxu0 0.0
    %534 = vmatprep.subr.mxu0 0.0
    %535 = vmatpush1.msra.mxu0 0.0
    %536 = vmatprep.subr.mxu0 0.0
    %537 = vmatpush1.msra.mxu0 0.0
    %538 = vmatprep.subr.mxu0 0.0
    %539 = vmatpush1.msra.mxu0 0.0
    %540 = vmatprep.subr.mxu0 0.0
    %541 = vmatpush1.msra.mxu0 0.0
    %542 = vmatprep.subr.mxu0 0.0
    %543 = vmatpush1.msra.mxu0 0.0
    %544 = vmatprep.subr.mxu0 0.0
    %545 = vmatpush1.msra.mxu0 0.0
    %546 = vmatprep.subr.mxu0 0.0
    %547 = vmatpush1.msra.mxu0 0.0
    %548 = vmatprep.mubr.f32.mxu0 0.0
    %549 = vmatmul.mubr.f32.gmra.mrb[0].mxu0 %v459
    %v550 = vpop.f32.mrb[0].mxu0
    %v551 = vadd.f32 %v482, %v550
    %v552 = vpop.f32.mrb[0].mxu0
    %553 = vmatprep.mubr.f32.mxu0 0.0
    %554 = vmatmul.mubr.f32.gmra.mrb[0].mxu0 %v460
    %v555 = vpop.f32.mrb[0].mxu0
    %v556 = vadd.f32 %v482, %v555
    %v557 = vpop.f32.mrb[0].mxu0
    %558 = vdwg.mxu0
    %v559 = vadd.f32 %v551, %v218
    %v560 = vadd.f32 %v556, %v219
    %v561 = vld [vmem:[#allocation16] sm:$0xff]
    %v562 = vld [vmem:[#allocation16 + $0x8] sm:$0xff]
    %v563 = vld [vmem:[#allocation16 + $0x10] sm:$0xff]
    %v564 = vld [vmem:[#allocation16 + $0x18] sm:$0xff]
    %v565 = vld [vmem:[#allocation16 + $0x20] sm:$0xff]
    %v566 = vld [vmem:[#allocation16 + $0x28] sm:$0xff]
    %v567 = vld [vmem:[#allocation16 + $0x30] sm:$0xff]
    %v568 = vld [vmem:[#allocation16 + $0x38] sm:$0xff]
    %v569 = vld [vmem:[#allocation16 + $0x40] sm:$0xff]
    %v570 = vld [vmem:[#allocation16 + $0x48] sm:$0xff]
    %v571 = vld [vmem:[#allocation16 + $0x50] sm:$0xff]
    %v572 = vld [vmem:[#allocation16 + $0x58] sm:$0xff]
    %v573 = vld [vmem:[#allocation16 + $0x60] sm:$0xff]
    %v574 = vld [vmem:[#allocation16 + $0x68] sm:$0xff]
    %v575 = vld [vmem:[#allocation16 + $0x70] sm:$0xff]
    %v576 = vld [vmem:[#allocation16 + $0x78] sm:$0xff]
    %v577 = vld [vmem:[#allocation16 + $0x80] sm:$0xff]
    %v578 = vld [vmem:[#allocation16 + $0x88] sm:$0xff]
    %v579 = vld [vmem:[#allocation16 + $0x90] sm:$0xff]
    %v580 = vld [vmem:[#allocation16 + $0x98] sm:$0xff]
    %v581 = vld [vmem:[#allocation16 + $0xa0] sm:$0xff]
    %v582 = vld [vmem:[#allocation16 + $0xa8] sm:$0xff]
    %v583 = vld [vmem:[#allocation16 + $0xb0] sm:$0xff]
    %v584 = vld [vmem:[#allocation16 + $0xb8] sm:$0xff]
    %v585 = vld [vmem:[#allocation16 + $0xc0] sm:$0xff]
    %v586 = vld [vmem:[#allocation16 + $0xc8] sm:$0xff]
    %v587 = vld [vmem:[#allocation16 + $0xd0] sm:$0xff]
    %v588 = vld [vmem:[#allocation16 + $0xd8] sm:$0xff]
    %v589 = vld [vmem:[#allocation16 + $0xe0] sm:$0xff]
    %v590 = vld [vmem:[#allocation16 + $0xe8] sm:$0xff]
    %v591 = vld [vmem:[#allocation16 + $0xf0] sm:$0xff]
    %v592 = vld [vmem:[#allocation16 + $0xf8] sm:$0xff]
    %v593 = vld [vmem:[#allocation16 + $0x100] sm:$0xff]
    %v594 = vld [vmem:[#allocation16 + $0x108] sm:$0xff]
    %v595 = vld [vmem:[#allocation16 + $0x110] sm:$0xff]
    %v596 = vld [vmem:[#allocation16 + $0x118] sm:$0xff]
    %v597 = vld [vmem:[#allocation16 + $0x120] sm:$0xff]
    %v598 = vld [vmem:[#allocation16 + $0x128] sm:$0xff]
    %v599 = vld [vmem:[#allocation16 + $0x130] sm:$0xff]
    %v600 = vld [vmem:[#allocation16 + $0x138] sm:$0xff]
    %v601 = vld [vmem:[#allocation16 + $0x140] sm:$0xff]
    %v602 = vld [vmem:[#allocation16 + $0x148] sm:$0xff]
    %v603 = vld [vmem:[#allocation16 + $0x150] sm:$0xff]
    %v604 = vld [vmem:[#allocation16 + $0x158] sm:$0xff]
    %v605 = vld [vmem:[#allocation16 + $0x160] sm:$0xff]
    %v606 = vld [vmem:[#allocation16 + $0x168] sm:$0xff]
    %v607 = vld [vmem:[#allocation16 + $0x170] sm:$0xff]
    %v608 = vld [vmem:[#allocation16 + $0x178] sm:$0xff]
    %v609 = vld [vmem:[#allocation18] sm:$0x7]
    %v611 = vlaneseq
    %v612 = vshrl.u32 %v611, 7
    %v613 = vsub.s32 0, %v612
    %v614 = vrot.slane %v609, %v613
    %v615 = vlaneseq
    %v616 = vshrl.u32 %v615, 7
    %v617 = vsub.s32 1, %v616
    %v618 = vrot.slane %v609, %v617
    %v619 = vlaneseq
    %v620 = vshrl.u32 %v619, 7
    %v621 = vsub.s32 2, %v620
    %v622 = vrot.slane %v609, %v621
    %626 = vmatprep.subr.mxu0 %v562
    %627 = vmatpush1.msra.mxu0 %v561
    %628 = vmatprep.subr.mxu0 %v565
    %629 = vmatpush1.msra.mxu0 %v564
    %630 = vmatprep.subr.mxu0 %v568
    %631 = vmatpush1.msra.mxu0 %v567
    %632 = vmatprep.subr.mxu0 %v571
    %633 = vmatpush1.msra.mxu0 %v570
    %634 = vmatprep.subr.mxu0 %v574
    %635 = vmatpush1.msra.mxu0 %v573
    %636 = vmatprep.subr.mxu0 %v577
    %637 = vmatpush1.msra.mxu0 %v576
    %638 = vmatprep.subr.mxu0 %v580
    %639 = vmatpush1.msra.mxu0 %v579
    %640 = vmatprep.subr.mxu0 %v583
    %641 = vmatpush1.msra.mxu0 %v582
    %642 = vmatprep.subr.mxu0 %v586
    %643 = vmatpush1.msra.mxu0 %v585
    %644 = vmatprep.subr.mxu0 %v589
    %645 = vmatpush1.msra.mxu0 %v588
    %646 = vmatprep.subr.mxu0 %v592
    %647 = vmatpush1.msra.mxu0 %v591
    %648 = vmatprep.subr.mxu0 %v595
    %649 = vmatpush1.msra.mxu0 %v594
    %650 = vmatprep.subr.mxu0 %v598
    %651 = vmatpush1.msra.mxu0 %v597
    %652 = vmatprep.subr.mxu0 %v601
    %653 = vmatpush1.msra.mxu0 %v600
    %654 = vmatprep.subr.mxu0 %v604
    %655 = vmatpush1.msra.mxu0 %v603
    %656 = vmatprep.subr.mxu0 %v607
    %657 = vmatpush1.msra.mxu0 %v606
    %658 = vmatprep.subr.mxu0 0.0
    %659 = vmatpush1.msra.mxu0 0.0
    %660 = vmatprep.subr.mxu0 0.0
    %661 = vmatpush1.msra.mxu0 0.0
    %662 = vmatprep.subr.mxu0 0.0
    %663 = vmatpush1.msra.mxu0 0.0
    %664 = vmatprep.subr.mxu0 0.0
    %665 = vmatpush1.msra.mxu0 0.0
    %666 = vmatprep.subr.mxu0 0.0
    %667 = vmatpush1.msra.mxu0 0.0
    %668 = vmatprep.subr.mxu0 0.0
    %669 = vmatpush1.msra.mxu0 0.0
    %670 = vmatprep.subr.mxu0 0.0
    %671 = vmatpush1.msra.mxu0 0.0
    %672 = vmatprep.subr.mxu0 0.0
    %673 = vmatpush1.msra.mxu0 0.0
    %674 = vmatprep.subr.mxu0 0.0
    %675 = vmatpush1.msra.mxu0 0.0
    %676 = vmatprep.subr.mxu0 0.0
    %677 = vmatpush1.msra.mxu0 0.0
    %678 = vmatprep.subr.mxu0 0.0
    %679 = vmatpush1.msra.mxu0 0.0
    %680 = vmatprep.subr.mxu0 0.0
    %681 = vmatpush1.msra.mxu0 0.0
    %682 = vmatprep.subr.mxu0 0.0
    %683 = vmatpush1.msra.mxu0 0.0
    %684 = vmatprep.subr.mxu0 0.0
    %685 = vmatpush1.msra.mxu0 0.0
    %686 = vmatprep.subr.mxu0 0.0
    %687 = vmatpush1.msra.mxu0 0.0
    %688 = vmatprep.subr.mxu0 0.0
    %689 = vmatpush1.msra.mxu0 0.0
    %690 = vmatprep.mubr.f32.mxu0 0.0
    %691 = vmatmul.mubr.f32.gmra.mrb[0].mxu0 %v216
    %v692 = vpop.f32.mrb[0].mxu0
    %v693 = vadd.f32 %v614, %v692
    %v694 = vpop.f32.mrb[0].mxu0
    %v695 = vadd.f32 %v618, %v694
    %696 = vmatprep.mubr.f32.mxu0 0.0
    %697 = vmatmul.mubr.f32.gmra.mrb[0].mxu0 %v217
    %v698 = vpop.f32.mrb[0].mxu0
    %v699 = vadd.f32 %v614, %v698
    %v700 = vpop.f32.mrb[0].mxu0
    %v701 = vadd.f32 %v618, %v700
    %702 = vdwg.mxu0
    %703 = vmatprep.subr.mxu0 0.0
    %704 = vmatpush1.msra.mxu0 %v563
    %705 = vmatprep.subr.mxu0 0.0
    %706 = vmatpush1.msra.mxu0 %v566
    %707 = vmatprep.subr.mxu0 0.0
    %708 = vmatpush1.msra.mxu0 %v569
    %709 = vmatprep.subr.mxu0 0.0
    %710 = vmatpush1.msra.mxu0 %v572
    %711 = vmatprep.subr.mxu0 0.0
    %712 = vmatpush1.msra.mxu0 %v575
    %713 = vmatprep.subr.mxu0 0.0
    %714 = vmatpush1.msra.mxu0 %v578
    %715 = vmatprep.subr.mxu0 0.0
    %716 = vmatpush1.msra.mxu0 %v581
    %717 = vmatprep.subr.mxu0 0.0
    %718 = vmatpush1.msra.mxu0 %v584
    %719 = vmatprep.subr.mxu0 0.0
    %720 = vmatpush1.msra.mxu0 %v587
    %721 = vmatprep.subr.mxu0 0.0
    %722 = vmatpush1.msra.mxu0 %v590
    %723 = vmatprep.subr.mxu0 0.0
    %724 = vmatpush1.msra.mxu0 %v593
    %725 = vmatprep.subr.mxu0 0.0
    %726 = vmatpush1.msra.mxu0 %v596
    %727 = vmatprep.subr.mxu0 0.0
    %728 = vmatpush1.msra.mxu0 %v599
    %729 = vmatprep.subr.mxu0 0.0
    %730 = vmatpush1.msra.mxu0 %v602
    %731 = vmatprep.subr.mxu0 0.0
    %732 = vmatpush1.msra.mxu0 %v605
    %733 = vmatprep.subr.mxu0 0.0
    %734 = vmatpush1.msra.mxu0 %v608
    %735 = vmatprep.subr.mxu0 0.0
    %736 = vmatpush1.msra.mxu0 0.0
    %737 = vmatprep.subr.mxu0 0.0
    %738 = vmatpush1.msra.mxu0 0.0
    %739 = vmatprep.subr.mxu0 0.0
    %740 = vmatpush1.msra.mxu0 0.0
    %741 = vmatprep.subr.mxu0 0.0
    %742 = vmatpush1.msra.mxu0 0.0
    %743 = vmatprep.subr.mxu0 0.0
    %744 = vmatpush1.msra.mxu0 0.0
    %745 = vmatprep.subr.mxu0 0.0
    %746 = vmatpush1.msra.mxu0 0.0
    %747 = vmatprep.subr.mxu0 0.0
    %748 = vmatpush1.msra.mxu0 0.0
    %749 = vmatprep.subr.mxu0 0.0
    %750 = vmatpush1.msra.mxu0 0.0
    %751 = vmatprep.subr.mxu0 0.0
    %752 = vmatpush1.msra.mxu0 0.0
    %753 = vmatprep.subr.mxu0 0.0
    %754 = vmatpush1.msra.mxu0 0.0
    %755 = vmatprep.subr.mxu0 0.0
    %756 = vmatpush1.msra.mxu0 0.0
    %757 = vmatprep.subr.mxu0 0.0
    %758 = vmatpush1.msra.mxu0 0.0
    %759 = vmatprep.subr.mxu0 0.0
    %760 = vmatpush1.msra.mxu0 0.0
    %761 = vmatprep.subr.mxu0 0.0
    %762 = vmatpush1.msra.mxu0 0.0
    %763 = vmatprep.subr.mxu0 0.0
    %764 = vmatpush1.msra.mxu0 0.0
    %765 = vmatprep.subr.mxu0 0.0
    %766 = vmatpush1.msra.mxu0 0.0
    %767 = vmatprep.mubr.f32.mxu0 0.0
    %768 = vmatmul.mubr.f32.gmra.mrb[0].mxu0 %v216
    %v769 = vpop.f32.mrb[0].mxu0
    %v770 = vadd.f32 %v622, %v769
    %v771 = vpop.f32.mrb[0].mxu0
    %772 = vmatprep.mubr.f32.mxu0 0.0
    %773 = vmatmul.mubr.f32.gmra.mrb[0].mxu0 %v217
    %v774 = vpop.f32.mrb[0].mxu0
    %v775 = vadd.f32 %v622, %v774
    %v776 = vpop.f32.mrb[0].mxu0
    %777 = vdwg.mxu0
    %vm778 = vcmask 261120
    %v780 = vsel %vm778, %v693, 0
    %v783 = vsel %vm778, %v695, 0
    %785 = vmatprep.subr.mxu0 0.0
    %786 = vmatpush1.xpose.msra.mxu0 %v783
    %787 = vmatprep.subr.mxu0 0.0
    %788 = vmatpush1.xpose.msra.mxu0 0.0
    %789 = vmatprep.subr.mxu0 0.0
    %790 = vmatpush1.xpose.msra.mxu0 0.0
    %791 = vmatprep.subr.mxu0 0.0
    %792 = vmatpush1.xpose.msra.mxu0 0.0
    %793 = vmatprep.subr.mxu0 0.0
    %794 = vmatpush1.xpose.msra.mxu0 0.0
    %795 = vmatprep.subr.mxu0 0.0
    %796 = vmatpush1.xpose.msra.mxu0 0.0
    %797 = vmatprep.subr.mxu0 0.0
    %798 = vmatpush1.xpose.msra.mxu0 0.0
    %799 = vmatprep.subr.mxu0 0.0
    %800 = vmatpush1.xpose.msra.mxu0 0.0
    %801 = vmatprep.subr.mxu0 0.0
    %802 = vmatpush1.xpose.msra.mxu0 0.0
    %803 = vmatprep.subr.mxu0 0.0
    %804 = vmatpush1.xpose.msra.mxu0 0.0
    %805 = vmatprep.subr.mxu0 0.0
    %806 = vmatpush1.xpose.msra.mxu0 0.0
    %807 = vmatprep.subr.mxu0 0.0
    %808 = vmatpush1.xpose.msra.mxu0 0.0
    %809 = vmatprep.subr.mxu0 0.0
    %810 = vmatpush1.xpose.msra.mxu0 0.0
    %811 = vmatprep.subr.mxu0 0.0
    %812 = vmatpush1.xpose.msra.mxu0 0.0
    %813 = vmatprep.subr.mxu0 0.0
    %814 = vmatpush1.xpose.msra.mxu0 0.0
    %815 = vmatprep.subr.mxu0 0.0
    %816 = vmatpush1.xpose.msra.mxu0 0.0
    %817 = vmatprep.subr.mxu0 0.0
    %818 = vmatpush1.xpose.msra.mxu0 0.0
    %819 = vmatprep.subr.mxu0 0.0
    %820 = vmatpush1.xpose.msra.mxu0 0.0
    %821 = vmatprep.subr.mxu0 0.0
    %822 = vmatpush1.xpose.msra.mxu0 0.0
    %823 = vmatprep.subr.mxu0 0.0
    %824 = vmatpush1.xpose.msra.mxu0 0.0
    %825 = vmatprep.subr.mxu0 0.0
    %826 = vmatpush1.xpose.msra.mxu0 0.0
    %827 = vmatprep.subr.mxu0 0.0
    %828 = vmatpush1.xpose.msra.mxu0 0.0
    %829 = vmatprep.subr.mxu0 0.0
    %830 = vmatpush1.xpose.msra.mxu0 0.0
    %831 = vmatprep.subr.mxu0 0.0
    %832 = vmatpush1.xpose.msra.mxu0 0.0
    %833 = vmatprep.subr.mxu0 0.0
    %834 = vmatpush1.xpose.msra.mxu0 0.0
    %835 = vmatprep.subr.mxu0 0.0
    %836 = vmatpush1.xpose.msra.mxu0 0.0
    %837 = vmatprep.subr.mxu0 0.0
    %838 = vmatpush1.xpose.msra.mxu0 0.0
    %839 = vmatprep.subr.mxu0 0.0
    %840 = vmatpush1.xpose.msra.mxu0 0.0
    %841 = vmatprep.subr.mxu0 0.0
    %842 = vmatpush1.xpose.msra.mxu0 0.0
    %843 = vmatprep.subr.mxu0 0.0
    %844 = vmatpush1.xpose.msra.mxu0 0.0
    %845 = vmatprep.subr.mxu0 0.0
    %846 = vmatpush1.xpose.msra.mxu0 0.0
    %847 = vmatprep.subr.mxu0 0.0
    %848 = vmatpush1.xpose.msra.mxu0 0.0
    %849 = vmatprep.mubr.f32.mxu0 0.0
    %850 = vmatmul.mubr.f32.gmra.mrb[0].mxu0 %v780
    %v851 = vpop.f32.mrb[0].mxu0
    %v852 = vadd.f32 0.0, %v851
    %v853 = vpop.f32.mrb[0].mxu0
    %854 = vdwg.mxu0
    %vm855 = vcmask 64512
    %v856 = vsel %vm855, %v852, -inf
    %857 = vmax.xlane.f32.xlu0 %v856
    %v858 = vpop.xlane.xlu0 %857
    %v859 = vsub.f32 %v852, %v858
    %v860 = vmul.f32 %v859, 1.442695
    %v861 = vpow.pop %v860
    %v862 = vsel %vm855, %v861, 0.0
    %863 = vadd.xlane.f32.xlu0 %v862
    %v864 = vpop.xlane.xlu0 %863
    %v865 = vrcp.pop %v864
    %v866 = vmul.f32 %v861, %v865
    %v868 = vsel %vm855, %v866, 0
    %870 = vmatprep.subr.mxu0 0.0
    %871 = vmatpush1.msra.mxu0 %v770
    %872 = vmatprep.subr.mxu0 0.0
    %873 = vmatpush1.msra.mxu0 0.0
    %874 = vmatprep.subr.mxu0 0.0
    %875 = vmatpush1.msra.mxu0 0.0
    %876 = vmatprep.subr.mxu0 0.0
    %877 = vmatpush1.msra.mxu0 0.0
    %878 = vmatprep.subr.mxu0 0.0
    %879 = vmatpush1.msra.mxu0 0.0
    %880 = vmatprep.subr.mxu0 0.0
    %881 = vmatpush1.msra.mxu0 0.0
    %882 = vmatprep.subr.mxu0 0.0
    %883 = vmatpush1.msra.mxu0 0.0
    %884 = vmatprep.subr.mxu0 0.0
    %885 = vmatpush1.msra.mxu0 0.0
    %886 = vmatprep.subr.mxu0 0.0
    %887 = vmatpush1.msra.mxu0 0.0
    %888 = vmatprep.subr.mxu0 0.0
    %889 = vmatpush1.msra.mxu0 0.0
    %890 = vmatprep.subr.mxu0 0.0
    %891 = vmatpush1.msra.mxu0 0.0
    %892 = vmatprep.subr.mxu0 0.0
    %893 = vmatpush1.msra.mxu0 0.0
    %894 = vmatprep.subr.mxu0 0.0
    %895 = vmatpush1.msra.mxu0 0.0
    %896 = vmatprep.subr.mxu0 0.0
    %897 = vmatpush1.msra.mxu0 0.0
    %898 = vmatprep.subr.mxu0 0.0
    %899 = vmatpush1.msra.mxu0 0.0
    %900 = vmatprep.subr.mxu0 0.0
    %901 = vmatpush1.msra.mxu0 0.0
    %902 = vmatprep.subr.mxu0 0.0
    %903 = vmatpush1.msra.mxu0 0.0
    %904 = vmatprep.subr.mxu0 0.0
    %905 = vmatpush1.msra.mxu0 0.0
    %906 = vmatprep.subr.mxu0 0.0
    %907 = vmatpush1.msra.mxu0 0.0
    %908 = vmatprep.subr.mxu0 0.0
    %909 = vmatpush1.msra.mxu0 0.0
    %910 = vmatprep.subr.mxu0 0.0
    %911 = vmatpush1.msra.mxu0 0.0
    %912 = vmatprep.subr.mxu0 0.0
    %913 = vmatpush1.msra.mxu0 0.0
    %914 = vmatprep.subr.mxu0 0.0
    %915 = vmatpush1.msra.mxu0 0.0
    %916 = vmatprep.subr.mxu0 0.0
    %917 = vmatpush1.msra.mxu0 0.0
    %918 = vmatprep.subr.mxu0 0.0
    %919 = vmatpush1.msra.mxu0 0.0
    %920 = vmatprep.subr.mxu0 0.0
    %921 = vmatpush1.msra.mxu0 0.0
    %922 = vmatprep.subr.mxu0 0.0
    %923 = vmatpush1.msra.mxu0 0.0
    %924 = vmatprep.subr.mxu0 0.0
    %925 = vmatpush1.msra.mxu0 0.0
    %926 = vmatprep.subr.mxu0 0.0
    %927 = vmatpush1.msra.mxu0 0.0
    %928 = vmatprep.subr.mxu0 0.0
    %929 = vmatpush1.msra.mxu0 0.0
    %930 = vmatprep.subr.mxu0 0.0
    %931 = vmatpush1.msra.mxu0 0.0
    %932 = vmatprep.subr.mxu0 0.0
    %933 = vmatpush1.msra.mxu0 0.0
    %934 = vmatprep.mubr.f32.mxu0 0.0
    %935 = vmatmul.mubr.f32.gmra.mrb[0].mxu0 %v868
    %v936 = vpop.f32.mrb[0].mxu0
    %v937 = vadd.f32 0.0, %v936
    %v938 = vpop.f32.mrb[0].mxu0
    %939 = vdwg.mxu0
    %940 = vrot.lane.b32.xlu0 %v693, 96
    %v941 = vpop.permute.xlu0 %940
    %942 = vrot.lane.b32.xlu0 %v695, 96
    %v943 = vpop.permute.xlu0 %942
    %v944 = vsel %vm778, %v941, 0
    %v946 = vsel %vm778, %v943, 0
    %948 = vmatprep.subr.mxu0 0.0
    %949 = vmatpush1.xpose.msra.mxu0 %v946
    %950 = vmatprep.subr.mxu0 0.0
    %951 = vmatpush1.xpose.msra.mxu0 0.0
    %952 = vmatprep.subr.mxu0 0.0
    %953 = vmatpush1.xpose.msra.mxu0 0.0
    %954 = vmatprep.subr.mxu0 0.0
    %955 = vmatpush1.xpose.msra.mxu0 0.0
    %956 = vmatprep.subr.mxu0 0.0
    %957 = vmatpush1.xpose.msra.mxu0 0.0
    %958 = vmatprep.subr.mxu0 0.0
    %959 = vmatpush1.xpose.msra.mxu0 0.0
    %960 = vmatprep.subr.mxu0 0.0
    %961 = vmatpush1.xpose.msra.mxu0 0.0
    %962 = vmatprep.subr.mxu0 0.0
    %963 = vmatpush1.xpose.msra.mxu0 0.0
    %964 = vmatprep.subr.mxu0 0.0
    %965 = vmatpush1.xpose.msra.mxu0 0.0
    %966 = vmatprep.subr.mxu0 0.0
    %967 = vmatpush1.xpose.msra.mxu0 0.0
    %968 = vmatprep.subr.mxu0 0.0
    %969 = vmatpush1.xpose.msra.mxu0 0.0
    %970 = vmatprep.subr.mxu0 0.0
    %971 = vmatpush1.xpose.msra.mxu0 0.0
    %972 = vmatprep.subr.mxu0 0.0
    %973 = vmatpush1.xpose.msra.mxu0 0.0
    %974 = vmatprep.subr.mxu0 0.0
    %975 = vmatpush1.xpose.msra.mxu0 0.0
    %976 = vmatprep.subr.mxu0 0.0
    %977 = vmatpush1.xpose.msra.mxu0 0.0
    %978 = vmatprep.subr.mxu0 0.0
    %979 = vmatpush1.xpose.msra.mxu0 0.0
    %980 = vmatprep.subr.mxu0 0.0
    %981 = vmatpush1.xpose.msra.mxu0 0.0
    %982 = vmatprep.subr.mxu0 0.0
    %983 = vmatpush1.xpose.msra.mxu0 0.0
    %984 = vmatprep.subr.mxu0 0.0
    %985 = vmatpush1.xpose.msra.mxu0 0.0
    %986 = vmatprep.subr.mxu0 0.0
    %987 = vmatpush1.xpose.msra.mxu0 0.0
    %988 = vmatprep.subr.mxu0 0.0
    %989 = vmatpush1.xpose.msra.mxu0 0.0
    %990 = vmatprep.subr.mxu0 0.0
    %991 = vmatpush1.xpose.msra.mxu0 0.0
    %992 = vmatprep.subr.mxu0 0.0
    %993 = vmatpush1.xpose.msra.mxu0 0.0
    %994 = vmatprep.subr.mxu0 0.0
    %995 = vmatpush1.xpose.msra.mxu0 0.0
    %996 = vmatprep.subr.mxu0 0.0
    %997 = vmatpush1.xpose.msra.mxu0 0.0
    %998 = vmatprep.subr.mxu0 0.0
    %999 = vmatpush1.xpose.msra.mxu0 0.0
    %1000 = vmatprep.subr.mxu0 0.0
    %1001 = vmatpush1.xpose.msra.mxu0 0.0
    %1002 = vmatprep.subr.mxu0 0.0
    %1003 = vmatpush1.xpose.msra.mxu0 0.0
    %1004 = vmatprep.subr.mxu0 0.0
    %1005 = vmatpush1.xpose.msra.mxu0 0.0
    %1006 = vmatprep.subr.mxu0 0.0
    %1007 = vmatpush1.xpose.msra.mxu0 0.0
    %1008 = vmatprep.subr.mxu0 0.0
    %1009 = vmatpush1.xpose.msra.mxu0 0.0
    %1010 = vmatprep.subr.mxu0 0.0
    %1011 = vmatpush1.xpose.msra.mxu0 0.0
    %1012 = vmatprep.mubr.f32.mxu0 0.0
    %1013 = vmatmul.mubr.f32.gmra.mrb[0].mxu0 %v944
    %v1014 = vpop.f32.mrb[0].mxu0
    %v1015 = vadd.f32 0.0, %v1014
    %v1016 = vpop.f32.mrb[0].mxu0
    %1017 = vdwg.mxu0
    %v1018 = vsel %vm855, %v1015, -inf
    %1019 = vmax.xlane.f32.xlu0 %v1018
    %v1020 = vpop.xlane.xlu0 %1019
    %v1021 = vsub.f32 %v1015, %v1020
    %v1022 = vmul.f32 %v1021, 1.442695
    %v1023 = vpow.pop %v1022
    %v1024 = vsel %vm855, %v1023, 0.0
    %1025 = vadd.xlane.f32.xlu0 %v1024
    %v1026 = vpop.xlane.xlu0 %1025
    %v1027 = vrcp.pop %v1026
    %v1028 = vmul.f32 %v1023, %v1027
    %1030 = vrot.lane.b32.xlu0 %v770, 96
    %v1031 = vpop.permute.xlu0 %1030
    %v1034 = vsel %vm855, %v1028, 0
    %1036 = vmatprep.subr.mxu0 0.0
    %1037 = vmatpush1.msra.mxu0 %v1031
    %1038 = vmatprep.subr.mxu0 0.0
    %1039 = vmatpush1.msra.mxu0 0.0
    %1040 = vmatprep.subr.mxu0 0.0
    %1041 = vmatpush1.msra.mxu0 0.0
    %1042 = vmatprep.subr.mxu0 0.0
    %1043 = vmatpush1.msra.mxu0 0.0
    %1044 = vmatprep.subr.mxu0 0.0
    %1045 = vmatpush1.msra.mxu0 0.0
    %1046 = vmatprep.subr.mxu0 0.0
    %1047 = vmatpush1.msra.mxu0 0.0
    %1048 = vmatprep.subr.mxu0 0.0
    %1049 = vmatpush1.msra.mxu0 0.0
    %1050 = vmatprep.subr.mxu0 0.0
    %1051 = vmatpush1.msra.mxu0 0.0
    %1052 = vmatprep.subr.mxu0 0.0
    %1053 = vmatpush1.msra.mxu0 0.0
    %1054 = vmatprep.subr.mxu0 0.0
    %1055 = vmatpush1.msra.mxu0 0.0
    %1056 = vmatprep.subr.mxu0 0.0
    %1057 = vmatpush1.msra.mxu0 0.0
    %1058 = vmatprep.subr.mxu0 0.0
    %1059 = vmatpush1.msra.mxu0 0.0
    %1060 = vmatprep.subr.mxu0 0.0
    %1061 = vmatpush1.msra.mxu0 0.0
    %1062 = vmatprep.subr.mxu0 0.0
    %1063 = vmatpush1.msra.mxu0 0.0
    %1064 = vmatprep.subr.mxu0 0.0
    %1065 = vmatpush1.msra.mxu0 0.0
    %1066 = vmatprep.subr.mxu0 0.0
    %1067 = vmatpush1.msra.mxu0 0.0
    %1068 = vmatprep.subr.mxu0 0.0
    %1069 = vmatpush1.msra.mxu0 0.0
    %1070 = vmatprep.subr.mxu0 0.0
    %1071 = vmatpush1.msra.mxu0 0.0
    %1072 = vmatprep.subr.mxu0 0.0
    %1073 = vmatpush1.msra.mxu0 0.0
    %1074 = vmatprep.subr.mxu0 0.0
    %1075 = vmatpush1.msra.mxu0 0.0
    %1076 = vmatprep.subr.mxu0 0.0
    %1077 = vmatpush1.msra.mxu0 0.0
    %1078 = vmatprep.subr.mxu0 0.0
    %1079 = vmatpush1.msra.mxu0 0.0
    %1080 = vmatprep.subr.mxu0 0.0
    %1081 = vmatpush1.msra.mxu0 0.0
    %1082 = vmatprep.subr.mxu0 0.0
    %1083 = vmatpush1.msra.mxu0 0.0
    %1084 = vmatprep.subr.mxu0 0.0
    %1085 = vmatpush1.msra.mxu0 0.0
    %1086 = vmatprep.subr.mxu0 0.0
    %1087 = vmatpush1.msra.mxu0 0.0
    %1088 = vmatprep.subr.mxu0 0.0
    %1089 = vmatpush1.msra.mxu0 0.0
    %1090 = vmatprep.subr.mxu0 0.0
    %1091 = vmatpush1.msra.mxu0 0.0
    %1092 = vmatprep.subr.mxu0 0.0
    %1093 = vmatpush1.msra.mxu0 0.0
    %1094 = vmatprep.subr.mxu0 0.0
    %1095 = vmatpush1.msra.mxu0 0.0
    %1096 = vmatprep.subr.mxu0 0.0
    %1097 = vmatpush1.msra.mxu0 0.0
    %1098 = vmatprep.subr.mxu0 0.0
    %1099 = vmatpush1.msra.mxu0 0.0
    %1100 = vmatprep.mubr.f32.mxu0 0.0
    %1101 = vmatmul.mubr.f32.gmra.mrb[0].mxu0 %v1034
    %v1102 = vpop.f32.mrb[0].mxu0
    %v1103 = vadd.f32 0.0, %v1102
    %v1104 = vpop.f32.mrb[0].mxu0
    %1105 = vdwg.mxu0
    %1106 = vrot.lane.b32.xlu0 %v693, 64
    %v1107 = vpop.permute.xlu0 %1106
    %1108 = vrot.lane.b32.xlu0 %v695, 64
    %v1109 = vpop.permute.xlu0 %1108
    %v1110 = vsel %vm778, %v1107, 0
    %v1112 = vsel %vm778, %v1109, 0
    %1114 = vmatprep.subr.mxu0 0.0
    %1115 = vmatpush1.xpose.msra.mxu0 %v1112
    %1116 = vmatprep.subr.mxu0 0.0
    %1117 = vmatpush1.xpose.msra.mxu0 0.0
    %1118 = vmatprep.subr.mxu0 0.0
    %1119 = vmatpush1.xpose.msra.mxu0 0.0
    %1120 = vmatprep.subr.mxu0 0.0
    %1121 = vmatpush1.xpose.msra.mxu0 0.0
    %1122 = vmatprep.subr.mxu0 0.0
    %1123 = vmatpush1.xpose.msra.mxu0 0.0
    %1124 = vmatprep.subr.mxu0 0.0
    %1125 = vmatpush1.xpose.msra.mxu0 0.0
    %1126 = vmatprep.subr.mxu0 0.0
    %1127 = vmatpush1.xpose.msra.mxu0 0.0
    %1128 = vmatprep.subr.mxu0 0.0
    %1129 = vmatpush1.xpose.msra.mxu0 0.0
    %1130 = vmatprep.subr.mxu0 0.0
    %1131 = vmatpush1.xpose.msra.mxu0 0.0
    %1132 = vmatprep.subr.mxu0 0.0
    %1133 = vmatpush1.xpose.msra.mxu0 0.0
    %1134 = vmatprep.subr.mxu0 0.0
    %1135 = vmatpush1.xpose.msra.mxu0 0.0
    %1136 = vmatprep.subr.mxu0 0.0
    %1137 = vmatpush1.xpose.msra.mxu0 0.0
    %1138 = vmatprep.subr.mxu0 0.0
    %1139 = vmatpush1.xpose.msra.mxu0 0.0
    %1140 = vmatprep.subr.mxu0 0.0
    %1141 = vmatpush1.xpose.msra.mxu0 0.0
    %1142 = vmatprep.subr.mxu0 0.0
    %1143 = vmatpush1.xpose.msra.mxu0 0.0
    %1144 = vmatprep.subr.mxu0 0.0
    %1145 = vmatpush1.xpose.msra.mxu0 0.0
    %1146 = vmatprep.subr.mxu0 0.0
    %1147 = vmatpush1.xpose.msra.mxu0 0.0
    %1148 = vmatprep.subr.mxu0 0.0
    %1149 = vmatpush1.xpose.msra.mxu0 0.0
    %1150 = vmatprep.subr.mxu0 0.0
    %1151 = vmatpush1.xpose.msra.mxu0 0.0
    %1152 = vmatprep.subr.mxu0 0.0
    %1153 = vmatpush1.xpose.msra.mxu0 0.0
    %1154 = vmatprep.subr.mxu0 0.0
    %1155 = vmatpush1.xpose.msra.mxu0 0.0
    %1156 = vmatprep.subr.mxu0 0.0
    %1157 = vmatpush1.xpose.msra.mxu0 0.0
    %1158 = vmatprep.subr.mxu0 0.0
    %1159 = vmatpush1.xpose.msra.mxu0 0.0
    %1160 = vmatprep.subr.mxu0 0.0
    %1161 = vmatpush1.xpose.msra.mxu0 0.0
    %1162 = vmatprep.subr.mxu0 0.0
    %1163 = vmatpush1.xpose.msra.mxu0 0.0
    %1164 = vmatprep.subr.mxu0 0.0
    %1165 = vmatpush1.xpose.msra.mxu0 0.0
    %1166 = vmatprep.subr.mxu0 0.0
    %1167 = vmatpush1.xpose.msra.mxu0 0.0
    %1168 = vmatprep.subr.mxu0 0.0
    %1169 = vmatpush1.xpose.msra.mxu0 0.0
    %1170 = vmatprep.subr.mxu0 0.0
    %1171 = vmatpush1.xpose.msra.mxu0 0.0
    %1172 = vmatprep.subr.mxu0 0.0
    %1173 = vmatpush1.xpose.msra.mxu0 0.0
    %1174 = vmatprep.subr.mxu0 0.0
    %1175 = vmatpush1.xpose.msra.mxu0 0.0
    %1176 = vmatprep.subr.mxu0 0.0
    %1177 = vmatpush1.xpose.msra.mxu0 0.0
    %1178 = vmatprep.mubr.f32.mxu0 0.0
    %1179 = vmatmul.mubr.f32.gmra.mrb[0].mxu0 %v1110
    %v1180 = vpop.f32.mrb[0].mxu0
    %v1181 = vadd.f32 0.0, %v1180
    %v1182 = vpop.f32.mrb[0].mxu0
    %1183 = vdwg.mxu0
    %v1184 = vsel %vm855, %v1181, -inf
    %1185 = vmax.xlane.f32.xlu0 %v1184
    %v1186 = vpop.xlane.xlu0 %1185
    %v1187 = vsub.f32 %v1181, %v1186
    %v1188 = vmul.f32 %v1187, 1.442695
    %v1189 = vpow.pop %v1188
    %v1190 = vsel %vm855, %v1189, 0.0
    %1191 = vadd.xlane.f32.xlu0 %v1190
    %v1192 = vpop.xlane.xlu0 %1191
    %v1193 = vrcp.pop %v1192
    %v1194 = vmul.f32 %v1189, %v1193
    %1195 = vrot.lane.b32.xlu0 %v770, 64
    %v1196 = vpop.permute.xlu0 %1195
    %v1199 = vsel %vm855, %v1194, 0
    %1201 = vmatprep.subr.mxu0 0.0
    %1202 = vmatpush1.msra.mxu0 %v1196
    %1203 = vmatprep.subr.mxu0 0.0
    %1204 = vmatpush1.msra.mxu0 0.0
    %1205 = vmatprep.subr.mxu0 0.0
    %1206 = vmatpush1.msra.mxu0 0.0
    %1207 = vmatprep.subr.mxu0 0.0
    %1208 = vmatpush1.msra.mxu0 0.0
    %1209 = vmatprep.subr.mxu0 0.0
    %1210 = vmatpush1.msra.mxu0 0.0
    %1211 = vmatprep.subr.mxu0 0.0
    %1212 = vmatpush1.msra.mxu0 0.0
    %1213 = vmatprep.subr.mxu0 0.0
    %1214 = vmatpush1.msra.mxu0 0.0
    %1215 = vmatprep.subr.mxu0 0.0
    %1216 = vmatpush1.msra.mxu0 0.0
    %1217 = vmatprep.subr.mxu0 0.0
    %1218 = vmatpush1.msra.mxu0 0.0
    %1219 = vmatprep.subr.mxu0 0.0
    %1220 = vmatpush1.msra.mxu0 0.0
    %1221 = vmatprep.subr.mxu0 0.0
    %1222 = vmatpush1.msra.mxu0 0.0
    %1223 = vmatprep.subr.mxu0 0.0
    %1224 = vmatpush1.msra.mxu0 0.0
    %1225 = vmatprep.subr.mxu0 0.0
    %1226 = vmatpush1.msra.mxu0 0.0
    %1227 = vmatprep.subr.mxu0 0.0
    %1228 = vmatpush1.msra.mxu0 0.0
    %1229 = vmatprep.subr.mxu0 0.0
    %1230 = vmatpush1.msra.mxu0 0.0
    %1231 = vmatprep.subr.mxu0 0.0
    %1232 = vmatpush1.msra.mxu0 0.0
    %1233 = vmatprep.subr.mxu0 0.0
    %1234 = vmatpush1.msra.mxu0 0.0
    %1235 = vmatprep.subr.mxu0 0.0
    %1236 = vmatpush1.msra.mxu0 0.0
    %1237 = vmatprep.subr.mxu0 0.0
    %1238 = vmatpush1.msra.mxu0 0.0
    %1239 = vmatprep.subr.mxu0 0.0
    %1240 = vmatpush1.msra.mxu0 0.0
    %1241 = vmatprep.subr.mxu0 0.0
    %1242 = vmatpush1.msra.mxu0 0.0
    %1243 = vmatprep.subr.mxu0 0.0
    %1244 = vmatpush1.msra.mxu0 0.0
    %1245 = vmatprep.subr.mxu0 0.0
    %1246 = vmatpush1.msra.mxu0 0.0
    %1247 = vmatprep.subr.mxu0 0.0
    %1248 = vmatpush1.msra.mxu0 0.0
    %1249 = vmatprep.subr.mxu0 0.0
    %1250 = vmatpush1.msra.mxu0 0.0
    %1251 = vmatprep.subr.mxu0 0.0
    %1252 = vmatpush1.msra.mxu0 0.0
    %1253 = vmatprep.subr.mxu0 0.0
    %1254 = vmatpush1.msra.mxu0 0.0
    %1255 = vmatprep.subr.mxu0 0.0
    %1256 = vmatpush1.msra.mxu0 0.0
    %1257 = vmatprep.subr.mxu0 0.0
    %1258 = vmatpush1.msra.mxu0 0.0
    %1259 = vmatprep.subr.mxu0 0.0
    %1260 = vmatpush1.msra.mxu0 0.0
    %1261 = vmatprep.subr.mxu0 0.0
    %1262 = vmatpush1.msra.mxu0 0.0
    %1263 = vmatprep.subr.mxu0 0.0
    %1264 = vmatpush1.msra.mxu0 0.0
    %1265 = vmatprep.mubr.f32.mxu0 0.0
    %1266 = vmatmul.mubr.f32.gmra.mrb[0].mxu0 %v1199
    %v1267 = vpop.f32.mrb[0].mxu0
    %v1268 = vadd.f32 0.0, %v1267
    %v1269 = vpop.f32.mrb[0].mxu0
    %1270 = vdwg.mxu0
    %1271 = vrot.lane.b32.xlu0 %v693, 32
    %v1272 = vpop.permute.xlu0 %1271
    %1273 = vrot.lane.b32.xlu0 %v695, 32
    %v1274 = vpop.permute.xlu0 %1273
    %v1275 = vsel %vm778, %v1272, 0
    %v1277 = vsel %vm778, %v1274, 0
    %1279 = vmatprep.subr.mxu0 0.0
    %1280 = vmatpush1.xpose.msra.mxu0 %v1277
    %1281 = vmatprep.subr.mxu0 0.0
    %1282 = vmatpush1.xpose.msra.mxu0 0.0
    %1283 = vmatprep.subr.mxu0 0.0
    %1284 = vmatpush1.xpose.msra.mxu0 0.0
    %1285 = vmatprep.subr.mxu0 0.0
    %1286 = vmatpush1.xpose.msra.mxu0 0.0
    %1287 = vmatprep.subr.mxu0 0.0
    %1288 = vmatpush1.xpose.msra.mxu0 0.0
    %1289 = vmatprep.subr.mxu0 0.0
    %1290 = vmatpush1.xpose.msra.mxu0 0.0
    %1291 = vmatprep.subr.mxu0 0.0
    %1292 = vmatpush1.xpose.msra.mxu0 0.0
    %1293 = vmatprep.subr.mxu0 0.0
    %1294 = vmatpush1.xpose.msra.mxu0 0.0
    %1295 = vmatprep.subr.mxu0 0.0
    %1296 = vmatpush1.xpose.msra.mxu0 0.0
    %1297 = vmatprep.subr.mxu0 0.0
    %1298 = vmatpush1.xpose.msra.mxu0 0.0
    %1299 = vmatprep.subr.mxu0 0.0
    %1300 = vmatpush1.xpose.msra.mxu0 0.0
    %1301 = vmatprep.subr.mxu0 0.0
    %1302 = vmatpush1.xpose.msra.mxu0 0.0
    %1303 = vmatprep.subr.mxu0 0.0
    %1304 = vmatpush1.xpose.msra.mxu0 0.0
    %1305 = vmatprep.subr.mxu0 0.0
    %1306 = vmatpush1.xpose.msra.mxu0 0.0
    %1307 = vmatprep.subr.mxu0 0.0
    %1308 = vmatpush1.xpose.msra.mxu0 0.0
    %1309 = vmatprep.subr.mxu0 0.0
    %1310 = vmatpush1.xpose.msra.mxu0 0.0
    %1311 = vmatprep.subr.mxu0 0.0
    %1312 = vmatpush1.xpose.msra.mxu0 0.0
    %1313 = vmatprep.subr.mxu0 0.0
    %1314 = vmatpush1.xpose.msra.mxu0 0.0
    %1315 = vmatprep.subr.mxu0 0.0
    %1316 = vmatpush1.xpose.msra.mxu0 0.0
    %1317 = vmatprep.subr.mxu0 0.0
    %1318 = vmatpush1.xpose.msra.mxu0 0.0
    %1319 = vmatprep.subr.mxu0 0.0
    %1320 = vmatpush1.xpose.msra.mxu0 0.0
    %1321 = vmatprep.subr.mxu0 0.0
    %1322 = vmatpush1.xpose.msra.mxu0 0.0
    %1323 = vmatprep.subr.mxu0 0.0
    %1324 = vmatpush1.xpose.msra.mxu0 0.0
    %1325 = vmatprep.subr.mxu0 0.0
    %1326 = vmatpush1.xpose.msra.mxu0 0.0
    %1327 = vmatprep.subr.mxu0 0.0
    %1328 = vmatpush1.xpose.msra.mxu0 0.0
    %1329 = vmatprep.subr.mxu0 0.0
    %1330 = vmatpush1.xpose.msra.mxu0 0.0
    %1331 = vmatprep.subr.mxu0 0.0
    %1332 = vmatpush1.xpose.msra.mxu0 0.0
    %1333 = vmatprep.subr.mxu0 0.0
    %1334 = vmatpush1.xpose.msra.mxu0 0.0
    %1335 = vmatprep.subr.mxu0 0.0
    %1336 = vmatpush1.xpose.msra.mxu0 0.0
    %1337 = vmatprep.subr.mxu0 0.0
    %1338 = vmatpush1.xpose.msra.mxu0 0.0
    %1339 = vmatprep.subr.mxu0 0.0
    %1340 = vmatpush1.xpose.msra.mxu0 0.0
    %1341 = vmatprep.subr.mxu0 0.0
    %1342 = vmatpush1.xpose.msra.mxu0 0.0
    %1343 = vmatprep.mubr.f32.mxu0 0.0
    %1344 = vmatmul.mubr.f32.gmra.mrb[0].mxu0 %v1275
    %v1345 = vpop.f32.mrb[0].mxu0
    %v1346 = vadd.f32 0.0, %v1345
    %v1347 = vpop.f32.mrb[0].mxu0
    %1348 = vdwg.mxu0
    %v1349 = vsel %vm855, %v1346, -inf
    %1350 = vmax.xlane.f32.xlu0 %v1349
    %v1351 = vpop.xlane.xlu0 %1350
    %v1352 = vsub.f32 %v1346, %v1351
    %v1353 = vmul.f32 %v1352, 1.442695
    %v1354 = vpow.pop %v1353
    %v1355 = vsel %vm855, %v1354, 0.0
    %1356 = vadd.xlane.f32.xlu0 %v1355
    %v1357 = vpop.xlane.xlu0 %1356
    %v1358 = vrcp.pop %v1357
    %v1359 = vmul.f32 %v1354, %v1358
    %1360 = vrot.lane.b32.xlu0 %v770, 32
    %v1361 = vpop.permute.xlu0 %1360
    %v1364 = vsel %vm855, %v1359, 0
    %1366 = vmatprep.subr.mxu0 0.0
    %1367 = vmatpush1.msra.mxu0 %v1361
    %1368 = vmatprep.subr.mxu0 0.0
    %1369 = vmatpush1.msra.mxu0 0.0
    %1370 = vmatprep.subr.mxu0 0.0
    %1371 = vmatpush1.msra.mxu0 0.0
    %1372 = vmatprep.subr.mxu0 0.0
    %1373 = vmatpush1.msra.mxu0 0.0
    %1374 = vmatprep.subr.mxu0 0.0
    %1375 = vmatpush1.msra.mxu0 0.0
    %1376 = vmatprep.subr.mxu0 0.0
    %1377 = vmatpush1.msra.mxu0 0.0
    %1378 = vmatprep.subr.mxu0 0.0
    %1379 = vmatpush1.msra.mxu0 0.0
    %1380 = vmatprep.subr.mxu0 0.0
    %1381 = vmatpush1.msra.mxu0 0.0
    %1382 = vmatprep.subr.mxu0 0.0
    %1383 = vmatpush1.msra.mxu0 0.0
    %1384 = vmatprep.subr.mxu0 0.0
    %1385 = vmatpush1.msra.mxu0 0.0
    %1386 = vmatprep.subr.mxu0 0.0
    %1387 = vmatpush1.msra.mxu0 0.0
    %1388 = vmatprep.subr.mxu0 0.0
    %1389 = vmatpush1.msra.mxu0 0.0
    %1390 = vmatprep.subr.mxu0 0.0
    %1391 = vmatpush1.msra.mxu0 0.0
    %1392 = vmatprep.subr.mxu0 0.0
    %1393 = vmatpush1.msra.mxu0 0.0
    %1394 = vmatprep.subr.mxu0 0.0
    %1395 = vmatpush1.msra.mxu0 0.0
    %1396 = vmatprep.subr.mxu0 0.0
    %1397 = vmatpush1.msra.mxu0 0.0
    %1398 = vmatprep.subr.mxu0 0.0
    %1399 = vmatpush1.msra.mxu0 0.0
    %1400 = vmatprep.subr.mxu0 0.0
    %1401 = vmatpush1.msra.mxu0 0.0
    %1402 = vmatprep.subr.mxu0 0.0
    %1403 = vmatpush1.msra.mxu0 0.0
    %1404 = vmatprep.subr.mxu0 0.0
    %1405 = vmatpush1.msra.mxu0 0.0
    %1406 = vmatprep.subr.mxu0 0.0
    %1407 = vmatpush1.msra.mxu0 0.0
    %1408 = vmatprep.subr.mxu0 0.0
    %1409 = vmatpush1.msra.mxu0 0.0
    %1410 = vmatprep.subr.mxu0 0.0
    %1411 = vmatpush1.msra.mxu0 0.0
    %1412 = vmatprep.subr.mxu0 0.0
    %1413 = vmatpush1.msra.mxu0 0.0
    %1414 = vmatprep.subr.mxu0 0.0
    %1415 = vmatpush1.msra.mxu0 0.0
    %1416 = vmatprep.subr.mxu0 0.0
    %1417 = vmatpush1.msra.mxu0 0.0
    %1418 = vmatprep.subr.mxu0 0.0
    %1419 = vmatpush1.msra.mxu0 0.0
    %1420 = vmatprep.subr.mxu0 0.0
    %1421 = vmatpush1.msra.mxu0 0.0
    %1422 = vmatprep.subr.mxu0 0.0
    %1423 = vmatpush1.msra.mxu0 0.0
    %1424 = vmatprep.subr.mxu0 0.0
    %1425 = vmatpush1.msra.mxu0 0.0
    %1426 = vmatprep.subr.mxu0 0.0
    %1427 = vmatpush1.msra.mxu0 0.0
    %1428 = vmatprep.subr.mxu0 0.0
    %1429 = vmatpush1.msra.mxu0 0.0
    %1430 = vmatprep.mubr.f32.mxu0 0.0
    %1431 = vmatmul.mubr.f32.gmra.mrb[0].mxu0 %v1364
    %v1432 = vpop.f32.mrb[0].mxu0
    %v1433 = vadd.f32 0.0, %v1432
    %v1434 = vpop.f32.mrb[0].mxu0
    %1435 = vdwg.mxu0
    %1437 = vrot.lane.b32.xlu0 %v1103, 32
    %v1438 = vpop.permute.xlu0 %1437
    %1441 = vrot.lane.b32.xlu0 %v1268, 64
    %v1442 = vpop.permute.xlu0 %1441
    %1445 = vrot.lane.b32.xlu0 %v1433, 96
    %v1446 = vpop.permute.xlu0 %1445
    %v1448 = vsel %vm778, %v937, %v1438
    %vm1449 = vcmask 523264
    %v1450 = vsel %vm1449, %v1448, %v1442
    %vm1451 = vcmask 785408
    %v1452 = vsel %vm1451, %v1450, %v1446
    %1453 = vst [vmem:[#allocation4] sm:$0xff] %v1452
    %v1455 = vsel %vm778, %v699, 0
    %v1458 = vsel %vm778, %v701, 0
    %1460 = vmatprep.subr.mxu0 0.0
    %1461 = vmatpush1.xpose.msra.mxu0 %v1458
    %1462 = vmatprep.subr.mxu0 0.0
    %1463 = vmatpush1.xpose.msra.mxu0 0.0
    %1464 = vmatprep.subr.mxu0 0.0
    %1465 = vmatpush1.xpose.msra.mxu0 0.0
    %1466 = vmatprep.subr.mxu0 0.0
    %1467 = vmatpush1.xpose.msra.mxu0 0.0
    %1468 = vmatprep.subr.mxu0 0.0
    %1469 = vmatpush1.xpose.msra.mxu0 0.0
    %1470 = vmatprep.subr.mxu0 0.0
    %1471 = vmatpush1.xpose.msra.mxu0 0.0
    %1472 = vmatprep.subr.mxu0 0.0
    %1473 = vmatpush1.xpose.msra.mxu0 0.0
    %1474 = vmatprep.subr.mxu0 0.0
    %1475 = vmatpush1.xpose.msra.mxu0 0.0
    %1476 = vmatprep.subr.mxu0 0.0
    %1477 = vmatpush1.xpose.msra.mxu0 0.0
    %1478 = vmatprep.subr.mxu0 0.0
    %1479 = vmatpush1.xpose.msra.mxu0 0.0
    %1480 = vmatprep.subr.mxu0 0.0
    %1481 = vmatpush1.xpose.msra.mxu0 0.0
    %1482 = vmatprep.subr.mxu0 0.0
    %1483 = vmatpush1.xpose.msra.mxu0 0.0
    %1484 = vmatprep.subr.mxu0 0.0
    %1485 = vmatpush1.xpose.msra.mxu0 0.0
    %1486 = vmatprep.subr.mxu0 0.0
    %1487 = vmatpush1.xpose.msra.mxu0 0.0
    %1488 = vmatprep.subr.mxu0 0.0
    %1489 = vmatpush1.xpose.msra.mxu0 0.0
    %1490 = vmatprep.subr.mxu0 0.0
    %1491 = vmatpush1.xpose.msra.mxu0 0.0
    %1492 = vmatprep.subr.mxu0 0.0
    %1493 = vmatpush1.xpose.msra.mxu0 0.0
    %1494 = vmatprep.subr.mxu0 0.0
    %1495 = vmatpush1.xpose.msra.mxu0 0.0
    %1496 = vmatprep.subr.mxu0 0.0
    %1497 = vmatpush1.xpose.msra.mxu0 0.0
    %1498 = vmatprep.subr.mxu0 0.0
    %1499 = vmatpush1.xpose.msra.mxu0 0.0
    %1500 = vmatprep.subr.mxu0 0.0
    %1501 = vmatpush1.xpose.msra.mxu0 0.0
    %1502 = vmatprep.subr.mxu0 0.0
    %1503 = vmatpush1.xpose.msra.mxu0 0.0
    %1504 = vmatprep.subr.mxu0 0.0
    %1505 = vmatpush1.xpose.msra.mxu0 0.0
    %1506 = vmatprep.subr.mxu0 0.0
    %1507 = vmatpush1.xpose.msra.mxu0 0.0
    %1508 = vmatprep.subr.mxu0 0.0
    %1509 = vmatpush1.xpose.msra.mxu0 0.0
    %1510 = vmatprep.subr.mxu0 0.0
    %1511 = vmatpush1.xpose.msra.mxu0 0.0
    %1512 = vmatprep.subr.mxu0 0.0
    %1513 = vmatpush1.xpose.msra.mxu0 0.0
    %1514 = vmatprep.subr.mxu0 0.0
    %1515 = vmatpush1.xpose.msra.mxu0 0.0
    %1516 = vmatprep.subr.mxu0 0.0
    %1517 = vmatpush1.xpose.msra.mxu0 0.0
    %1518 = vmatprep.subr.mxu0 0.0
    %1519 = vmatpush1.xpose.msra.mxu0 0.0
    %1520 = vmatprep.subr.mxu0 0.0
    %1521 = vmatpush1.xpose.msra.mxu0 0.0
    %1522 = vmatprep.subr.mxu0 0.0
    %1523 = vmatpush1.xpose.msra.mxu0 0.0
    %1524 = vmatprep.mubr.f32.mxu0 0.0
    %1525 = vmatmul.mubr.f32.gmra.mrb[0].mxu0 %v1455
    %v1526 = vpop.f32.mrb[0].mxu0
    %v1527 = vadd.f32 0.0, %v1526
    %v1528 = vpop.f32.mrb[0].mxu0
    %1529 = vdwg.mxu0
    %v1530 = vsel %vm855, %v1527, -inf
    %1531 = vmax.xlane.f32.xlu0 %v1530
    %v1532 = vpop.xlane.xlu0 %1531
    %v1533 = vsub.f32 %v1527, %v1532
    %v1534 = vmul.f32 %v1533, 1.442695
    %v1535 = vpow.pop %v1534
    %v1536 = vsel %vm855, %v1535, 0.0
    %1537 = vadd.xlane.f32.xlu0 %v1536
    %v1538 = vpop.xlane.xlu0 %1537
    %v1539 = vrcp.pop %v1538
    %v1540 = vmul.f32 %v1535, %v1539
    %v1542 = vsel %vm855, %v1540, 0
    %1544 = vmatprep.subr.mxu0 0.0
    %1545 = vmatpush1.msra.mxu0 %v775
    %1546 = vmatprep.subr.mxu0 0.0
    %1547 = vmatpush1.msra.mxu0 0.0
    %1548 = vmatprep.subr.mxu0 0.0
    %1549 = vmatpush1.msra.mxu0 0.0
    %1550 = vmatprep.subr.mxu0 0.0
    %1551 = vmatpush1.msra.mxu0 0.0
    %1552 = vmatprep.subr.mxu0 0.0
    %1553 = vmatpush1.msra.mxu0 0.0
    %1554 = vmatprep.subr.mxu0 0.0
    %1555 = vmatpush1.msra.mxu0 0.0
    %1556 = vmatprep.subr.mxu0 0.0
    %1557 = vmatpush1.msra.mxu0 0.0
    %1558 = vmatprep.subr.mxu0 0.0
    %1559 = vmatpush1.msra.mxu0 0.0
    %1560 = vmatprep.subr.mxu0 0.0
    %1561 = vmatpush1.msra.mxu0 0.0
    %1562 = vmatprep.subr.mxu0 0.0
    %1563 = vmatpush1.msra.mxu0 0.0
    %1564 = vmatprep.subr.mxu0 0.0
    %1565 = vmatpush1.msra.mxu0 0.0
    %1566 = vmatprep.subr.mxu0 0.0
    %1567 = vmatpush1.msra.mxu0 0.0
    %1568 = vmatprep.subr.mxu0 0.0
    %1569 = vmatpush1.msra.mxu0 0.0
    %1570 = vmatprep.subr.mxu0 0.0
    %1571 = vmatpush1.msra.mxu0 0.0
    %1572 = vmatprep.subr.mxu0 0.0
    %1573 = vmatpush1.msra.mxu0 0.0
    %1574 = vmatprep.subr.mxu0 0.0
    %1575 = vmatpush1.msra.mxu0 0.0
    %1576 = vmatprep.subr.mxu0 0.0
    %1577 = vmatpush1.msra.mxu0 0.0
    %1578 = vmatprep.subr.mxu0 0.0
    %1579 = vmatpush1.msra.mxu0 0.0
    %1580 = vmatprep.subr.mxu0 0.0
    %1581 = vmatpush1.msra.mxu0 0.0
    %1582 = vmatprep.subr.mxu0 0.0
    %1583 = vmatpush1.msra.mxu0 0.0
    %1584 = vmatprep.subr.mxu0 0.0
    %1585 = vmatpush1.msra.mxu0 0.0
    %1586 = vmatprep.subr.mxu0 0.0
    %1587 = vmatpush1.msra.mxu0 0.0
    %1588 = vmatprep.subr.mxu0 0.0
    %1589 = vmatpush1.msra.mxu0 0.0
    %1590 = vmatprep.subr.mxu0 0.0
    %1591 = vmatpush1.msra.mxu0 0.0
    %1592 = vmatprep.subr.mxu0 0.0
    %1593 = vmatpush1.msra.mxu0 0.0
    %1594 = vmatprep.subr.mxu0 0.0
    %1595 = vmatpush1.msra.mxu0 0.0
    %1596 = vmatprep.subr.mxu0 0.0
    %1597 = vmatpush1.msra.mxu0 0.0
    %1598 = vmatprep.subr.mxu0 0.0
    %1599 = vmatpush1.msra.mxu0 0.0
    %1600 = vmatprep.subr.mxu0 0.0
    %1601 = vmatpush1.msra.mxu0 0.0
    %1602 = vmatprep.subr.mxu0 0.0
    %1603 = vmatpush1.msra.mxu0 0.0
    %1604 = vmatprep.subr.mxu0 0.0
    %1605 = vmatpush1.msra.mxu0 0.0
    %1606 = vmatprep.subr.mxu0 0.0
    %1607 = vmatpush1.msra.mxu0 0.0
    %1608 = vmatprep.mubr.f32.mxu0 0.0
    %1609 = vmatmul.mubr.f32.gmra.mrb[0].mxu0 %v1542
    %v1610 = vpop.f32.mrb[0].mxu0
    %v1611 = vadd.f32 0.0, %v1610
    %v1612 = vpop.f32.mrb[0].mxu0
    %1613 = vdwg.mxu0
    %1614 = vrot.lane.b32.xlu0 %v699, 96
    %v1615 = vpop.permute.xlu0 %1614
    %1616 = vrot.lane.b32.xlu0 %v701, 96
    %v1617 = vpop.permute.xlu0 %1616
    %v1618 = vsel %vm778, %v1615, 0
    %v1620 = vsel %vm778, %v1617, 0
    %1622 = vmatprep.subr.mxu0 0.0
    %1623 = vmatpush1.xpose.msra.mxu0 %v1620
    %1624 = vmatprep.subr.mxu0 0.0
    %1625 = vmatpush1.xpose.msra.mxu0 0.0
    %1626 = vmatprep.subr.mxu0 0.0
    %1627 = vmatpush1.xpose.msra.mxu0 0.0
    %1628 = vmatprep.subr.mxu0 0.0
    %1629 = vmatpush1.xpose.msra.mxu0 0.0
    %1630 = vmatprep.subr.mxu0 0.0
    %1631 = vmatpush1.xpose.msra.mxu0 0.0
    %1632 = vmatprep.subr.mxu0 0.0
    %1633 = vmatpush1.xpose.msra.mxu0 0.0
    %1634 = vmatprep.subr.mxu0 0.0
    %1635 = vmatpush1.xpose.msra.mxu0 0.0
    %1636 = vmatprep.subr.mxu0 0.0
    %1637 = vmatpush1.xpose.msra.mxu0 0.0
    %1638 = vmatprep.subr.mxu0 0.0
    %1639 = vmatpush1.xpose.msra.mxu0 0.0
    %1640 = vmatprep.subr.mxu0 0.0
    %1641 = vmatpush1.xpose.msra.mxu0 0.0
    %1642 = vmatprep.subr.mxu0 0.0
    %1643 = vmatpush1.xpose.msra.mxu0 0.0
    %1644 = vmatprep.subr.mxu0 0.0
    %1645 = vmatpush1.xpose.msra.mxu0 0.0
    %1646 = vmatprep.subr.mxu0 0.0
    %1647 = vmatpush1.xpose.msra.mxu0 0.0
    %1648 = vmatprep.subr.mxu0 0.0
    %1649 = vmatpush1.xpose.msra.mxu0 0.0
    %1650 = vmatprep.subr.mxu0 0.0
    %1651 = vmatpush1.xpose.msra.mxu0 0.0
    %1652 = vmatprep.subr.mxu0 0.0
    %1653 = vmatpush1.xpose.msra.mxu0 0.0
    %1654 = vmatprep.subr.mxu0 0.0
    %1655 = vmatpush1.xpose.msra.mxu0 0.0
    %1656 = vmatprep.subr.mxu0 0.0
    %1657 = vmatpush1.xpose.msra.mxu0 0.0
    %1658 = vmatprep.subr.mxu0 0.0
    %1659 = vmatpush1.xpose.msra.mxu0 0.0
    %1660 = vmatprep.subr.mxu0 0.0
    %1661 = vmatpush1.xpose.msra.mxu0 0.0
    %1662 = vmatprep.subr.mxu0 0.0
    %1663 = vmatpush1.xpose.msra.mxu0 0.0
    %1664 = vmatprep.subr.mxu0 0.0
    %1665 = vmatpush1.xpose.msra.mxu0 0.0
    %1666 = vmatprep.subr.mxu0 0.0
    %1667 = vmatpush1.xpose.msra.mxu0 0.0
    %1668 = vmatprep.subr.mxu0 0.0
    %1669 = vmatpush1.xpose.msra.mxu0 0.0
    %1670 = vmatprep.subr.mxu0 0.0
    %1671 = vmatpush1.xpose.msra.mxu0 0.0
    %1672 = vmatprep.subr.mxu0 0.0
    %1673 = vmatpush1.xpose.msra.mxu0 0.0
    %1674 = vmatprep.subr.mxu0 0.0
    %1675 = vmatpush1.xpose.msra.mxu0 0.0
    %1676 = vmatprep.subr.mxu0 0.0
    %1677 = vmatpush1.xpose.msra.mxu0 0.0
    %1678 = vmatprep.subr.mxu0 0.0
    %1679 = vmatpush1.xpose.msra.mxu0 0.0
    %1680 = vmatprep.subr.mxu0 0.0
    %1681 = vmatpush1.xpose.msra.mxu0 0.0
    %1682 = vmatprep.subr.mxu0 0.0
    %1683 = vmatpush1.xpose.msra.mxu0 0.0
    %1684 = vmatprep.subr.mxu0 0.0
    %1685 = vmatpush1.xpose.msra.mxu0 0.0
    %1686 = vmatprep.mubr.f32.mxu0 0.0
    %1687 = vmatmul.mubr.f32.gmra.mrb[0].mxu0 %v1618
    %v1688 = vpop.f32.mrb[0].mxu0
    %v1689 = vadd.f32 0.0, %v1688
    %v1690 = vpop.f32.mrb[0].mxu0
    %1691 = vdwg.mxu0
    %v1692 = vsel %vm855, %v1689, -inf
    %1693 = vmax.xlane.f32.xlu0 %v1692
    %v1694 = vpop.xlane.xlu0 %1693
    %v1695 = vsub.f32 %v1689, %v1694
    %v1696 = vmul.f32 %v1695, 1.442695
    %v1697 = vpow.pop %v1696
    %v1698 = vsel %vm855, %v1697, 0.0
    %1699 = vadd.xlane.f32.xlu0 %v1698
    %v1700 = vpop.xlane.xlu0 %1699
    %v1701 = vrcp.pop %v1700
    %v1702 = vmul.f32 %v1697, %v1701
    %1704 = vrot.lane.b32.xlu0 %v775, 96
    %v1705 = vpop.permute.xlu0 %1704
    %v1708 = vsel %vm855, %v1702, 0
    %1710 = vmatprep.subr.mxu0 0.0
    %1711 = vmatpush1.msra.mxu0 %v1705
    %1712 = vmatprep.subr.mxu0 0.0
    %1713 = vmatpush1.msra.mxu0 0.0
    %1714 = vmatprep.subr.mxu0 0.0
    %1715 = vmatpush1.msra.mxu0 0.0
    %1716 = vmatprep.subr.mxu0 0.0
    %1717 = vmatpush1.msra.mxu0 0.0
    %1718 = vmatprep.subr.mxu0 0.0
    %1719 = vmatpush1.msra.mxu0 0.0
    %1720 = vmatprep.subr.mxu0 0.0
    %1721 = vmatpush1.msra.mxu0 0.0
    %1722 = vmatprep.subr.mxu0 0.0
    %1723 = vmatpush1.msra.mxu0 0.0
    %1724 = vmatprep.subr.mxu0 0.0
    %1725 = vmatpush1.msra.mxu0 0.0
    %1726 = vmatprep.subr.mxu0 0.0
    %1727 = vmatpush1.msra.mxu0 0.0
    %1728 = vmatprep.subr.mxu0 0.0
    %1729 = vmatpush1.msra.mxu0 0.0
    %1730 = vmatprep.subr.mxu0 0.0
    %1731 = vmatpush1.msra.mxu0 0.0
    %1732 = vmatprep.subr.mxu0 0.0
    %1733 = vmatpush1.msra.mxu0 0.0
    %1734 = vmatprep.subr.mxu0 0.0
    %1735 = vmatpush1.msra.mxu0 0.0
    %1736 = vmatprep.subr.mxu0 0.0
    %1737 = vmatpush1.msra.mxu0 0.0
    %1738 = vmatprep.subr.mxu0 0.0
    %1739 = vmatpush1.msra.mxu0 0.0
    %1740 = vmatprep.subr.mxu0 0.0
    %1741 = vmatpush1.msra.mxu0 0.0
    %1742 = vmatprep.subr.mxu0 0.0
    %1743 = vmatpush1.msra.mxu0 0.0
    %1744 = vmatprep.subr.mxu0 0.0
    %1745 = vmatpush1.msra.mxu0 0.0
    %1746 = vmatprep.subr.mxu0 0.0
    %1747 = vmatpush1.msra.mxu0 0.0
    %1748 = vmatprep.subr.mxu0 0.0
    %1749 = vmatpush1.msra.mxu0 0.0
    %1750 = vmatprep.subr.mxu0 0.0
    %1751 = vmatpush1.msra.mxu0 0.0
    %1752 = vmatprep.subr.mxu0 0.0
    %1753 = vmatpush1.msra.mxu0 0.0
    %1754 = vmatprep.subr.mxu0 0.0
    %1755 = vmatpush1.msra.mxu0 0.0
    %1756 = vmatprep.subr.mxu0 0.0
    %1757 = vmatpush1.msra.mxu0 0.0
    %1758 = vmatprep.subr.mxu0 0.0
    %1759 = vmatpush1.msra.mxu0 0.0
    %1760 = vmatprep.subr.mxu0 0.0
    %1761 = vmatpush1.msra.mxu0 0.0
    %1762 = vmatprep.subr.mxu0 0.0
    %1763 = vmatpush1.msra.mxu0 0.0
    %1764 = vmatprep.subr.mxu0 0.0
    %1765 = vmatpush1.msra.mxu0 0.0
    %1766 = vmatprep.subr.mxu0 0.0
    %1767 = vmatpush1.msra.mxu0 0.0
    %1768 = vmatprep.subr.mxu0 0.0
    %1769 = vmatpush1.msra.mxu0 0.0
    %1770 = vmatprep.subr.mxu0 0.0
    %1771 = vmatpush1.msra.mxu0 0.0
    %1772 = vmatprep.subr.mxu0 0.0
    %1773 = vmatpush1.msra.mxu0 0.0
    %1774 = vmatprep.mubr.f32.mxu0 0.0
    %1775 = vmatmul.mubr.f32.gmra.mrb[0].mxu0 %v1708
    %v1776 = vpop.f32.mrb[0].mxu0
    %v1777 = vadd.f32 0.0, %v1776
    %v1778 = vpop.f32.mrb[0].mxu0
    %1779 = vdwg.mxu0
    %1780 = vrot.lane.b32.xlu0 %v699, 64
    %v1781 = vpop.permute.xlu0 %1780
    %1782 = vrot.lane.b32.xlu0 %v701, 64
    %v1783 = vpop.permute.xlu0 %1782
    %v1784 = vsel %vm778, %v1781, 0
    %v1786 = vsel %vm778, %v1783, 0
    %1788 = vmatprep.subr.mxu0 0.0
    %1789 = vmatpush1.xpose.msra.mxu0 %v1786
    %1790 = vmatprep.subr.mxu0 0.0
    %1791 = vmatpush1.xpose.msra.mxu0 0.0
    %1792 = vmatprep.subr.mxu0 0.0
    %1793 = vmatpush1.xpose.msra.mxu0 0.0
    %1794 = vmatprep.subr.mxu0 0.0
    %1795 = vmatpush1.xpose.msra.mxu0 0.0
    %1796 = vmatprep.subr.mxu0 0.0
    %1797 = vmatpush1.xpose.msra.mxu0 0.0
    %1798 = vmatprep.subr.mxu0 0.0
    %1799 = vmatpush1.xpose.msra.mxu0 0.0
    %1800 = vmatprep.subr.mxu0 0.0
    %1801 = vmatpush1.xpose.msra.mxu0 0.0
    %1802 = vmatprep.subr.mxu0 0.0
    %1803 = vmatpush1.xpose.msra.mxu0 0.0
    %1804 = vmatprep.subr.mxu0 0.0
    %1805 = vmatpush1.xpose.msra.mxu0 0.0
    %1806 = vmatprep.subr.mxu0 0.0
    %1807 = vmatpush1.xpose.msra.mxu0 0.0
    %1808 = vmatprep.subr.mxu0 0.0
    %1809 = vmatpush1.xpose.msra.mxu0 0.0
    %1810 = vmatprep.subr.mxu0 0.0
    %1811 = vmatpush1.xpose.msra.mxu0 0.0
    %1812 = vmatprep.subr.mxu0 0.0
    %1813 = vmatpush1.xpose.msra.mxu0 0.0
    %1814 = vmatprep.subr.mxu0 0.0
    %1815 = vmatpush1.xpose.msra.mxu0 0.0
    %1816 = vmatprep.subr.mxu0 0.0
    %1817 = vmatpush1.xpose.msra.mxu0 0.0
    %1818 = vmatprep.subr.mxu0 0.0
    %1819 = vmatpush1.xpose.msra.mxu0 0.0
    %1820 = vmatprep.subr.mxu0 0.0
    %1821 = vmatpush1.xpose.msra.mxu0 0.0
    %1822 = vmatprep.subr.mxu0 0.0
    %1823 = vmatpush1.xpose.msra.mxu0 0.0
    %1824 = vmatprep.subr.mxu0 0.0
    %1825 = vmatpush1.xpose.msra.mxu0 0.0
    %1826 = vmatprep.subr.mxu0 0.0
    %1827 = vmatpush1.xpose.msra.mxu0 0.0
    %1828 = vmatprep.subr.mxu0 0.0
    %1829 = vmatpush1.xpose.msra.mxu0 0.0
    %1830 = vmatprep.subr.mxu0 0.0
    %1831 = vmatpush1.xpose.msra.mxu0 0.0
    %1832 = vmatprep.subr.mxu0 0.0
    %1833 = vmatpush1.xpose.msra.mxu0 0.0
    %1834 = vmatprep.subr.mxu0 0.0
    %1835 = vmatpush1.xpose.msra.mxu0 0.0
    %1836 = vmatprep.subr.mxu0 0.0
    %1837 = vmatpush1.xpose.msra.mxu0 0.0
    %1838 = vmatprep.subr.mxu0 0.0
    %1839 = vmatpush1.xpose.msra.mxu0 0.0
    %1840 = vmatprep.subr.mxu0 0.0
    %1841 = vmatpush1.xpose.msra.mxu0 0.0
    %1842 = vmatprep.subr.mxu0 0.0
    %1843 = vmatpush1.xpose.msra.mxu0 0.0
    %1844 = vmatprep.subr.mxu0 0.0
    %1845 = vmatpush1.xpose.msra.mxu0 0.0
    %1846 = vmatprep.subr.mxu0 0.0
    %1847 = vmatpush1.xpose.msra.mxu0 0.0
    %1848 = vmatprep.subr.mxu0 0.0
    %1849 = vmatpush1.xpose.msra.mxu0 0.0
    %1850 = vmatprep.subr.mxu0 0.0
    %1851 = vmatpush1.xpose.msra.mxu0 0.0
    %1852 = vmatprep.mubr.f32.mxu0 0.0
    %1853 = vmatmul.mubr.f32.gmra.mrb[0].mxu0 %v1784
    %v1854 = vpop.f32.mrb[0].mxu0
    %v1855 = vadd.f32 0.0, %v1854
    %v1856 = vpop.f32.mrb[0].mxu0
    %1857 = vdwg.mxu0
    %v1858 = vsel %vm855, %v1855, -inf
    %1859 = vmax.xlane.f32.xlu0 %v1858
    %v1860 = vpop.xlane.xlu0 %1859
    %v1861 = vsub.f32 %v1855, %v1860
    %v1862 = vmul.f32 %v1861, 1.442695
    %v1863 = vpow.pop %v1862
    %v1864 = vsel %vm855, %v1863, 0.0
    %1865 = vadd.xlane.f32.xlu0 %v1864
    %v1866 = vpop.xlane.xlu0 %1865
    %v1867 = vrcp.pop %v1866
    %v1868 = vmul.f32 %v1863, %v1867
    %1869 = vrot.lane.b32.xlu0 %v775, 64
    %v1870 = vpop.permute.xlu0 %1869
    %v1873 = vsel %vm855, %v1868, 0
    %1875 = vmatprep.subr.mxu0 0.0
    %1876 = vmatpush1.msra.mxu0 %v1870
    %1877 = vmatprep.subr.mxu0 0.0
    %1878 = vmatpush1.msra.mxu0 0.0
    %1879 = vmatprep.subr.mxu0 0.0
    %1880 = vmatpush1.msra.mxu0 0.0
    %1881 = vmatprep.subr.mxu0 0.0
    %1882 = vmatpush1.msra.mxu0 0.0
    %1883 = vmatprep.subr.mxu0 0.0
    %1884 = vmatpush1.msra.mxu0 0.0
    %1885 = vmatprep.subr.mxu0 0.0
    %1886 = vmatpush1.msra.mxu0 0.0
    %1887 = vmatprep.subr.mxu0 0.0
    %1888 = vmatpush1.msra.mxu0 0.0
    %1889 = vmatprep.subr.mxu0 0.0
    %1890 = vmatpush1.msra.mxu0 0.0
    %1891 = vmatprep.subr.mxu0 0.0
    %1892 = vmatpush1.msra.mxu0 0.0
    %1893 = vmatprep.subr.mxu0 0.0
    %1894 = vmatpush1.msra.mxu0 0.0
    %1895 = vmatprep.subr.mxu0 0.0
    %1896 = vmatpush1.msra.mxu0 0.0
    %1897 = vmatprep.subr.mxu0 0.0
    %1898 = vmatpush1.msra.mxu0 0.0
    %1899 = vmatprep.subr.mxu0 0.0
    %1900 = vmatpush1.msra.mxu0 0.0
    %1901 = vmatprep.subr.mxu0 0.0
    %1902 = vmatpush1.msra.mxu0 0.0
    %1903 = vmatprep.subr.mxu0 0.0
    %1904 = vmatpush1.msra.mxu0 0.0
    %1905 = vmatprep.subr.mxu0 0.0
    %1906 = vmatpush1.msra.mxu0 0.0
    %1907 = vmatprep.subr.mxu0 0.0
    %1908 = vmatpush1.msra.mxu0 0.0
    %1909 = vmatprep.subr.mxu0 0.0
    %1910 = vmatpush1.msra.mxu0 0.0
    %1911 = vmatprep.subr.mxu0 0.0
    %1912 = vmatpush1.msra.mxu0 0.0
    %1913 = vmatprep.subr.mxu0 0.0
    %1914 = vmatpush1.msra.mxu0 0.0
    %1915 = vmatprep.subr.mxu0 0.0
    %1916 = vmatpush1.msra.mxu0 0.0
    %1917 = vmatprep.subr.mxu0 0.0
    %1918 = vmatpush1.msra.mxu0 0.0
    %1919 = vmatprep.subr.mxu0 0.0
    %1920 = vmatpush1.msra.mxu0 0.0
    %1921 = vmatprep.subr.mxu0 0.0
    %1922 = vmatpush1.msra.mxu0 0.0
    %1923 = vmatprep.subr.mxu0 0.0
    %1924 = vmatpush1.msra.mxu0 0.0
    %1925 = vmatprep.subr.mxu0 0.0
    %1926 = vmatpush1.msra.mxu0 0.0
    %1927 = vmatprep.subr.mxu0 0.0
    %1928 = vmatpush1.msra.mxu0 0.0
    %1929 = vmatprep.subr.mxu0 0.0
    %1930 = vmatpush1.msra.mxu0 0.0
    %1931 = vmatprep.subr.mxu0 0.0
    %1932 = vmatpush1.msra.mxu0 0.0
    %1933 = vmatprep.subr.mxu0 0.0
    %1934 = vmatpush1.msra.mxu0 0.0
    %1935 = vmatprep.subr.mxu0 0.0
    %1936 = vmatpush1.msra.mxu0 0.0
    %1937 = vmatprep.subr.mxu0 0.0
    %1938 = vmatpush1.msra.mxu0 0.0
    %1939 = vmatprep.mubr.f32.mxu0 0.0
    %1940 = vmatmul.mubr.f32.gmra.mrb[0].mxu0 %v1873
    %v1941 = vpop.f32.mrb[0].mxu0
    %v1942 = vadd.f32 0.0, %v1941
    %v1943 = vpop.f32.mrb[0].mxu0
    %1944 = vdwg.mxu0
    %1945 = vrot.lane.b32.xlu0 %v699, 32
    %v1946 = vpop.permute.xlu0 %1945
    %1947 = vrot.lane.b32.xlu0 %v701, 32
    %v1948 = vpop.permute.xlu0 %1947
    %v1949 = vsel %vm778, %v1946, 0
    %v1951 = vsel %vm778, %v1948, 0
    %1953 = vmatprep.subr.mxu0 0.0
    %1954 = vmatpush1.xpose.msra.mxu0 %v1951
    %1955 = vmatprep.subr.mxu0 0.0
    %1956 = vmatpush1.xpose.msra.mxu0 0.0
    %1957 = vmatprep.subr.mxu0 0.0
    %1958 = vmatpush1.xpose.msra.mxu0 0.0
    %1959 = vmatprep.subr.mxu0 0.0
    %1960 = vmatpush1.xpose.msra.mxu0 0.0
    %1961 = vmatprep.subr.mxu0 0.0
    %1962 = vmatpush1.xpose.msra.mxu0 0.0
    %1963 = vmatprep.subr.mxu0 0.0
    %1964 = vmatpush1.xpose.msra.mxu0 0.0
    %1965 = vmatprep.subr.mxu0 0.0
    %1966 = vmatpush1.xpose.msra.mxu0 0.0
    %1967 = vmatprep.subr.mxu0 0.0
    %1968 = vmatpush1.xpose.msra.mxu0 0.0
    %1969 = vmatprep.subr.mxu0 0.0
    %1970 = vmatpush1.xpose.msra.mxu0 0.0
    %1971 = vmatprep.subr.mxu0 0.0
    %1972 = vmatpush1.xpose.msra.mxu0 0.0
    %1973 = vmatprep.subr.mxu0 0.0
    %1974 = vmatpush1.xpose.msra.mxu0 0.0
    %1975 = vmatprep.subr.mxu0 0.0
    %1976 = vmatpush1.xpose.msra.mxu0 0.0
    %1977 = vmatprep.subr.mxu0 0.0
    %1978 = vmatpush1.xpose.msra.mxu0 0.0
    %1979 = vmatprep.subr.mxu0 0.0
    %1980 = vmatpush1.xpose.msra.mxu0 0.0
    %1981 = vmatprep.subr.mxu0 0.0
    %1982 = vmatpush1.xpose.msra.mxu0 0.0
    %1983 = vmatprep.subr.mxu0 0.0
    %1984 = vmatpush1.xpose.msra.mxu0 0.0
    %1985 = vmatprep.subr.mxu0 0.0
    %1986 = vmatpush1.xpose.msra.mxu0 0.0
    %1987 = vmatprep.subr.mxu0 0.0
    %1988 = vmatpush1.xpose.msra.mxu0 0.0
    %1989 = vmatprep.subr.mxu0 0.0
    %1990 = vmatpush1.xpose.msra.mxu0 0.0
    %1991 = vmatprep.subr.mxu0 0.0
    %1992 = vmatpush1.xpose.msra.mxu0 0.0
    %1993 = vmatprep.subr.mxu0 0.0
    %1994 = vmatpush1.xpose.msra.mxu0 0.0
    %1995 = vmatprep.subr.mxu0 0.0
    %1996 = vmatpush1.xpose.msra.mxu0 0.0
    %1997 = vmatprep.subr.mxu0 0.0
    %1998 = vmatpush1.xpose.msra.mxu0 0.0
    %1999 = vmatprep.subr.mxu0 0.0
    %2000 = vmatpush1.xpose.msra.mxu0 0.0
    %2001 = vmatprep.subr.mxu0 0.0
    %2002 = vmatpush1.xpose.msra.mxu0 0.0
    %2003 = vmatprep.subr.mxu0 0.0
    %2004 = vmatpush1.xpose.msra.mxu0 0.0
    %2005 = vmatprep.subr.mxu0 0.0
    %2006 = vmatpush1.xpose.msra.mxu0 0.0
    %2007 = vmatprep.subr.mxu0 0.0
    %2008 = vmatpush1.xpose.msra.mxu0 0.0
    %2009 = vmatprep.subr.mxu0 0.0
    %2010 = vmatpush1.xpose.msra.mxu0 0.0
    %2011 = vmatprep.subr.mxu0 0.0
    %2012 = vmatpush1.xpose.msra.mxu0 0.0
    %2013 = vmatprep.subr.mxu0 0.0
    %2014 = vmatpush1.xpose.msra.mxu0 0.0
    %2015 = vmatprep.subr.mxu0 0.0
    %2016 = vmatpush1.xpose.msra.mxu0 0.0
    %2017 = vmatprep.mubr.f32.mxu0 0.0
    %2018 = vmatmul.mubr.f32.gmra.mrb[0].mxu0 %v1949
    %v2019 = vpop.f32.mrb[0].mxu0
    %v2020 = vadd.f32 0.0, %v2019
    %v2021 = vpop.f32.mrb[0].mxu0
    %2022 = vdwg.mxu0
    %v2023 = vsel %vm855, %v2020, -inf
    %2024 = vmax.xlane.f32.xlu0 %v2023
    %v2025 = vpop.xlane.xlu0 %2024
    %v2026 = vsub.f32 %v2020, %v2025
    %v2027 = vmul.f32 %v2026, 1.442695
    %v2028 = vpow.pop %v2027
    %v2029 = vsel %vm855, %v2028, 0.0
    %2030 = vadd.xlane.f32.xlu0 %v2029
    %v2031 = vpop.xlane.xlu0 %2030
    %v2032 = vrcp.pop %v2031
    %v2033 = vmul.f32 %v2028, %v2032
    %2034 = vrot.lane.b32.xlu0 %v775, 32
    %v2035 = vpop.permute.xlu0 %2034
    %v2038 = vsel %vm855, %v2033, 0
    %2040 = vmatprep.subr.mxu0 0.0
    %2041 = vmatpush1.msra.mxu0 %v2035
    %2042 = vmatprep.subr.mxu0 0.0
    %2043 = vmatpush1.msra.mxu0 0.0
    %2044 = vmatprep.subr.mxu0 0.0
    %2045 = vmatpush1.msra.mxu0 0.0
    %2046 = vmatprep.subr.mxu0 0.0
    %2047 = vmatpush1.msra.mxu0 0.0
    %2048 = vmatprep.subr.mxu0 0.0
    %2049 = vmatpush1.msra.mxu0 0.0
    %2050 = vmatprep.subr.mxu0 0.0
    %2051 = vmatpush1.msra.mxu0 0.0
    %2052 = vmatprep.subr.mxu0 0.0
    %2053 = vmatpush1.msra.mxu0 0.0
    %2054 = vmatprep.subr.mxu0 0.0
    %2055 = vmatpush1.msra.mxu0 0.0
    %2056 = vmatprep.subr.mxu0 0.0
    %2057 = vmatpush1.msra.mxu0 0.0
    %2058 = vmatprep.subr.mxu0 0.0
    %2059 = vmatpush1.msra.mxu0 0.0
    %2060 = vmatprep.subr.mxu0 0.0
    %2061 = vmatpush1.msra.mxu0 0.0
    %2062 = vmatprep.subr.mxu0 0.0
    %2063 = vmatpush1.msra.mxu0 0.0
    %2064 = vmatprep.subr.mxu0 0.0
    %2065 = vmatpush1.msra.mxu0 0.0
    %2066 = vmatprep.subr.mxu0 0.0
    %2067 = vmatpush1.msra.mxu0 0.0
    %2068 = vmatprep.subr.mxu0 0.0
    %2069 = vmatpush1.msra.mxu0 0.0
    %2070 = vmatprep.subr.mxu0 0.0
    %2071 = vmatpush1.msra.mxu0 0.0
    %2072 = vmatprep.subr.mxu0 0.0
    %2073 = vmatpush1.msra.mxu0 0.0
    %2074 = vmatprep.subr.mxu0 0.0
    %2075 = vmatpush1.msra.mxu0 0.0
    %2076 = vmatprep.subr.mxu0 0.0
    %2077 = vmatpush1.msra.mxu0 0.0
    %2078 = vmatprep.subr.mxu0 0.0
    %2079 = vmatpush1.msra.mxu0 0.0
    %2080 = vmatprep.subr.mxu0 0.0
    %2081 = vmatpush1.msra.mxu0 0.0
    %2082 = vmatprep.subr.mxu0 0.0
    %2083 = vmatpush1.msra.mxu0 0.0
    %2084 = vmatprep.subr.mxu0 0.0
    %2085 = vmatpush1.msra.mxu0 0.0
    %2086 = vmatprep.subr.mxu0 0.0
    %2087 = vmatpush1.msra.mxu0 0.0
    %2088 = vmatprep.subr.mxu0 0.0
    %2089 = vmatpush1.msra.mxu0 0.0
    %2090 = vmatprep.subr.mxu0 0.0
    %2091 = vmatpush1.msra.mxu0 0.0
    %2092 = vmatprep.subr.mxu0 0.0
    %2093 = vmatpush1.msra.mxu0 0.0
    %2094 = vmatprep.subr.mxu0 0.0
    %2095 = vmatpush1.msra.mxu0 0.0
    %2096 = vmatprep.subr.mxu0 0.0
    %2097 = vmatpush1.msra.mxu0 0.0
    %2098 = vmatprep.subr.mxu0 0.0
    %2099 = vmatpush1.msra.mxu0 0.0
    %2100 = vmatprep.subr.mxu0 0.0
    %2101 = vmatpush1.msra.mxu0 0.0
    %2102 = vmatprep.subr.mxu0 0.0
    %2103 = vmatpush1.msra.mxu0 0.0
    %2104 = vmatprep.mubr.f32.mxu0 0.0
    %2105 = vmatmul.mubr.f32.gmra.mrb[0].mxu0 %v2038
    %v2106 = vpop.f32.mrb[0].mxu0
    %v2107 = vadd.f32 0.0, %v2106
    %v2108 = vpop.f32.mrb[0].mxu0
    %2109 = vdwg.mxu0
    %2111 = vrot.lane.b32.xlu0 %v1777, 32
    %v2112 = vpop.permute.xlu0 %2111
    %2115 = vrot.lane.b32.xlu0 %v1942, 64
    %v2116 = vpop.permute.xlu0 %2115
    %2119 = vrot.lane.b32.xlu0 %v2107, 96
    %v2120 = vpop.permute.xlu0 %2119
    %v2122 = vsel %vm778, %v1611, %v2112
    %v2123 = vsel %vm1449, %v2122, %v2116
    %v2124 = vsel %vm1451, %v2123, %v2120
    %2125 = vst [vmem:[#allocation4 + $0x8] sm:$0xff] %v2124
    %v2126 = vld [vmem:[#allocation4] sm:$0xff]
    %v2127 = vld [vmem:[#allocation4 + $0x8] sm:$0xff]
    %v2128 = vld [vmem:[#allocation19] sm:$0xff]
    %v2129 = vld [vmem:[#allocation19 + $0x8] sm:$0xff]
    %v2130 = vld [vmem:[#allocation19 + $0x10] sm:$0xff]
    %v2131 = vld [vmem:[#allocation19 + $0x18] sm:$0xff]
    %v2132 = vld [vmem:[#allocation19 + $0x20] sm:$0xff]
    %v2133 = vld [vmem:[#allocation19 + $0x28] sm:$0xff]
    %v2134 = vld [vmem:[#allocation19 + $0x30] sm:$0xff]
    %v2135 = vld [vmem:[#allocation19 + $0x38] sm:$0xff]
    %v2136 = vld [vmem:[#allocation19 + $0x40] sm:$0xff]
    %v2137 = vld [vmem:[#allocation19 + $0x48] sm:$0xff]
    %v2138 = vld [vmem:[#allocation19 + $0x50] sm:$0xff]
    %v2139 = vld [vmem:[#allocation19 + $0x58] sm:$0xff]
    %v2140 = vld [vmem:[#allocation19 + $0x60] sm:$0xff]
    %v2141 = vld [vmem:[#allocation19 + $0x68] sm:$0xff]
    %v2142 = vld [vmem:[#allocation19 + $0x70] sm:$0xff]
    %v2143 = vld [vmem:[#allocation19 + $0x78] sm:$0xff]
    %v2144 = vld [vmem:[#allocation21] sm:$0x1]
    %v2146 = vlaneseq
    %v2147 = vshrl.u32 %v2146, 7
    %v2148 = vsub.s32 0, %v2147
    %v2149 = vrot.slane %v2144, %v2148
    %2151 = vmatprep.subr.mxu0 0.0
    %2152 = vmatpush1.msra.mxu0 %v2128
    %2153 = vmatprep.subr.mxu0 0.0
    %2154 = vmatpush1.msra.mxu0 %v2129
    %2155 = vmatprep.subr.mxu0 0.0
    %2156 = vmatpush1.msra.mxu0 %v2130
    %2157 = vmatprep.subr.mxu0 0.0
    %2158 = vmatpush1.msra.mxu0 %v2131
    %2159 = vmatprep.subr.mxu0 0.0
    %2160 = vmatpush1.msra.mxu0 %v2132
    %2161 = vmatprep.subr.mxu0 0.0
    %2162 = vmatpush1.msra.mxu0 %v2133
    %2163 = vmatprep.subr.mxu0 0.0
    %2164 = vmatpush1.msra.mxu0 %v2134
    %2165 = vmatprep.subr.mxu0 0.0
    %2166 = vmatpush1.msra.mxu0 %v2135
    %2167 = vmatprep.subr.mxu0 0.0
    %2168 = vmatpush1.msra.mxu0 %v2136
    %2169 = vmatprep.subr.mxu0 0.0
    %2170 = vmatpush1.msra.mxu0 %v2137
    %2171 = vmatprep.subr.mxu0 0.0
    %2172 = vmatpush1.msra.mxu0 %v2138
    %2173 = vmatprep.subr.mxu0 0.0
    %2174 = vmatpush1.msra.mxu0 %v2139
    %2175 = vmatprep.subr.mxu0 0.0
    %2176 = vmatpush1.msra.mxu0 %v2140
    %2177 = vmatprep.subr.mxu0 0.0
    %2178 = vmatpush1.msra.mxu0 %v2141
    %2179 = vmatprep.subr.mxu0 0.0
    %2180 = vmatpush1.msra.mxu0 %v2142
    %2181 = vmatprep.subr.mxu0 0.0
    %2182 = vmatpush1.msra.mxu0 %v2143
    %2183 = vmatprep.subr.mxu0 0.0
    %2184 = vmatpush1.msra.mxu0 0.0
    %2185 = vmatprep.subr.mxu0 0.0
    %2186 = vmatpush1.msra.mxu0 0.0
    %2187 = vmatprep.subr.mxu0 0.0
    %2188 = vmatpush1.msra.mxu0 0.0
    %2189 = vmatprep.subr.mxu0 0.0
    %2190 = vmatpush1.msra.mxu0 0.0
    %2191 = vmatprep.subr.mxu0 0.0
    %2192 = vmatpush1.msra.mxu0 0.0
    %2193 = vmatprep.subr.mxu0 0.0
    %2194 = vmatpush1.msra.mxu0 0.0
    %2195 = vmatprep.subr.mxu0 0.0
    %2196 = vmatpush1.msra.mxu0 0.0
    %2197 = vmatprep.subr.mxu0 0.0
    %2198 = vmatpush1.msra.mxu0 0.0
    %2199 = vmatprep.subr.mxu0 0.0
    %2200 = vmatpush1.msra.mxu0 0.0
    %2201 = vmatprep.subr.mxu0 0.0
    %2202 = vmatpush1.msra.mxu0 0.0
    %2203 = vmatprep.subr.mxu0 0.0
    %2204 = vmatpush1.msra.mxu0 0.0
    %2205 = vmatprep.subr.mxu0 0.0
    %2206 = vmatpush1.msra.mxu0 0.0
    %2207 = vmatprep.subr.mxu0 0.0
    %2208 = vmatpush1.msra.mxu0 0.0
    %2209 = vmatprep.subr.mxu0 0.0
    %2210 = vmatpush1.msra.mxu0 0.0
    %2211 = vmatprep.subr.mxu0 0.0
    %2212 = vmatpush1.msra.mxu0 0.0
    %2213 = vmatprep.subr.mxu0 0.0
    %2214 = vmatpush1.msra.mxu0 0.0
    %2215 = vmatprep.mubr.f32.mxu0 0.0
    %2216 = vmatmul.mubr.f32.gmra.mrb[0].mxu0 %v2126
    %v2217 = vpop.f32.mrb[0].mxu0
    %v2218 = vadd.f32 %v2149, %v2217
    %v2219 = vpop.f32.mrb[0].mxu0
    %2220 = vmatprep.mubr.f32.mxu0 0.0
    %2221 = vmatmul.mubr.f32.gmra.mrb[0].mxu0 %v2127
    %v2222 = vpop.f32.mrb[0].mxu0
    %v2223 = vadd.f32 %v2149, %v2222
    %v2224 = vpop.f32.mrb[0].mxu0
    %2225 = vdwg.mxu0
    %v2226 = vadd.f32 %v2218, %v218
    %v2227 = vadd.f32 %v2223, %v219
    %v2228 = vadd.f32 %v559, %v2226
    %v2229 = vadd.f32 %v560, %v2227
    %v2230 = vld [vmem:[%s14] sm:$0xff]
    %v2231 = vld [vmem:[%s14 + $0x8] sm:$0xff]
    %v2232 = vld [vmem:[%s14 + $0x10] sm:$0xff]
    %v2233 = vld [vmem:[%s14 + $0x18] sm:$0xff]
    %v2234 = vld [vmem:[%s14 + $0x20] sm:$0xff]
    %v2235 = vld [vmem:[%s14 + $0x28] sm:$0xff]
    %v2236 = vld [vmem:[%s14 + $0x30] sm:$0xff]
    %v2237 = vld [vmem:[%s14 + $0x38] sm:$0xff]
    %v2238 = vld [vmem:[%s14 + $0x40] sm:$0xff]
    %v2239 = vld [vmem:[%s14 + $0x48] sm:$0xff]
    %v2240 = vld [vmem:[%s14 + $0x50] sm:$0xff]
    %v2241 = vld [vmem:[%s14 + $0x58] sm:$0xff]
    %v2242 = vld [vmem:[%s14 + $0x60] sm:$0xff]
    %v2243 = vld [vmem:[%s14 + $0x68] sm:$0xff]
    %v2244 = vld [vmem:[%s14 + $0x70] sm:$0xff]
    %v2245 = vld [vmem:[%s14 + $0x78] sm:$0xff]
    %v2246 = vld [vmem:[%s14 + $0x80] sm:$0xff]
    %v2247 = vld [vmem:[%s14 + $0x88] sm:$0xff]
    %v2248 = vld [vmem:[%s14 + $0x90] sm:$0xff]
    %v2249 = vld [vmem:[%s14 + $0x98] sm:$0xff]
    %v2250 = vld [vmem:[%s14 + $0xa0] sm:$0xff]
    %v2251 = vld [vmem:[%s14 + $0xa8] sm:$0xff]
    %v2252 = vld [vmem:[%s14 + $0xb0] sm:$0xff]
    %v2253 = vld [vmem:[%s14 + $0xb8] sm:$0xff]
    %v2254 = vld [vmem:[%s14 + $0xc0] sm:$0xff]
    %v2255 = vld [vmem:[%s14 + $0xc8] sm:$0xff]
    %v2256 = vld [vmem:[%s14 + $0xd0] sm:$0xff]
    %v2257 = vld [vmem:[%s14 + $0xd8] sm:$0xff]
    %v2258 = vld [vmem:[%s14 + $0xe0] sm:$0xff]
    %v2259 = vld [vmem:[%s14 + $0xe8] sm:$0xff]
    %v2260 = vld [vmem:[%s14 + $0xf0] sm:$0xff]
    %v2261 = vld [vmem:[%s14 + $0xf8] sm:$0xff]
    %v2262 = vld [vmem:[#allocation22] sm:$0x3]
    %v2264 = vlaneseq
    %v2265 = vshrl.u32 %v2264, 7
    %v2266 = vsub.s32 0, %v2265
    %v2267 = vrot.slane %v2262, %v2266
    %v2268 = vlaneseq
    %v2269 = vshrl.u32 %v2268, 7
    %v2270 = vsub.s32 1, %v2269
    %v2271 = vrot.slane %v2262, %v2270
    %2274 = vmatprep.subr.mxu0 %v2231
    %2275 = vmatpush1.msra.mxu0 %v2230
    %2276 = vmatprep.subr.mxu0 %v2233
    %2277 = vmatpush1.msra.mxu0 %v2232
    %2278 = vmatprep.subr.mxu0 %v2235
    %2279 = vmatpush1.msra.mxu0 %v2234
    %2280 = vmatprep.subr.mxu0 %v2237
    %2281 = vmatpush1.msra.mxu0 %v2236
    %2282 = vmatprep.subr.mxu0 %v2239
    %2283 = vmatpush1.msra.mxu0 %v2238
    %2284 = vmatprep.subr.mxu0 %v2241
    %2285 = vmatpush1.msra.mxu0 %v2240
    %2286 = vmatprep.subr.mxu0 %v2243
    %2287 = vmatpush1.msra.mxu0 %v2242
    %2288 = vmatprep.subr.mxu0 %v2245
    %2289 = vmatpush1.msra.mxu0 %v2244
    %2290 = vmatprep.subr.mxu0 %v2247
    %2291 = vmatpush1.msra.mxu0 %v2246
    %2292 = vmatprep.subr.mxu0 %v2249
    %2293 = vmatpush1.msra.mxu0 %v2248
    %2294 = vmatprep.subr.mxu0 %v2251
    %2295 = vmatpush1.msra.mxu0 %v2250
    %2296 = vmatprep.subr.mxu0 %v2253
    %2297 = vmatpush1.msra.mxu0 %v2252
    %2298 = vmatprep.subr.mxu0 %v2255
    %2299 = vmatpush1.msra.mxu0 %v2254
    %2300 = vmatprep.subr.mxu0 %v2257
    %2301 = vmatpush1.msra.mxu0 %v2256
    %2302 = vmatprep.subr.mxu0 %v2259
    %2303 = vmatpush1.msra.mxu0 %v2258
    %2304 = vmatprep.subr.mxu0 %v2261
    %2305 = vmatpush1.msra.mxu0 %v2260
    %2306 = vmatprep.subr.mxu0 0.0
    %2307 = vmatpush1.msra.mxu0 0.0
    %2308 = vmatprep.subr.mxu0 0.0
    %2309 = vmatpush1.msra.mxu0 0.0
    %2310 = vmatprep.subr.mxu0 0.0
    %2311 = vmatpush1.msra.mxu0 0.0
    %2312 = vmatprep.subr.mxu0 0.0
    %2313 = vmatpush1.msra.mxu0 0.0
    %2314 = vmatprep.subr.mxu0 0.0
    %2315 = vmatpush1.msra.mxu0 0.0
    %2316 = vmatprep.subr.mxu0 0.0
    %2317 = vmatpush1.msra.mxu0 0.0
    %2318 = vmatprep.subr.mxu0 0.0
    %2319 = vmatpush1.msra.mxu0 0.0
    %2320 = vmatprep.subr.mxu0 0.0
    %2321 = vmatpush1.msra.mxu0 0.0
    %2322 = vmatprep.subr.mxu0 0.0
    %2323 = vmatpush1.msra.mxu0 0.0
    %2324 = vmatprep.subr.mxu0 0.0
    %2325 = vmatpush1.msra.mxu0 0.0
    %2326 = vmatprep.subr.mxu0 0.0
    %2327 = vmatpush1.msra.mxu0 0.0
    %2328 = vmatprep.subr.mxu0 0.0
    %2329 = vmatpush1.msra.mxu0 0.0
    %2330 = vmatprep.subr.mxu0 0.0
    %2331 = vmatpush1.msra.mxu0 0.0
    %2332 = vmatprep.subr.mxu0 0.0
    %2333 = vmatpush1.msra.mxu0 0.0
    %2334 = vmatprep.subr.mxu0 0.0
    %2335 = vmatpush1.msra.mxu0 0.0
    %2336 = vmatprep.subr.mxu0 0.0
    %2337 = vmatpush1.msra.mxu0 0.0
    %2338 = vmatprep.mubr.f32.mxu0 0.0
    %2339 = vmatmul.mubr.f32.gmra.mrb[0].mxu0 %v2228
    %v2340 = vpop.f32.mrb[0].mxu0
    %v2341 = vadd.f32 %v2267, %v2340
    %v2342 = vpop.f32.mrb[0].mxu0
    %v2343 = vadd.f32 %v2271, %v2342
    %2344 = vmatprep.mubr.f32.mxu0 0.0
    %2345 = vmatmul.mubr.f32.gmra.mrb[0].mxu0 %v2229
    %v2346 = vpop.f32.mrb[0].mxu0
    %v2347 = vadd.f32 %v2267, %v2346
    %v2348 = vpop.f32.mrb[0].mxu0
    %v2349 = vadd.f32 %v2271, %v2348
    %2350 = vdwg.mxu0
    %v2351 = vmax.f32 %v2341, 0.0
    %v2352 = vmax.f32 %v2343, 0.0
    %v2353 = vmax.f32 %v2347, 0.0
    %v2354 = vmax.f32 %v2349, 0.0
    %v2355 = vld [vmem:[#allocation24] sm:$0xff]
    %v2356 = vld [vmem:[#allocation24 + $0x8] sm:$0xff]
    %v2357 = vld [vmem:[#allocation24 + $0x10] sm:$0xff]
    %v2358 = vld [vmem:[#allocation24 + $0x18] sm:$0xff]
    %v2359 = vld [vmem:[#allocation24 + $0x20] sm:$0xff]
    %v2360 = vld [vmem:[#allocation24 + $0x28] sm:$0xff]
    %v2361 = vld [vmem:[#allocation24 + $0x30] sm:$0xff]
    %v2362 = vld [vmem:[#allocation24 + $0x38] sm:$0xff]
    %v2363 = vld [vmem:[#allocation24 + $0x40] sm:$0xff]
    %v2364 = vld [vmem:[#allocation24 + $0x48] sm:$0xff]
    %v2365 = vld [vmem:[#allocation24 + $0x50] sm:$0xff]
    %v2366 = vld [vmem:[#allocation24 + $0x58] sm:$0xff]
    %v2367 = vld [vmem:[#allocation24 + $0x60] sm:$0xff]
    %v2368 = vld [vmem:[#allocation24 + $0x68] sm:$0xff]
    %v2369 = vld [vmem:[#allocation24 + $0x70] sm:$0xff]
    %v2370 = vld [vmem:[#allocation24 + $0x78] sm:$0xff]
    %v2371 = vld [vmem:[#allocation24 + $0x80] sm:$0xff]
    %v2372 = vld [vmem:[#allocation24 + $0x88] sm:$0xff]
    %v2373 = vld [vmem:[#allocation24 + $0x90] sm:$0xff]
    %v2374 = vld [vmem:[#allocation24 + $0x98] sm:$0xff]
    %v2375 = vld [vmem:[#allocation24 + $0xa0] sm:$0xff]
    %v2376 = vld [vmem:[#allocation24 + $0xa8] sm:$0xff]
    %v2377 = vld [vmem:[#allocation24 + $0xb0] sm:$0xff]
    %v2378 = vld [vmem:[#allocation24 + $0xb8] sm:$0xff]
    %v2379 = vld [vmem:[#allocation24 + $0xc0] sm:$0xff]
    %v2380 = vld [vmem:[#allocation24 + $0xc8] sm:$0xff]
    %v2381 = vld [vmem:[#allocation24 + $0xd0] sm:$0xff]
    %v2382 = vld [vmem:[#allocation24 + $0xd8] sm:$0xff]
    %v2383 = vld [vmem:[#allocation24 + $0xe0] sm:$0xff]
    %v2384 = vld [vmem:[#allocation24 + $0xe8] sm:$0xff]
    %v2385 = vld [vmem:[#allocation24 + $0xf0] sm:$0xff]
    %v2386 = vld [vmem:[#allocation24 + $0xf8] sm:$0xff]
    %v2387 = vld [vmem:[#allocation25] sm:$0x1]
    %v2389 = vlaneseq
    %v2390 = vshrl.u32 %v2389, 7
    %v2391 = vsub.s32 0, %v2390
    %v2392 = vrot.slane %v2387, %v2391
    %2394 = vmatprep.subr.mxu0 0.0
    %2395 = vmatpush1.msra.mxu0 %v2355
    %2396 = vmatprep.subr.mxu0 0.0
    %2397 = vmatpush1.msra.mxu0 %v2356
    %2398 = vmatprep.subr.mxu0 0.0
    %2399 = vmatpush1.msra.mxu0 %v2357
    %2400 = vmatprep.subr.mxu0 0.0
    %2401 = vmatpush1.msra.mxu0 %v2358
    %2402 = vmatprep.subr.mxu0 0.0
    %2403 = vmatpush1.msra.mxu0 %v2359
    %2404 = vmatprep.subr.mxu0 0.0
    %2405 = vmatpush1.msra.mxu0 %v2360
    %2406 = vmatprep.subr.mxu0 0.0
    %2407 = vmatpush1.msra.mxu0 %v2361
    %2408 = vmatprep.subr.mxu0 0.0
    %2409 = vmatpush1.msra.mxu0 %v2362
    %2410 = vmatprep.subr.mxu0 0.0
    %2411 = vmatpush1.msra.mxu0 %v2363
    %2412 = vmatprep.subr.mxu0 0.0
    %2413 = vmatpush1.msra.mxu0 %v2364
    %2414 = vmatprep.subr.mxu0 0.0
    %2415 = vmatpush1.msra.mxu0 %v2365
    %2416 = vmatprep.subr.mxu0 0.0
    %2417 = vmatpush1.msra.mxu0 %v2366
    %2418 = vmatprep.subr.mxu0 0.0
    %2419 = vmatpush1.msra.mxu0 %v2367
    %2420 = vmatprep.subr.mxu0 0.0
    %2421 = vmatpush1.msra.mxu0 %v2368
    %2422 = vmatprep.subr.mxu0 0.0
    %2423 = vmatpush1.msra.mxu0 %v2369
    %2424 = vmatprep.subr.mxu0 0.0
    %2425 = vmatpush1.msra.mxu0 %v2370
    %2426 = vmatprep.subr.mxu0 0.0
    %2427 = vmatpush1.msra.mxu0 %v2371
    %2428 = vmatprep.subr.mxu0 0.0
    %2429 = vmatpush1.msra.mxu0 %v2372
    %2430 = vmatprep.subr.mxu0 0.0
    %2431 = vmatpush1.msra.mxu0 %v2373
    %2432 = vmatprep.subr.mxu0 0.0
    %2433 = vmatpush1.msra.mxu0 %v2374
    %2434 = vmatprep.subr.mxu0 0.0
    %2435 = vmatpush1.msra.mxu0 %v2375
    %2436 = vmatprep.subr.mxu0 0.0
    %2437 = vmatpush1.msra.mxu0 %v2376
    %2438 = vmatprep.subr.mxu0 0.0
    %2439 = vmatpush1.msra.mxu0 %v2377
    %2440 = vmatprep.subr.mxu0 0.0
    %2441 = vmatpush1.msra.mxu0 %v2378
    %2442 = vmatprep.subr.mxu0 0.0
    %2443 = vmatpush1.msra.mxu0 %v2379
    %2444 = vmatprep.subr.mxu0 0.0
    %2445 = vmatpush1.msra.mxu0 %v2380
    %2446 = vmatprep.subr.mxu0 0.0
    %2447 = vmatpush1.msra.mxu0 %v2381
    %2448 = vmatprep.subr.mxu0 0.0
    %2449 = vmatpush1.msra.mxu0 %v2382
    %2450 = vmatprep.subr.mxu0 0.0
    %2451 = vmatpush1.msra.mxu0 %v2383
    %2452 = vmatprep.subr.mxu0 0.0
    %2453 = vmatpush1.msra.mxu0 %v2384
    %2454 = vmatprep.subr.mxu0 0.0
    %2455 = vmatpush1.msra.mxu0 %v2385
    %2456 = vmatprep.subr.mxu0 0.0
    %2457 = vmatpush1.msra.mxu0 %v2386
    %2458 = vmatprep.mubr.f32.mxu0 %v2352
    %2459 = vmatmul.mubr.f32.gmra.mrb[0].mxu0 %v2351
    %v2460 = vpop.f32.mrb[0].mxu0
    %v2461 = vadd.f32 %v2392, %v2460
    %v2462 = vpop.f32.mrb[0].mxu0
    %2463 = vmatprep.mubr.f32.mxu0 %v2354
    %2464 = vmatmul.mubr.f32.gmra.mrb[0].mxu0 %v2353
    %v2465 = vpop.f32.mrb[0].mxu0
    %v2466 = vadd.f32 %v2392, %v2465
    %v2467 = vpop.f32.mrb[0].mxu0
    %2468 = vdwg.mxu0
    %v2469 = vmul.f32 %v2228, 0.999995
    %v2470 = vmul.f32 %v2229, 0.999995
    %v2471 = vadd.f32 %v2469, %v2461
    %v2472 = vadd.f32 %v2470, %v2466
    %2473 = vst [vmem:[%s18] sm:$0xff] %v2471
    %2474 = vst [vmem:[%s18 + $0x8] sm:$0xff] %v2472
    // Predicated region
    $region121: #{gps_forward.4} parent=1 // pred_check
      _
    $region122: #{gps_forward.4} parent=1 // pred_check_branch
      %2476 = sbr.rel (0) target = $region124
    $region123: #{gps_forward.4} parent=1 // pred_region
      _
    $region124: #{gps_forward.4} parent=1 // pred_fallthru
      _
    // Predicated region
    $region125: #{gps_forward.4} parent=1 // pred_check
      _
    $region126: #{gps_forward.4} parent=1 // pred_check_branch
      %2478 = sbr.rel (0) target = $region128
    $region127: #{gps_forward.4} parent=1 // pred_region
      _
    $region128: #{gps_forward.4} parent=1 // pred_fallthru
      _
    %2479 = vsyncpa [#allocation9], 1
    %2480 = vsyncpa [#allocation11], 1
    %2481 = vsyncpa [#allocation14], 1
    %2482 = vsyncpa [#allocation17], 1
    %2483 = vsyncpa [#allocation20], 1
    %2484 = vsyncpa [#allocation23], 1
    %2485 = vsyncpa [#allocation26], 1

// kernel: gps_forward.5
$region0: #{gps_forward.5}
  #allocation0 [shape = 'u32[]', space=smem, size = 0x4, offset = 0x4, fixed_abs, tag = 'smem constant byte address 0x4 - core index']
  #allocation1 [shape = 'u32[144,128]{1,0:T(1,128)}', space=vmem, size = 0x12000, scoped, tag = 'internal scratch']
  #allocation2 [shape = 'f32[32,128]{1,0:T(8,128)}', space=vmem, size = 0x4000, scoped, tag = 'scratch operand']
  #allocation3 [shape = 'f32[16,128]{1,0:T(8,128)}', space=vmem, size = 0x2000, scoped, tag = 'scratch operand']
  #allocation4 [shape = 'f32[16,128]{1,0:T(8,128)}', space=vmem, size = 0x2000, scoped, tag = 'scratch operand']
  #allocation5 [shape = 's32[1]{0}', space=sflag, size = 0x4, scoped, tag = 'scoped memory for gps_forward.5']
  #allocation6 [shape = 'u8[512]{0}', space=smem, size = 0x200, scoped, tag = 'prefetched SMEM operand 0']
  #allocation7 [shape = 'u8[512]{0}', space=smem, size = 0x200, scoped, tag = 'prefetched SMEM operand 1']
  %s0 = inlined_call_operand.vmem [shape: s32[32], index: 0, kind: input, shape index: {}]
  %s1 = inlined_call_operand.vmem [shape: s32[32], index: 1, kind: input, shape index: {}]
  %s2 = inlined_call_operand.vmem [shape: f32[16,128], index: 2, kind: input, shape index: {}]
  %s3 = inlined_call_operand.vmem [shape: f32[32,10], index: 3, kind: input, shape index: {}]
  %s4 = inlined_call_operand.vmem [shape: f32[10,128], index: 4, kind: input, shape index: {}]
  %s5 = inlined_call_operand.vmem [shape: f32[1,128], index: 5, kind: input, shape index: {}]
  %s6 = inlined_call_operand.vmem [shape: f32[128,128], index: 6, kind: input, shape index: {}]
  %s7 = inlined_call_operand.vmem [shape: f32[1,128], index: 7, kind: input, shape index: {}]
  %s8 = inlined_call_operand.vmem [shape: f32[128,128], index: 8, kind: input, shape index: {}]
  %s9 = inlined_call_operand.vmem [shape: f32[1,128], index: 9, kind: input, shape index: {}]
  %s10 = inlined_call_operand.vmem [shape: f32[128,384], index: 10, kind: input, shape index: {}]
  %s11 = inlined_call_operand.vmem [shape: f32[1,384], index: 11, kind: input, shape index: {}]
  %s12 = inlined_call_operand.vmem [shape: f32[128,128], index: 12, kind: input, shape index: {}]
  %s13 = inlined_call_operand.vmem [shape: f32[1,128], index: 13, kind: input, shape index: {}]
  %s14 = inlined_call_operand.vmem [shape: f32[128,256], index: 14, kind: input, shape index: {}]
  %s15 = inlined_call_operand.vmem [shape: f32[1,256], index: 15, kind: input, shape index: {}]
  %s16 = inlined_call_operand.vmem [shape: f32[256,128], index: 16, kind: input, shape index: {}]
  %s17 = inlined_call_operand.vmem [shape: f32[1,128], index: 17, kind: input, shape index: {}]
  %s18 = inlined_call_operand.hbm [shape: f32[16,128], index: 18, kind: output, shape index: {}]
  %s19 = sld [smem:[#allocation0]]
  $region81: #{gps_forward.5} parent=0
    _
  %s21 = ssub.s32 1, %s19
  %s22 = scalar_select 0, %s21, %s19
  %s23 = sshll.u32 %s0, 4
  %s24 = int_to_ptr.vmem [resolvable:$true] %s23
  %26 = dma.vmem_to_smem %s24, 16, [#allocation6], [#allocation5]
  %s27 = sshll.u32 %s1, 4
  %s28 = int_to_ptr.vmem [resolvable:$true] %s27
  %30 = dma.vmem_to_smem %s28, 16, [#allocation7], [#allocation5]
  %31 = dma.done [#allocation5], 32
  %32 = sfence
  $region1: #{gps_forward.5} parent=0
    #allocation8 [shape = 'u8[8192]{0}', space=vmem, size = 0x2000, scoped, tag = 'output window, operand 0, single buffered']
    #allocation9 [shape = 's32[1]{0}', space=sflag, size = 0x4, scoped, tag = 'scoped memory for gps_forward.5']
    %33 = vsyncpa [#allocation9], 0
    // Predicated region
    $region2: #{gps_forward.5} parent=1 // pred_check
      _
    $region3: #{gps_forward.5} parent=1 // pred_check_branch
      %35 = sbr.rel (0) target = $region5
    $region4: #{gps_forward.5} parent=1 // pred_region
      _
    $region5: #{gps_forward.5} parent=1 // pred_fallthru
      _
    // Predicated region
    $region6: #{gps_forward.5} parent=1 // pred_check
      _
    $region7: #{gps_forward.5} parent=1 // pred_check_branch
      %37 = sbr.rel (0) target = $region9
    $region8: #{gps_forward.5} parent=1 // pred_region
      _
    $region9: #{gps_forward.5} parent=1 // pred_fallthru
      _
    // Predicated region
    $region10: #{gps_forward.5} parent=1 // pred_check
      _
    $region11: #{gps_forward.5} parent=1 // pred_check_branch
      %39 = sbr.rel (0) target = $region13
    $region12: #{gps_forward.5} parent=1 // pred_region
      _
    $region13: #{gps_forward.5} parent=1 // pred_fallthru
      _
    // Predicated region
    $region14: #{gps_forward.5} parent=1 // pred_check
      _
    $region15: #{gps_forward.5} parent=1 // pred_check_branch
      %41 = sbr.rel (0) target = $region17
    $region16: #{gps_forward.5} parent=1 // pred_region
      _
    $region17: #{gps_forward.5} parent=1 // pred_fallthru
      _
    // Predicated region
    $region18: #{gps_forward.5} parent=1 // pred_check
      _
    $region19: #{gps_forward.5} parent=1 // pred_check_branch
      %43 = sbr.rel (0) target = $region21
    $region20: #{gps_forward.5} parent=1 // pred_region
      _
    $region21: #{gps_forward.5} parent=1 // pred_fallthru
      _
    // Predicated region
    $region22: #{gps_forward.5} parent=1 // pred_check
      _
    $region23: #{gps_forward.5} parent=1 // pred_check_branch
      %45 = sbr.rel (0) target = $region25
    $region24: #{gps_forward.5} parent=1 // pred_region
      _
    $region25: #{gps_forward.5} parent=1 // pred_fallthru
      _
    // Predicated region
    $region26: #{gps_forward.5} parent=1 // pred_check
      _
    $region27: #{gps_forward.5} parent=1 // pred_check_branch
      %47 = sbr.rel (0) target = $region29
    $region28: #{gps_forward.5} parent=1 // pred_region
      _
    $region29: #{gps_forward.5} parent=1 // pred_fallthru
      _
    // Predicated region
    $region30: #{gps_forward.5} parent=1 // pred_check
      _
    $region31: #{gps_forward.5} parent=1 // pred_check_branch
      %49 = sbr.rel (0) target = $region33
    $region32: #{gps_forward.5} parent=1 // pred_region
      _
    $region33: #{gps_forward.5} parent=1 // pred_fallthru
      _
    // Predicated region
    $region34: #{gps_forward.5} parent=1 // pred_check
      _
    $region35: #{gps_forward.5} parent=1 // pred_check_branch
      %51 = sbr.rel (0) target = $region37
    $region36: #{gps_forward.5} parent=1 // pred_region
      _
    $region37: #{gps_forward.5} parent=1 // pred_fallthru
      _
    // Predicated region
    $region38: #{gps_forward.5} parent=1 // pred_check
      _
    $region39: #{gps_forward.5} parent=1 // pred_check_branch
      %53 = sbr.rel (0) target = $region41
    $region40: #{gps_forward.5} parent=1 // pred_region
      _
    $region41: #{gps_forward.5} parent=1 // pred_fallthru
      _
    // Predicated region
    $region42: #{gps_forward.5} parent=1 // pred_check
      _
    $region43: #{gps_forward.5} parent=1 // pred_check_branch
      %55 = sbr.rel (0) target = $region45
    $region44: #{gps_forward.5} parent=1 // pred_region
      _
    $region45: #{gps_forward.5} parent=1 // pred_fallthru
      _
    // Predicated region
    $region46: #{gps_forward.5} parent=1 // pred_check
      _
    $region47: #{gps_forward.5} parent=1 // pred_check_branch
      %57 = sbr.rel (0) target = $region49
    $region48: #{gps_forward.5} parent=1 // pred_region
      _
    $region49: #{gps_forward.5} parent=1 // pred_fallthru
      _
    // Predicated region
    $region50: #{gps_forward.5} parent=1 // pred_check
      _
    $region51: #{gps_forward.5} parent=1 // pred_check_branch
      %59 = sbr.rel (0) target = $region53
    $region52: #{gps_forward.5} parent=1 // pred_region
      _
    $region53: #{gps_forward.5} parent=1 // pred_fallthru
      _
    // Predicated region
    $region54: #{gps_forward.5} parent=1 // pred_check
      _
    $region55: #{gps_forward.5} parent=1 // pred_check_branch
      %61 = sbr.rel (0) target = $region57
    $region56: #{gps_forward.5} parent=1 // pred_region
      _
    $region57: #{gps_forward.5} parent=1 // pred_fallthru
      _
    // Predicated region
    $region58: #{gps_forward.5} parent=1 // pred_check
      _
    $region59: #{gps_forward.5} parent=1 // pred_check_branch
      %63 = sbr.rel (0) target = $region61
    $region60: #{gps_forward.5} parent=1 // pred_region
      _
    $region61: #{gps_forward.5} parent=1 // pred_fallthru
      _
    // Predicated region
    $region62: #{gps_forward.5} parent=1 // pred_check
      _
    $region63: #{gps_forward.5} parent=1 // pred_check_branch
      %65 = sbr.rel (0) target = $region65
    $region64: #{gps_forward.5} parent=1 // pred_region
      _
    $region65: #{gps_forward.5} parent=1 // pred_fallthru
      _
    %v66 = vld [vmem:[%s2] sm:$0xff]
    %v67 = vld [vmem:[%s2 + $0x8] sm:$0xff]
    %v68 = vmul.f32 %v66, 0.999995
    %v69 = vmul.f32 %v67, 0.999995
    %v70 = vld [vmem:[%s3] sm:$0xff]
    %v71 = vld [vmem:[%s3 + $0x8] sm:$0xff]
    %v72 = vld [vmem:[%s3 + $0x10] sm:$0xff]
    %v73 = vld [vmem:[%s3 + $0x18] sm:$0xff]
    %v74 = vld [vmem:[%s4] sm:$0xff]
    %v75 = vld [vmem:[%s4 + $0x8] sm:$0x3]
    %v76 = vld [vmem:[%s5] sm:$0x1]
    %v78 = vlaneseq
    %v79 = vshrl.u32 %v78, 7
    %v80 = vsub.s32 0, %v79
    %v81 = vrot.slane %v76, %v80
    %vm83 = vcmask 80896
    %v85 = vsel %vm83, %v70, 0
    %v88 = vsel %vm83, %v71, 0
    %v91 = vsel %vm83, %v72, 0
    %v94 = vsel %vm83, %v73, 0
    %vm96 = vcmask 1041408
    %v98 = vsel %vm96, %v75, 0
    %100 = vmatprep.subr.mxu0 0.0
    %101 = vmatpush1.msra.mxu0 %v74
    %102 = vmatprep.subr.mxu0 0.0
    %103 = vmatpush1.msra.mxu0 %v98
    %104 = vmatprep.subr.mxu0 0.0
    %105 = vmatpush1.msra.mxu0 0.0
    %106 = vmatprep.subr.mxu0 0.0
    %107 = vmatpush1.msra.mxu0 0.0
    %108 = vmatprep.subr.mxu0 0.0
    %109 = vmatpush1.msra.mxu0 0.0
    %110 = vmatprep.subr.mxu0 0.0
    %111 = vmatpush1.msra.mxu0 0.0
    %112 = vmatprep.subr.mxu0 0.0
    %113 = vmatpush1.msra.mxu0 0.0
    %114 = vmatprep.subr.mxu0 0.0
    %115 = vmatpush1.msra.mxu0 0.0
    %116 = vmatprep.subr.mxu0 0.0
    %117 = vmatpush1.msra.mxu0 0.0
    %118 = vmatprep.subr.mxu0 0.0
    %119 = vmatpush1.msra.mxu0 0.0
    %120 = vmatprep.subr.mxu0 0.0
    %121 = vmatpush1.msra.mxu0 0.0
    %122 = vmatprep.subr.mxu0 0.0
    %123 = vmatpush1.msra.mxu0 0.0
    %124 = vmatprep.subr.mxu0 0.0
    %125 = vmatpush1.msra.mxu0 0.0
    %126 = vmatprep.subr.mxu0 0.0
    %127 = vmatpush1.msra.mxu0 0.0
    %128 = vmatprep.subr.mxu0 0.0
    %129 = vmatpush1.msra.mxu0 0.0
    %130 = vmatprep.subr.mxu0 0.0
    %131 = vmatpush1.msra.mxu0 0.0
    %132 = vmatprep.subr.mxu0 0.0
    %133 = vmatpush1.msra.mxu0 0.0
    %134 = vmatprep.subr.mxu0 0.0
    %135 = vmatpush1.msra.mxu0 0.0
    %136 = vmatprep.subr.mxu0 0.0
    %137 = vmatpush1.msra.mxu0 0.0
    %138 = vmatprep.subr.mxu0 0.0
    %139 = vmatpush1.msra.mxu0 0.0
    %140 = vmatprep.subr.mxu0 0.0
    %141 = vmatpush1.msra.mxu0 0.0
    %142 = vmatprep.subr.mxu0 0.0
    %143 = vmatpush1.msra.mxu0 0.0
    %144 = vmatprep.subr.mxu0 0.0
    %145 = vmatpush1.msra.mxu0 0.0
    %146 = vmatprep.subr.mxu0 0.0
    %147 = vmatpush1.msra.mxu0 0.0
    %148 = vmatprep.subr.mxu0 0.0
    %149 = vmatpush1.msra.mxu0 0.0
    %150 = vmatprep.subr.mxu0 0.0
    %151 = vmatpush1.msra.mxu0 0.0
    %152 = vmatprep.subr.mxu0 0.0
    %153 = vmatpush1.msra.mxu0 0.0
    %154 = vmatprep.subr.mxu0 0.0
    %155 = vmatpush1.msra.mxu0 0.0
    %156 = vmatprep.subr.mxu0 0.0
    %157 = vmatpush1.msra.mxu0 0.0
    %158 = vmatprep.subr.mxu0 0.0
    %159 = vmatpush1.msra.mxu0 0.0
    %160 = vmatprep.subr.mxu0 0.0
    %161 = vmatpush1.msra.mxu0 0.0
    %162 = vmatprep.subr.mxu0 0.0
    %163 = vmatpush1.msra.mxu0 0.0
    %164 = vmatprep.mubr.f32.mxu0 0.0
    %165 = vmatmul.mubr.f32.gmra.mrb[0].mxu0 %v85
    %v166 = vpop.f32.mrb[0].mxu0
    %v167 = vadd.f32 %v81, %v166
    %v168 = vpop.f32.mrb[0].mxu0
    %169 = vmatprep.mubr.f32.mxu0 0.0
    %170 = vmatmul.mubr.f32.gmra.mrb[0].mxu0 %v88
    %v171 = vpop.f32.mrb[0].mxu0
    %v172 = vadd.f32 %v81, %v171
    %v173 = vpop.f32.mrb[0].mxu0
    %174 = vmatprep.mubr.f32.mxu0 0.0
    %175 = vmatmul.mubr.f32.gmra.mrb[0].mxu0 %v91
    %v176 = vpop.f32.mrb[0].mxu0
    %v177 = vadd.f32 %v81, %v176
    %v178 = vpop.f32.mrb[0].mxu0
    %179 = vmatprep.mubr.f32.mxu0 0.0
    %180 = vmatmul.mubr.f32.gmra.mrb[0].mxu0 %v94
    %v181 = vpop.f32.mrb[0].mxu0
    %v182 = vadd.f32 %v81, %v181
    %v183 = vpop.f32.mrb[0].mxu0
    %184 = vdwg.mxu0
    %185 = vst [vmem:[#allocation2] sm:$0xff] %v167
    %186 = vst [vmem:[#allocation2 + $0x8] sm:$0xff] %v172
    %187 = vst [vmem:[#allocation2 + $0x10] sm:$0xff] %v177
    %188 = vst [vmem:[#allocation2 + $0x18] sm:$0xff] %v182
    %189 = vst [vmem:[#allocation3] sm:$0xff] %v66
    %190 = vst [vmem:[#allocation3 + $0x8] sm:$0xff] %v67
    loop: start=0, step=1, limit=32
    $region66: #{gps_forward.5} parent=1 // loop_pre_header
      _
    $region67: #{gps_forward.5} parent=1 // loop_header
      %s192 = sphi 0, %s196
      %p193 = scmp.ge.s32.totalorder %s192, 32
    $region68: #{gps_forward.5} parent=1 // loop_header_branch
      %195 = sbr.rel (%p193) target = $region72
    $region69: #{gps_forward.5} parent=1 // loop_body
      %s197 = sld [smem:[#allocation6 + %s192]]
      %s198 = sld [smem:[#allocation7 + %s192]]
      %s199 = scalar_lea.vmem %s2, %s197
      %v200 = vld [vmem:[%s199] sm:$0x1]
      %s201 = scalar_lea.vmem [#allocation2], %s192
      %v202 = vld [vmem:[%s201] sm:$0x1]
      %v203 = vadd.f32 %v200, %v202
      %v204 = vmax.f32 %v203, 0.0
      %s205 = scalar_lea.vmem [#allocation3], %s198
      %v206 = vld [vmem:[%s205] sm:$0x1]
      %v207 = vadd.f32 %v206, %v204
      %208 = vst [vmem:[%s205] sm:$0x1] %v207
    $region70: #{gps_forward.5} parent=1 // loop_footer
      %s196 = sadd.s32 1, %s192
    $region71: #{gps_forward.5} parent=1 // loop_footer_branch
      %191 = sbr.rel target = $region67
    $region72: #{gps_forward.5} parent=1 // loop_exit
      _
    %v209 = vld [vmem:[#allocation3] sm:$0xff]
    %v210 = vld [vmem:[#allocation3 + $0x8] sm:$0xff]
    %v211 = vld [vmem:[%s6] sm:$0xff]
    %v212 = vld [vmem:[%s6 + $0x8] sm:$0xff]
    %v213 = vld [vmem:[%s6 + $0x10] sm:$0xff]
    %v214 = vld [vmem:[%s6 + $0x18] sm:$0xff]
    %v215 = vld [vmem:[%s6 + $0x20] sm:$0xff]
    %v216 = vld [vmem:[%s6 + $0x28] sm:$0xff]
    %v217 = vld [vmem:[%s6 + $0x30] sm:$0xff]
    %v218 = vld [vmem:[%s6 + $0x38] sm:$0xff]
    %v219 = vld [vmem:[%s6 + $0x40] sm:$0xff]
    %v220 = vld [vmem:[%s6 + $0x48] sm:$0xff]
    %v221 = vld [vmem:[%s6 + $0x50] sm:$0xff]
    %v222 = vld [vmem:[%s6 + $0x58] sm:$0xff]
    %v223 = vld [vmem:[%s6 + $0x60] sm:$0xff]
    %v224 = vld [vmem:[%s6 + $0x68] sm:$0xff]
    %v225 = vld [vmem:[%s6 + $0x70] sm:$0xff]
    %v226 = vld [vmem:[%s6 + $0x78] sm:$0xff]
    %v227 = vld [vmem:[%s7] sm:$0x1]
    %v229 = vlaneseq
    %v230 = vshrl.u32 %v229, 7
    %v231 = vsub.s32 0, %v230
    %v232 = vrot.slane %v227, %v231
    %234 = vmatprep.subr.mxu0 0.0
    %235 = vmatpush1.msra.mxu0 %v211
    %236 = vmatprep.subr.mxu0 0.0
    %237 = vmatpush1.msra.mxu0 %v212
    %238 = vmatprep.subr.mxu0 0.0
    %239 = vmatpush1.msra.mxu0 %v213
    %240 = vmatprep.subr.mxu0 0.0
    %241 = vmatpush1.msra.mxu0 %v214
    %242 = vmatprep.subr.mxu0 0.0
    %243 = vmatpush1.msra.mxu0 %v215
    %244 = vmatprep.subr.mxu0 0.0
    %245 = vmatpush1.msra.mxu0 %v216
    %246 = vmatprep.subr.mxu0 0.0
    %247 = vmatpush1.msra.mxu0 %v217
    %248 = vmatprep.subr.mxu0 0.0
    %249 = vmatpush1.msra.mxu0 %v218
    %250 = vmatprep.subr.mxu0 0.0
    %251 = vmatpush1.msra.mxu0 %v219
    %252 = vmatprep.subr.mxu0 0.0
    %253 = vmatpush1.msra.mxu0 %v220
    %254 = vmatprep.subr.mxu0 0.0
    %255 = vmatpush1.msra.mxu0 %v221
    %256 = vmatprep.subr.mxu0 0.0
    %257 = vmatpush1.msra.mxu0 %v222
    %258 = vmatprep.subr.mxu0 0.0
    %259 = vmatpush1.msra.mxu0 %v223
    %260 = vmatprep.subr.mxu0 0.0
    %261 = vmatpush1.msra.mxu0 %v224
    %262 = vmatprep.subr.mxu0 0.0
    %263 = vmatpush1.msra.mxu0 %v225
    %264 = vmatprep.subr.mxu0 0.0
    %265 = vmatpush1.msra.mxu0 %v226
    %266 = vmatprep.subr.mxu0 0.0
    %267 = vmatpush1.msra.mxu0 0.0
    %268 = vmatprep.subr.mxu0 0.0
    %269 = vmatpush1.msra.mxu0 0.0
    %270 = vmatprep.subr.mxu0 0.0
    %271 = vmatpush1.msra.mxu0 0.0
    %272 = vmatprep.subr.mxu0 0.0
    %273 = vmatpush1.msra.mxu0 0.0
    %274 = vmatprep.subr.mxu0 0.0
    %275 = vmatpush1.msra.mxu0 0.0
    %276 = vmatprep.subr.mxu0 0.0
    %277 = vmatpush1.msra.mxu0 0.0
    %278 = vmatprep.subr.mxu0 0.0
    %279 = vmatpush1.msra.mxu0 0.0
    %280 = vmatprep.subr.mxu0 0.0
    %281 = vmatpush1.msra.mxu0 0.0
    %282 = vmatprep.subr.mxu0 0.0
    %283 = vmatpush1.msra.mxu0 0.0
    %284 = vmatprep.subr.mxu0 0.0
    %285 = vmatpush1.msra.mxu0 0.0
    %286 = vmatprep.subr.mxu0 0.0
    %287 = vmatpush1.msra.mxu0 0.0
    %288 = vmatprep.subr.mxu0 0.0
    %289 = vmatpush1.msra.mxu0 0.0
    %290 = vmatprep.subr.mxu0 0.0
    %291 = vmatpush1.msra.mxu0 0.0
    %292 = vmatprep.subr.mxu0 0.0
    %293 = vmatpush1.msra.mxu0 0.0
    %294 = vmatprep.subr.mxu0 0.0
    %295 = vmatpush1.msra.mxu0 0.0
    %296 = vmatprep.subr.mxu0 0.0
    %297 = vmatpush1.msra.mxu0 0.0
    %298 = vmatprep.mubr.f32.mxu0 0.0
    %299 = vmatmul.mubr.f32.gmra.mrb[0].mxu0 %v209
    %v300 = vpop.f32.mrb[0].mxu0
    %v301 = vadd.f32 %v232, %v300
    %v302 = vpop.f32.mrb[0].mxu0
    %303 = vmatprep.mubr.f32.mxu0 0.0
    %304 = vmatmul.mubr.f32.gmra.mrb[0].mxu0 %v210
    %v305 = vpop.f32.mrb[0].mxu0
    %v306 = vadd.f32 %v232, %v305
    %v307 = vpop.f32.mrb[0].mxu0
    %308 = vdwg.mxu0
    %v309 = vmax.f32 %v301, 0.0
    %v310 = vmax.f32 %v306, 0.0
    %v311 = vld [vmem:[%s8] sm:$0xff]
    %v312 = vld [vmem:[%s8 + $0x8] sm:$0xff]
    %v313 = vld [vmem:[%s8 + $0x10] sm:$0xff]
    %v314 = vld [vmem:[%s8 + $0x18] sm:$0xff]
    %v315 = vld [vmem:[%s8 + $0x20] sm:$0xff]
    %v316 = vld [vmem:[%s8 + $0x28] sm:$0xff]
    %v317 = vld [vmem:[%s8 + $0x30] sm:$0xff]
    %v318 = vld [vmem:[%s8 + $0x38] sm:$0xff]
    %v319 = vld [vmem:[%s8 + $0x40] sm:$0xff]
    %v320 = vld [vmem:[%s8 + $0x48] sm:$0xff]
    %v321 = vld [vmem:[%s8 + $0x50] sm:$0xff]
    %v322 = vld [vmem:[%s8 + $0x58] sm:$0xff]
    %v323 = vld [vmem:[%s8 + $0x60] sm:$0xff]
    %v324 = vld [vmem:[%s8 + $0x68] sm:$0xff]
    %v325 = vld [vmem:[%s8 + $0x70] sm:$0xff]
    %v326 = vld [vmem:[%s8 + $0x78] sm:$0xff]
    %v327 = vld [vmem:[%s9] sm:$0x1]
    %v329 = vlaneseq
    %v330 = vshrl.u32 %v329, 7
    %v331 = vsub.s32 0, %v330
    %v332 = vrot.slane %v327, %v331
    %334 = vmatprep.subr.mxu0 0.0
    %335 = vmatpush1.msra.mxu0 %v311
    %336 = vmatprep.subr.mxu0 0.0
    %337 = vmatpush1.msra.mxu0 %v312
    %338 = vmatprep.subr.mxu0 0.0
    %339 = vmatpush1.msra.mxu0 %v313
    %340 = vmatprep.subr.mxu0 0.0
    %341 = vmatpush1.msra.mxu0 %v314
    %342 = vmatprep.subr.mxu0 0.0
    %343 = vmatpush1.msra.mxu0 %v315
    %344 = vmatprep.subr.mxu0 0.0
    %345 = vmatpush1.msra.mxu0 %v316
    %346 = vmatprep.subr.mxu0 0.0
    %347 = vmatpush1.msra.mxu0 %v317
    %348 = vmatprep.subr.mxu0 0.0
    %349 = vmatpush1.msra.mxu0 %v318
    %350 = vmatprep.subr.mxu0 0.0
    %351 = vmatpush1.msra.mxu0 %v319
    %352 = vmatprep.subr.mxu0 0.0
    %353 = vmatpush1.msra.mxu0 %v320
    %354 = vmatprep.subr.mxu0 0.0
    %355 = vmatpush1.msra.mxu0 %v321
    %356 = vmatprep.subr.mxu0 0.0
    %357 = vmatpush1.msra.mxu0 %v322
    %358 = vmatprep.subr.mxu0 0.0
    %359 = vmatpush1.msra.mxu0 %v323
    %360 = vmatprep.subr.mxu0 0.0
    %361 = vmatpush1.msra.mxu0 %v324
    %362 = vmatprep.subr.mxu0 0.0
    %363 = vmatpush1.msra.mxu0 %v325
    %364 = vmatprep.subr.mxu0 0.0
    %365 = vmatpush1.msra.mxu0 %v326
    %366 = vmatprep.subr.mxu0 0.0
    %367 = vmatpush1.msra.mxu0 0.0
    %368 = vmatprep.subr.mxu0 0.0
    %369 = vmatpush1.msra.mxu0 0.0
    %370 = vmatprep.subr.mxu0 0.0
    %371 = vmatpush1.msra.mxu0 0.0
    %372 = vmatprep.subr.mxu0 0.0
    %373 = vmatpush1.msra.mxu0 0.0
    %374 = vmatprep.subr.mxu0 0.0
    %375 = vmatpush1.msra.mxu0 0.0
    %376 = vmatprep.subr.mxu0 0.0
    %377 = vmatpush1.msra.mxu0 0.0
    %378 = vmatprep.subr.mxu0 0.0
    %379 = vmatpush1.msra.mxu0 0.0
    %380 = vmatprep.subr.mxu0 0.0
    %381 = vmatpush1.msra.mxu0 0.0
    %382 = vmatprep.subr.mxu0 0.0
    %383 = vmatpush1.msra.mxu0 0.0
    %384 = vmatprep.subr.mxu0 0.0
    %385 = vmatpush1.msra.mxu0 0.0
    %386 = vmatprep.subr.mxu0 0.0
    %387 = vmatpush1.msra.mxu0 0.0
    %388 = vmatprep.subr.mxu0 0.0
    %389 = vmatpush1.msra.mxu0 0.0
    %390 = vmatprep.subr.mxu0 0.0
    %391 = vmatpush1.msra.mxu0 0.0
    %392 = vmatprep.subr.mxu0 0.0
    %393 = vmatpush1.msra.mxu0 0.0
    %394 = vmatprep.subr.mxu0 0.0
    %395 = vmatpush1.msra.mxu0 0.0
    %396 = vmatprep.subr.mxu0 0.0
    %397 = vmatpush1.msra.mxu0 0.0
    %398 = vmatprep.mubr.f32.mxu0 0.0
    %399 = vmatmul.mubr.f32.gmra.mrb[0].mxu0 %v309
    %v400 = vpop.f32.mrb[0].mxu0
    %v401 = vadd.f32 %v332, %v400
    %v402 = vpop.f32.mrb[0].mxu0
    %403 = vmatprep.mubr.f32.mxu0 0.0
    %404 = vmatmul.mubr.f32.gmra.mrb[0].mxu0 %v310
    %v405 = vpop.f32.mrb[0].mxu0
    %v406 = vadd.f32 %v332, %v405
    %v407 = vpop.f32.mrb[0].mxu0
    %408 = vdwg.mxu0
    %v409 = vadd.f32 %v401, %v68
    %v410 = vadd.f32 %v406, %v69
    %v411 = vld [vmem:[%s10] sm:$0xff]
    %v412 = vld [vmem:[%s10 + $0x8] sm:$0xff]
    %v413 = vld [vmem:[%s10 + $0x10] sm:$0xff]
    %v414 = vld [vmem:[%s10 + $0x18] sm:$0xff]
    %v415 = vld [vmem:[%s10 + $0x20] sm:$0xff]
    %v416 = vld [vmem:[%s10 + $0x28] sm:$0xff]
    %v417 = vld [vmem:[%s10 + $0x30] sm:$0xff]
    %v418 = vld [vmem:[%s10 + $0x38] sm:$0xff]
    %v419 = vld [vmem:[%s10 + $0x40] sm:$0xff]
    %v420 = vld [vmem:[%s10 + $0x48] sm:$0xff]
    %v421 = vld [vmem:[%s10 + $0x50] sm:$0xff]
    %v422 = vld [vmem:[%s10 + $0x58] sm:$0xff]
    %v423 = vld [vmem:[%s10 + $0x60] sm:$0xff]
    %v424 = vld [vmem:[%s10 + $0x68] sm:$0xff]
    %v425 = vld [vmem:[%s10 + $0x70] sm:$0xff]
    %v426 = vld [vmem:[%s10 + $0x78] sm:$0xff]
    %v427 = vld [vmem:[%s10 + $0x80] sm:$0xff]
    %v428 = vld [vmem:[%s10 + $0x88] sm:$0xff]
    %v429 = vld [vmem:[%s10 + $0x90] sm:$0xff]
    %v430 = vld [vmem:[%s10 + $0x98] sm:$0xff]
    %v431 = vld [vmem:[%s10 + $0xa0] sm:$0xff]
    %v432 = vld [vmem:[%s10 + $0xa8] sm:$0xff]
    %v433 = vld [vmem:[%s10 + $0xb0] sm:$0xff]
    %v434 = vld [vmem:[%s10 + $0xb8] sm:$0xff]
    %v435 = vld [vmem:[%s10 + $0xc0] sm:$0xff]
    %v436 = vld [vmem:[%s10 + $0xc8] sm:$0xff]
    %v437 = vld [vmem:[%s10 + $0xd0] sm:$0xff]
    %v438 = vld [vmem:[%s10 + $0xd8] sm:$0xff]
    %v439 = vld [vmem:[%s10 + $0xe0] sm:$0xff]
    %v440 = vld [vmem:[%s10 + $0xe8] sm:$0xff]
    %v441 = vld [vmem:[%s10 + $0xf0] sm:$0xff]
    %v442 = vld [vmem:[%s10 + $0xf8] sm:$0xff]
    %v443 = vld [vmem:[%s10 + $0x100] sm:$0xff]
    %v444 = vld [vmem:[%s10 + $0x108] sm:$0xff]
    %v445 = vld [vmem:[%s10 + $0x110] sm:$0xff]
    %v446 = vld [vmem:[%s10 + $0x118] sm:$0xff]
    %v447 = vld [vmem:[%s10 + $0x120] sm:$0xff]
    %v448 = vld [vmem:[%s10 + $0x128] sm:$0xff]
    %v449 = vld [vmem:[%s10 + $0x130] sm:$0xff]
    %v450 = vld [vmem:[%s10 + $0x138] sm:$0xff]
    %v451 = vld [vmem:[%s10 + $0x140] sm:$0xff]
    %v452 = vld [vmem:[%s10 + $0x148] sm:$0xff]
    %v453 = vld [vmem:[%s10 + $0x150] sm:$0xff]
    %v454 = vld [vmem:[%s10 + $0x158] sm:$0xff]
    %v455 = vld [vmem:[%s10 + $0x160] sm:$0xff]
    %v456 = vld [vmem:[%s10 + $0x168] sm:$0xff]
    %v457 = vld [vmem:[%s10 + $0x170] sm:$0xff]
    %v458 = vld [vmem:[%s10 + $0x178] sm:$0xff]
    %v459 = vld [vmem:[%s11] sm:$0x7]
    %v461 = vlaneseq
    %v462 = vshrl.u32 %v461, 7
    %v463 = vsub.s32 0, %v462
    %v464 = vrot.slane %v459, %v463
    %v465 = vlaneseq
    %v466 = vshrl.u32 %v465, 7
    %v467 = vsub.s32 1, %v466
    %v468 = vrot.slane %v459, %v467
    %v469 = vlaneseq
    %v470 = vshrl.u32 %v469, 7
    %v471 = vsub.s32 2, %v470
    %v472 = vrot.slane %v459, %v471
    %476 = vmatprep.subr.mxu0 %v412
    %477 = vmatpush1.msra.mxu0 %v411
    %478 = vmatprep.subr.mxu0 %v415
    %479 = vmatpush1.msra.mxu0 %v414
    %480 = vmatprep.subr.mxu0 %v418
    %481 = vmatpush1.msra.mxu0 %v417
    %482 = vmatprep.subr.mxu0 %v421
    %483 = vmatpush1.msra.mxu0 %v420
    %484 = vmatprep.subr.mxu0 %v424
    %485 = vmatpush1.msra.mxu0 %v423
    %486 = vmatprep.subr.mxu0 %v427
    %487 = vmatpush1.msra.mxu0 %v426
    %488 = vmatprep.subr.mxu0 %v430
    %489 = vmatpush1.msra.mxu0 %v429
    %490 = vmatprep.subr.mxu0 %v433
    %491 = vmatpush1.msra.mxu0 %v432
    %492 = vmatprep.subr.mxu0 %v436
    %493 = vmatpush1.msra.mxu0 %v435
    %494 = vmatprep.subr.mxu0 %v439
    %495 = vmatpush1.msra.mxu0 %v438
    %496 = vmatprep.subr.mxu0 %v442
    %497 = vmatpush1.msra.mxu0 %v441
    %498 = vmatprep.subr.mxu0 %v445
    %499 = vmatpush1.msra.mxu0 %v444
    %500 = vmatprep.subr.mxu0 %v448
    %501 = vmatpush1.msra.mxu0 %v447
    %502 = vmatprep.subr.mxu0 %v451
    %503 = vmatpush1.msra.mxu0 %v450
    %504 = vmatprep.subr.mxu0 %v454
    %505 = vmatpush1.msra.mxu0 %v453
    %506 = vmatprep.subr.mxu0 %v457
    %507 = vmatpush1.msra.mxu0 %v456
    %508 = vmatprep.subr.mxu0 0.0
    %509 = vmatpush1.msra.mxu0 0.0
    %510 = vmatprep.subr.mxu0 0.0
    %511 = vmatpush1.msra.mxu0 0.0
    %512 = vmatprep.subr.mxu0 0.0
    %513 = vmatpush1.msra.mxu0 0.0
    %514 = vmatprep.subr.mxu0 0.0
    %515 = vmatpush1.msra.mxu0 0.0
    %516 = vmatprep.subr.mxu0 0.0
    %517 = vmatpush1.msra.mxu0 0.0
    %518 = vmatprep.subr.mxu0 0.0
    %519 = vmatpush1.msra.mxu0 0.0
    %520 = vmatprep.subr.mxu0 0.0
    %521 = vmatpush1.msra.mxu0 0.0
    %522 = vmatprep.subr.mxu0 0.0
    %523 = vmatpush1.msra.mxu0 0.0
    %524 = vmatprep.subr.mxu0 0.0
    %525 = vmatpush1.msra.mxu0 0.0
    %526 = vmatprep.subr.mxu0 0.0
    %527 = vmatpush1.msra.mxu0 0.0
    %528 = vmatprep.subr.mxu0 0.0
    %529 = vmatpush1.msra.mxu0 0.0
    %530 = vmatprep.subr.mxu0 0.0
    %531 = vmatpush1.msra.mxu0 0.0
    %532 = vmatprep.subr.mxu0 0.0
    %533 = vmatpush1.msra.mxu0 0.0
    %534 = vmatprep.subr.mxu0 0.0
    %535 = vmatpush1.msra.mxu0 0.0
    %536 = vmatprep.subr.mxu0 0.0
    %537 = vmatpush1.msra.mxu0 0.0
    %538 = vmatprep.subr.mxu0 0.0
    %539 = vmatpush1.msra.mxu0 0.0
    %540 = vmatprep.mubr.f32.mxu0 0.0
    %541 = vmatmul.mubr.f32.gmra.mrb[0].mxu0 %v66
    %v542 = vpop.f32.mrb[0].mxu0
    %v543 = vadd.f32 %v464, %v542
    %v544 = vpop.f32.mrb[0].mxu0
    %v545 = vadd.f32 %v468, %v544
    %546 = vmatprep.mubr.f32.mxu0 0.0
    %547 = vmatmul.mubr.f32.gmra.mrb[0].mxu0 %v67
    %v548 = vpop.f32.mrb[0].mxu0
    %v549 = vadd.f32 %v464, %v548
    %v550 = vpop.f32.mrb[0].mxu0
    %v551 = vadd.f32 %v468, %v550
    %552 = vdwg.mxu0
    %553 = vmatprep.subr.mxu0 0.0
    %554 = vmatpush1.msra.mxu0 %v413
    %555 = vmatprep.subr.mxu0 0.0
    %556 = vmatpush1.msra.mxu0 %v416
    %557 = vmatprep.subr.mxu0 0.0
    %558 = vmatpush1.msra.mxu0 %v419
    %559 = vmatprep.subr.mxu0 0.0
    %560 = vmatpush1.msra.mxu0 %v422
    %561 = vmatprep.subr.mxu0 0.0
    %562 = vmatpush1.msra.mxu0 %v425
    %563 = vmatprep.subr.mxu0 0.0
    %564 = vmatpush1.msra.mxu0 %v428
    %565 = vmatprep.subr.mxu0 0.0
    %566 = vmatpush1.msra.mxu0 %v431
    %567 = vmatprep.subr.mxu0 0.0
    %568 = vmatpush1.msra.mxu0 %v434
    %569 = vmatprep.subr.mxu0 0.0
    %570 = vmatpush1.msra.mxu0 %v437
    %571 = vmatprep.subr.mxu0 0.0
    %572 = vmatpush1.msra.mxu0 %v440
    %573 = vmatprep.subr.mxu0 0.0
    %574 = vmatpush1.msra.mxu0 %v443
    %575 = vmatprep.subr.mxu0 0.0
    %576 = vmatpush1.msra.mxu0 %v446
    %577 = vmatprep.subr.mxu0 0.0
    %578 = vmatpush1.msra.mxu0 %v449
    %579 = vmatprep.subr.mxu0 0.0
    %580 = vmatpush1.msra.mxu0 %v452
    %581 = vmatprep.subr.mxu0 0.0
    %582 = vmatpush1.msra.mxu0 %v455
    %583 = vmatprep.subr.mxu0 0.0
    %584 = vmatpush1.msra.mxu0 %v458
    %585 = vmatprep.subr.mxu0 0.0
    %586 = vmatpush1.msra.mxu0 0.0
    %587 = vmatprep.subr.mxu0 0.0
    %588 = vmatpush1.msra.mxu0 0.0
    %589 = vmatprep.subr.mxu0 0.0
    %590 = vmatpush1.msra.mxu0 0.0
    %591 = vmatprep.subr.mxu0 0.0
    %592 = vmatpush1.msra.mxu0 0.0
    %593 = vmatprep.subr.mxu0 0.0
    %594 = vmatpush1.msra.mxu0 0.0
    %595 = vmatprep.subr.mxu0 0.0
    %596 = vmatpush1.msra.mxu0 0.0
    %597 = vmatprep.subr.mxu0 0.0
    %598 = vmatpush1.msra.mxu0 0.0
    %599 = vmatprep.subr.mxu0 0.0
    %600 = vmatpush1.msra.mxu0 0.0
    %601 = vmatprep.subr.mxu0 0.0
    %602 = vmatpush1.msra.mxu0 0.0
    %603 = vmatprep.subr.mxu0 0.0
    %604 = vmatpush1.msra.mxu0 0.0
    %605 = vmatprep.subr.mxu0 0.0
    %606 = vmatpush1.msra.mxu0 0.0
    %607 = vmatprep.subr.mxu0 0.0
    %608 = vmatpush1.msra.mxu0 0.0
    %609 = vmatprep.subr.mxu0 0.0
    %610 = vmatpush1.msra.mxu0 0.0
    %611 = vmatprep.subr.mxu0 0.0
    %612 = vmatpush1.msra.mxu0 0.0
    %613 = vmatprep.subr.mxu0 0.0
    %614 = vmatpush1.msra.mxu0 0.0
    %615 = vmatprep.subr.mxu0 0.0
    %616 = vmatpush1.msra.mxu0 0.0
    %617 = vmatprep.mubr.f32.mxu0 0.0
    %618 = vmatmul.mubr.f32.gmra.mrb[0].mxu0 %v66
    %v619 = vpop.f32.mrb[0].mxu0
    %v620 = vadd.f32 %v472, %v619
    %v621 = vpop.f32.mrb[0].mxu0
    %622 = vmatprep.mubr.f32.mxu0 0.0
    %623 = vmatmul.mubr.f32.gmra.mrb[0].mxu0 %v67
    %v624 = vpop.f32.mrb[0].mxu0
    %v625 = vadd.f32 %v472, %v624
    %v626 = vpop.f32.mrb[0].mxu0
    %627 = vdwg.mxu0
    %vm628 = vcmask 261120
    %v630 = vsel %vm628, %v543, 0
    %v633 = vsel %vm628, %v545, 0
    %635 = vmatprep.subr.mxu0 0.0
    %636 = vmatpush1.xpose.msra.mxu0 %v633
    %637 = vmatprep.subr.mxu0 0.0
    %638 = vmatpush1.xpose.msra.mxu0 0.0
    %639 = vmatprep.subr.mxu0 0.0
    %640 = vmatpush1.xpose.msra.mxu0 0.0
    %641 = vmatprep.subr.mxu0 0.0
    %642 = vmatpush1.xpose.msra.mxu0 0.0
    %643 = vmatprep.subr.mxu0 0.0
    %644 = vmatpush1.xpose.msra.mxu0 0.0
    %645 = vmatprep.subr.mxu0 0.0
    %646 = vmatpush1.xpose.msra.mxu0 0.0
    %647 = vmatprep.subr.mxu0 0.0
    %648 = vmatpush1.xpose.msra.mxu0 0.0
    %649 = vmatprep.subr.mxu0 0.0
    %650 = vmatpush1.xpose.msra.mxu0 0.0
    %651 = vmatprep.subr.mxu0 0.0
    %652 = vmatpush1.xpose.msra.mxu0 0.0
    %653 = vmatprep.subr.mxu0 0.0
    %654 = vmatpush1.xpose.msra.mxu0 0.0
    %655 = vmatprep.subr.mxu0 0.0
    %656 = vmatpush1.xpose.msra.mxu0 0.0
    %657 = vmatprep.subr.mxu0 0.0
    %658 = vmatpush1.xpose.msra.mxu0 0.0
    %659 = vmatprep.subr.mxu0 0.0
    %660 = vmatpush1.xpose.msra.mxu0 0.0
    %661 = vmatprep.subr.mxu0 0.0
    %662 = vmatpush1.xpose.msra.mxu0 0.0
    %663 = vmatprep.subr.mxu0 0.0
    %664 = vmatpush1.xpose.msra.mxu0 0.0
    %665 = vmatprep.subr.mxu0 0.0
    %666 = vmatpush1.xpose.msra.mxu0 0.0
    %667 = vmatprep.subr.mxu0 0.0
    %668 = vmatpush1.xpose.msra.mxu0 0.0
    %669 = vmatprep.subr.mxu0 0.0
    %670 = vmatpush1.xpose.msra.mxu0 0.0
    %671 = vmatprep.subr.mxu0 0.0
    %672 = vmatpush1.xpose.msra.mxu0 0.0
    %673 = vmatprep.subr.mxu0 0.0
    %674 = vmatpush1.xpose.msra.mxu0 0.0
    %675 = vmatprep.subr.mxu0 0.0
    %676 = vmatpush1.xpose.msra.mxu0 0.0
    %677 = vmatprep.subr.mxu0 0.0
    %678 = vmatpush1.xpose.msra.mxu0 0.0
    %679 = vmatprep.subr.mxu0 0.0
    %680 = vmatpush1.xpose.msra.mxu0 0.0
    %681 = vmatprep.subr.mxu0 0.0
    %682 = vmatpush1.xpose.msra.mxu0 0.0
    %683 = vmatprep.subr.mxu0 0.0
    %684 = vmatpush1.xpose.msra.mxu0 0.0
    %685 = vmatprep.subr.mxu0 0.0
    %686 = vmatpush1.xpose.msra.mxu0 0.0
    %687 = vmatprep.subr.mxu0 0.0
    %688 = vmatpush1.xpose.msra.mxu0 0.0
    %689 = vmatprep.subr.mxu0 0.0
    %690 = vmatpush1.xpose.msra.mxu0 0.0
    %691 = vmatprep.subr.mxu0 0.0
    %692 = vmatpush1.xpose.msra.mxu0 0.0
    %693 = vmatprep.subr.mxu0 0.0
    %694 = vmatpush1.xpose.msra.mxu0 0.0
    %695 = vmatprep.subr.mxu0 0.0
    %696 = vmatpush1.xpose.msra.mxu0 0.0
    %697 = vmatprep.subr.mxu0 0.0
    %698 = vmatpush1.xpose.msra.mxu0 0.0
    %699 = vmatprep.mubr.f32.mxu0 0.0
    %700 = vmatmul.mubr.f32.gmra.mrb[0].mxu0 %v630
    %v701 = vpop.f32.mrb[0].mxu0
    %v702 = vadd.f32 0.0, %v701
    %v703 = vpop.f32.mrb[0].mxu0
    %704 = vdwg.mxu0
    %vm705 = vcmask 64512
    %v706 = vsel %vm705, %v702, -inf
    %707 = vmax.xlane.f32.xlu0 %v706
    %v708 = vpop.xlane.xlu0 %707
    %v709 = vsub.f32 %v702, %v708
    %v710 = vmul.f32 %v709, 1.442695
    %v711 = vpow.pop %v710
    %v712 = vsel %vm705, %v711, 0.0
    %713 = vadd.xlane.f32.xlu0 %v712
    %v714 = vpop.xlane.xlu0 %713
    %v715 = vrcp.pop %v714
    %v716 = vmul.f32 %v711, %v715
    %v718 = vsel %vm705, %v716, 0
    %720 = vmatprep.subr.mxu0 0.0
    %721 = vmatpush1.msra.mxu0 %v620
    %722 = vmatprep.subr.mxu0 0.0
    %723 = vmatpush1.msra.mxu0 0.0
    %724 = vmatprep.subr.mxu0 0.0
    %725 = vmatpush1.msra.mxu0 0.0
    %726 = vmatprep.subr.mxu0 0.0
    %727 = vmatpush1.msra.mxu0 0.0
    %728 = vmatprep.subr.mxu0 0.0
    %729 = vmatpush1.msra.mxu0 0.0
    %730 = vmatprep.subr.mxu0 0.0
    %731 = vmatpush1.msra.mxu0 0.0
    %732 = vmatprep.subr.mxu0 0.0
    %733 = vmatpush1.msra.mxu0 0.0
    %734 = vmatprep.subr.mxu0 0.0
    %735 = vmatpush1.msra.mxu0 0.0
    %736 = vmatprep.subr.mxu0 0.0
    %737 = vmatpush1.msra.mxu0 0.0
    %738 = vmatprep.subr.mxu0 0.0
    %739 = vmatpush1.msra.mxu0 0.0
    %740 = vmatprep.subr.mxu0 0.0
    %741 = vmatpush1.msra.mxu0 0.0
    %742 = vmatprep.subr.mxu0 0.0
    %743 = vmatpush1.msra.mxu0 0.0
    %744 = vmatprep.subr.mxu0 0.0
    %745 = vmatpush1.msra.mxu0 0.0
    %746 = vmatprep.subr.mxu0 0.0
    %747 = vmatpush1.msra.mxu0 0.0
    %748 = vmatprep.subr.mxu0 0.0
    %749 = vmatpush1.msra.mxu0 0.0
    %750 = vmatprep.subr.mxu0 0.0
    %751 = vmatpush1.msra.mxu0 0.0
    %752 = vmatprep.subr.mxu0 0.0
    %753 = vmatpush1.msra.mxu0 0.0
    %754 = vmatprep.subr.mxu0 0.0
    %755 = vmatpush1.msra.mxu0 0.0
    %756 = vmatprep.subr.mxu0 0.0
    %757 = vmatpush1.msra.mxu0 0.0
    %758 = vmatprep.subr.mxu0 0.0
    %759 = vmatpush1.msra.mxu0 0.0
    %760 = vmatprep.subr.mxu0 0.0
    %761 = vmatpush1.msra.mxu0 0.0
    %762 = vmatprep.subr.mxu0 0.0
    %763 = vmatpush1.msra.mxu0 0.0
    %764 = vmatprep.subr.mxu0 0.0
    %765 = vmatpush1.msra.mxu0 0.0
    %766 = vmatprep.subr.mxu0 0.0
    %767 = vmatpush1.msra.mxu0 0.0
    %768 = vmatprep.subr.mxu0 0.0
    %769 = vmatpush1.msra.mxu0 0.0
    %770 = vmatprep.subr.mxu0 0.0
    %771 = vmatpush1.msra.mxu0 0.0
    %772 = vmatprep.subr.mxu0 0.0
    %773 = vmatpush1.msra.mxu0 0.0
    %774 = vmatprep.subr.mxu0 0.0
    %775 = vmatpush1.msra.mxu0 0.0
    %776 = vmatprep.subr.mxu0 0.0
    %777 = vmatpush1.msra.mxu0 0.0
    %778 = vmatprep.subr.mxu0 0.0
    %779 = vmatpush1.msra.mxu0 0.0
    %780 = vmatprep.subr.mxu0 0.0
    %781 = vmatpush1.msra.mxu0 0.0
    %782 = vmatprep.subr.mxu0 0.0
    %783 = vmatpush1.msra.mxu0 0.0
    %784 = vmatprep.mubr.f32.mxu0 0.0
    %785 = vmatmul.mubr.f32.gmra.mrb[0].mxu0 %v718
    %v786 = vpop.f32.mrb[0].mxu0
    %v787 = vadd.f32 0.0, %v786
    %v788 = vpop.f32.mrb[0].mxu0
    %789 = vdwg.mxu0
    %790 = vrot.lane.b32.xlu0 %v543, 96
    %v791 = vpop.permute.xlu0 %790
    %792 = vrot.lane.b32.xlu0 %v545, 96
    %v793 = vpop.permute.xlu0 %792
    %v794 = vsel %vm628, %v791, 0
    %v796 = vsel %vm628, %v793, 0
    %798 = vmatprep.subr.mxu0 0.0
    %799 = vmatpush1.xpose.msra.mxu0 %v796
    %800 = vmatprep.subr.mxu0 0.0
    %801 = vmatpush1.xpose.msra.mxu0 0.0
    %802 = vmatprep.subr.mxu0 0.0
    %803 = vmatpush1.xpose.msra.mxu0 0.0
    %804 = vmatprep.subr.mxu0 0.0
    %805 = vmatpush1.xpose.msra.mxu0 0.0
    %806 = vmatprep.subr.mxu0 0.0
    %807 = vmatpush1.xpose.msra.mxu0 0.0
    %808 = vmatprep.subr.mxu0 0.0
    %809 = vmatpush1.xpose.msra.mxu0 0.0
    %810 = vmatprep.subr.mxu0 0.0
    %811 = vmatpush1.xpose.msra.mxu0 0.0
    %812 = vmatprep.subr.mxu0 0.0
    %813 = vmatpush1.xpose.msra.mxu0 0.0
    %814 = vmatprep.subr.mxu0 0.0
    %815 = vmatpush1.xpose.msra.mxu0 0.0
    %816 = vmatprep.subr.mxu0 0.0
    %817 = vmatpush1.xpose.msra.mxu0 0.0
    %818 = vmatprep.subr.mxu0 0.0
    %819 = vmatpush1.xpose.msra.mxu0 0.0
    %820 = vmatprep.subr.mxu0 0.0
    %821 = vmatpush1.xpose.msra.mxu0 0.0
    %822 = vmatprep.subr.mxu0 0.0
    %823 = vmatpush1.xpose.msra.mxu0 0.0
    %824 = vmatprep.subr.mxu0 0.0
    %825 = vmatpush1.xpose.msra.mxu0 0.0
    %826 = vmatprep.subr.mxu0 0.0
    %827 = vmatpush1.xpose.msra.mxu0 0.0
    %828 = vmatprep.subr.mxu0 0.0
    %829 = vmatpush1.xpose.msra.mxu0 0.0
    %830 = vmatprep.subr.mxu0 0.0
    %831 = vmatpush1.xpose.msra.mxu0 0.0
    %832 = vmatprep.subr.mxu0 0.0
    %833 = vmatpush1.xpose.msra.mxu0 0.0
    %834 = vmatprep.subr.mxu0 0.0
    %835 = vmatpush1.xpose.msra.mxu0 0.0
    %836 = vmatprep.subr.mxu0 0.0
    %837 = vmatpush1.xpose.msra.mxu0 0.0
    %838 = vmatprep.subr.mxu0 0.0
    %839 = vmatpush1.xpose.msra.mxu0 0.0
    %840 = vmatprep.subr.mxu0 0.0
    %841 = vmatpush1.xpose.msra.mxu0 0.0
    %842 = vmatprep.subr.mxu0 0.0
    %843 = vmatpush1.xpose.msra.mxu0 0.0
    %844 = vmatprep.subr.mxu0 0.0
    %845 = vmatpush1.xpose.msra.mxu0 0.0
    %846 = vmatprep.subr.mxu0 0.0
    %847 = vmatpush1.xpose.msra.mxu0 0.0
    %848 = vmatprep.subr.mxu0 0.0
    %849 = vmatpush1.xpose.msra.mxu0 0.0
    %850 = vmatprep.subr.mxu0 0.0
    %851 = vmatpush1.xpose.msra.mxu0 0.0
    %852 = vmatprep.subr.mxu0 0.0
    %853 = vmatpush1.xpose.msra.mxu0 0.0
    %854 = vmatprep.subr.mxu0 0.0
    %855 = vmatpush1.xpose.msra.mxu0 0.0
    %856 = vmatprep.subr.mxu0 0.0
    %857 = vmatpush1.xpose.msra.mxu0 0.0
    %858 = vmatprep.subr.mxu0 0.0
    %859 = vmatpush1.xpose.msra.mxu0 0.0
    %860 = vmatprep.subr.mxu0 0.0
    %861 = vmatpush1.xpose.msra.mxu0 0.0
    %862 = vmatprep.mubr.f32.mxu0 0.0
    %863 = vmatmul.mubr.f32.gmra.mrb[0].mxu0 %v794
    %v864 = vpop.f32.mrb[0].mxu0
    %v865 = vadd.f32 0.0, %v864
    %v866 = vpop.f32.mrb[0].mxu0
    %867 = vdwg.mxu0
    %v868 = vsel %vm705, %v865, -inf
    %869 = vmax.xlane.f32.xlu0 %v868
    %v870 = vpop.xlane.xlu0 %869
    %v871 = vsub.f32 %v865, %v870
    %v872 = vmul.f32 %v871, 1.442695
    %v873 = vpow.pop %v872
    %v874 = vsel %vm705, %v873, 0.0
    %875 = vadd.xlane.f32.xlu0 %v874
    %v876 = vpop.xlane.xlu0 %875
    %v877 = vrcp.pop %v876
    %v878 = vmul.f32 %v873, %v877
    %880 = vrot.lane.b32.xlu0 %v620, 96
    %v881 = vpop.permute.xlu0 %880
    %v884 = vsel %vm705, %v878, 0
    %886 = vmatprep.subr.mxu0 0.0
    %887 = vmatpush1.msra.mxu0 %v881
    %888 = vmatprep.subr.mxu0 0.0
    %889 = vmatpush1.msra.mxu0 0.0
    %890 = vmatprep.subr.mxu0 0.0
    %891 = vmatpush1.msra.mxu0 0.0
    %892 = vmatprep.subr.mxu0 0.0
    %893 = vmatpush1.msra.mxu0 0.0
    %894 = vmatprep.subr.mxu0 0.0
    %895 = vmatpush1.msra.mxu0 0.0
    %896 = vmatprep.subr.mxu0 0.0
    %897 = vmatpush1.msra.mxu0 0.0
    %898 = vmatprep.subr.mxu0 0.0
    %899 = vmatpush1.msra.mxu0 0.0
    %900 = vmatprep.subr.mxu0 0.0
    %901 = vmatpush1.msra.mxu0 0.0
    %902 = vmatprep.subr.mxu0 0.0
    %903 = vmatpush1.msra.mxu0 0.0
    %904 = vmatprep.subr.mxu0 0.0
    %905 = vmatpush1.msra.mxu0 0.0
    %906 = vmatprep.subr.mxu0 0.0
    %907 = vmatpush1.msra.mxu0 0.0
    %908 = vmatprep.subr.mxu0 0.0
    %909 = vmatpush1.msra.mxu0 0.0
    %910 = vmatprep.subr.mxu0 0.0
    %911 = vmatpush1.msra.mxu0 0.0
    %912 = vmatprep.subr.mxu0 0.0
    %913 = vmatpush1.msra.mxu0 0.0
    %914 = vmatprep.subr.mxu0 0.0
    %915 = vmatpush1.msra.mxu0 0.0
    %916 = vmatprep.subr.mxu0 0.0
    %917 = vmatpush1.msra.mxu0 0.0
    %918 = vmatprep.subr.mxu0 0.0
    %919 = vmatpush1.msra.mxu0 0.0
    %920 = vmatprep.subr.mxu0 0.0
    %921 = vmatpush1.msra.mxu0 0.0
    %922 = vmatprep.subr.mxu0 0.0
    %923 = vmatpush1.msra.mxu0 0.0
    %924 = vmatprep.subr.mxu0 0.0
    %925 = vmatpush1.msra.mxu0 0.0
    %926 = vmatprep.subr.mxu0 0.0
    %927 = vmatpush1.msra.mxu0 0.0
    %928 = vmatprep.subr.mxu0 0.0
    %929 = vmatpush1.msra.mxu0 0.0
    %930 = vmatprep.subr.mxu0 0.0
    %931 = vmatpush1.msra.mxu0 0.0
    %932 = vmatprep.subr.mxu0 0.0
    %933 = vmatpush1.msra.mxu0 0.0
    %934 = vmatprep.subr.mxu0 0.0
    %935 = vmatpush1.msra.mxu0 0.0
    %936 = vmatprep.subr.mxu0 0.0
    %937 = vmatpush1.msra.mxu0 0.0
    %938 = vmatprep.subr.mxu0 0.0
    %939 = vmatpush1.msra.mxu0 0.0
    %940 = vmatprep.subr.mxu0 0.0
    %941 = vmatpush1.msra.mxu0 0.0
    %942 = vmatprep.subr.mxu0 0.0
    %943 = vmatpush1.msra.mxu0 0.0
    %944 = vmatprep.subr.mxu0 0.0
    %945 = vmatpush1.msra.mxu0 0.0
    %946 = vmatprep.subr.mxu0 0.0
    %947 = vmatpush1.msra.mxu0 0.0
    %948 = vmatprep.subr.mxu0 0.0
    %949 = vmatpush1.msra.mxu0 0.0
    %950 = vmatprep.mubr.f32.mxu0 0.0
    %951 = vmatmul.mubr.f32.gmra.mrb[0].mxu0 %v884
    %v952 = vpop.f32.mrb[0].mxu0
    %v953 = vadd.f32 0.0, %v952
    %v954 = vpop.f32.mrb[0].mxu0
    %955 = vdwg.mxu0
    %956 = vrot.lane.b32.xlu0 %v543, 64
    %v957 = vpop.permute.xlu0 %956
    %958 = vrot.lane.b32.xlu0 %v545, 64
    %v959 = vpop.permute.xlu0 %958
    %v960 = vsel %vm628, %v957, 0
    %v962 = vsel %vm628, %v959, 0
    %964 = vmatprep.subr.mxu0 0.0
    %965 = vmatpush1.xpose.msra.mxu0 %v962
    %966 = vmatprep.subr.mxu0 0.0
    %967 = vmatpush1.xpose.msra.mxu0 0.0
    %968 = vmatprep.subr.mxu0 0.0
    %969 = vmatpush1.xpose.msra.mxu0 0.0
    %970 = vmatprep.subr.mxu0 0.0
    %971 = vmatpush1.xpose.msra.mxu0 0.0
    %972 = vmatprep.subr.mxu0 0.0
    %973 = vmatpush1.xpose.msra.mxu0 0.0
    %974 = vmatprep.subr.mxu0 0.0
    %975 = vmatpush1.xpose.msra.mxu0 0.0
    %976 = vmatprep.subr.mxu0 0.0
    %977 = vmatpush1.xpose.msra.mxu0 0.0
    %978 = vmatprep.subr.mxu0 0.0
    %979 = vmatpush1.xpose.msra.mxu0 0.0
    %980 = vmatprep.subr.mxu0 0.0
    %981 = vmatpush1.xpose.msra.mxu0 0.0
    %982 = vmatprep.subr.mxu0 0.0
    %983 = vmatpush1.xpose.msra.mxu0 0.0
    %984 = vmatprep.subr.mxu0 0.0
    %985 = vmatpush1.xpose.msra.mxu0 0.0
    %986 = vmatprep.subr.mxu0 0.0
    %987 = vmatpush1.xpose.msra.mxu0 0.0
    %988 = vmatprep.subr.mxu0 0.0
    %989 = vmatpush1.xpose.msra.mxu0 0.0
    %990 = vmatprep.subr.mxu0 0.0
    %991 = vmatpush1.xpose.msra.mxu0 0.0
    %992 = vmatprep.subr.mxu0 0.0
    %993 = vmatpush1.xpose.msra.mxu0 0.0
    %994 = vmatprep.subr.mxu0 0.0
    %995 = vmatpush1.xpose.msra.mxu0 0.0
    %996 = vmatprep.subr.mxu0 0.0
    %997 = vmatpush1.xpose.msra.mxu0 0.0
    %998 = vmatprep.subr.mxu0 0.0
    %999 = vmatpush1.xpose.msra.mxu0 0.0
    %1000 = vmatprep.subr.mxu0 0.0
    %1001 = vmatpush1.xpose.msra.mxu0 0.0
    %1002 = vmatprep.subr.mxu0 0.0
    %1003 = vmatpush1.xpose.msra.mxu0 0.0
    %1004 = vmatprep.subr.mxu0 0.0
    %1005 = vmatpush1.xpose.msra.mxu0 0.0
    %1006 = vmatprep.subr.mxu0 0.0
    %1007 = vmatpush1.xpose.msra.mxu0 0.0
    %1008 = vmatprep.subr.mxu0 0.0
    %1009 = vmatpush1.xpose.msra.mxu0 0.0
    %1010 = vmatprep.subr.mxu0 0.0
    %1011 = vmatpush1.xpose.msra.mxu0 0.0
    %1012 = vmatprep.subr.mxu0 0.0
    %1013 = vmatpush1.xpose.msra.mxu0 0.0
    %1014 = vmatprep.subr.mxu0 0.0
    %1015 = vmatpush1.xpose.msra.mxu0 0.0
    %1016 = vmatprep.subr.mxu0 0.0
    %1017 = vmatpush1.xpose.msra.mxu0 0.0
    %1018 = vmatprep.subr.mxu0 0.0
    %1019 = vmatpush1.xpose.msra.mxu0 0.0
    %1020 = vmatprep.subr.mxu0 0.0
    %1021 = vmatpush1.xpose.msra.mxu0 0.0
    %1022 = vmatprep.subr.mxu0 0.0
    %1023 = vmatpush1.xpose.msra.mxu0 0.0
    %1024 = vmatprep.subr.mxu0 0.0
    %1025 = vmatpush1.xpose.msra.mxu0 0.0
    %1026 = vmatprep.subr.mxu0 0.0
    %1027 = vmatpush1.xpose.msra.mxu0 0.0
    %1028 = vmatprep.mubr.f32.mxu0 0.0
    %1029 = vmatmul.mubr.f32.gmra.mrb[0].mxu0 %v960
    %v1030 = vpop.f32.mrb[0].mxu0
    %v1031 = vadd.f32 0.0, %v1030
    %v1032 = vpop.f32.mrb[0].mxu0
    %1033 = vdwg.mxu0
    %v1034 = vsel %vm705, %v1031, -inf
    %1035 = vmax.xlane.f32.xlu0 %v1034
    %v1036 = vpop.xlane.xlu0 %1035
    %v1037 = vsub.f32 %v1031, %v1036
    %v1038 = vmul.f32 %v1037, 1.442695
    %v1039 = vpow.pop %v1038
    %v1040 = vsel %vm705, %v1039, 0.0
    %1041 = vadd.xlane.f32.xlu0 %v1040
    %v1042 = vpop.xlane.xlu0 %1041
    %v1043 = vrcp.pop %v1042
    %v1044 = vmul.f32 %v1039, %v1043
    %1045 = vrot.lane.b32.xlu0 %v620, 64
    %v1046 = vpop.permute.xlu0 %1045
    %v1049 = vsel %vm705, %v1044, 0
    %1051 = vmatprep.subr.mxu0 0.0
    %1052 = vmatpush1.msra.mxu0 %v1046
    %1053 = vmatprep.subr.mxu0 0.0
    %1054 = vmatpush1.msra.mxu0 0.0
    %1055 = vmatprep.subr.mxu0 0.0
    %1056 = vmatpush1.msra.mxu0 0.0
    %1057 = vmatprep.subr.mxu0 0.0
    %1058 = vmatpush1.msra.mxu0 0.0
    %1059 = vmatprep.subr.mxu0 0.0
    %1060 = vmatpush1.msra.mxu0 0.0
    %1061 = vmatprep.subr.mxu0 0.0
    %1062 = vmatpush1.msra.mxu0 0.0
    %1063 = vmatprep.subr.mxu0 0.0
    %1064 = vmatpush1.msra.mxu0 0.0
    %1065 = vmatprep.subr.mxu0 0.0
    %1066 = vmatpush1.msra.mxu0 0.0
    %1067 = vmatprep.subr.mxu0 0.0
    %1068 = vmatpush1.msra.mxu0 0.0
    %1069 = vmatprep.subr.mxu0 0.0
    %1070 = vmatpush1.msra.mxu0 0.0
    %1071 = vmatprep.subr.mxu0 0.0
    %1072 = vmatpush1.msra.mxu0 0.0
    %1073 = vmatprep.subr.mxu0 0.0
    %1074 = vmatpush1.msra.mxu0 0.0
    %1075 = vmatprep.subr.mxu0 0.0
    %1076 = vmatpush1.msra.mxu0 0.0
    %1077 = vmatprep.subr.mxu0 0.0
    %1078 = vmatpush1.msra.mxu0 0.0
    %1079 = vmatprep.subr.mxu0 0.0
    %1080 = vmatpush1.msra.mxu0 0.0
    %1081 = vmatprep.subr.mxu0 0.0
    %1082 = vmatpush1.msra.mxu0 0.0
    %1083 = vmatprep.subr.mxu0 0.0
    %1084 = vmatpush1.msra.mxu0 0.0
    %1085 = vmatprep.subr.mxu0 0.0
    %1086 = vmatpush1.msra.mxu0 0.0
    %1087 = vmatprep.subr.mxu0 0.0
    %1088 = vmatpush1.msra.mxu0 0.0
    %1089 = vmatprep.subr.mxu0 0.0
    %1090 = vmatpush1.msra.mxu0 0.0
    %1091 = vmatprep.subr.mxu0 0.0
    %1092 = vmatpush1.msra.mxu0 0.0
    %1093 = vmatprep.subr.mxu0 0.0
    %1094 = vmatpush1.msra.mxu0 0.0
    %1095 = vmatprep.subr.mxu0 0.0
    %1096 = vmatpush1.msra.mxu0 0.0
    %1097 = vmatprep.subr.mxu0 0.0
    %1098 = vmatpush1.msra.mxu0 0.0
    %1099 = vmatprep.subr.mxu0 0.0
    %1100 = vmatpush1.msra.mxu0 0.0
    %1101 = vmatprep.subr.mxu0 0.0
    %1102 = vmatpush1.msra.mxu0 0.0
    %1103 = vmatprep.subr.mxu0 0.0
    %1104 = vmatpush1.msra.mxu0 0.0
    %1105 = vmatprep.subr.mxu0 0.0
    %1106 = vmatpush1.msra.mxu0 0.0
    %1107 = vmatprep.subr.mxu0 0.0
    %1108 = vmatpush1.msra.mxu0 0.0
    %1109 = vmatprep.subr.mxu0 0.0
    %1110 = vmatpush1.msra.mxu0 0.0
    %1111 = vmatprep.subr.mxu0 0.0
    %1112 = vmatpush1.msra.mxu0 0.0
    %1113 = vmatprep.subr.mxu0 0.0
    %1114 = vmatpush1.msra.mxu0 0.0
    %1115 = vmatprep.mubr.f32.mxu0 0.0
    %1116 = vmatmul.mubr.f32.gmra.mrb[0].mxu0 %v1049
    %v1117 = vpop.f32.mrb[0].mxu0
    %v1118 = vadd.f32 0.0, %v1117
    %v1119 = vpop.f32.mrb[0].mxu0
    %1120 = vdwg.mxu0
    %1121 = vrot.lane.b32.xlu0 %v543, 32
    %v1122 = vpop.permute.xlu0 %1121
    %1123 = vrot.lane.b32.xlu0 %v545, 32
    %v1124 = vpop.permute.xlu0 %1123
    %v1125 = vsel %vm628, %v1122, 0
    %v1127 = vsel %vm628, %v1124, 0
    %1129 = vmatprep.subr.mxu0 0.0
    %1130 = vmatpush1.xpose.msra.mxu0 %v1127
    %1131 = vmatprep.subr.mxu0 0.0
    %1132 = vmatpush1.xpose.msra.mxu0 0.0
    %1133 = vmatprep.subr.mxu0 0.0
    %1134 = vmatpush1.xpose.msra.mxu0 0.0
    %1135 = vmatprep.subr.mxu0 0.0
    %1136 = vmatpush1.xpose.msra.mxu0 0.0
    %1137 = vmatprep.subr.mxu0 0.0
    %1138 = vmatpush1.xpose.msra.mxu0 0.0
    %1139 = vmatprep.subr.mxu0 0.0
    %1140 = vmatpush1.xpose.msra.mxu0 0.0
    %1141 = vmatprep.subr.mxu0 0.0
    %1142 = vmatpush1.xpose.msra.mxu0 0.0
    %1143 = vmatprep.subr.mxu0 0.0
    %1144 = vmatpush1.xpose.msra.mxu0 0.0
    %1145 = vmatprep.subr.mxu0 0.0
    %1146 = vmatpush1.xpose.msra.mxu0 0.0
    %1147 = vmatprep.subr.mxu0 0.0
    %1148 = vmatpush1.xpose.msra.mxu0 0.0
    %1149 = vmatprep.subr.mxu0 0.0
    %1150 = vmatpush1.xpose.msra.mxu0 0.0
    %1151 = vmatprep.subr.mxu0 0.0
    %1152 = vmatpush1.xpose.msra.mxu0 0.0
    %1153 = vmatprep.subr.mxu0 0.0
    %1154 = vmatpush1.xpose.msra.mxu0 0.0
    %1155 = vmatprep.subr.mxu0 0.0
    %1156 = vmatpush1.xpose.msra.mxu0 0.0
    %1157 = vmatprep.subr.mxu0 0.0
    %1158 = vmatpush1.xpose.msra.mxu0 0.0
    %1159 = vmatprep.subr.mxu0 0.0
    %1160 = vmatpush1.xpose.msra.mxu0 0.0
    %1161 = vmatprep.subr.mxu0 0.0
    %1162 = vmatpush1.xpose.msra.mxu0 0.0
    %1163 = vmatprep.subr.mxu0 0.0
    %1164 = vmatpush1.xpose.msra.mxu0 0.0
    %1165 = vmatprep.subr.mxu0 0.0
    %1166 = vmatpush1.xpose.msra.mxu0 0.0
    %1167 = vmatprep.subr.mxu0 0.0
    %1168 = vmatpush1.xpose.msra.mxu0 0.0
    %1169 = vmatprep.subr.mxu0 0.0
    %1170 = vmatpush1.xpose.msra.mxu0 0.0
    %1171 = vmatprep.subr.mxu0 0.0
    %1172 = vmatpush1.xpose.msra.mxu0 0.0
    %1173 = vmatprep.subr.mxu0 0.0
    %1174 = vmatpush1.xpose.msra.mxu0 0.0
    %1175 = vmatprep.subr.mxu0 0.0
    %1176 = vmatpush1.xpose.msra.mxu0 0.0
    %1177 = vmatprep.subr.mxu0 0.0
    %1178 = vmatpush1.xpose.msra.mxu0 0.0
    %1179 = vmatprep.subr.mxu0 0.0
    %1180 = vmatpush1.xpose.msra.mxu0 0.0
    %1181 = vmatprep.subr.mxu0 0.0
    %1182 = vmatpush1.xpose.msra.mxu0 0.0
    %1183 = vmatprep.subr.mxu0 0.0
    %1184 = vmatpush1.xpose.msra.mxu0 0.0
    %1185 = vmatprep.subr.mxu0 0.0
    %1186 = vmatpush1.xpose.msra.mxu0 0.0
    %1187 = vmatprep.subr.mxu0 0.0
    %1188 = vmatpush1.xpose.msra.mxu0 0.0
    %1189 = vmatprep.subr.mxu0 0.0
    %1190 = vmatpush1.xpose.msra.mxu0 0.0
    %1191 = vmatprep.subr.mxu0 0.0
    %1192 = vmatpush1.xpose.msra.mxu0 0.0
    %1193 = vmatprep.mubr.f32.mxu0 0.0
    %1194 = vmatmul.mubr.f32.gmra.mrb[0].mxu0 %v1125
    %v1195 = vpop.f32.mrb[0].mxu0
    %v1196 = vadd.f32 0.0, %v1195
    %v1197 = vpop.f32.mrb[0].mxu0
    %1198 = vdwg.mxu0
    %v1199 = vsel %vm705, %v1196, -inf
    %1200 = vmax.xlane.f32.xlu0 %v1199
    %v1201 = vpop.xlane.xlu0 %1200
    %v1202 = vsub.f32 %v1196, %v1201
    %v1203 = vmul.f32 %v1202, 1.442695
    %v1204 = vpow.pop %v1203
    %v1205 = vsel %vm705, %v1204, 0.0
    %1206 = vadd.xlane.f32.xlu0 %v1205
    %v1207 = vpop.xlane.xlu0 %1206
    %v1208 = vrcp.pop %v1207
    %v1209 = vmul.f32 %v1204, %v1208
    %1210 = vrot.lane.b32.xlu0 %v620, 32
    %v1211 = vpop.permute.xlu0 %1210
    %v1214 = vsel %vm705, %v1209, 0
    %1216 = vmatprep.subr.mxu0 0.0
    %1217 = vmatpush1.msra.mxu0 %v1211
    %1218 = vmatprep.subr.mxu0 0.0
    %1219 = vmatpush1.msra.mxu0 0.0
    %1220 = vmatprep.subr.mxu0 0.0
    %1221 = vmatpush1.msra.mxu0 0.0
    %1222 = vmatprep.subr.mxu0 0.0
    %1223 = vmatpush1.msra.mxu0 0.0
    %1224 = vmatprep.subr.mxu0 0.0
    %1225 = vmatpush1.msra.mxu0 0.0
    %1226 = vmatprep.subr.mxu0 0.0
    %1227 = vmatpush1.msra.mxu0 0.0
    %1228 = vmatprep.subr.mxu0 0.0
    %1229 = vmatpush1.msra.mxu0 0.0
    %1230 = vmatprep.subr.mxu0 0.0
    %1231 = vmatpush1.msra.mxu0 0.0
    %1232 = vmatprep.subr.mxu0 0.0
    %1233 = vmatpush1.msra.mxu0 0.0
    %1234 = vmatprep.subr.mxu0 0.0
    %1235 = vmatpush1.msra.mxu0 0.0
    %1236 = vmatprep.subr.mxu0 0.0
    %1237 = vmatpush1.msra.mxu0 0.0
    %1238 = vmatprep.subr.mxu0 0.0
    %1239 = vmatpush1.msra.mxu0 0.0
    %1240 = vmatprep.subr.mxu0 0.0
    %1241 = vmatpush1.msra.mxu0 0.0
    %1242 = vmatprep.subr.mxu0 0.0
    %1243 = vmatpush1.msra.mxu0 0.0
    %1244 = vmatprep.subr.mxu0 0.0
    %1245 = vmatpush1.msra.mxu0 0.0
    %1246 = vmatprep.subr.mxu0 0.0
    %1247 = vmatpush1.msra.mxu0 0.0
    %1248 = vmatprep.subr.mxu0 0.0
    %1249 = vmatpush1.msra.mxu0 0.0
    %1250 = vmatprep.subr.mxu0 0.0
    %1251 = vmatpush1.msra.mxu0 0.0
    %1252 = vmatprep.subr.mxu0 0.0
    %1253 = vmatpush1.msra.mxu0 0.0
    %1254 = vmatprep.subr.mxu0 0.0
    %1255 = vmatpush1.msra.mxu0 0.0
    %1256 = vmatprep.subr.mxu0 0.0
    %1257 = vmatpush1.msra.mxu0 0.0
    %1258 = vmatprep.subr.mxu0 0.0
    %1259 = vmatpush1.msra.mxu0 0.0
    %1260 = vmatprep.subr.mxu0 0.0
    %1261 = vmatpush1.msra.mxu0 0.0
    %1262 = vmatprep.subr.mxu0 0.0
    %1263 = vmatpush1.msra.mxu0 0.0
    %1264 = vmatprep.subr.mxu0 0.0
    %1265 = vmatpush1.msra.mxu0 0.0
    %1266 = vmatprep.subr.mxu0 0.0
    %1267 = vmatpush1.msra.mxu0 0.0
    %1268 = vmatprep.subr.mxu0 0.0
    %1269 = vmatpush1.msra.mxu0 0.0
    %1270 = vmatprep.subr.mxu0 0.0
    %1271 = vmatpush1.msra.mxu0 0.0
    %1272 = vmatprep.subr.mxu0 0.0
    %1273 = vmatpush1.msra.mxu0 0.0
    %1274 = vmatprep.subr.mxu0 0.0
    %1275 = vmatpush1.msra.mxu0 0.0
    %1276 = vmatprep.subr.mxu0 0.0
    %1277 = vmatpush1.msra.mxu0 0.0
    %1278 = vmatprep.subr.mxu0 0.0
    %1279 = vmatpush1.msra.mxu0 0.0
    %1280 = vmatprep.mubr.f32.mxu0 0.0
    %1281 = vmatmul.mubr.f32.gmra.mrb[0].mxu0 %v1214
    %v1282 = vpop.f32.mrb[0].mxu0
    %v1283 = vadd.f32 0.0, %v1282
    %v1284 = vpop.f32.mrb[0].mxu0
    %1285 = vdwg.mxu0
    %1287 = vrot.lane.b32.xlu0 %v953, 32
    %v1288 = vpop.permute.xlu0 %1287
    %1291 = vrot.lane.b32.xlu0 %v1118, 64
    %v1292 = vpop.permute.xlu0 %1291
    %1295 = vrot.lane.b32.xlu0 %v1283, 96
    %v1296 = vpop.permute.xlu0 %1295
    %v1298 = vsel %vm628, %v787, %v1288
    %vm1299 = vcmask 523264
    %v1300 = vsel %vm1299, %v1298, %v1292
    %vm1301 = vcmask 785408
    %v1302 = vsel %vm1301, %v1300, %v1296
    %1303 = vst [vmem:[#allocation4] sm:$0xff] %v1302
    %v1305 = vsel %vm628, %v549, 0
    %v1308 = vsel %vm628, %v551, 0
    %1310 = vmatprep.subr.mxu0 0.0
    %1311 = vmatpush1.xpose.msra.mxu0 %v1308
    %1312 = vmatprep.subr.mxu0 0.0
    %1313 = vmatpush1.xpose.msra.mxu0 0.0
    %1314 = vmatprep.subr.mxu0 0.0
    %1315 = vmatpush1.xpose.msra.mxu0 0.0
    %1316 = vmatprep.subr.mxu0 0.0
    %1317 = vmatpush1.xpose.msra.mxu0 0.0
    %1318 = vmatprep.subr.mxu0 0.0
    %1319 = vmatpush1.xpose.msra.mxu0 0.0
    %1320 = vmatprep.subr.mxu0 0.0
    %1321 = vmatpush1.xpose.msra.mxu0 0.0
    %1322 = vmatprep.subr.mxu0 0.0
    %1323 = vmatpush1.xpose.msra.mxu0 0.0
    %1324 = vmatprep.subr.mxu0 0.0
    %1325 = vmatpush1.xpose.msra.mxu0 0.0
    %1326 = vmatprep.subr.mxu0 0.0
    %1327 = vmatpush1.xpose.msra.mxu0 0.0
    %1328 = vmatprep.subr.mxu0 0.0
    %1329 = vmatpush1.xpose.msra.mxu0 0.0
    %1330 = vmatprep.subr.mxu0 0.0
    %1331 = vmatpush1.xpose.msra.mxu0 0.0
    %1332 = vmatprep.subr.mxu0 0.0
    %1333 = vmatpush1.xpose.msra.mxu0 0.0
    %1334 = vmatprep.subr.mxu0 0.0
    %1335 = vmatpush1.xpose.msra.mxu0 0.0
    %1336 = vmatprep.subr.mxu0 0.0
    %1337 = vmatpush1.xpose.msra.mxu0 0.0
    %1338 = vmatprep.subr.mxu0 0.0
    %1339 = vmatpush1.xpose.msra.mxu0 0.0
    %1340 = vmatprep.subr.mxu0 0.0
    %1341 = vmatpush1.xpose.msra.mxu0 0.0
    %1342 = vmatprep.subr.mxu0 0.0
    %1343 = vmatpush1.xpose.msra.mxu0 0.0
    %1344 = vmatprep.subr.mxu0 0.0
    %1345 = vmatpush1.xpose.msra.mxu0 0.0
    %1346 = vmatprep.subr.mxu0 0.0
    %1347 = vmatpush1.xpose.msra.mxu0 0.0
    %1348 = vmatprep.subr.mxu0 0.0
    %1349 = vmatpush1.xpose.msra.mxu0 0.0
    %1350 = vmatprep.subr.mxu0 0.0
    %1351 = vmatpush1.xpose.msra.mxu0 0.0
    %1352 = vmatprep.subr.mxu0 0.0
    %1353 = vmatpush1.xpose.msra.mxu0 0.0
    %1354 = vmatprep.subr.mxu0 0.0
    %1355 = vmatpush1.xpose.msra.mxu0 0.0
    %1356 = vmatprep.subr.mxu0 0.0
    %1357 = vmatpush1.xpose.msra.mxu0 0.0
    %1358 = vmatprep.subr.mxu0 0.0
    %1359 = vmatpush1.xpose.msra.mxu0 0.0
    %1360 = vmatprep.subr.mxu0 0.0
    %1361 = vmatpush1.xpose.msra.mxu0 0.0
    %1362 = vmatprep.subr.mxu0 0.0
    %1363 = vmatpush1.xpose.msra.mxu0 0.0
    %1364 = vmatprep.subr.mxu0 0.0
    %1365 = vmatpush1.xpose.msra.mxu0 0.0
    %1366 = vmatprep.subr.mxu0 0.0
    %1367 = vmatpush1.xpose.msra.mxu0 0.0
    %1368 = vmatprep.subr.mxu0 0.0
    %1369 = vmatpush1.xpose.msra.mxu0 0.0
    %1370 = vmatprep.subr.mxu0 0.0
    %1371 = vmatpush1.xpose.msra.mxu0 0.0
    %1372 = vmatprep.subr.mxu0 0.0
    %1373 = vmatpush1.xpose.msra.mxu0 0.0
    %1374 = vmatprep.mubr.f32.mxu0 0.0
    %1375 = vmatmul.mubr.f32.gmra.mrb[0].mxu0 %v1305
    %v1376 = vpop.f32.mrb[0].mxu0
    %v1377 = vadd.f32 0.0, %v1376
    %v1378 = vpop.f32.mrb[0].mxu0
    %1379 = vdwg.mxu0
    %v1380 = vsel %vm705, %v1377, -inf
    %1381 = vmax.xlane.f32.xlu0 %v1380
    %v1382 = vpop.xlane.xlu0 %1381
    %v1383 = vsub.f32 %v1377, %v1382
    %v1384 = vmul.f32 %v1383, 1.442695
    %v1385 = vpow.pop %v1384
    %v1386 = vsel %vm705, %v1385, 0.0
    %1387 = vadd.xlane.f32.xlu0 %v1386
    %v1388 = vpop.xlane.xlu0 %1387
    %v1389 = vrcp.pop %v1388
    %v1390 = vmul.f32 %v1385, %v1389
    %v1392 = vsel %vm705, %v1390, 0
    %1394 = vmatprep.subr.mxu0 0.0
    %1395 = vmatpush1.msra.mxu0 %v625
    %1396 = vmatprep.subr.mxu0 0.0
    %1397 = vmatpush1.msra.mxu0 0.0
    %1398 = vmatprep.subr.mxu0 0.0
    %1399 = vmatpush1.msra.mxu0 0.0
    %1400 = vmatprep.subr.mxu0 0.0
    %1401 = vmatpush1.msra.mxu0 0.0
    %1402 = vmatprep.subr.mxu0 0.0
    %1403 = vmatpush1.msra.mxu0 0.0
    %1404 = vmatprep.subr.mxu0 0.0
    %1405 = vmatpush1.msra.mxu0 0.0
    %1406 = vmatprep.subr.mxu0 0.0
    %1407 = vmatpush1.msra.mxu0 0.0
    %1408 = vmatprep.subr.mxu0 0.0
    %1409 = vmatpush1.msra.mxu0 0.0
    %1410 = vmatprep.subr.mxu0 0.0
    %1411 = vmatpush1.msra.mxu0 0.0
    %1412 = vmatprep.subr.mxu0 0.0
    %1413 = vmatpush1.msra.mxu0 0.0
    %1414 = vmatprep.subr.mxu0 0.0
    %1415 = vmatpush1.msra.mxu0 0.0
    %1416 = vmatprep.subr.mxu0 0.0
    %1417 = vmatpush1.msra.mxu0 0.0
    %1418 = vmatprep.subr.mxu0 0.0
    %1419 = vmatpush1.msra.mxu0 0.0
    %1420 = vmatprep.subr.mxu0 0.0
    %1421 = vmatpush1.msra.mxu0 0.0
    %1422 = vmatprep.subr.mxu0 0.0
    %1423 = vmatpush1.msra.mxu0 0.0
    %1424 = vmatprep.subr.mxu0 0.0
    %1425 = vmatpush1.msra.mxu0 0.0
    %1426 = vmatprep.subr.mxu0 0.0
    %1427 = vmatpush1.msra.mxu0 0.0
    %1428 = vmatprep.subr.mxu0 0.0
    %1429 = vmatpush1.msra.mxu0 0.0
    %1430 = vmatprep.subr.mxu0 0.0
    %1431 = vmatpush1.msra.mxu0 0.0
    %1432 = vmatprep.subr.mxu0 0.0
    %1433 = vmatpush1.msra.mxu0 0.0
    %1434 = vmatprep.subr.mxu0 0.0
    %1435 = vmatpush1.msra.mxu0 0.0
    %1436 = vmatprep.subr.mxu0 0.0
    %1437 = vmatpush1.msra.mxu0 0.0
    %1438 = vmatprep.subr.mxu0 0.0
    %1439 = vmatpush1.msra.mxu0 0.0
    %1440 = vmatprep.subr.mxu0 0.0
    %1441 = vmatpush1.msra.mxu0 0.0
    %1442 = vmatprep.subr.mxu0 0.0
    %1443 = vmatpush1.msra.mxu0 0.0
    %1444 = vmatprep.subr.mxu0 0.0
    %1445 = vmatpush1.msra.mxu0 0.0
    %1446 = vmatprep.subr.mxu0 0.0
    %1447 = vmatpush1.msra.mxu0 0.0
    %1448 = vmatprep.subr.mxu0 0.0
    %1449 = vmatpush1.msra.mxu0 0.0
    %1450 = vmatprep.subr.mxu0 0.0
    %1451 = vmatpush1.msra.mxu0 0.0
    %1452 = vmatprep.subr.mxu0 0.0
    %1453 = vmatpush1.msra.mxu0 0.0
    %1454 = vmatprep.subr.mxu0 0.0
    %1455 = vmatpush1.msra.mxu0 0.0
    %1456 = vmatprep.subr.mxu0 0.0
    %1457 = vmatpush1.msra.mxu0 0.0
    %1458 = vmatprep.mubr.f32.mxu0 0.0
    %1459 = vmatmul.mubr.f32.gmra.mrb[0].mxu0 %v1392
    %v1460 = vpop.f32.mrb[0].mxu0
    %v1461 = vadd.f32 0.0, %v1460
    %v1462 = vpop.f32.mrb[0].mxu0
    %1463 = vdwg.mxu0
    %1464 = vrot.lane.b32.xlu0 %v549, 96
    %v1465 = vpop.permute.xlu0 %1464
    %1466 = vrot.lane.b32.xlu0 %v551, 96
    %v1467 = vpop.permute.xlu0 %1466
    %v1468 = vsel %vm628, %v1465, 0
    %v1470 = vsel %vm628, %v1467, 0
    %1472 = vmatprep.subr.mxu0 0.0
    %1473 = vmatpush1.xpose.msra.mxu0 %v1470
    %1474 = vmatprep.subr.mxu0 0.0
    %1475 = vmatpush1.xpose.msra.mxu0 0.0
    %1476 = vmatprep.subr.mxu0 0.0
    %1477 = vmatpush1.xpose.msra.mxu0 0.0
    %1478 = vmatprep.subr.mxu0 0.0
    %1479 = vmatpush1.xpose.msra.mxu0 0.0
    %1480 = vmatprep.subr.mxu0 0.0
    %1481 = vmatpush1.xpose.msra.mxu0 0.0
    %1482 = vmatprep.subr.mxu0 0.0
    %1483 = vmatpush1.xpose.msra.mxu0 0.0
    %1484 = vmatprep.subr.mxu0 0.0
    %1485 = vmatpush1.xpose.msra.mxu0 0.0
    %1486 = vmatprep.subr.mxu0 0.0
    %1487 = vmatpush1.xpose.msra.mxu0 0.0
    %1488 = vmatprep.subr.mxu0 0.0
    %1489 = vmatpush1.xpose.msra.mxu0 0.0
    %1490 = vmatprep.subr.mxu0 0.0
    %1491 = vmatpush1.xpose.msra.mxu0 0.0
    %1492 = vmatprep.subr.mxu0 0.0
    %1493 = vmatpush1.xpose.msra.mxu0 0.0
    %1494 = vmatprep.subr.mxu0 0.0
    %1495 = vmatpush1.xpose.msra.mxu0 0.0
    %1496 = vmatprep.subr.mxu0 0.0
    %1497 = vmatpush1.xpose.msra.mxu0 0.0
    %1498 = vmatprep.subr.mxu0 0.0
    %1499 = vmatpush1.xpose.msra.mxu0 0.0
    %1500 = vmatprep.subr.mxu0 0.0
    %1501 = vmatpush1.xpose.msra.mxu0 0.0
    %1502 = vmatprep.subr.mxu0 0.0
    %1503 = vmatpush1.xpose.msra.mxu0 0.0
    %1504 = vmatprep.subr.mxu0 0.0
    %1505 = vmatpush1.xpose.msra.mxu0 0.0
    %1506 = vmatprep.subr.mxu0 0.0
    %1507 = vmatpush1.xpose.msra.mxu0 0.0
    %1508 = vmatprep.subr.mxu0 0.0
    %1509 = vmatpush1.xpose.msra.mxu0 0.0
    %1510 = vmatprep.subr.mxu0 0.0
    %1511 = vmatpush1.xpose.msra.mxu0 0.0
    %1512 = vmatprep.subr.mxu0 0.0
    %1513 = vmatpush1.xpose.msra.mxu0 0.0
    %1514 = vmatprep.subr.mxu0 0.0
    %1515 = vmatpush1.xpose.msra.mxu0 0.0
    %1516 = vmatprep.subr.mxu0 0.0
    %1517 = vmatpush1.xpose.msra.mxu0 0.0
    %1518 = vmatprep.subr.mxu0 0.0
    %1519 = vmatpush1.xpose.msra.mxu0 0.0
    %1520 = vmatprep.subr.mxu0 0.0
    %1521 = vmatpush1.xpose.msra.mxu0 0.0
    %1522 = vmatprep.subr.mxu0 0.0
    %1523 = vmatpush1.xpose.msra.mxu0 0.0
    %1524 = vmatprep.subr.mxu0 0.0
    %1525 = vmatpush1.xpose.msra.mxu0 0.0
    %1526 = vmatprep.subr.mxu0 0.0
    %1527 = vmatpush1.xpose.msra.mxu0 0.0
    %1528 = vmatprep.subr.mxu0 0.0
    %1529 = vmatpush1.xpose.msra.mxu0 0.0
    %1530 = vmatprep.subr.mxu0 0.0
    %1531 = vmatpush1.xpose.msra.mxu0 0.0
    %1532 = vmatprep.subr.mxu0 0.0
    %1533 = vmatpush1.xpose.msra.mxu0 0.0
    %1534 = vmatprep.subr.mxu0 0.0
    %1535 = vmatpush1.xpose.msra.mxu0 0.0
    %1536 = vmatprep.mubr.f32.mxu0 0.0
    %1537 = vmatmul.mubr.f32.gmra.mrb[0].mxu0 %v1468
    %v1538 = vpop.f32.mrb[0].mxu0
    %v1539 = vadd.f32 0.0, %v1538
    %v1540 = vpop.f32.mrb[0].mxu0
    %1541 = vdwg.mxu0
    %v1542 = vsel %vm705, %v1539, -inf
    %1543 = vmax.xlane.f32.xlu0 %v1542
    %v1544 = vpop.xlane.xlu0 %1543
    %v1545 = vsub.f32 %v1539, %v1544
    %v1546 = vmul.f32 %v1545, 1.442695
    %v1547 = vpow.pop %v1546
    %v1548 = vsel %vm705, %v1547, 0.0
    %1549 = vadd.xlane.f32.xlu0 %v1548
    %v1550 = vpop.xlane.xlu0 %1549
    %v1551 = vrcp.pop %v1550
    %v1552 = vmul.f32 %v1547, %v1551
    %1554 = vrot.lane.b32.xlu0 %v625, 96
    %v1555 = vpop.permute.xlu0 %1554
    %v1558 = vsel %vm705, %v1552, 0
    %1560 = vmatprep.subr.mxu0 0.0
    %1561 = vmatpush1.msra.mxu0 %v1555
    %1562 = vmatprep.subr.mxu0 0.0
    %1563 = vmatpush1.msra.mxu0 0.0
    %1564 = vmatprep.subr.mxu0 0.0
    %1565 = vmatpush1.msra.mxu0 0.0
    %1566 = vmatprep.subr.mxu0 0.0
    %1567 = vmatpush1.msra.mxu0 0.0
    %1568 = vmatprep.subr.mxu0 0.0
    %1569 = vmatpush1.msra.mxu0 0.0
    %1570 = vmatprep.subr.mxu0 0.0
    %1571 = vmatpush1.msra.mxu0 0.0
    %1572 = vmatprep.subr.mxu0 0.0
    %1573 = vmatpush1.msra.mxu0 0.0
    %1574 = vmatprep.subr.mxu0 0.0
    %1575 = vmatpush1.msra.mxu0 0.0
    %1576 = vmatprep.subr.mxu0 0.0
    %1577 = vmatpush1.msra.mxu0 0.0
    %1578 = vmatprep.subr.mxu0 0.0
    %1579 = vmatpush1.msra.mxu0 0.0
    %1580 = vmatprep.subr.mxu0 0.0
    %1581 = vmatpush1.msra.mxu0 0.0
    %1582 = vmatprep.subr.mxu0 0.0
    %1583 = vmatpush1.msra.mxu0 0.0
    %1584 = vmatprep.subr.mxu0 0.0
    %1585 = vmatpush1.msra.mxu0 0.0
    %1586 = vmatprep.subr.mxu0 0.0
    %1587 = vmatpush1.msra.mxu0 0.0
    %1588 = vmatprep.subr.mxu0 0.0
    %1589 = vmatpush1.msra.mxu0 0.0
    %1590 = vmatprep.subr.mxu0 0.0
    %1591 = vmatpush1.msra.mxu0 0.0
    %1592 = vmatprep.subr.mxu0 0.0
    %1593 = vmatpush1.msra.mxu0 0.0
    %1594 = vmatprep.subr.mxu0 0.0
    %1595 = vmatpush1.msra.mxu0 0.0
    %1596 = vmatprep.subr.mxu0 0.0
    %1597 = vmatpush1.msra.mxu0 0.0
    %1598 = vmatprep.subr.mxu0 0.0
    %1599 = vmatpush1.msra.mxu0 0.0
    %1600 = vmatprep.subr.mxu0 0.0
    %1601 = vmatpush1.msra.mxu0 0.0
    %1602 = vmatprep.subr.mxu0 0.0
    %1603 = vmatpush1.msra.mxu0 0.0
    %1604 = vmatprep.subr.mxu0 0.0
    %1605 = vmatpush1.msra.mxu0 0.0
    %1606 = vmatprep.subr.mxu0 0.0
    %1607 = vmatpush1.msra.mxu0 0.0
    %1608 = vmatprep.subr.mxu0 0.0
    %1609 = vmatpush1.msra.mxu0 0.0
    %1610 = vmatprep.subr.mxu0 0.0
    %1611 = vmatpush1.msra.mxu0 0.0
    %1612 = vmatprep.subr.mxu0 0.0
    %1613 = vmatpush1.msra.mxu0 0.0
    %1614 = vmatprep.subr.mxu0 0.0
    %1615 = vmatpush1.msra.mxu0 0.0
    %1616 = vmatprep.subr.mxu0 0.0
    %1617 = vmatpush1.msra.mxu0 0.0
    %1618 = vmatprep.subr.mxu0 0.0
    %1619 = vmatpush1.msra.mxu0 0.0
    %1620 = vmatprep.subr.mxu0 0.0
    %1621 = vmatpush1.msra.mxu0 0.0
    %1622 = vmatprep.subr.mxu0 0.0
    %1623 = vmatpush1.msra.mxu0 0.0
    %1624 = vmatprep.mubr.f32.mxu0 0.0
    %1625 = vmatmul.mubr.f32.gmra.mrb[0].mxu0 %v1558
    %v1626 = vpop.f32.mrb[0].mxu0
    %v1627 = vadd.f32 0.0, %v1626
    %v1628 = vpop.f32.mrb[0].mxu0
    %1629 = vdwg.mxu0
    %1630 = vrot.lane.b32.xlu0 %v549, 64
    %v1631 = vpop.permute.xlu0 %1630
    %1632 = vrot.lane.b32.xlu0 %v551, 64
    %v1633 = vpop.permute.xlu0 %1632
    %v1634 = vsel %vm628, %v1631, 0
    %v1636 = vsel %vm628, %v1633, 0
    %1638 = vmatprep.subr.mxu0 0.0
    %1639 = vmatpush1.xpose.msra.mxu0 %v1636
    %1640 = vmatprep.subr.mxu0 0.0
    %1641 = vmatpush1.xpose.msra.mxu0 0.0
    %1642 = vmatprep.subr.mxu0 0.0
    %1643 = vmatpush1.xpose.msra.mxu0 0.0
    %1644 = vmatprep.subr.mxu0 0.0
    %1645 = vmatpush1.xpose.msra.mxu0 0.0
    %1646 = vmatprep.subr.mxu0 0.0
    %1647 = vmatpush1.xpose.msra.mxu0 0.0
    %1648 = vmatprep.subr.mxu0 0.0
    %1649 = vmatpush1.xpose.msra.mxu0 0.0
    %1650 = vmatprep.subr.mxu0 0.0
    %1651 = vmatpush1.xpose.msra.mxu0 0.0
    %1652 = vmatprep.subr.mxu0 0.0
    %1653 = vmatpush1.xpose.msra.mxu0 0.0
    %1654 = vmatprep.subr.mxu0 0.0
    %1655 = vmatpush1.xpose.msra.mxu0 0.0
    %1656 = vmatprep.subr.mxu0 0.0
    %1657 = vmatpush1.xpose.msra.mxu0 0.0
    %1658 = vmatprep.subr.mxu0 0.0
    %1659 = vmatpush1.xpose.msra.mxu0 0.0
    %1660 = vmatprep.subr.mxu0 0.0
    %1661 = vmatpush1.xpose.msra.mxu0 0.0
    %1662 = vmatprep.subr.mxu0 0.0
    %1663 = vmatpush1.xpose.msra.mxu0 0.0
    %1664 = vmatprep.subr.mxu0 0.0
    %1665 = vmatpush1.xpose.msra.mxu0 0.0
    %1666 = vmatprep.subr.mxu0 0.0
    %1667 = vmatpush1.xpose.msra.mxu0 0.0
    %1668 = vmatprep.subr.mxu0 0.0
    %1669 = vmatpush1.xpose.msra.mxu0 0.0
    %1670 = vmatprep.subr.mxu0 0.0
    %1671 = vmatpush1.xpose.msra.mxu0 0.0
    %1672 = vmatprep.subr.mxu0 0.0
    %1673 = vmatpush1.xpose.msra.mxu0 0.0
    %1674 = vmatprep.subr.mxu0 0.0
    %1675 = vmatpush1.xpose.msra.mxu0 0.0
    %1676 = vmatprep.subr.mxu0 0.0
    %1677 = vmatpush1.xpose.msra.mxu0 0.0
    %1678 = vmatprep.subr.mxu0 0.0
    %1679 = vmatpush1.xpose.msra.mxu0 0.0
    %1680 = vmatprep.subr.mxu0 0.0
    %1681 = vmatpush1.xpose.msra.mxu0 0.0
    %1682 = vmatprep.subr.mxu0 0.0
    %1683 = vmatpush1.xpose.msra.mxu0 0.0
    %1684 = vmatprep.subr.mxu0 0.0
    %1685 = vmatpush1.xpose.msra.mxu0 0.0
    %1686 = vmatprep.subr.mxu0 0.0
    %1687 = vmatpush1.xpose.msra.mxu0 0.0
    %1688 = vmatprep.subr.mxu0 0.0
    %1689 = vmatpush1.xpose.msra.mxu0 0.0
    %1690 = vmatprep.subr.mxu0 0.0
    %1691 = vmatpush1.xpose.msra.mxu0 0.0
    %1692 = vmatprep.subr.mxu0 0.0
    %1693 = vmatpush1.xpose.msra.mxu0 0.0
    %1694 = vmatprep.subr.mxu0 0.0
    %1695 = vmatpush1.xpose.msra.mxu0 0.0
    %1696 = vmatprep.subr.mxu0 0.0
    %1697 = vmatpush1.xpose.msra.mxu0 0.0
    %1698 = vmatprep.subr.mxu0 0.0
    %1699 = vmatpush1.xpose.msra.mxu0 0.0
    %1700 = vmatprep.subr.mxu0 0.0
    %1701 = vmatpush1.xpose.msra.mxu0 0.0
    %1702 = vmatprep.mubr.f32.mxu0 0.0
    %1703 = vmatmul.mubr.f32.gmra.mrb[0].mxu0 %v1634
    %v1704 = vpop.f32.mrb[0].mxu0
    %v1705 = vadd.f32 0.0, %v1704
    %v1706 = vpop.f32.mrb[0].mxu0
    %1707 = vdwg.mxu0
    %v1708 = vsel %vm705, %v1705, -inf
    %1709 = vmax.xlane.f32.xlu0 %v1708
    %v1710 = vpop.xlane.xlu0 %1709
    %v1711 = vsub.f32 %v1705, %v1710
    %v1712 = vmul.f32 %v1711, 1.442695
    %v1713 = vpow.pop %v1712
    %v1714 = vsel %vm705, %v1713, 0.0
    %1715 = vadd.xlane.f32.xlu0 %v1714
    %v1716 = vpop.xlane.xlu0 %1715
    %v1717 = vrcp.pop %v1716
    %v1718 = vmul.f32 %v1713, %v1717
    %1719 = vrot.lane.b32.xlu0 %v625, 64
    %v1720 = vpop.permute.xlu0 %1719
    %v1723 = vsel %vm705, %v1718, 0
    %1725 = vmatprep.subr.mxu0 0.0
    %1726 = vmatpush1.msra.mxu0 %v1720
    %1727 = vmatprep.subr.mxu0 0.0
    %1728 = vmatpush1.msra.mxu0 0.0
    %1729 = vmatprep.subr.mxu0 0.0
    %1730 = vmatpush1.msra.mxu0 0.0
    %1731 = vmatprep.subr.mxu0 0.0
    %1732 = vmatpush1.msra.mxu0 0.0
    %1733 = vmatprep.subr.mxu0 0.0
    %1734 = vmatpush1.msra.mxu0 0.0
    %1735 = vmatprep.subr.mxu0 0.0
    %1736 = vmatpush1.msra.mxu0 0.0
    %1737 = vmatprep.subr.mxu0 0.0
    %1738 = vmatpush1.msra.mxu0 0.0
    %1739 = vmatprep.subr.mxu0 0.0
    %1740 = vmatpush1.msra.mxu0 0.0
    %1741 = vmatprep.subr.mxu0 0.0
    %1742 = vmatpush1.msra.mxu0 0.0
    %1743 = vmatprep.subr.mxu0 0.0
    %1744 = vmatpush1.msra.mxu0 0.0
    %1745 = vmatprep.subr.mxu0 0.0
    %1746 = vmatpush1.msra.mxu0 0.0
    %1747 = vmatprep.subr.mxu0 0.0
    %1748 = vmatpush1.msra.mxu0 0.0
    %1749 = vmatprep.subr.mxu0 0.0
    %1750 = vmatpush1.msra.mxu0 0.0
    %1751 = vmatprep.subr.mxu0 0.0
    %1752 = vmatpush1.msra.mxu0 0.0
    %1753 = vmatprep.subr.mxu0 0.0
    %1754 = vmatpush1.msra.mxu0 0.0
    %1755 = vmatprep.subr.mxu0 0.0
    %1756 = vmatpush1.msra.mxu0 0.0
    %1757 = vmatprep.subr.mxu0 0.0
    %1758 = vmatpush1.msra.mxu0 0.0
    %1759 = vmatprep.subr.mxu0 0.0
    %1760 = vmatpush1.msra.mxu0 0.0
    %1761 = vmatprep.subr.mxu0 0.0
    %1762 = vmatpush1.msra.mxu0 0.0
    %1763 = vmatprep.subr.mxu0 0.0
    %1764 = vmatpush1.msra.mxu0 0.0
    %1765 = vmatprep.subr.mxu0 0.0
    %1766 = vmatpush1.msra.mxu0 0.0
    %1767 = vmatprep.subr.mxu0 0.0
    %1768 = vmatpush1.msra.mxu0 0.0
    %1769 = vmatprep.subr.mxu0 0.0
    %1770 = vmatpush1.msra.mxu0 0.0
    %1771 = vmatprep.subr.mxu0 0.0
    %1772 = vmatpush1.msra.mxu0 0.0
    %1773 = vmatprep.subr.mxu0 0.0
    %1774 = vmatpush1.msra.mxu0 0.0
    %1775 = vmatprep.subr.mxu0 0.0
    %1776 = vmatpush1.msra.mxu0 0.0
    %1777 = vmatprep.subr.mxu0 0.0
    %1778 = vmatpush1.msra.mxu0 0.0
    %1779 = vmatprep.subr.mxu0 0.0
    %1780 = vmatpush1.msra.mxu0 0.0
    %1781 = vmatprep.subr.mxu0 0.0
    %1782 = vmatpush1.msra.mxu0 0.0
    %1783 = vmatprep.subr.mxu0 0.0
    %1784 = vmatpush1.msra.mxu0 0.0
    %1785 = vmatprep.subr.mxu0 0.0
    %1786 = vmatpush1.msra.mxu0 0.0
    %1787 = vmatprep.subr.mxu0 0.0
    %1788 = vmatpush1.msra.mxu0 0.0
    %1789 = vmatprep.mubr.f32.mxu0 0.0
    %1790 = vmatmul.mubr.f32.gmra.mrb[0].mxu0 %v1723
    %v1791 = vpop.f32.mrb[0].mxu0
    %v1792 = vadd.f32 0.0, %v1791
    %v1793 = vpop.f32.mrb[0].mxu0
    %1794 = vdwg.mxu0
    %1795 = vrot.lane.b32.xlu0 %v549, 32
    %v1796 = vpop.permute.xlu0 %1795
    %1797 = vrot.lane.b32.xlu0 %v551, 32
    %v1798 = vpop.permute.xlu0 %1797
    %v1799 = vsel %vm628, %v1796, 0
    %v1801 = vsel %vm628, %v1798, 0
    %1803 = vmatprep.subr.mxu0 0.0
    %1804 = vmatpush1.xpose.msra.mxu0 %v1801
    %1805 = vmatprep.subr.mxu0 0.0
    %1806 = vmatpush1.xpose.msra.mxu0 0.0
    %1807 = vmatprep.subr.mxu0 0.0
    %1808 = vmatpush1.xpose.msra.mxu0 0.0
    %1809 = vmatprep.subr.mxu0 0.0
    %1810 = vmatpush1.xpose.msra.mxu0 0.0
    %1811 = vmatprep.subr.mxu0 0.0
    %1812 = vmatpush1.xpose.msra.mxu0 0.0
    %1813 = vmatprep.subr.mxu0 0.0
    %1814 = vmatpush1.xpose.msra.mxu0 0.0
    %1815 = vmatprep.subr.mxu0 0.0
    %1816 = vmatpush1.xpose.msra.mxu0 0.0
    %1817 = vmatprep.subr.mxu0 0.0
    %1818 = vmatpush1.xpose.msra.mxu0 0.0
    %1819 = vmatprep.subr.mxu0 0.0
    %1820 = vmatpush1.xpose.msra.mxu0 0.0
    %1821 = vmatprep.subr.mxu0 0.0
    %1822 = vmatpush1.xpose.msra.mxu0 0.0
    %1823 = vmatprep.subr.mxu0 0.0
    %1824 = vmatpush1.xpose.msra.mxu0 0.0
    %1825 = vmatprep.subr.mxu0 0.0
    %1826 = vmatpush1.xpose.msra.mxu0 0.0
    %1827 = vmatprep.subr.mxu0 0.0
    %1828 = vmatpush1.xpose.msra.mxu0 0.0
    %1829 = vmatprep.subr.mxu0 0.0
    %1830 = vmatpush1.xpose.msra.mxu0 0.0
    %1831 = vmatprep.subr.mxu0 0.0
    %1832 = vmatpush1.xpose.msra.mxu0 0.0
    %1833 = vmatprep.subr.mxu0 0.0
    %1834 = vmatpush1.xpose.msra.mxu0 0.0
    %1835 = vmatprep.subr.mxu0 0.0
    %1836 = vmatpush1.xpose.msra.mxu0 0.0
    %1837 = vmatprep.subr.mxu0 0.0
    %1838 = vmatpush1.xpose.msra.mxu0 0.0
    %1839 = vmatprep.subr.mxu0 0.0
    %1840 = vmatpush1.xpose.msra.mxu0 0.0
    %1841 = vmatprep.subr.mxu0 0.0
    %1842 = vmatpush1.xpose.msra.mxu0 0.0
    %1843 = vmatprep.subr.mxu0 0.0
    %1844 = vmatpush1.xpose.msra.mxu0 0.0
    %1845 = vmatprep.subr.mxu0 0.0
    %1846 = vmatpush1.xpose.msra.mxu0 0.0
    %1847 = vmatprep.subr.mxu0 0.0
    %1848 = vmatpush1.xpose.msra.mxu0 0.0
    %1849 = vmatprep.subr.mxu0 0.0
    %1850 = vmatpush1.xpose.msra.mxu0 0.0
    %1851 = vmatprep.subr.mxu0 0.0
    %1852 = vmatpush1.xpose.msra.mxu0 0.0
    %1853 = vmatprep.subr.mxu0 0.0
    %1854 = vmatpush1.xpose.msra.mxu0 0.0
    %1855 = vmatprep.subr.mxu0 0.0
    %1856 = vmatpush1.xpose.msra.mxu0 0.0
    %1857 = vmatprep.subr.mxu0 0.0
    %1858 = vmatpush1.xpose.msra.mxu0 0.0
    %1859 = vmatprep.subr.mxu0 0.0
    %1860 = vmatpush1.xpose.msra.mxu0 0.0
    %1861 = vmatprep.subr.mxu0 0.0
    %1862 = vmatpush1.xpose.msra.mxu0 0.0
    %1863 = vmatprep.subr.mxu0 0.0
    %1864 = vmatpush1.xpose.msra.mxu0 0.0
    %1865 = vmatprep.subr.mxu0 0.0
    %1866 = vmatpush1.xpose.msra.mxu0 0.0
    %1867 = vmatprep.mubr.f32.mxu0 0.0
    %1868 = vmatmul.mubr.f32.gmra.mrb[0].mxu0 %v1799
    %v1869 = vpop.f32.mrb[0].mxu0
    %v1870 = vadd.f32 0.0, %v1869
    %v1871 = vpop.f32.mrb[0].mxu0
    %1872 = vdwg.mxu0
    %v1873 = vsel %vm705, %v1870, -inf
    %1874 = vmax.xlane.f32.xlu0 %v1873
    %v1875 = vpop.xlane.xlu0 %1874
    %v1876 = vsub.f32 %v1870, %v1875
    %v1877 = vmul.f32 %v1876, 1.442695
    %v1878 = vpow.pop %v1877
    %v1879 = vsel %vm705, %v1878, 0.0
    %1880 = vadd.xlane.f32.xlu0 %v1879
    %v1881 = vpop.xlane.xlu0 %1880
    %v1882 = vrcp.pop %v1881
    %v1883 = vmul.f32 %v1878, %v1882
    %1884 = vrot.lane.b32.xlu0 %v625, 32
    %v1885 = vpop.permute.xlu0 %1884
    %v1888 = vsel %vm705, %v1883, 0
    %1890 = vmatprep.subr.mxu0 0.0
    %1891 = vmatpush1.msra.mxu0 %v1885
    %1892 = vmatprep.subr.mxu0 0.0
    %1893 = vmatpush1.msra.mxu0 0.0
    %1894 = vmatprep.subr.mxu0 0.0
    %1895 = vmatpush1.msra.mxu0 0.0
    %1896 = vmatprep.subr.mxu0 0.0
    %1897 = vmatpush1.msra.mxu0 0.0
    %1898 = vmatprep.subr.mxu0 0.0
    %1899 = vmatpush1.msra.mxu0 0.0
    %1900 = vmatprep.subr.mxu0 0.0
    %1901 = vmatpush1.msra.mxu0 0.0
    %1902 = vmatprep.subr.mxu0 0.0
    %1903 = vmatpush1.msra.mxu0 0.0
    %1904 = vmatprep.subr.mxu0 0.0
    %1905 = vmatpush1.msra.mxu0 0.0
    %1906 = vmatprep.subr.mxu0 0.0
    %1907 = vmatpush1.msra.mxu0 0.0
    %1908 = vmatprep.subr.mxu0 0.0
    %1909 = vmatpush1.msra.mxu0 0.0
    %1910 = vmatprep.subr.mxu0 0.0
    %1911 = vmatpush1.msra.mxu0 0.0
    %1912 = vmatprep.subr.mxu0 0.0
    %1913 = vmatpush1.msra.mxu0 0.0
    %1914 = vmatprep.subr.mxu0 0.0
    %1915 = vmatpush1.msra.mxu0 0.0
    %1916 = vmatprep.subr.mxu0 0.0
    %1917 = vmatpush1.msra.mxu0 0.0
    %1918 = vmatprep.subr.mxu0 0.0
    %1919 = vmatpush1.msra.mxu0 0.0
    %1920 = vmatprep.subr.mxu0 0.0
    %1921 = vmatpush1.msra.mxu0 0.0
    %1922 = vmatprep.subr.mxu0 0.0
    %1923 = vmatpush1.msra.mxu0 0.0
    %1924 = vmatprep.subr.mxu0 0.0
    %1925 = vmatpush1.msra.mxu0 0.0
    %1926 = vmatprep.subr.mxu0 0.0
    %1927 = vmatpush1.msra.mxu0 0.0
    %1928 = vmatprep.subr.mxu0 0.0
    %1929 = vmatpush1.msra.mxu0 0.0
    %1930 = vmatprep.subr.mxu0 0.0
    %1931 = vmatpush1.msra.mxu0 0.0
    %1932 = vmatprep.subr.mxu0 0.0
    %1933 = vmatpush1.msra.mxu0 0.0
    %1934 = vmatprep.subr.mxu0 0.0
    %1935 = vmatpush1.msra.mxu0 0.0
    %1936 = vmatprep.subr.mxu0 0.0
    %1937 = vmatpush1.msra.mxu0 0.0
    %1938 = vmatprep.subr.mxu0 0.0
    %1939 = vmatpush1.msra.mxu0 0.0
    %1940 = vmatprep.subr.mxu0 0.0
    %1941 = vmatpush1.msra.mxu0 0.0
    %1942 = vmatprep.subr.mxu0 0.0
    %1943 = vmatpush1.msra.mxu0 0.0
    %1944 = vmatprep.subr.mxu0 0.0
    %1945 = vmatpush1.msra.mxu0 0.0
    %1946 = vmatprep.subr.mxu0 0.0
    %1947 = vmatpush1.msra.mxu0 0.0
    %1948 = vmatprep.subr.mxu0 0.0
    %1949 = vmatpush1.msra.mxu0 0.0
    %1950 = vmatprep.subr.mxu0 0.0
    %1951 = vmatpush1.msra.mxu0 0.0
    %1952 = vmatprep.subr.mxu0 0.0
    %1953 = vmatpush1.msra.mxu0 0.0
    %1954 = vmatprep.mubr.f32.mxu0 0.0
    %1955 = vmatmul.mubr.f32.gmra.mrb[0].mxu0 %v1888
    %v1956 = vpop.f32.mrb[0].mxu0
    %v1957 = vadd.f32 0.0, %v1956
    %v1958 = vpop.f32.mrb[0].mxu0
    %1959 = vdwg.mxu0
    %1961 = vrot.lane.b32.xlu0 %v1627, 32
    %v1962 = vpop.permute.xlu0 %1961
    %1965 = vrot.lane.b32.xlu0 %v1792, 64
    %v1966 = vpop.permute.xlu0 %1965
    %1969 = vrot.lane.b32.xlu0 %v1957, 96
    %v1970 = vpop.permute.xlu0 %1969
    %v1972 = vsel %vm628, %v1461, %v1962
    %v1973 = vsel %vm1299, %v1972, %v1966
    %v1974 = vsel %vm1301, %v1973, %v1970
    %1975 = vst [vmem:[#allocation4 + $0x8] sm:$0xff] %v1974
    %v1976 = vld [vmem:[#allocation4] sm:$0xff]
    %v1977 = vld [vmem:[#allocation4 + $0x8] sm:$0xff]
    %v1978 = vld [vmem:[%s12] sm:$0xff]
    %v1979 = vld [vmem:[%s12 + $0x8] sm:$0xff]
    %v1980 = vld [vmem:[%s12 + $0x10] sm:$0xff]
    %v1981 = vld [vmem:[%s12 + $0x18] sm:$0xff]
    %v1982 = vld [vmem:[%s12 + $0x20] sm:$0xff]
    %v1983 = vld [vmem:[%s12 + $0x28] sm:$0xff]
    %v1984 = vld [vmem:[%s12 + $0x30] sm:$0xff]
    %v1985 = vld [vmem:[%s12 + $0x38] sm:$0xff]
    %v1986 = vld [vmem:[%s12 + $0x40] sm:$0xff]
    %v1987 = vld [vmem:[%s12 + $0x48] sm:$0xff]
    %v1988 = vld [vmem:[%s12 + $0x50] sm:$0xff]
    %v1989 = vld [vmem:[%s12 + $0x58] sm:$0xff]
    %v1990 = vld [vmem:[%s12 + $0x60] sm:$0xff]
    %v1991 = vld [vmem:[%s12 + $0x68] sm:$0xff]
    %v1992 = vld [vmem:[%s12 + $0x70] sm:$0xff]
    %v1993 = vld [vmem:[%s12 + $0x78] sm:$0xff]
    %v1994 = vld [vmem:[%s13] sm:$0x1]
    %v1996 = vlaneseq
    %v1997 = vshrl.u32 %v1996, 7
    %v1998 = vsub.s32 0, %v1997
    %v1999 = vrot.slane %v1994, %v1998
    %2001 = vmatprep.subr.mxu0 0.0
    %2002 = vmatpush1.msra.mxu0 %v1978
    %2003 = vmatprep.subr.mxu0 0.0
    %2004 = vmatpush1.msra.mxu0 %v1979
    %2005 = vmatprep.subr.mxu0 0.0
    %2006 = vmatpush1.msra.mxu0 %v1980
    %2007 = vmatprep.subr.mxu0 0.0
    %2008 = vmatpush1.msra.mxu0 %v1981
    %2009 = vmatprep.subr.mxu0 0.0
    %2010 = vmatpush1.msra.mxu0 %v1982
    %2011 = vmatprep.subr.mxu0 0.0
    %2012 = vmatpush1.msra.mxu0 %v1983
    %2013 = vmatprep.subr.mxu0 0.0
    %2014 = vmatpush1.msra.mxu0 %v1984
    %2015 = vmatprep.subr.mxu0 0.0
    %2016 = vmatpush1.msra.mxu0 %v1985
    %2017 = vmatprep.subr.mxu0 0.0
    %2018 = vmatpush1.msra.mxu0 %v1986
    %2019 = vmatprep.subr.mxu0 0.0
    %2020 = vmatpush1.msra.mxu0 %v1987
    %2021 = vmatprep.subr.mxu0 0.0
    %2022 = vmatpush1.msra.mxu0 %v1988
    %2023 = vmatprep.subr.mxu0 0.0
    %2024 = vmatpush1.msra.mxu0 %v1989
    %2025 = vmatprep.subr.mxu0 0.0
    %2026 = vmatpush1.msra.mxu0 %v1990
    %2027 = vmatprep.subr.mxu0 0.0
    %2028 = vmatpush1.msra.mxu0 %v1991
    %2029 = vmatprep.subr.mxu0 0.0
    %2030 = vmatpush1.msra.mxu0 %v1992
    %2031 = vmatprep.subr.mxu0 0.0
    %2032 = vmatpush1.msra.mxu0 %v1993
    %2033 = vmatprep.subr.mxu0 0.0
    %2034 = vmatpush1.msra.mxu0 0.0
    %2035 = vmatprep.subr.mxu0 0.0
    %2036 = vmatpush1.msra.mxu0 0.0
    %2037 = vmatprep.subr.mxu0 0.0
    %2038 = vmatpush1.msra.mxu0 0.0
    %2039 = vmatprep.subr.mxu0 0.0
    %2040 = vmatpush1.msra.mxu0 0.0
    %2041 = vmatprep.subr.mxu0 0.0
    %2042 = vmatpush1.msra.mxu0 0.0
    %2043 = vmatprep.subr.mxu0 0.0
    %2044 = vmatpush1.msra.mxu0 0.0
    %2045 = vmatprep.subr.mxu0 0.0
    %2046 = vmatpush1.msra.mxu0 0.0
    %2047 = vmatprep.subr.mxu0 0.0
    %2048 = vmatpush1.msra.mxu0 0.0
    %2049 = vmatprep.subr.mxu0 0.0
    %2050 = vmatpush1.msra.mxu0 0.0
    %2051 = vmatprep.subr.mxu0 0.0
    %2052 = vmatpush1.msra.mxu0 0.0
    %2053 = vmatprep.subr.mxu0 0.0
    %2054 = vmatpush1.msra.mxu0 0.0
    %2055 = vmatprep.subr.mxu0 0.0
    %2056 = vmatpush1.msra.mxu0 0.0
    %2057 = vmatprep.subr.mxu0 0.0
    %2058 = vmatpush1.msra.mxu0 0.0
    %2059 = vmatprep.subr.mxu0 0.0
    %2060 = vmatpush1.msra.mxu0 0.0
    %2061 = vmatprep.subr.mxu0 0.0
    %2062 = vmatpush1.msra.mxu0 0.0
    %2063 = vmatprep.subr.mxu0 0.0
    %2064 = vmatpush1.msra.mxu0 0.0
    %2065 = vmatprep.mubr.f32.mxu0 0.0
    %2066 = vmatmul.mubr.f32.gmra.mrb[0].mxu0 %v1976
    %v2067 = vpop.f32.mrb[0].mxu0
    %v2068 = vadd.f32 %v1999, %v2067
    %v2069 = vpop.f32.mrb[0].mxu0
    %2070 = vmatprep.mubr.f32.mxu0 0.0
    %2071 = vmatmul.mubr.f32.gmra.mrb[0].mxu0 %v1977
    %v2072 = vpop.f32.mrb[0].mxu0
    %v2073 = vadd.f32 %v1999, %v2072
    %v2074 = vpop.f32.mrb[0].mxu0
    %2075 = vdwg.mxu0
    %v2076 = vadd.f32 %v2068, %v68
    %v2077 = vadd.f32 %v2073, %v69
    %v2078 = vadd.f32 %v409, %v2076
    %v2079 = vadd.f32 %v410, %v2077
    %v2080 = vld [vmem:[%s14] sm:$0xff]
    %v2081 = vld [vmem:[%s14 + $0x8] sm:$0xff]
    %v2082 = vld [vmem:[%s14 + $0x10] sm:$0xff]
    %v2083 = vld [vmem:[%s14 + $0x18] sm:$0xff]
    %v2084 = vld [vmem:[%s14 + $0x20] sm:$0xff]
    %v2085 = vld [vmem:[%s14 + $0x28] sm:$0xff]
    %v2086 = vld [vmem:[%s14 + $0x30] sm:$0xff]
    %v2087 = vld [vmem:[%s14 + $0x38] sm:$0xff]
    %v2088 = vld [vmem:[%s14 + $0x40] sm:$0xff]
    %v2089 = vld [vmem:[%s14 + $0x48] sm:$0xff]
    %v2090 = vld [vmem:[%s14 + $0x50] sm:$0xff]
    %v2091 = vld [vmem:[%s14 + $0x58] sm:$0xff]
    %v2092 = vld [vmem:[%s14 + $0x60] sm:$0xff]
    %v2093 = vld [vmem:[%s14 + $0x68] sm:$0xff]
    %v2094 = vld [vmem:[%s14 + $0x70] sm:$0xff]
    %v2095 = vld [vmem:[%s14 + $0x78] sm:$0xff]
    %v2096 = vld [vmem:[%s14 + $0x80] sm:$0xff]
    %v2097 = vld [vmem:[%s14 + $0x88] sm:$0xff]
    %v2098 = vld [vmem:[%s14 + $0x90] sm:$0xff]
    %v2099 = vld [vmem:[%s14 + $0x98] sm:$0xff]
    %v2100 = vld [vmem:[%s14 + $0xa0] sm:$0xff]
    %v2101 = vld [vmem:[%s14 + $0xa8] sm:$0xff]
    %v2102 = vld [vmem:[%s14 + $0xb0] sm:$0xff]
    %v2103 = vld [vmem:[%s14 + $0xb8] sm:$0xff]
    %v2104 = vld [vmem:[%s14 + $0xc0] sm:$0xff]
    %v2105 = vld [vmem:[%s14 + $0xc8] sm:$0xff]
    %v2106 = vld [vmem:[%s14 + $0xd0] sm:$0xff]
    %v2107 = vld [vmem:[%s14 + $0xd8] sm:$0xff]
    %v2108 = vld [vmem:[%s14 + $0xe0] sm:$0xff]
    %v2109 = vld [vmem:[%s14 + $0xe8] sm:$0xff]
    %v2110 = vld [vmem:[%s14 + $0xf0] sm:$0xff]
    %v2111 = vld [vmem:[%s14 + $0xf8] sm:$0xff]
    %v2112 = vld [vmem:[%s15] sm:$0x3]
    %v2114 = vlaneseq
    %v2115 = vshrl.u32 %v2114, 7
    %v2116 = vsub.s32 0, %v2115
    %v2117 = vrot.slane %v2112, %v2116
    %v2118 = vlaneseq
    %v2119 = vshrl.u32 %v2118, 7
    %v2120 = vsub.s32 1, %v2119
    %v2121 = vrot.slane %v2112, %v2120
    %2124 = vmatprep.subr.mxu0 %v2081
    %2125 = vmatpush1.msra.mxu0 %v2080
    %2126 = vmatprep.subr.mxu0 %v2083
    %2127 = vmatpush1.msra.mxu0 %v2082
    %2128 = vmatprep.subr.mxu0 %v2085
    %2129 = vmatpush1.msra.mxu0 %v2084
    %2130 = vmatprep.subr.mxu0 %v2087
    %2131 = vmatpush1.msra.mxu0 %v2086
    %2132 = vmatprep.subr.mxu0 %v2089
    %2133 = vmatpush1.msra.mxu0 %v2088
    %2134 = vmatprep.subr.mxu0 %v2091
    %2135 = vmatpush1.msra.mxu0 %v2090
    %2136 = vmatprep.subr.mxu0 %v2093
    %2137 = vmatpush1.msra.mxu0 %v2092
    %2138 = vmatprep.subr.mxu0 %v2095
    %2139 = vmatpush1.msra.mxu0 %v2094
    %2140 = vmatprep.subr.mxu0 %v2097
    %2141 = vmatpush1.msra.mxu0 %v2096
    %2142 = vmatprep.subr.mxu0 %v2099
    %2143 = vmatpush1.msra.mxu0 %v2098
    %2144 = vmatprep.subr.mxu0 %v2101
    %2145 = vmatpush1.msra.mxu0 %v2100
    %2146 = vmatprep.subr.mxu0 %v2103
    %2147 = vmatpush1.msra.mxu0 %v2102
    %2148 = vmatprep.subr.mxu0 %v2105
    %2149 = vmatpush1.msra.mxu0 %v2104
    %2150 = vmatprep.subr.mxu0 %v2107
    %2151 = vmatpush1.msra.mxu0 %v2106
    %2152 = vmatprep.subr.mxu0 %v2109
    %2153 = vmatpush1.msra.mxu0 %v2108
    %2154 = vmatprep.subr.mxu0 %v2111
    %2155 = vmatpush1.msra.mxu0 %v2110
    %2156 = vmatprep.subr.mxu0 0.0
    %2157 = vmatpush1.msra.mxu0 0.0
    %2158 = vmatprep.subr.mxu0 0.0
    %2159 = vmatpush1.msra.mxu0 0.0
    %2160 = vmatprep.subr.mxu0 0.0
    %2161 = vmatpush1.msra.mxu0 0.0
    %2162 = vmatprep.subr.mxu0 0.0
    %2163 = vmatpush1.msra.mxu0 0.0
    %2164 = vmatprep.subr.mxu0 0.0
    %2165 = vmatpush1.msra.mxu0 0.0
    %2166 = vmatprep.subr.mxu0 0.0
    %2167 = vmatpush1.msra.mxu0 0.0
    %2168 = vmatprep.subr.mxu0 0.0
    %2169 = vmatpush1.msra.mxu0 0.0
    %2170 = vmatprep.subr.mxu0 0.0
    %2171 = vmatpush1.msra.mxu0 0.0
    %2172 = vmatprep.subr.mxu0 0.0
    %2173 = vmatpush1.msra.mxu0 0.0
    %2174 = vmatprep.subr.mxu0 0.0
    %2175 = vmatpush1.msra.mxu0 0.0
    %2176 = vmatprep.subr.mxu0 0.0
    %2177 = vmatpush1.msra.mxu0 0.0
    %2178 = vmatprep.subr.mxu0 0.0
    %2179 = vmatpush1.msra.mxu0 0.0
    %2180 = vmatprep.subr.mxu0 0.0
    %2181 = vmatpush1.msra.mxu0 0.0
    %2182 = vmatprep.subr.mxu0 0.0
    %2183 = vmatpush1.msra.mxu0 0.0
    %2184 = vmatprep.subr.mxu0 0.0
    %2185 = vmatpush1.msra.mxu0 0.0
    %2186 = vmatprep.subr.mxu0 0.0
    %2187 = vmatpush1.msra.mxu0 0.0
    %2188 = vmatprep.mubr.f32.mxu0 0.0
    %2189 = vmatmul.mubr.f32.gmra.mrb[0].mxu0 %v2078
    %v2190 = vpop.f32.mrb[0].mxu0
    %v2191 = vadd.f32 %v2117, %v2190
    %v2192 = vpop.f32.mrb[0].mxu0
    %v2193 = vadd.f32 %v2121, %v2192
    %2194 = vmatprep.mubr.f32.mxu0 0.0
    %2195 = vmatmul.mubr.f32.gmra.mrb[0].mxu0 %v2079
    %v2196 = vpop.f32.mrb[0].mxu0
    %v2197 = vadd.f32 %v2117, %v2196
    %v2198 = vpop.f32.mrb[0].mxu0
    %v2199 = vadd.f32 %v2121, %v2198
    %2200 = vdwg.mxu0
    %v2201 = vmax.f32 %v2191, 0.0
    %v2202 = vmax.f32 %v2193, 0.0
    %v2203 = vmax.f32 %v2197, 0.0
    %v2204 = vmax.f32 %v2199, 0.0
    %v2205 = vld [vmem:[%s16] sm:$0xff]
    %v2206 = vld [vmem:[%s16 + $0x8] sm:$0xff]
    %v2207 = vld [vmem:[%s16 + $0x10] sm:$0xff]
    %v2208 = vld [vmem:[%s16 + $0x18] sm:$0xff]
    %v2209 = vld [vmem:[%s16 + $0x20] sm:$0xff]
    %v2210 = vld [vmem:[%s16 + $0x28] sm:$0xff]
    %v2211 = vld [vmem:[%s16 + $0x30] sm:$0xff]
    %v2212 = vld [vmem:[%s16 + $0x38] sm:$0xff]
    %v2213 = vld [vmem:[%s16 + $0x40] sm:$0xff]
    %v2214 = vld [vmem:[%s16 + $0x48] sm:$0xff]
    %v2215 = vld [vmem:[%s16 + $0x50] sm:$0xff]
    %v2216 = vld [vmem:[%s16 + $0x58] sm:$0xff]
    %v2217 = vld [vmem:[%s16 + $0x60] sm:$0xff]
    %v2218 = vld [vmem:[%s16 + $0x68] sm:$0xff]
    %v2219 = vld [vmem:[%s16 + $0x70] sm:$0xff]
    %v2220 = vld [vmem:[%s16 + $0x78] sm:$0xff]
    %v2221 = vld [vmem:[%s16 + $0x80] sm:$0xff]
    %v2222 = vld [vmem:[%s16 + $0x88] sm:$0xff]
    %v2223 = vld [vmem:[%s16 + $0x90] sm:$0xff]
    %v2224 = vld [vmem:[%s16 + $0x98] sm:$0xff]
    %v2225 = vld [vmem:[%s16 + $0xa0] sm:$0xff]
    %v2226 = vld [vmem:[%s16 + $0xa8] sm:$0xff]
    %v2227 = vld [vmem:[%s16 + $0xb0] sm:$0xff]
    %v2228 = vld [vmem:[%s16 + $0xb8] sm:$0xff]
    %v2229 = vld [vmem:[%s16 + $0xc0] sm:$0xff]
    %v2230 = vld [vmem:[%s16 + $0xc8] sm:$0xff]
    %v2231 = vld [vmem:[%s16 + $0xd0] sm:$0xff]
    %v2232 = vld [vmem:[%s16 + $0xd8] sm:$0xff]
    %v2233 = vld [vmem:[%s16 + $0xe0] sm:$0xff]
    %v2234 = vld [vmem:[%s16 + $0xe8] sm:$0xff]
    %v2235 = vld [vmem:[%s16 + $0xf0] sm:$0xff]
    %v2236 = vld [vmem:[%s16 + $0xf8] sm:$0xff]
    %v2237 = vld [vmem:[%s17] sm:$0x1]
    %v2239 = vlaneseq
    %v2240 = vshrl.u32 %v2239, 7
    %v2241 = vsub.s32 0, %v2240
    %v2242 = vrot.slane %v2237, %v2241
    %2244 = vmatprep.subr.mxu0 0.0
    %2245 = vmatpush1.msra.mxu0 %v2205
    %2246 = vmatprep.subr.mxu0 0.0
    %2247 = vmatpush1.msra.mxu0 %v2206
    %2248 = vmatprep.subr.mxu0 0.0
    %2249 = vmatpush1.msra.mxu0 %v2207
    %2250 = vmatprep.subr.mxu0 0.0
    %2251 = vmatpush1.msra.mxu0 %v2208
    %2252 = vmatprep.subr.mxu0 0.0
    %2253 = vmatpush1.msra.mxu0 %v2209
    %2254 = vmatprep.subr.mxu0 0.0
    %2255 = vmatpush1.msra.mxu0 %v2210
    %2256 = vmatprep.subr.mxu0 0.0
    %2257 = vmatpush1.msra.mxu0 %v2211
    %2258 = vmatprep.subr.mxu0 0.0
    %2259 = vmatpush1.msra.mxu0 %v2212
    %2260 = vmatprep.subr.mxu0 0.0
    %2261 = vmatpush1.msra.mxu0 %v2213
    %2262 = vmatprep.subr.mxu0 0.0
    %2263 = vmatpush1.msra.mxu0 %v2214
    %2264 = vmatprep.subr.mxu0 0.0
    %2265 = vmatpush1.msra.mxu0 %v2215
    %2266 = vmatprep.subr.mxu0 0.0
    %2267 = vmatpush1.msra.mxu0 %v2216
    %2268 = vmatprep.subr.mxu0 0.0
    %2269 = vmatpush1.msra.mxu0 %v2217
    %2270 = vmatprep.subr.mxu0 0.0
    %2271 = vmatpush1.msra.mxu0 %v2218
    %2272 = vmatprep.subr.mxu0 0.0
    %2273 = vmatpush1.msra.mxu0 %v2219
    %2274 = vmatprep.subr.mxu0 0.0
    %2275 = vmatpush1.msra.mxu0 %v2220
    %2276 = vmatprep.subr.mxu0 0.0
    %2277 = vmatpush1.msra.mxu0 %v2221
    %2278 = vmatprep.subr.mxu0 0.0
    %2279 = vmatpush1.msra.mxu0 %v2222
    %2280 = vmatprep.subr.mxu0 0.0
    %2281 = vmatpush1.msra.mxu0 %v2223
    %2282 = vmatprep.subr.mxu0 0.0
    %2283 = vmatpush1.msra.mxu0 %v2224
    %2284 = vmatprep.subr.mxu0 0.0
    %2285 = vmatpush1.msra.mxu0 %v2225
    %2286 = vmatprep.subr.mxu0 0.0
    %2287 = vmatpush1.msra.mxu0 %v2226
    %2288 = vmatprep.subr.mxu0 0.0
    %2289 = vmatpush1.msra.mxu0 %v2227
    %2290 = vmatprep.subr.mxu0 0.0
    %2291 = vmatpush1.msra.mxu0 %v2228
    %2292 = vmatprep.subr.mxu0 0.0
    %2293 = vmatpush1.msra.mxu0 %v2229
    %2294 = vmatprep.subr.mxu0 0.0
    %2295 = vmatpush1.msra.mxu0 %v2230
    %2296 = vmatprep.subr.mxu0 0.0
    %2297 = vmatpush1.msra.mxu0 %v2231
    %2298 = vmatprep.subr.mxu0 0.0
    %2299 = vmatpush1.msra.mxu0 %v2232
    %2300 = vmatprep.subr.mxu0 0.0
    %2301 = vmatpush1.msra.mxu0 %v2233
    %2302 = vmatprep.subr.mxu0 0.0
    %2303 = vmatpush1.msra.mxu0 %v2234
    %2304 = vmatprep.subr.mxu0 0.0
    %2305 = vmatpush1.msra.mxu0 %v2235
    %2306 = vmatprep.subr.mxu0 0.0
    %2307 = vmatpush1.msra.mxu0 %v2236
    %2308 = vmatprep.mubr.f32.mxu0 %v2202
    %2309 = vmatmul.mubr.f32.gmra.mrb[0].mxu0 %v2201
    %v2310 = vpop.f32.mrb[0].mxu0
    %v2311 = vadd.f32 %v2242, %v2310
    %v2312 = vpop.f32.mrb[0].mxu0
    %2313 = vmatprep.mubr.f32.mxu0 %v2204
    %2314 = vmatmul.mubr.f32.gmra.mrb[0].mxu0 %v2203
    %v2315 = vpop.f32.mrb[0].mxu0
    %v2316 = vadd.f32 %v2242, %v2315
    %v2317 = vpop.f32.mrb[0].mxu0
    %2318 = vdwg.mxu0
    %v2319 = vmul.f32 %v2078, 0.999995
    %v2320 = vmul.f32 %v2079, 0.999995
    %v2321 = vadd.f32 %v2319, %v2311
    %v2322 = vadd.f32 %v2320, %v2316
    %2323 = vst [vmem:[#allocation8] sm:$0xff] %v2321
    %2324 = vst [vmem:[#allocation8 + $0x8] sm:$0xff] %v2322
    // Predicated region
    $region73: #{gps_forward.5} parent=1 // pred_check
      _
    $region74: #{gps_forward.5} parent=1 // pred_check_branch
      %2326 = sbr.rel (0) target = $region76
    $region75: #{gps_forward.5} parent=1 // pred_region
      %s2328 = ssub.s32 256, 256
      %2329 = vsyncadd [#allocation9], %s2328
      %s2330 = sshll.u32 [#allocation8], 4
      %s2331 = int_to_ptr.vmem [resolvable:$true] %s2330
      %2336 = dma.vmem_to_hbm [thread:$0]  %s2331, 256, %s18, [#allocation9], 128, 128, 8
    $region76: #{gps_forward.5} parent=1 // pred_fallthru
      _
    // Predicated region
    $region77: #{gps_forward.5} parent=1 // pred_check
      _
    $region78: #{gps_forward.5} parent=1 // pred_check_branch
      %2338 = sbr.rel (0) target = $region80
    $region79: #{gps_forward.5} parent=1 // pred_region
      %2339 = dma.done [#allocation9], 256
    $region80: #{gps_forward.5} parent=1 // pred_fallthru
      _
    %2340 = vsyncpa [#allocation9], 1

</llo_original>
